<compile_context>
chip_gen: v7x
topology: tpu7x:2x2x1
jax: 0.10.0
libtpu: 0.0.40
codegen_flags: <defaults>
</compile_context>

<pallas_src>
import functools
import math

import jax
import jax.numpy as jnp
import numpy as np
from jax import lax
from jax.experimental import pallas as pl
from jax.experimental.pallas import tpu as pltpu

TP = 16


# ------------------------- fused attention-block kernel ------------------------- #
def _fused_attn_kernel(x_ref, wqkv_ref, bqkv_ref, wproj_ref, bproj_ref, o_ref, *,
                       num_heads, head_dim, masked_bias):
    """One batch element: x (S,E) f32 -> c_attn -> causal attention -> c_proj -> (S,E)."""
    S = x_ref.shape[0]
    split = num_heads * head_dim

    # --- FC_QKV: (S,E) @ (E, 3*split) + bias, bf16 operands, f32 accumulation. ---
    x = x_ref[...].astype(jnp.bfloat16)
    qkv = jnp.dot(x, wqkv_ref[...], preferred_element_type=jnp.float32) + bqkv_ref[...]
    qkv = qkv.astype(jnp.bfloat16)                       # (S, 3*split); Q already scaled

    # torch.tril causal bias buffer.
    row = lax.broadcasted_iota(jnp.int32, (S, S), 0)
    col = lax.broadcasted_iota(jnp.int32, (S, S), 1)
    causal = col <= row

    outs = []
    for h in range(num_heads):                           # static unroll (2 heads/shard)
        lo, hi = h * head_dim, (h + 1) * head_dim
        q = qkv[:, 0 * split + lo:0 * split + hi]        # (S, D) bf16, pre-scaled
        k = qkv[:, 1 * split + lo:1 * split + hi]
        v = qkv[:, 2 * split + lo:2 * split + hi]

        # Matmul_QK: contract last dims (no materialized k transpose) -> (S,S) f32.
        s = lax.dot_general(q, k, dimension_numbers=(((1,), (1,)), ((), ())),
                            preferred_element_type=jnp.float32)
        # WHERE_ON_QK (causal mask with masked_bias, matching torch.where).
        s = jnp.where(causal, s, jnp.float32(masked_bias))
        # SOFTMAX in f32, but normalize AFTER the PV matmul (cheaper: (S,D) not (S,S)).
        m = jnp.max(s, axis=-1, keepdims=True)
        e = jnp.exp(s - m)
        l = jnp.sum(e, axis=-1, keepdims=True)
        # Matmul_QKV on un-normalized weights, then scale rows by 1/l on the EUP.
        o = jnp.dot(e.astype(v.dtype), v, preferred_element_type=jnp.float32)   # (S, D)
        o = o * pl.reciprocal(l, approx=True)
        outs.append(o)

    # Concat_heads -> lane-dense (S, split=128) slab.
    attn = jnp.concatenate(outs, axis=-1).astype(jnp.bfloat16)

    # FC_proj: (S, split) @ (split, E) + bias -> (S, E), single lane-dense store.
    out = jnp.dot(attn, wproj_ref[...], preferred_element_type=jnp.float32) + bproj_ref[...]
    o_ref[...] = out.astype(o_ref.dtype)


def gpt2_attention_fused(hidden_states, wqkv, bqkv, wproj, bproj, *,
                         num_heads, head_dim, masked_bias=-10000.0):
    """hidden_states: (B,S,E) f32; wqkv: (E,3*split) bf16 (Q cols pre-scaled);
    bqkv: (1,3*split) f32; wproj: (split,E) bf16; bproj: (1,E) f32."""
    B, S, E = hidden_states.shape
    split = num_heads * head_dim
    assert wqkv.shape == (E, 3 * split) and wproj.shape == (split, E)
    assert split % 128 == 0, "per-shard hidden must be lane-dense (multiple of 128)"

    kernel = functools.partial(_fused_attn_kernel, num_heads=num_heads,
                               head_dim=head_dim, masked_bias=masked_bias)

    return pl.pallas_call(
        kernel,
        out_shape=jax.ShapeDtypeStruct((B, S, E), hidden_states.dtype),
        grid_spec=pltpu.PrefetchScalarGridSpec(
            num_scalar_prefetch=0,
            grid=(B,),
            in_specs=[
                # per-batch activation slab (leading dim squeezed -> kernel sees (S,E))
                pl.BlockSpec((None, S, E), lambda b: (b, 0, 0)),
                # resident weights/biases: constant block index -> DMA'd once per core
                pl.BlockSpec((E, 3 * split), lambda b: (0, 0)),
                pl.BlockSpec((1, 3 * split), lambda b: (0, 0)),
                pl.BlockSpec((split, E), lambda b: (0, 0)),
                pl.BlockSpec((1, E), lambda b: (0, 0)),
            ],
            out_specs=pl.BlockSpec((None, S, E), lambda b: (b, 0, 0)),
        ),
        compiler_params=pltpu.CompilerParams(
            dimension_semantics=("parallel",)),        # megacore: one batch per TC on v7x
    )(hidden_states, wqkv, bqkv, wproj, bproj)


# ------------------------------ module wrapper ----------------------------- #
class GPT2AttentionPallas:
    def __init__(self, hidden_size, num_attention_heads, key):
        self.embed_dim = hidden_size
        self.num_heads = num_attention_heads // TP          # heads per TP shard
        self.head_dim = hidden_size // TP // self.num_heads
        self.split_size = hidden_size // TP
        assert self.head_dim * self.num_heads * TP == hidden_size

        k1, k2 = jax.random.split(key)
        # Reference (PyTorch-layout) f32 parameters.
        # c_attn: Conv1D(3*E/TP, E)  -> weight (E, 3E/TP), bias (3E/TP,)
        self.c_attn_w = 0.02 * jax.random.normal(
            k1, (hidden_size, 3 * hidden_size // TP), jnp.float32)
        self.c_attn_b = jnp.zeros((3 * hidden_size // TP,), jnp.float32)
        # c_proj: Conv1D(E, E/TP)   -> weight (E/TP, E), bias (E,)
        self.c_proj_w = 0.02 * jax.random.normal(
            k2, (hidden_size // TP, hidden_size), jnp.float32)
        self.c_proj_b = jnp.zeros((hidden_size,), jnp.float32)

        # Kernel-ready cached params (computed once, not per call):
        #   * 1/sqrt(head_dim) folded into the Q columns in f32, then cast to bf16.
        #   * biases kept f32 and pre-reshaped to (1, N).
        scale = 1.0 / math.sqrt(float(self.head_dim))
        col_scale = jnp.concatenate([
            jnp.full((self.split_size,), scale, jnp.float32),
            jnp.ones((2 * self.split_size,), jnp.float32),
        ])
        self._wqkv = (self.c_attn_w * col_scale[None, :]).astype(jnp.bfloat16)
        self._bqkv = (self.c_attn_b * col_scale).reshape(1, -1).astype(jnp.float32)
        self._wproj = self.c_proj_w.astype(jnp.bfloat16)
        self._bproj = self.c_proj_b.reshape(1, -1).astype(jnp.float32)

    def __call__(self, hidden_states):
        out = gpt2_attention_fused(
            hidden_states, self._wqkv, self._bqkv, self._wproj, self._bproj,
            num_heads=self.num_heads, head_dim=self.head_dim)
        present = None  # use_cache=False
        return out, present


# ------------------------------ pure-JAX reference ------------------------- #
def reference(hidden_states, mod):
    """Full-f32 reference matching the PyTorch module semantics."""
    B, S, E = hidden_states.shape
    x = hidden_states.reshape(B * S, E) @ mod.c_attn_w + mod.c_attn_b
    x = x.reshape(B, S, 3 * mod.split_size)
    q, k, v = jnp.split(x, 3, axis=2)
    sh = lambda t: t.reshape(B, S, mod.num_heads, mod.head_dim).transpose(0, 2, 1, 3)
    q, k, v = sh(q), sh(k), sh(v)
    s = jnp.einsum("bhqd,bhkd->bhqk", q, k) / math.sqrt(mod.head_dim)
    causal = jnp.tril(jnp.ones((S, S), bool))[None, None]
    s = jnp.where(causal, s, jnp.float32(-10000.0))
    p = jax.nn.softmax(s, axis=-1)
    o = jnp.einsum("bhqk,bhkd->bhqd", p, v)
    o = o.transpose(0, 2, 1, 3).reshape(B * S, mod.split_size)
    o = o @ mod.c_proj_w + mod.c_proj_b
    return o.reshape(B, S, E)


if __name__ == "__main__":
    # config: hidden_size=2048, num_attention_heads=32  (per-shard: 2 heads x 64 dim)
    hidden_size = 2048
    num_attention_heads = 32
    B, S = 2, 128

    key = jax.random.PRNGKey(0)
    k_params, k_x = jax.random.split(key)
    mod = GPT2AttentionPallas(hidden_size, num_attention_heads, k_params)
    hidden_states = jax.random.normal(k_x, (B, S, hidden_size), jnp.float32)

    out, present = mod(hidden_states)
    out = jax.block_until_ready(out)

    ref = jax.block_until_ready(reference(hidden_states, mod))
    # bf16 matmul operands (f32 accumulation) + approx reciprocal vs. full-f32 reference:
    # tolerance 2e-2 (bf16 operand rounding ~0.4% relative).
    np.testing.assert_allclose(np.asarray(out), np.asarray(ref), rtol=2e-2, atol=2e-2)

    print("KERNEL_OK")
</pallas_src>

<mosaic_0001>
module attributes {stable_mosaic.version = 11 : i64} {
  func.func @_fused_attn_kernel(%arg0: i32, %arg1: memref<1x128x2048xf32, #tpu.memory_space<vmem>>, %arg2: memref<2048x384xbf16, #tpu.memory_space<vmem>>, %arg3: memref<1x384xf32, #tpu.memory_space<vmem>>, %arg4: memref<128x2048xbf16, #tpu.memory_space<vmem>>, %arg5: memref<1x2048xf32, #tpu.memory_space<vmem>>, %arg6: memref<1x128x2048xf32, #tpu.memory_space<vmem>>) attributes {dimension_semantics = [#tpu.dimension_semantics<parallel>], iteration_bounds = array<i64: 2>, scalar_prefetch = 0 : i64, scratch_operands = 0 : i64, tpu.core_type = #tpu.core_type<tc>, window_params = [{transform_indices = @transform_0, window_bounds = array<i64: 1, 128, 2048>}, {pipeline_mode = #tpu.pipeline_mode<synchronous>, transform_indices = @transform_1, window_bounds = array<i64: 2048, 384>}, {pipeline_mode = #tpu.pipeline_mode<synchronous>, transform_indices = @transform_2, window_bounds = array<i64: 1, 384>}, {pipeline_mode = #tpu.pipeline_mode<synchronous>, transform_indices = @transform_3, window_bounds = array<i64: 128, 2048>}, {pipeline_mode = #tpu.pipeline_mode<synchronous>, transform_indices = @transform_4, window_bounds = array<i64: 1, 2048>}, {transform_indices = @transform_5, window_bounds = array<i64: 1, 128, 2048>}]} {
    %c0 = arith.constant 0 : index
    %c0_0 = arith.constant 0 : index
    %c0_1 = arith.constant 0 : index
    %0 = vector.load %arg1[%c0, %c0_0, %c0_1] : memref<1x128x2048xf32, #tpu.memory_space<vmem>>, vector<1x128x2048xf32>
    %1 = vector.shape_cast %0 : vector<1x128x2048xf32> to vector<128x2048xf32>
    %2 = arith.truncf %1 : vector<128x2048xf32> to vector<128x2048xbf16>
    %c0_2 = arith.constant 0 : index
    %c0_3 = arith.constant 0 : index
    %3 = vector.load %arg2[%c0_2, %c0_3] : memref<2048x384xbf16, #tpu.memory_space<vmem>>, vector<2048x384xbf16>
    %cst = arith.constant dense<0.000000e+00> : vector<128x384xf32>
    %4 = tpu.matmul %2, %3, %cst {dimension_numbers = #tpu.dot_dimension_numbers<[1], [0], [0], [1], [0, 0, 1, 1], [], []>} : vector<128x2048xbf16>, vector<2048x384xbf16>, vector<128x384xf32> -> vector<128x384xf32>
    %c0_4 = arith.constant 0 : index
    %c0_5 = arith.constant 0 : index
    %5 = vector.load %arg3[%c0_4, %c0_5] : memref<1x384xf32, #tpu.memory_space<vmem>>, vector<1x384xf32>
    %6 = vector.broadcast %5 : vector<1x384xf32> to vector<128x384xf32>
    %7 = arith.addf %4, %6 : vector<128x384xf32>
    %8 = arith.truncf %7 : vector<128x384xf32> to vector<128x384xbf16>
    %9 = tpu.iota {dimensions = array<i32: 0>} : vector<128x128xi32>
    %10 = tpu.iota {dimensions = array<i32: 1>} : vector<128x128xi32>
    %11 = arith.cmpi sle, %10, %9 : vector<128x128xi32>
    %12 = vector.extract_strided_slice %8 {offsets = [0, 0], sizes = [128, 64], strides = [1, 1]} : vector<128x384xbf16> to vector<128x64xbf16>
    %13 = vector.extract_strided_slice %8 {offsets = [0, 128], sizes = [128, 64], strides = [1, 1]} : vector<128x384xbf16> to vector<128x64xbf16>
    %14 = vector.extract_strided_slice %8 {offsets = [0, 256], sizes = [128, 64], strides = [1, 1]} : vector<128x384xbf16> to vector<128x64xbf16>
    %cst_6 = arith.constant dense<0.000000e+00> : vector<128x128xf32>
    %15 = tpu.matmul %12, %13, %cst_6 {dimension_numbers = #tpu.dot_dimension_numbers<[1], [1], [0], [0], [0, 0, 1, 0], [], []>} : vector<128x64xbf16>, vector<128x64xbf16>, vector<128x128xf32> -> vector<128x128xf32>
    %cst_7 = arith.constant -1.000000e+04 : f32
    %16 = vector.broadcast %cst_7 : f32 to vector<128x128xf32>
    %17 = arith.select %11, %15, %16 : vector<128x128xi1>, vector<128x128xf32>
    %cst_8 = arith.constant dense<0xFF800000> : vector<128xf32>
    %18 = vector.multi_reduction <maximumf>, %17, %cst_8 [1] : vector<128x128xf32> to vector<128xf32>
    %19 = vector.shape_cast %18 : vector<128xf32> to vector<128x1xf32>
    %20 = vector.broadcast %19 : vector<128x1xf32> to vector<128x128xf32>
    %21 = arith.subf %17, %20 : vector<128x128xf32>
    %22 = math.exp %21 : vector<128x128xf32>
    %cst_9 = arith.constant dense<0.000000e+00> : vector<128xf32>
    %23 = vector.multi_reduction <add>, %22, %cst_9 [1] : vector<128x128xf32> to vector<128xf32>
    %24 = vector.shape_cast %23 : vector<128xf32> to vector<128x1xf32>
    %25 = arith.truncf %22 : vector<128x128xf32> to vector<128x128xbf16>
    %cst_10 = arith.constant dense<0.000000e+00> : vector<128x64xf32>
    %26 = tpu.matmul %25, %14, %cst_10 {dimension_numbers = #tpu.dot_dimension_numbers<[1], [0], [0], [1], [0, 0, 1, 1], [], []>} : vector<128x128xbf16>, vector<128x64xbf16>, vector<128x64xf32> -> vector<128x64xf32>
    %27 = tpu.reciprocal %24 {approx = true} : vector<128x1xf32> -> vector<128x1xf32>
    %28 = vector.broadcast %27 : vector<128x1xf32> to vector<128x64xf32>
    %29 = arith.mulf %26, %28 : vector<128x64xf32>
    %30 = vector.extract_strided_slice %8 {offsets = [0, 64], sizes = [128, 64], strides = [1, 1]} : vector<128x384xbf16> to vector<128x64xbf16>
    %31 = vector.extract_strided_slice %8 {offsets = [0, 192], sizes = [128, 64], strides = [1, 1]} : vector<128x384xbf16> to vector<128x64xbf16>
    %32 = vector.extract_strided_slice %8 {offsets = [0, 320], sizes = [128, 64], strides = [1, 1]} : vector<128x384xbf16> to vector<128x64xbf16>
    %cst_11 = arith.constant dense<0.000000e+00> : vector<128x128xf32>
    %33 = tpu.matmul %30, %31, %cst_11 {dimension_numbers = #tpu.dot_dimension_numbers<[1], [1], [0], [0], [0, 0, 1, 0], [], []>} : vector<128x64xbf16>, vector<128x64xbf16>, vector<128x128xf32> -> vector<128x128xf32>
    %cst_12 = arith.constant -1.000000e+04 : f32
    %34 = vector.broadcast %cst_12 : f32 to vector<128x128xf32>
    %35 = arith.select %11, %33, %34 : vector<128x128xi1>, vector<128x128xf32>
    %cst_13 = arith.constant dense<0xFF800000> : vector<128xf32>
    %36 = vector.multi_reduction <maximumf>, %35, %cst_13 [1] : vector<128x128xf32> to vector<128xf32>
    %37 = vector.shape_cast %36 : vector<128xf32> to vector<128x1xf32>
    %38 = vector.broadcast %37 : vector<128x1xf32> to vector<128x128xf32>
    %39 = arith.subf %35, %38 : vector<128x128xf32>
    %40 = math.exp %39 : vector<128x128xf32>
    %cst_14 = arith.constant dense<0.000000e+00> : vector<128xf32>
    %41 = vector.multi_reduction <add>, %40, %cst_14 [1] : vector<128x128xf32> to vector<128xf32>
    %42 = vector.shape_cast %41 : vector<128xf32> to vector<128x1xf32>
    %43 = arith.truncf %40 : vector<128x128xf32> to vector<128x128xbf16>
    %cst_15 = arith.constant dense<0.000000e+00> : vector<128x64xf32>
    %44 = tpu.matmul %43, %32, %cst_15 {dimension_numbers = #tpu.dot_dimension_numbers<[1], [0], [0], [1], [0, 0, 1, 1], [], []>} : vector<128x128xbf16>, vector<128x64xbf16>, vector<128x64xf32> -> vector<128x64xf32>
    %45 = tpu.reciprocal %42 {approx = true} : vector<128x1xf32> -> vector<128x1xf32>
    %46 = vector.broadcast %45 : vector<128x1xf32> to vector<128x64xf32>
    %47 = arith.mulf %44, %46 : vector<128x64xf32>
    %48 = tpu.concatenate %29, %47 in 1 : vector<128x64xf32>, vector<128x64xf32> -> vector<128x128xf32>
    %49 = arith.truncf %48 : vector<128x128xf32> to vector<128x128xbf16>
    %c0_16 = arith.constant 0 : index
    %c0_17 = arith.constant 0 : index
    %50 = vector.load %arg4[%c0_16, %c0_17] : memref<128x2048xbf16, #tpu.memory_space<vmem>>, vector<128x2048xbf16>
    %cst_18 = arith.constant dense<0.000000e+00> : vector<128x2048xf32>
    %51 = tpu.matmul %49, %50, %cst_18 {dimension_numbers = #tpu.dot_dimension_numbers<[1], [0], [0], [1], [0, 0, 1, 1], [], []>} : vector<128x128xbf16>, vector<128x2048xbf16>, vector<128x2048xf32> -> vector<128x2048xf32>
    %c0_19 = arith.constant 0 : index
    %c0_20 = arith.constant 0 : index
    %52 = vector.load %arg5[%c0_19, %c0_20] : memref<1x2048xf32, #tpu.memory_space<vmem>>, vector<1x2048xf32>
    %53 = vector.broadcast %52 : vector<1x2048xf32> to vector<128x2048xf32>
    %54 = arith.addf %51, %53 : vector<128x2048xf32>
    %c0_21 = arith.constant 0 : index
    %c0_22 = arith.constant 0 : index
    %c0_23 = arith.constant 0 : index
    %55 = vector.load %arg6[%c0_21, %c0_22, %c0_23] : memref<1x128x2048xf32, #tpu.memory_space<vmem>>, vector<1x128x2048xf32>
    %56 = vector.shape_cast %55 : vector<1x128x2048xf32> to vector<128x2048xf32>
    %57 = vector.shape_cast %54 : vector<128x2048xf32> to vector<1x128x2048xf32>
    tpu.vector_store %arg6[%c0_21, %c0_22, %c0_23], %57 {strides = array<i32>} : memref<1x128x2048xf32, #tpu.memory_space<vmem>>, vector<1x128x2048xf32>,
    return
  }
  func.func @transform_0(%arg0: i32) -> (i32, i32, i32) {
    %c0_i32 = arith.constant 0 : i32
    %c0_i32_0 = arith.constant 0 : i32
    %c0_i32_1 = arith.constant 0 : i32
    return %arg0, %c0_i32, %c0_i32_0 : i32, i32, i32
  }
  func.func @transform_1(%arg0: i32) -> (i32, i32) {
    %c0_i32 = arith.constant 0 : i32
    %c0_i32_0 = arith.constant 0 : i32
    %c0_i32_1 = arith.constant 0 : i32
    return %c0_i32, %c0_i32_0 : i32, i32
  }
  func.func @transform_2(%arg0: i32) -> (i32, i32) {
    %c0_i32 = arith.constant 0 : i32
    %c0_i32_0 = arith.constant 0 : i32
    %c0_i32_1 = arith.constant 0 : i32
    return %c0_i32, %c0_i32_0 : i32, i32
  }
  func.func @transform_3(%arg0: i32) -> (i32, i32) {
    %c0_i32 = arith.constant 0 : i32
    %c0_i32_0 = arith.constant 0 : i32
    %c0_i32_1 = arith.constant 0 : i32
    return %c0_i32, %c0_i32_0 : i32, i32
  }
  func.func @transform_4(%arg0: i32) -> (i32, i32) {
    %c0_i32 = arith.constant 0 : i32
    %c0_i32_0 = arith.constant 0 : i32
    %c0_i32_1 = arith.constant 0 : i32
    return %c0_i32, %c0_i32_0 : i32, i32
  }
  func.func @transform_5(%arg0: i32) -> (i32, i32, i32) {
    %c0_i32 = arith.constant 0 : i32
    %c0_i32_0 = arith.constant 0 : i32
    %c0_i32_1 = arith.constant 0 : i32
    return %arg0, %c0_i32, %c0_i32_0 : i32, i32, i32
  }
}

</mosaic_0001>

<llo_original>
// kernel: tpu_custom_call.1
$region0: #{tpu_custom_call.1}
  #allocation0 [shape = 'u32[]', space=smem, size = 0x4, offset = 0x4, fixed_abs, tag = 'smem constant byte address 0x4 - core index']
  #allocation1 [shape = 'u32[144,128]{1,0:T(1,128)}', space=vmem, size = 0x12000, scoped, tag = 'internal scratch']
  %s0 = inlined_call_operand.hbm [shape: f32[2,128,2048], index: 0, kind: input, shape index: {}]
  %s1 = inlined_call_operand.hbm [shape: bf16[2048,384], index: 1, kind: input, shape index: {}]
  %s2 = inlined_call_operand.hbm [shape: f32[1,384], index: 2, kind: input, shape index: {}]
  %s3 = inlined_call_operand.hbm [shape: bf16[128,2048], index: 3, kind: input, shape index: {}]
  %s4 = inlined_call_operand.hbm [shape: f32[1,2048], index: 4, kind: input, shape index: {}]
  %s5 = inlined_call_operand.hbm [shape: f32[2,128,2048], index: 5, kind: output, shape index: {}]
  %s6 = sld [smem:[#allocation0]]
  $region73: #{tpu_custom_call.1} parent=0
    _
  %s8 = ssub.s32 1, %s6
  %s9 = scalar_select 0, %s8, %s6
  $region1: #{tpu_custom_call.1} parent=0
    #allocation2 [shape = 'u8[2097152]{0}', space=vmem, size = 0x200000, scoped, tag = 'input window, operand 0']
    #allocation3 [shape = 's32[2]{0}', space=sflag, size = 0x8, scoped, tag = 'scoped memory for tpu_custom_call.1']
    #allocation4 [shape = 's32[2]{0}', space=sflag, size = 0x8, scoped, tag = 'scoped memory for tpu_custom_call.1']
    #allocation5 [shape = 'u8[1572864]{0}', space=vmem, size = 0x180000, scoped, tag = 'input window, operand 1, single buffered']
    #allocation6 [shape = 's32[1]{0}', space=sflag, size = 0x4, scoped, tag = 'scoped memory for tpu_custom_call.1']
    #allocation7 [shape = 'u8[1536]{0}', space=vmem, size = 0x800, scoped, tag = 'input window, operand 2, single buffered']
    #allocation8 [shape = 'u8[524288]{0}', space=vmem, size = 0x80000, scoped, tag = 'input window, operand 3, single buffered']
    #allocation9 [shape = 's32[1]{0}', space=sflag, size = 0x4, scoped, tag = 'scoped memory for tpu_custom_call.1']
    #allocation10 [shape = 'u8[8192]{0}', space=vmem, size = 0x2000, scoped, tag = 'input window, operand 4, single buffered']
    #allocation11 [shape = 'u8[2097152]{0}', space=vmem, size = 0x200000, scoped, tag = 'output window, operand 0']
    %10 = vsyncpa [#allocation3], 0
    %s11 = scalar_lea.sflag [#allocation3], 1
    %12 = vsyncpa %s11, 0
    %13 = vsyncpa [#allocation6], 0
    %14 = vsyncpa [#allocation9], 0
    %15 = vsyncpa [#allocation4], 0
    %s16 = scalar_lea.sflag [#allocation4], 1
    %17 = vsyncpa %s16, 0
    loop: start=0, step=1, limit=4
    $region2: #{tpu_custom_call.1} parent=1 // loop_pre_header
      _
    $region3: #{tpu_custom_call.1} parent=1 // loop_header
      %s19 = sphi 0, %s23
      %p20 = scmp.ge.s32.totalorder %s19, 4
      %s29 = sphi 0, %s31
      %s32 = sphi 0, %s29
      %s33 = sphi 0, %s32
      %s49 = sphi 0, %s33
      %s53 = sphi 0, %s53
      %s55 = sphi 0, %s53
      %s56 = sphi 0, %s55
      %s70 = sphi 0, %s56
      %s74 = sphi 0, %s74
      %s76 = sphi 0, %s74
      %s77 = sphi 0, %s76
      %s91 = sphi 0, %s77
      %s95 = sphi 0, %s95
      %s97 = sphi 0, %s95
      %s98 = sphi 0, %s97
      %s112 = sphi 0, %s98
      %s116 = sphi 0, %s116
      %s118 = sphi 0, %s116
      %s119 = sphi 0, %s118
      %s133 = sphi 0, %s119
      %s139 = sphi 0, %s141
      %s142 = sphi 0, %s139
      %s143 = sphi 0, %s142
      %s159 = sphi 0, %s143
    $region4: #{tpu_custom_call.1} parent=1 // loop_header_branch
      %22 = sbr.rel (%p20) target = $region8
    $region5: #{tpu_custom_call.1} parent=1 // loop_body
      %s24 = ssub.s32 %s19, 1
      %s25 = ssub.s32 %s19, 2
      %s26 = sadd.s32 %s19, 1
      %s27 = ssub.s32 %s19, %s26
      %p28 = scmp.eq.s32.totalorder %s27, 0
      %s30 = sadd.s32 %s29, 1
      %s31 = scalar_select %p28, %s29, %s30
      %p34 = pneg %p28
      %p35 = scmp.eq.s32.totalorder %s19, 1
      %p36 = por %p34, %p35
      %p37 = scmp.ne.s32.totalorder %s29, %s32
      %p38 = scmp.eq.s32.totalorder %s19, 0
      %p39 = por %p37, %p38
      %p40 = scmp.ne.s32.totalorder %s29, %s32
      %p41 = scmp.eq.s32.totalorder %s24, 1
      %p42 = por %p40, %p41
      %p43 = scmp.ne.s32.totalorder %s32, %s33
      %p44 = scmp.eq.s32.totalorder %s24, 0
      %p45 = por %p43, %p44
      %p46 = scmp.ne.s32.totalorder %s32, %s33
      %p47 = scmp.eq.s32.totalorder %s25, 1
      %p48 = por %p46, %p47
      %p50 = scmp.ne.s32.totalorder %s33, %s49
      %p51 = scmp.eq.s32.totalorder %s25, 0
      %p52 = por %p50, %p51
      %s54 = sadd.s32 %s53, 1
      %p57 = scmp.eq.s32.totalorder %s19, 1
      %p58 = scmp.ne.s32.totalorder %s53, %s55
      %p59 = scmp.eq.s32.totalorder %s19, 0
      %p60 = por %p58, %p59
      %p61 = scmp.ne.s32.totalorder %s53, %s55
      %p62 = scmp.eq.s32.totalorder %s24, 1
      %p63 = por %p61, %p62
      %p64 = scmp.ne.s32.totalorder %s55, %s56
      %p65 = scmp.eq.s32.totalorder %s24, 0
      %p66 = por %p64, %p65
      %p67 = scmp.ne.s32.totalorder %s55, %s56
      %p68 = scmp.eq.s32.totalorder %s25, 1
      %p69 = por %p67, %p68
      %p71 = scmp.ne.s32.totalorder %s56, %s70
      %p72 = scmp.eq.s32.totalorder %s25, 0
      %p73 = por %p71, %p72
      %s75 = sadd.s32 %s74, 1
      %p78 = scmp.eq.s32.totalorder %s19, 1
      %p79 = scmp.ne.s32.totalorder %s74, %s76
      %p80 = scmp.eq.s32.totalorder %s19, 0
      %p81 = por %p79, %p80
      %p82 = scmp.ne.s32.totalorder %s74, %s76
      %p83 = scmp.eq.s32.totalorder %s24, 1
      %p84 = por %p82, %p83
      %p85 = scmp.ne.s32.totalorder %s76, %s77
      %p86 = scmp.eq.s32.totalorder %s24, 0
      %p87 = por %p85, %p86
      %p88 = scmp.ne.s32.totalorder %s76, %s77
      %p89 = scmp.eq.s32.totalorder %s25, 1
      %p90 = por %p88, %p89
      %p92 = scmp.ne.s32.totalorder %s77, %s91
      %p93 = scmp.eq.s32.totalorder %s25, 0
      %p94 = por %p92, %p93
      %s96 = sadd.s32 %s95, 1
      %p99 = scmp.eq.s32.totalorder %s19, 1
      %p100 = scmp.ne.s32.totalorder %s95, %s97
      %p101 = scmp.eq.s32.totalorder %s19, 0
      %p102 = por %p100, %p101
      %p103 = scmp.ne.s32.totalorder %s95, %s97
      %p104 = scmp.eq.s32.totalorder %s24, 1
      %p105 = por %p103, %p104
      %p106 = scmp.ne.s32.totalorder %s97, %s98
      %p107 = scmp.eq.s32.totalorder %s24, 0
      %p108 = por %p106, %p107
      %p109 = scmp.ne.s32.totalorder %s97, %s98
      %p110 = scmp.eq.s32.totalorder %s25, 1
      %p111 = por %p109, %p110
      %p113 = scmp.ne.s32.totalorder %s98, %s112
      %p114 = scmp.eq.s32.totalorder %s25, 0
      %p115 = por %p113, %p114
      %s117 = sadd.s32 %s116, 1
      %p120 = scmp.eq.s32.totalorder %s19, 1
      %p121 = scmp.ne.s32.totalorder %s116, %s118
      %p122 = scmp.eq.s32.totalorder %s19, 0
      %p123 = por %p121, %p122
      %p124 = scmp.ne.s32.totalorder %s116, %s118
      %p125 = scmp.eq.s32.totalorder %s24, 1
      %p126 = por %p124, %p125
      %p127 = scmp.ne.s32.totalorder %s118, %s119
      %p128 = scmp.eq.s32.totalorder %s24, 0
      %p129 = por %p127, %p128
      %p130 = scmp.ne.s32.totalorder %s118, %s119
      %p131 = scmp.eq.s32.totalorder %s25, 1
      %p132 = por %p130, %p131
      %p134 = scmp.ne.s32.totalorder %s119, %s133
      %p135 = scmp.eq.s32.totalorder %s25, 0
      %p136 = por %p134, %p135
      %s137 = ssub.s32 %s19, %s26
      %p138 = scmp.eq.s32.totalorder %s137, 0
      %s140 = sadd.s32 %s139, 1
      %s141 = scalar_select %p138, %s139, %s140
      %p144 = pneg %p138
      %p145 = scmp.eq.s32.totalorder %s19, 1
      %p146 = por %p144, %p145
      %p147 = scmp.ne.s32.totalorder %s139, %s142
      %p148 = scmp.eq.s32.totalorder %s19, 0
      %p149 = por %p147, %p148
      %p150 = scmp.ne.s32.totalorder %s139, %s142
      %p151 = scmp.eq.s32.totalorder %s24, 1
      %p152 = por %p150, %p151
      %p153 = scmp.ne.s32.totalorder %s142, %s143
      %p154 = scmp.eq.s32.totalorder %s24, 0
      %p155 = por %p153, %p154
      %p156 = scmp.ne.s32.totalorder %s142, %s143
      %p157 = scmp.eq.s32.totalorder %s25, 1
      %p158 = por %p156, %p157
      %p160 = scmp.ne.s32.totalorder %s143, %s159
      %p161 = scmp.eq.s32.totalorder %s25, 0
      %p162 = por %p160, %p161
      %p163 = scmp.le.s32.totalorder 1, %s19
      %p164 = scmp.lt.s32.totalorder %s19, 3
      %p165 = pnand %p163, %p164
      %p166 = pneg %p165
      // Predicated region
      $region9: #{tpu_custom_call.1} parent=5 // pred_check
        _
      $region10: #{tpu_custom_call.1} parent=5 // pred_check_branch
        %168 = sbr.rel (%p165) target = $region12
      $region11: #{tpu_custom_call.1} parent=5 // pred_region
        %s169 = ssub.s32 %s19, 1
        // Predicated region
        $region13: #{tpu_custom_call.1} parent=11 // pred_check
          %p170 = pneg %p66
        $region14: #{tpu_custom_call.1} parent=11 // pred_check_branch
          %172 = sbr.rel (%p170) target = $region16
        $region15: #{tpu_custom_call.1} parent=11 // pred_region
          %s174 = ssub.s32 49152, 49152
          %175 = vsyncadd [#allocation6], %s174
          %s176 = sshll.u32 [#allocation5], 4
          %s177 = int_to_ptr.vmem [resolvable:$true] %s176
          %182 = dma.hbm_to_vmem [thread:$0]  %s1, 49152, %s177, [#allocation6], 192, 192, 12
        $region16: #{tpu_custom_call.1} parent=11 // pred_fallthru
          _
        // Predicated region
        $region17: #{tpu_custom_call.1} parent=11 // pred_check
          %p183 = pneg %p87
        $region18: #{tpu_custom_call.1} parent=11 // pred_check_branch
          %185 = sbr.rel (%p183) target = $region20
        $region19: #{tpu_custom_call.1} parent=11 // pred_region
          %s187 = ssub.s32 48, 48
          %188 = vsyncadd [#allocation6], %s187
          %s190 = sshll.u32 [#allocation7], 4
          %s191 = int_to_ptr.vmem [resolvable:$true] %s190
          %193 = dma.hbm_to_vmem [thread:$0]  %s2, 48, %s191, [#allocation6]
        $region20: #{tpu_custom_call.1} parent=11 // pred_fallthru
          _
        // Predicated region
        $region21: #{tpu_custom_call.1} parent=11 // pred_check
          %p194 = pneg %p108
        $region22: #{tpu_custom_call.1} parent=11 // pred_check_branch
          %196 = sbr.rel (%p194) target = $region24
        $region23: #{tpu_custom_call.1} parent=11 // pred_region
          %s198 = ssub.s32 16384, 16384
          %199 = vsyncadd [#allocation9], %s198
          %s200 = sshll.u32 [#allocation8], 4
          %s201 = int_to_ptr.vmem [resolvable:$true] %s200
          %206 = dma.hbm_to_vmem [thread:$0]  %s3, 16384, %s201, [#allocation9], 1024, 1024, 64
        $region24: #{tpu_custom_call.1} parent=11 // pred_fallthru
          _
        // Predicated region
        $region25: #{tpu_custom_call.1} parent=11 // pred_check
          %p207 = pneg %p129
        $region26: #{tpu_custom_call.1} parent=11 // pred_check_branch
          %209 = sbr.rel (%p207) target = $region28
        $region27: #{tpu_custom_call.1} parent=11 // pred_region
          %s211 = ssub.s32 256, 256
          %212 = vsyncadd [#allocation9], %s211
          %s214 = sshll.u32 [#allocation10], 4
          %s215 = int_to_ptr.vmem [resolvable:$true] %s214
          %217 = dma.hbm_to_vmem [thread:$0]  %s4, 256, %s215, [#allocation9]
        $region28: #{tpu_custom_call.1} parent=11 // pred_fallthru
          _
      $region12: #{tpu_custom_call.1} parent=5 // pred_fallthru
        _
      %p218 = scmp.lt.s32.totalorder %s19, 2
      // Predicated region
      $region29: #{tpu_custom_call.1} parent=5 // pred_check
        %p219 = pneg %p218
      $region30: #{tpu_custom_call.1} parent=5 // pred_check_branch
        %221 = sbr.rel (%p219) target = $region32
      $region31: #{tpu_custom_call.1} parent=5 // pred_region
        // Predicated region
        $region33: #{tpu_custom_call.1} parent=31 // pred_check
          %p222 = pneg %p39
        $region34: #{tpu_custom_call.1} parent=31 // pred_check_branch
          %224 = sbr.rel (%p222) target = $region36
        $region35: #{tpu_custom_call.1} parent=31 // pred_region
          %s225 = sand.u32 %s29, 1
          %s226 = scalar_lea.sflag [#allocation3], %s225
          %s227 = sand.u32 %s29, 1
          %s228 = smul.addr %s227, 2048
          %s229 = scalar_lea.vmem [#allocation2], %s228
          %s231 = ssub.s32 32768, 32768
          %232 = vsyncadd %s226, %s231
          %s233 = smul.addr %s19, 256
          %s234 = smul.addr %s233, 128
          %s235 = scalar_lea.hbm %s0, %s234
          %s236 = sshll.u32 %s229, 4
          %s237 = int_to_ptr.vmem [resolvable:$true] %s236
          %242 = dma.hbm_to_vmem [thread:$0]  %s235, 32768, %s237, %s226, 2048, 2048, 128
        $region36: #{tpu_custom_call.1} parent=31 // pred_fallthru
          _
      $region32: #{tpu_custom_call.1} parent=5 // pred_fallthru
        _
      %p243 = scmp.le.s32.totalorder 1, %s19
      %p244 = scmp.lt.s32.totalorder %s19, 3
      %p245 = pnand %p243, %p244
      %p246 = pneg %p245
      // Predicated region
      $region37: #{tpu_custom_call.1} parent=5 // pred_check
        _
      $region38: #{tpu_custom_call.1} parent=5 // pred_check_branch
        %248 = sbr.rel (%p245) target = $region40
      $region39: #{tpu_custom_call.1} parent=5 // pred_region
        %s249 = ssub.s32 %s19, 1
        %s250 = sand.u32 %s32, 1
        %s251 = scalar_lea.sflag [#allocation3], %s250
        %s252 = sand.u32 %s32, 1
        %s253 = smul.addr %s252, 2048
        %s254 = scalar_lea.vmem [#allocation2], %s253
        // Predicated region
        $region41: #{tpu_custom_call.1} parent=39 // pred_check
          %p255 = pneg %p45
        $region42: #{tpu_custom_call.1} parent=39 // pred_check_branch
          %257 = sbr.rel (%p255) target = $region44
        $region43: #{tpu_custom_call.1} parent=39 // pred_region
          %258 = dma.done %s251, 32768
        $region44: #{tpu_custom_call.1} parent=39 // pred_fallthru
          _
        // Predicated region
        $region45: #{tpu_custom_call.1} parent=39 // pred_check
          %p259 = pneg %p66
        $region46: #{tpu_custom_call.1} parent=39 // pred_check_branch
          %261 = sbr.rel (%p259) target = $region48
        $region47: #{tpu_custom_call.1} parent=39 // pred_region
          %262 = dma.done [#allocation6], 49152
        $region48: #{tpu_custom_call.1} parent=39 // pred_fallthru
          _
        // Predicated region
        $region49: #{tpu_custom_call.1} parent=39 // pred_check
          %p263 = pneg %p87
        $region50: #{tpu_custom_call.1} parent=39 // pred_check_branch
          %265 = sbr.rel (%p263) target = $region52
        $region51: #{tpu_custom_call.1} parent=39 // pred_region
          %266 = dma.done [#allocation6], 48
        $region52: #{tpu_custom_call.1} parent=39 // pred_fallthru
          _
        // Predicated region
        $region53: #{tpu_custom_call.1} parent=39 // pred_check
          %p267 = pneg %p108
        $region54: #{tpu_custom_call.1} parent=39 // pred_check_branch
          %269 = sbr.rel (%p267) target = $region56
        $region55: #{tpu_custom_call.1} parent=39 // pred_region
          %270 = dma.done [#allocation9], 16384
        $region56: #{tpu_custom_call.1} parent=39 // pred_fallthru
          _
        // Predicated region
        $region57: #{tpu_custom_call.1} parent=39 // pred_check
          %p271 = pneg %p129
        $region58: #{tpu_custom_call.1} parent=39 // pred_check_branch
          %273 = sbr.rel (%p271) target = $region60
        $region59: #{tpu_custom_call.1} parent=39 // pred_region
          %274 = dma.done [#allocation9], 256
        $region60: #{tpu_custom_call.1} parent=39 // pred_fallthru
          _
        %s275 = sand.u32 %s32, 1
        %s276 = scalar_lea.sflag [#allocation3], %s275
        %s277 = sand.u32 %s32, 1
        %s278 = smul.addr %s277, 2048
        %s279 = scalar_lea.vmem [#allocation2], %s278
        %p280 = pneg %p45
        %p281 = pneg %p42
        %p282 = pneg %p66
        %p283 = pneg %p63
        %p284 = pneg %p87
        %p285 = pneg %p84
        %p286 = pneg %p108
        %p287 = pneg %p105
        %p288 = pneg %p129
        %p289 = pneg %p126
        %p290 = pneg %p155
        %p291 = pneg %p152
        %s292 = sand.u32 %s142, 1
        %s293 = scalar_lea.sflag [#allocation4], %s292
        %s294 = sand.u32 %s142, 1
        %s295 = smul.addr %s294, 2048
        %s296 = scalar_lea.vmem [#allocation11], %s295
        %v298 = vld [vmem:[%s254] sm:$0xff]
        %v299 = vld [vmem:[%s254 + $0x8] sm:$0xff]
        %v300 = vld [vmem:[%s254 + $0x10] sm:$0xff]
        %v301 = vld [vmem:[%s254 + $0x18] sm:$0xff]
        %v302 = vld [vmem:[%s254 + $0x20] sm:$0xff]
        %v303 = vld [vmem:[%s254 + $0x28] sm:$0xff]
        %v304 = vld [vmem:[%s254 + $0x30] sm:$0xff]
        %v305 = vld [vmem:[%s254 + $0x38] sm:$0xff]
        %v306 = vld [vmem:[%s254 + $0x40] sm:$0xff]
        %v307 = vld [vmem:[%s254 + $0x48] sm:$0xff]
        %v308 = vld [vmem:[%s254 + $0x50] sm:$0xff]
        %v309 = vld [vmem:[%s254 + $0x58] sm:$0xff]
        %v310 = vld [vmem:[%s254 + $0x60] sm:$0xff]
        %v311 = vld [vmem:[%s254 + $0x68] sm:$0xff]
        %v312 = vld [vmem:[%s254 + $0x70] sm:$0xff]
        %v313 = vld [vmem:[%s254 + $0x78] sm:$0xff]
        %v314 = vld [vmem:[%s254 + $0x80] sm:$0xff]
        %v315 = vld [vmem:[%s254 + $0x88] sm:$0xff]
        %v316 = vld [vmem:[%s254 + $0x90] sm:$0xff]
        %v317 = vld [vmem:[%s254 + $0x98] sm:$0xff]
        %v318 = vld [vmem:[%s254 + $0xa0] sm:$0xff]
        %v319 = vld [vmem:[%s254 + $0xa8] sm:$0xff]
        %v320 = vld [vmem:[%s254 + $0xb0] sm:$0xff]
        %v321 = vld [vmem:[%s254 + $0xb8] sm:$0xff]
        %v322 = vld [vmem:[%s254 + $0xc0] sm:$0xff]
        %v323 = vld [vmem:[%s254 + $0xc8] sm:$0xff]
        %v324 = vld [vmem:[%s254 + $0xd0] sm:$0xff]
        %v325 = vld [vmem:[%s254 + $0xd8] sm:$0xff]
        %v326 = vld [vmem:[%s254 + $0xe0] sm:$0xff]
        %v327 = vld [vmem:[%s254 + $0xe8] sm:$0xff]
        %v328 = vld [vmem:[%s254 + $0xf0] sm:$0xff]
        %v329 = vld [vmem:[%s254 + $0xf8] sm:$0xff]
        %v330 = vld [vmem:[%s254 + $0x100] sm:$0xff]
        %v331 = vld [vmem:[%s254 + $0x108] sm:$0xff]
        %v332 = vld [vmem:[%s254 + $0x110] sm:$0xff]
        %v333 = vld [vmem:[%s254 + $0x118] sm:$0xff]
        %v334 = vld [vmem:[%s254 + $0x120] sm:$0xff]
        %v335 = vld [vmem:[%s254 + $0x128] sm:$0xff]
        %v336 = vld [vmem:[%s254 + $0x130] sm:$0xff]
        %v337 = vld [vmem:[%s254 + $0x138] sm:$0xff]
        %v338 = vld [vmem:[%s254 + $0x140] sm:$0xff]
        %v339 = vld [vmem:[%s254 + $0x148] sm:$0xff]
        %v340 = vld [vmem:[%s254 + $0x150] sm:$0xff]
        %v341 = vld [vmem:[%s254 + $0x158] sm:$0xff]
        %v342 = vld [vmem:[%s254 + $0x160] sm:$0xff]
        %v343 = vld [vmem:[%s254 + $0x168] sm:$0xff]
        %v344 = vld [vmem:[%s254 + $0x170] sm:$0xff]
        %v345 = vld [vmem:[%s254 + $0x178] sm:$0xff]
        %v346 = vld [vmem:[%s254 + $0x180] sm:$0xff]
        %v347 = vld [vmem:[%s254 + $0x188] sm:$0xff]
        %v348 = vld [vmem:[%s254 + $0x190] sm:$0xff]
        %v349 = vld [vmem:[%s254 + $0x198] sm:$0xff]
        %v350 = vld [vmem:[%s254 + $0x1a0] sm:$0xff]
        %v351 = vld [vmem:[%s254 + $0x1a8] sm:$0xff]
        %v352 = vld [vmem:[%s254 + $0x1b0] sm:$0xff]
        %v353 = vld [vmem:[%s254 + $0x1b8] sm:$0xff]
        %v354 = vld [vmem:[%s254 + $0x1c0] sm:$0xff]
        %v355 = vld [vmem:[%s254 + $0x1c8] sm:$0xff]
        %v356 = vld [vmem:[%s254 + $0x1d0] sm:$0xff]
        %v357 = vld [vmem:[%s254 + $0x1d8] sm:$0xff]
        %v358 = vld [vmem:[%s254 + $0x1e0] sm:$0xff]
        %v359 = vld [vmem:[%s254 + $0x1e8] sm:$0xff]
        %v360 = vld [vmem:[%s254 + $0x1f0] sm:$0xff]
        %v361 = vld [vmem:[%s254 + $0x1f8] sm:$0xff]
        %v362 = vld [vmem:[%s254 + $0x200] sm:$0xff]
        %v363 = vld [vmem:[%s254 + $0x208] sm:$0xff]
        %v364 = vld [vmem:[%s254 + $0x210] sm:$0xff]
        %v365 = vld [vmem:[%s254 + $0x218] sm:$0xff]
        %v366 = vld [vmem:[%s254 + $0x220] sm:$0xff]
        %v367 = vld [vmem:[%s254 + $0x228] sm:$0xff]
        %v368 = vld [vmem:[%s254 + $0x230] sm:$0xff]
        %v369 = vld [vmem:[%s254 + $0x238] sm:$0xff]
        %v370 = vld [vmem:[%s254 + $0x240] sm:$0xff]
        %v371 = vld [vmem:[%s254 + $0x248] sm:$0xff]
        %v372 = vld [vmem:[%s254 + $0x250] sm:$0xff]
        %v373 = vld [vmem:[%s254 + $0x258] sm:$0xff]
        %v374 = vld [vmem:[%s254 + $0x260] sm:$0xff]
        %v375 = vld [vmem:[%s254 + $0x268] sm:$0xff]
        %v376 = vld [vmem:[%s254 + $0x270] sm:$0xff]
        %v377 = vld [vmem:[%s254 + $0x278] sm:$0xff]
        %v378 = vld [vmem:[%s254 + $0x280] sm:$0xff]
        %v379 = vld [vmem:[%s254 + $0x288] sm:$0xff]
        %v380 = vld [vmem:[%s254 + $0x290] sm:$0xff]
        %v381 = vld [vmem:[%s254 + $0x298] sm:$0xff]
        %v382 = vld [vmem:[%s254 + $0x2a0] sm:$0xff]
        %v383 = vld [vmem:[%s254 + $0x2a8] sm:$0xff]
        %v384 = vld [vmem:[%s254 + $0x2b0] sm:$0xff]
        %v385 = vld [vmem:[%s254 + $0x2b8] sm:$0xff]
        %v386 = vld [vmem:[%s254 + $0x2c0] sm:$0xff]
        %v387 = vld [vmem:[%s254 + $0x2c8] sm:$0xff]
        %v388 = vld [vmem:[%s254 + $0x2d0] sm:$0xff]
        %v389 = vld [vmem:[%s254 + $0x2d8] sm:$0xff]
        %v390 = vld [vmem:[%s254 + $0x2e0] sm:$0xff]
        %v391 = vld [vmem:[%s254 + $0x2e8] sm:$0xff]
        %v392 = vld [vmem:[%s254 + $0x2f0] sm:$0xff]
        %v393 = vld [vmem:[%s254 + $0x2f8] sm:$0xff]
        %v394 = vld [vmem:[%s254 + $0x300] sm:$0xff]
        %v395 = vld [vmem:[%s254 + $0x308] sm:$0xff]
        %v396 = vld [vmem:[%s254 + $0x310] sm:$0xff]
        %v397 = vld [vmem:[%s254 + $0x318] sm:$0xff]
        %v398 = vld [vmem:[%s254 + $0x320] sm:$0xff]
        %v399 = vld [vmem:[%s254 + $0x328] sm:$0xff]
        %v400 = vld [vmem:[%s254 + $0x330] sm:$0xff]
        %v401 = vld [vmem:[%s254 + $0x338] sm:$0xff]
        %v402 = vld [vmem:[%s254 + $0x340] sm:$0xff]
        %v403 = vld [vmem:[%s254 + $0x348] sm:$0xff]
        %v404 = vld [vmem:[%s254 + $0x350] sm:$0xff]
        %v405 = vld [vmem:[%s254 + $0x358] sm:$0xff]
        %v406 = vld [vmem:[%s254 + $0x360] sm:$0xff]
        %v407 = vld [vmem:[%s254 + $0x368] sm:$0xff]
        %v408 = vld [vmem:[%s254 + $0x370] sm:$0xff]
        %v409 = vld [vmem:[%s254 + $0x378] sm:$0xff]
        %v410 = vld [vmem:[%s254 + $0x380] sm:$0xff]
        %v411 = vld [vmem:[%s254 + $0x388] sm:$0xff]
        %v412 = vld [vmem:[%s254 + $0x390] sm:$0xff]
        %v413 = vld [vmem:[%s254 + $0x398] sm:$0xff]
        %v414 = vld [vmem:[%s254 + $0x3a0] sm:$0xff]
        %v415 = vld [vmem:[%s254 + $0x3a8] sm:$0xff]
        %v416 = vld [vmem:[%s254 + $0x3b0] sm:$0xff]
        %v417 = vld [vmem:[%s254 + $0x3b8] sm:$0xff]
        %v418 = vld [vmem:[%s254 + $0x3c0] sm:$0xff]
        %v419 = vld [vmem:[%s254 + $0x3c8] sm:$0xff]
        %v420 = vld [vmem:[%s254 + $0x3d0] sm:$0xff]
        %v421 = vld [vmem:[%s254 + $0x3d8] sm:$0xff]
        %v422 = vld [vmem:[%s254 + $0x3e0] sm:$0xff]
        %v423 = vld [vmem:[%s254 + $0x3e8] sm:$0xff]
        %v424 = vld [vmem:[%s254 + $0x3f0] sm:$0xff]
        %v425 = vld [vmem:[%s254 + $0x3f8] sm:$0xff]
        %v426 = vld [vmem:[%s254 + $0x400] sm:$0xff]
        %v427 = vld [vmem:[%s254 + $0x408] sm:$0xff]
        %v428 = vld [vmem:[%s254 + $0x410] sm:$0xff]
        %v429 = vld [vmem:[%s254 + $0x418] sm:$0xff]
        %v430 = vld [vmem:[%s254 + $0x420] sm:$0xff]
        %v431 = vld [vmem:[%s254 + $0x428] sm:$0xff]
        %v432 = vld [vmem:[%s254 + $0x430] sm:$0xff]
        %v433 = vld [vmem:[%s254 + $0x438] sm:$0xff]
        %v434 = vld [vmem:[%s254 + $0x440] sm:$0xff]
        %v435 = vld [vmem:[%s254 + $0x448] sm:$0xff]
        %v436 = vld [vmem:[%s254 + $0x450] sm:$0xff]
        %v437 = vld [vmem:[%s254 + $0x458] sm:$0xff]
        %v438 = vld [vmem:[%s254 + $0x460] sm:$0xff]
        %v439 = vld [vmem:[%s254 + $0x468] sm:$0xff]
        %v440 = vld [vmem:[%s254 + $0x470] sm:$0xff]
        %v441 = vld [vmem:[%s254 + $0x478] sm:$0xff]
        %v442 = vld [vmem:[%s254 + $0x480] sm:$0xff]
        %v443 = vld [vmem:[%s254 + $0x488] sm:$0xff]
        %v444 = vld [vmem:[%s254 + $0x490] sm:$0xff]
        %v445 = vld [vmem:[%s254 + $0x498] sm:$0xff]
        %v446 = vld [vmem:[%s254 + $0x4a0] sm:$0xff]
        %v447 = vld [vmem:[%s254 + $0x4a8] sm:$0xff]
        %v448 = vld [vmem:[%s254 + $0x4b0] sm:$0xff]
        %v449 = vld [vmem:[%s254 + $0x4b8] sm:$0xff]
        %v450 = vld [vmem:[%s254 + $0x4c0] sm:$0xff]
        %v451 = vld [vmem:[%s254 + $0x4c8] sm:$0xff]
        %v452 = vld [vmem:[%s254 + $0x4d0] sm:$0xff]
        %v453 = vld [vmem:[%s254 + $0x4d8] sm:$0xff]
        %v454 = vld [vmem:[%s254 + $0x4e0] sm:$0xff]
        %v455 = vld [vmem:[%s254 + $0x4e8] sm:$0xff]
        %v456 = vld [vmem:[%s254 + $0x4f0] sm:$0xff]
        %v457 = vld [vmem:[%s254 + $0x4f8] sm:$0xff]
        %v458 = vld [vmem:[%s254 + $0x500] sm:$0xff]
        %v459 = vld [vmem:[%s254 + $0x508] sm:$0xff]
        %v460 = vld [vmem:[%s254 + $0x510] sm:$0xff]
        %v461 = vld [vmem:[%s254 + $0x518] sm:$0xff]
        %v462 = vld [vmem:[%s254 + $0x520] sm:$0xff]
        %v463 = vld [vmem:[%s254 + $0x528] sm:$0xff]
        %v464 = vld [vmem:[%s254 + $0x530] sm:$0xff]
        %v465 = vld [vmem:[%s254 + $0x538] sm:$0xff]
        %v466 = vld [vmem:[%s254 + $0x540] sm:$0xff]
        %v467 = vld [vmem:[%s254 + $0x548] sm:$0xff]
        %v468 = vld [vmem:[%s254 + $0x550] sm:$0xff]
        %v469 = vld [vmem:[%s254 + $0x558] sm:$0xff]
        %v470 = vld [vmem:[%s254 + $0x560] sm:$0xff]
        %v471 = vld [vmem:[%s254 + $0x568] sm:$0xff]
        %v472 = vld [vmem:[%s254 + $0x570] sm:$0xff]
        %v473 = vld [vmem:[%s254 + $0x578] sm:$0xff]
        %v474 = vld [vmem:[%s254 + $0x580] sm:$0xff]
        %v475 = vld [vmem:[%s254 + $0x588] sm:$0xff]
        %v476 = vld [vmem:[%s254 + $0x590] sm:$0xff]
        %v477 = vld [vmem:[%s254 + $0x598] sm:$0xff]
        %v478 = vld [vmem:[%s254 + $0x5a0] sm:$0xff]
        %v479 = vld [vmem:[%s254 + $0x5a8] sm:$0xff]
        %v480 = vld [vmem:[%s254 + $0x5b0] sm:$0xff]
        %v481 = vld [vmem:[%s254 + $0x5b8] sm:$0xff]
        %v482 = vld [vmem:[%s254 + $0x5c0] sm:$0xff]
        %v483 = vld [vmem:[%s254 + $0x5c8] sm:$0xff]
        %v484 = vld [vmem:[%s254 + $0x5d0] sm:$0xff]
        %v485 = vld [vmem:[%s254 + $0x5d8] sm:$0xff]
        %v486 = vld [vmem:[%s254 + $0x5e0] sm:$0xff]
        %v487 = vld [vmem:[%s254 + $0x5e8] sm:$0xff]
        %v488 = vld [vmem:[%s254 + $0x5f0] sm:$0xff]
        %v489 = vld [vmem:[%s254 + $0x5f8] sm:$0xff]
        %v490 = vld [vmem:[%s254 + $0x600] sm:$0xff]
        %v491 = vld [vmem:[%s254 + $0x608] sm:$0xff]
        %v492 = vld [vmem:[%s254 + $0x610] sm:$0xff]
        %v493 = vld [vmem:[%s254 + $0x618] sm:$0xff]
        %v494 = vld [vmem:[%s254 + $0x620] sm:$0xff]
        %v495 = vld [vmem:[%s254 + $0x628] sm:$0xff]
        %v496 = vld [vmem:[%s254 + $0x630] sm:$0xff]
        %v497 = vld [vmem:[%s254 + $0x638] sm:$0xff]
        %v498 = vld [vmem:[%s254 + $0x640] sm:$0xff]
        %v499 = vld [vmem:[%s254 + $0x648] sm:$0xff]
        %v500 = vld [vmem:[%s254 + $0x650] sm:$0xff]
        %v501 = vld [vmem:[%s254 + $0x658] sm:$0xff]
        %v502 = vld [vmem:[%s254 + $0x660] sm:$0xff]
        %v503 = vld [vmem:[%s254 + $0x668] sm:$0xff]
        %v504 = vld [vmem:[%s254 + $0x670] sm:$0xff]
        %v505 = vld [vmem:[%s254 + $0x678] sm:$0xff]
        %v506 = vld [vmem:[%s254 + $0x680] sm:$0xff]
        %v507 = vld [vmem:[%s254 + $0x688] sm:$0xff]
        %v508 = vld [vmem:[%s254 + $0x690] sm:$0xff]
        %v509 = vld [vmem:[%s254 + $0x698] sm:$0xff]
        %v510 = vld [vmem:[%s254 + $0x6a0] sm:$0xff]
        %v511 = vld [vmem:[%s254 + $0x6a8] sm:$0xff]
        %v512 = vld [vmem:[%s254 + $0x6b0] sm:$0xff]
        %v513 = vld [vmem:[%s254 + $0x6b8] sm:$0xff]
        %v514 = vld [vmem:[%s254 + $0x6c0] sm:$0xff]
        %v515 = vld [vmem:[%s254 + $0x6c8] sm:$0xff]
        %v516 = vld [vmem:[%s254 + $0x6d0] sm:$0xff]
        %v517 = vld [vmem:[%s254 + $0x6d8] sm:$0xff]
        %v518 = vld [vmem:[%s254 + $0x6e0] sm:$0xff]
        %v519 = vld [vmem:[%s254 + $0x6e8] sm:$0xff]
        %v520 = vld [vmem:[%s254 + $0x6f0] sm:$0xff]
        %v521 = vld [vmem:[%s254 + $0x6f8] sm:$0xff]
        %v522 = vld [vmem:[%s254 + $0x700] sm:$0xff]
        %v523 = vld [vmem:[%s254 + $0x708] sm:$0xff]
        %v524 = vld [vmem:[%s254 + $0x710] sm:$0xff]
        %v525 = vld [vmem:[%s254 + $0x718] sm:$0xff]
        %v526 = vld [vmem:[%s254 + $0x720] sm:$0xff]
        %v527 = vld [vmem:[%s254 + $0x728] sm:$0xff]
        %v528 = vld [vmem:[%s254 + $0x730] sm:$0xff]
        %v529 = vld [vmem:[%s254 + $0x738] sm:$0xff]
        %v530 = vld [vmem:[%s254 + $0x740] sm:$0xff]
        %v531 = vld [vmem:[%s254 + $0x748] sm:$0xff]
        %v532 = vld [vmem:[%s254 + $0x750] sm:$0xff]
        %v533 = vld [vmem:[%s254 + $0x758] sm:$0xff]
        %v534 = vld [vmem:[%s254 + $0x760] sm:$0xff]
        %v535 = vld [vmem:[%s254 + $0x768] sm:$0xff]
        %v536 = vld [vmem:[%s254 + $0x770] sm:$0xff]
        %v537 = vld [vmem:[%s254 + $0x778] sm:$0xff]
        %v538 = vld [vmem:[%s254 + $0x780] sm:$0xff]
        %v539 = vld [vmem:[%s254 + $0x788] sm:$0xff]
        %v540 = vld [vmem:[%s254 + $0x790] sm:$0xff]
        %v541 = vld [vmem:[%s254 + $0x798] sm:$0xff]
        %v542 = vld [vmem:[%s254 + $0x7a0] sm:$0xff]
        %v543 = vld [vmem:[%s254 + $0x7a8] sm:$0xff]
        %v544 = vld [vmem:[%s254 + $0x7b0] sm:$0xff]
        %v545 = vld [vmem:[%s254 + $0x7b8] sm:$0xff]
        %v546 = vld [vmem:[%s254 + $0x7c0] sm:$0xff]
        %v547 = vld [vmem:[%s254 + $0x7c8] sm:$0xff]
        %v548 = vld [vmem:[%s254 + $0x7d0] sm:$0xff]
        %v549 = vld [vmem:[%s254 + $0x7d8] sm:$0xff]
        %v550 = vld [vmem:[%s254 + $0x7e0] sm:$0xff]
        %v551 = vld [vmem:[%s254 + $0x7e8] sm:$0xff]
        %v552 = vld [vmem:[%s254 + $0x7f0] sm:$0xff]
        %v553 = vld [vmem:[%s254 + $0x7f8] sm:$0xff]
        %v554 = vpack.c.bf16 %v314, %v298
        %v555 = vpack.c.bf16 %v315, %v299
        %v556 = vpack.c.bf16 %v316, %v300
        %v557 = vpack.c.bf16 %v317, %v301
        %v558 = vpack.c.bf16 %v318, %v302
        %v559 = vpack.c.bf16 %v319, %v303
        %v560 = vpack.c.bf16 %v320, %v304
        %v561 = vpack.c.bf16 %v321, %v305
        %v562 = vpack.c.bf16 %v322, %v306
        %v563 = vpack.c.bf16 %v323, %v307
        %v564 = vpack.c.bf16 %v324, %v308
        %v565 = vpack.c.bf16 %v325, %v309
        %v566 = vpack.c.bf16 %v326, %v310
        %v567 = vpack.c.bf16 %v327, %v311
        %v568 = vpack.c.bf16 %v328, %v312
        %v569 = vpack.c.bf16 %v329, %v313
        %v570 = vpack.c.bf16 %v346, %v330
        %v571 = vpack.c.bf16 %v347, %v331
        %v572 = vpack.c.bf16 %v348, %v332
        %v573 = vpack.c.bf16 %v349, %v333
        %v574 = vpack.c.bf16 %v350, %v334
        %v575 = vpack.c.bf16 %v351, %v335
        %v576 = vpack.c.bf16 %v352, %v336
        %v577 = vpack.c.bf16 %v353, %v337
        %v578 = vpack.c.bf16 %v354, %v338
        %v579 = vpack.c.bf16 %v355, %v339
        %v580 = vpack.c.bf16 %v356, %v340
        %v581 = vpack.c.bf16 %v357, %v341
        %v582 = vpack.c.bf16 %v358, %v342
        %v583 = vpack.c.bf16 %v359, %v343
        %v584 = vpack.c.bf16 %v360, %v344
        %v585 = vpack.c.bf16 %v361, %v345
        %v586 = vpack.c.bf16 %v378, %v362
        %v587 = vpack.c.bf16 %v379, %v363
        %v588 = vpack.c.bf16 %v380, %v364
        %v589 = vpack.c.bf16 %v381, %v365
        %v590 = vpack.c.bf16 %v382, %v366
        %v591 = vpack.c.bf16 %v383, %v367
        %v592 = vpack.c.bf16 %v384, %v368
        %v593 = vpack.c.bf16 %v385, %v369
        %v594 = vpack.c.bf16 %v386, %v370
        %v595 = vpack.c.bf16 %v387, %v371
        %v596 = vpack.c.bf16 %v388, %v372
        %v597 = vpack.c.bf16 %v389, %v373
        %v598 = vpack.c.bf16 %v390, %v374
        %v599 = vpack.c.bf16 %v391, %v375
        %v600 = vpack.c.bf16 %v392, %v376
        %v601 = vpack.c.bf16 %v393, %v377
        %v602 = vpack.c.bf16 %v410, %v394
        %v603 = vpack.c.bf16 %v411, %v395
        %v604 = vpack.c.bf16 %v412, %v396
        %v605 = vpack.c.bf16 %v413, %v397
        %v606 = vpack.c.bf16 %v414, %v398
        %v607 = vpack.c.bf16 %v415, %v399
        %v608 = vpack.c.bf16 %v416, %v400
        %v609 = vpack.c.bf16 %v417, %v401
        %v610 = vpack.c.bf16 %v418, %v402
        %v611 = vpack.c.bf16 %v419, %v403
        %v612 = vpack.c.bf16 %v420, %v404
        %v613 = vpack.c.bf16 %v421, %v405
        %v614 = vpack.c.bf16 %v422, %v406
        %v615 = vpack.c.bf16 %v423, %v407
        %v616 = vpack.c.bf16 %v424, %v408
        %v617 = vpack.c.bf16 %v425, %v409
        %v618 = vpack.c.bf16 %v442, %v426
        %v619 = vpack.c.bf16 %v443, %v427
        %v620 = vpack.c.bf16 %v444, %v428
        %v621 = vpack.c.bf16 %v445, %v429
        %v622 = vpack.c.bf16 %v446, %v430
        %v623 = vpack.c.bf16 %v447, %v431
        %v624 = vpack.c.bf16 %v448, %v432
        %v625 = vpack.c.bf16 %v449, %v433
        %v626 = vpack.c.bf16 %v450, %v434
        %v627 = vpack.c.bf16 %v451, %v435
        %v628 = vpack.c.bf16 %v452, %v436
        %v629 = vpack.c.bf16 %v453, %v437
        %v630 = vpack.c.bf16 %v454, %v438
        %v631 = vpack.c.bf16 %v455, %v439
        %v632 = vpack.c.bf16 %v456, %v440
        %v633 = vpack.c.bf16 %v457, %v441
        %v634 = vpack.c.bf16 %v474, %v458
        %v635 = vpack.c.bf16 %v475, %v459
        %v636 = vpack.c.bf16 %v476, %v460
        %v637 = vpack.c.bf16 %v477, %v461
        %v638 = vpack.c.bf16 %v478, %v462
        %v639 = vpack.c.bf16 %v479, %v463
        %v640 = vpack.c.bf16 %v480, %v464
        %v641 = vpack.c.bf16 %v481, %v465
        %v642 = vpack.c.bf16 %v482, %v466
        %v643 = vpack.c.bf16 %v483, %v467
        %v644 = vpack.c.bf16 %v484, %v468
        %v645 = vpack.c.bf16 %v485, %v469
        %v646 = vpack.c.bf16 %v486, %v470
        %v647 = vpack.c.bf16 %v487, %v471
        %v648 = vpack.c.bf16 %v488, %v472
        %v649 = vpack.c.bf16 %v489, %v473
        %v650 = vpack.c.bf16 %v506, %v490
        %v651 = vpack.c.bf16 %v507, %v491
        %v652 = vpack.c.bf16 %v508, %v492
        %v653 = vpack.c.bf16 %v509, %v493
        %v654 = vpack.c.bf16 %v510, %v494
        %v655 = vpack.c.bf16 %v511, %v495
        %v656 = vpack.c.bf16 %v512, %v496
        %v657 = vpack.c.bf16 %v513, %v497
        %v658 = vpack.c.bf16 %v514, %v498
        %v659 = vpack.c.bf16 %v515, %v499
        %v660 = vpack.c.bf16 %v516, %v500
        %v661 = vpack.c.bf16 %v517, %v501
        %v662 = vpack.c.bf16 %v518, %v502
        %v663 = vpack.c.bf16 %v519, %v503
        %v664 = vpack.c.bf16 %v520, %v504
        %v665 = vpack.c.bf16 %v521, %v505
        %v666 = vpack.c.bf16 %v538, %v522
        %v667 = vpack.c.bf16 %v539, %v523
        %v668 = vpack.c.bf16 %v540, %v524
        %v669 = vpack.c.bf16 %v541, %v525
        %v670 = vpack.c.bf16 %v542, %v526
        %v671 = vpack.c.bf16 %v543, %v527
        %v672 = vpack.c.bf16 %v544, %v528
        %v673 = vpack.c.bf16 %v545, %v529
        %v674 = vpack.c.bf16 %v546, %v530
        %v675 = vpack.c.bf16 %v547, %v531
        %v676 = vpack.c.bf16 %v548, %v532
        %v677 = vpack.c.bf16 %v549, %v533
        %v678 = vpack.c.bf16 %v550, %v534
        %v679 = vpack.c.bf16 %v551, %v535
        %v680 = vpack.c.bf16 %v552, %v536
        %v681 = vpack.c.bf16 %v553, %v537
        %v682 = vld [vmem:[#allocation5] sm:$0xff]
        %v683 = vld [vmem:[#allocation5 + $0x8] sm:$0xf]
        %v684 = vld [vmem:[#allocation5 + $0xc] sm:$0xff]
        %v685 = vld [vmem:[#allocation5 + $0x14] sm:$0xf]
        %v686 = vld [vmem:[#allocation5 + $0x18] sm:$0xff]
        %v687 = vld [vmem:[#allocation5 + $0x20] sm:$0xf]
        %v688 = vld [vmem:[#allocation5 + $0x24] sm:$0xff]
        %v689 = vld [vmem:[#allocation5 + $0x2c] sm:$0xf]
        %v690 = vld [vmem:[#allocation5 + $0x30] sm:$0xff]
        %v691 = vld [vmem:[#allocation5 + $0x38] sm:$0xf]
        %v692 = vld [vmem:[#allocation5 + $0x3c] sm:$0xff]
        %v693 = vld [vmem:[#allocation5 + $0x44] sm:$0xf]
        %v694 = vld [vmem:[#allocation5 + $0x48] sm:$0xff]
        %v695 = vld [vmem:[#allocation5 + $0x50] sm:$0xf]
        %v696 = vld [vmem:[#allocation5 + $0x54] sm:$0xff]
        %v697 = vld [vmem:[#allocation5 + $0x5c] sm:$0xf]
        %v698 = vld [vmem:[#allocation5 + $0x60] sm:$0xff]
        %v699 = vld [vmem:[#allocation5 + $0x68] sm:$0xf]
        %v700 = vld [vmem:[#allocation5 + $0x6c] sm:$0xff]
        %v701 = vld [vmem:[#allocation5 + $0x74] sm:$0xf]
        %v702 = vld [vmem:[#allocation5 + $0x78] sm:$0xff]
        %v703 = vld [vmem:[#allocation5 + $0x80] sm:$0xf]
        %v704 = vld [vmem:[#allocation5 + $0x84] sm:$0xff]
        %v705 = vld [vmem:[#allocation5 + $0x8c] sm:$0xf]
        %v706 = vld [vmem:[#allocation5 + $0x90] sm:$0xff]
        %v707 = vld [vmem:[#allocation5 + $0x98] sm:$0xf]
        %v708 = vld [vmem:[#allocation5 + $0x9c] sm:$0xff]
        %v709 = vld [vmem:[#allocation5 + $0xa4] sm:$0xf]
        %v710 = vld [vmem:[#allocation5 + $0xa8] sm:$0xff]
        %v711 = vld [vmem:[#allocation5 + $0xb0] sm:$0xf]
        %v712 = vld [vmem:[#allocation5 + $0xb4] sm:$0xff]
        %v713 = vld [vmem:[#allocation5 + $0xbc] sm:$0xf]
        %v714 = vld [vmem:[#allocation5 + $0xc0] sm:$0xff]
        %v715 = vld [vmem:[#allocation5 + $0xc8] sm:$0xf]
        %v716 = vld [vmem:[#allocation5 + $0xcc] sm:$0xff]
        %v717 = vld [vmem:[#allocation5 + $0xd4] sm:$0xf]
        %v718 = vld [vmem:[#allocation5 + $0xd8] sm:$0xff]
        %v719 = vld [vmem:[#allocation5 + $0xe0] sm:$0xf]
        %v720 = vld [vmem:[#allocation5 + $0xe4] sm:$0xff]
        %v721 = vld [vmem:[#allocation5 + $0xec] sm:$0xf]
        %v722 = vld [vmem:[#allocation5 + $0xf0] sm:$0xff]
        %v723 = vld [vmem:[#allocation5 + $0xf8] sm:$0xf]
        %v724 = vld [vmem:[#allocation5 + $0xfc] sm:$0xff]
        %v725 = vld [vmem:[#allocation5 + $0x104] sm:$0xf]
        %v726 = vld [vmem:[#allocation5 + $0x108] sm:$0xff]
        %v727 = vld [vmem:[#allocation5 + $0x110] sm:$0xf]
        %v728 = vld [vmem:[#allocation5 + $0x114] sm:$0xff]
        %v729 = vld [vmem:[#allocation5 + $0x11c] sm:$0xf]
        %v730 = vld [vmem:[#allocation5 + $0x120] sm:$0xff]
        %v731 = vld [vmem:[#allocation5 + $0x128] sm:$0xf]
        %v732 = vld [vmem:[#allocation5 + $0x12c] sm:$0xff]
        %v733 = vld [vmem:[#allocation5 + $0x134] sm:$0xf]
        %v734 = vld [vmem:[#allocation5 + $0x138] sm:$0xff]
        %v735 = vld [vmem:[#allocation5 + $0x140] sm:$0xf]
        %v736 = vld [vmem:[#allocation5 + $0x144] sm:$0xff]
        %v737 = vld [vmem:[#allocation5 + $0x14c] sm:$0xf]
        %v738 = vld [vmem:[#allocation5 + $0x150] sm:$0xff]
        %v739 = vld [vmem:[#allocation5 + $0x158] sm:$0xf]
        %v740 = vld [vmem:[#allocation5 + $0x15c] sm:$0xff]
        %v741 = vld [vmem:[#allocation5 + $0x164] sm:$0xf]
        %v742 = vld [vmem:[#allocation5 + $0x168] sm:$0xff]
        %v743 = vld [vmem:[#allocation5 + $0x170] sm:$0xf]
        %v744 = vld [vmem:[#allocation5 + $0x174] sm:$0xff]
        %v745 = vld [vmem:[#allocation5 + $0x17c] sm:$0xf]
        %v746 = vld [vmem:[#allocation5 + $0x180] sm:$0xff]
        %v747 = vld [vmem:[#allocation5 + $0x188] sm:$0xf]
        %v748 = vld [vmem:[#allocation5 + $0x18c] sm:$0xff]
        %v749 = vld [vmem:[#allocation5 + $0x194] sm:$0xf]
        %v750 = vld [vmem:[#allocation5 + $0x198] sm:$0xff]
        %v751 = vld [vmem:[#allocation5 + $0x1a0] sm:$0xf]
        %v752 = vld [vmem:[#allocation5 + $0x1a4] sm:$0xff]
        %v753 = vld [vmem:[#allocation5 + $0x1ac] sm:$0xf]
        %v754 = vld [vmem:[#allocation5 + $0x1b0] sm:$0xff]
        %v755 = vld [vmem:[#allocation5 + $0x1b8] sm:$0xf]
        %v756 = vld [vmem:[#allocation5 + $0x1bc] sm:$0xff]
        %v757 = vld [vmem:[#allocation5 + $0x1c4] sm:$0xf]
        %v758 = vld [vmem:[#allocation5 + $0x1c8] sm:$0xff]
        %v759 = vld [vmem:[#allocation5 + $0x1d0] sm:$0xf]
        %v760 = vld [vmem:[#allocation5 + $0x1d4] sm:$0xff]
        %v761 = vld [vmem:[#allocation5 + $0x1dc] sm:$0xf]
        %v762 = vld [vmem:[#allocation5 + $0x1e0] sm:$0xff]
        %v763 = vld [vmem:[#allocation5 + $0x1e8] sm:$0xf]
        %v764 = vld [vmem:[#allocation5 + $0x1ec] sm:$0xff]
        %v765 = vld [vmem:[#allocation5 + $0x1f4] sm:$0xf]
        %v766 = vld [vmem:[#allocation5 + $0x1f8] sm:$0xff]
        %v767 = vld [vmem:[#allocation5 + $0x200] sm:$0xf]
        %v768 = vld [vmem:[#allocation5 + $0x204] sm:$0xff]
        %v769 = vld [vmem:[#allocation5 + $0x20c] sm:$0xf]
        %v770 = vld [vmem:[#allocation5 + $0x210] sm:$0xff]
        %v771 = vld [vmem:[#allocation5 + $0x218] sm:$0xf]
        %v772 = vld [vmem:[#allocation5 + $0x21c] sm:$0xff]
        %v773 = vld [vmem:[#allocation5 + $0x224] sm:$0xf]
        %v774 = vld [vmem:[#allocation5 + $0x228] sm:$0xff]
        %v775 = vld [vmem:[#allocation5 + $0x230] sm:$0xf]
        %v776 = vld [vmem:[#allocation5 + $0x234] sm:$0xff]
        %v777 = vld [vmem:[#allocation5 + $0x23c] sm:$0xf]
        %v778 = vld [vmem:[#allocation5 + $0x240] sm:$0xff]
        %v779 = vld [vmem:[#allocation5 + $0x248] sm:$0xf]
        %v780 = vld [vmem:[#allocation5 + $0x24c] sm:$0xff]
        %v781 = vld [vmem:[#allocation5 + $0x254] sm:$0xf]
        %v782 = vld [vmem:[#allocation5 + $0x258] sm:$0xff]
        %v783 = vld [vmem:[#allocation5 + $0x260] sm:$0xf]
        %v784 = vld [vmem:[#allocation5 + $0x264] sm:$0xff]
        %v785 = vld [vmem:[#allocation5 + $0x26c] sm:$0xf]
        %v786 = vld [vmem:[#allocation5 + $0x270] sm:$0xff]
        %v787 = vld [vmem:[#allocation5 + $0x278] sm:$0xf]
        %v788 = vld [vmem:[#allocation5 + $0x27c] sm:$0xff]
        %v789 = vld [vmem:[#allocation5 + $0x284] sm:$0xf]
        %v790 = vld [vmem:[#allocation5 + $0x288] sm:$0xff]
        %v791 = vld [vmem:[#allocation5 + $0x290] sm:$0xf]
        %v792 = vld [vmem:[#allocation5 + $0x294] sm:$0xff]
        %v793 = vld [vmem:[#allocation5 + $0x29c] sm:$0xf]
        %v794 = vld [vmem:[#allocation5 + $0x2a0] sm:$0xff]
        %v795 = vld [vmem:[#allocation5 + $0x2a8] sm:$0xf]
        %v796 = vld [vmem:[#allocation5 + $0x2ac] sm:$0xff]
        %v797 = vld [vmem:[#allocation5 + $0x2b4] sm:$0xf]
        %v798 = vld [vmem:[#allocation5 + $0x2b8] sm:$0xff]
        %v799 = vld [vmem:[#allocation5 + $0x2c0] sm:$0xf]
        %v800 = vld [vmem:[#allocation5 + $0x2c4] sm:$0xff]
        %v801 = vld [vmem:[#allocation5 + $0x2cc] sm:$0xf]
        %v802 = vld [vmem:[#allocation5 + $0x2d0] sm:$0xff]
        %v803 = vld [vmem:[#allocation5 + $0x2d8] sm:$0xf]
        %v804 = vld [vmem:[#allocation5 + $0x2dc] sm:$0xff]
        %v805 = vld [vmem:[#allocation5 + $0x2e4] sm:$0xf]
        %v806 = vld [vmem:[#allocation5 + $0x2e8] sm:$0xff]
        %v807 = vld [vmem:[#allocation5 + $0x2f0] sm:$0xf]
        %v808 = vld [vmem:[#allocation5 + $0x2f4] sm:$0xff]
        %v809 = vld [vmem:[#allocation5 + $0x2fc] sm:$0xf]
        %v810 = vld [vmem:[#allocation5 + $0x300] sm:$0xff]
        %v811 = vld [vmem:[#allocation5 + $0x308] sm:$0xf]
        %v812 = vld [vmem:[#allocation5 + $0x30c] sm:$0xff]
        %v813 = vld [vmem:[#allocation5 + $0x314] sm:$0xf]
        %v814 = vld [vmem:[#allocation5 + $0x318] sm:$0xff]
        %v815 = vld [vmem:[#allocation5 + $0x320] sm:$0xf]
        %v816 = vld [vmem:[#allocation5 + $0x324] sm:$0xff]
        %v817 = vld [vmem:[#allocation5 + $0x32c] sm:$0xf]
        %v818 = vld [vmem:[#allocation5 + $0x330] sm:$0xff]
        %v819 = vld [vmem:[#allocation5 + $0x338] sm:$0xf]
        %v820 = vld [vmem:[#allocation5 + $0x33c] sm:$0xff]
        %v821 = vld [vmem:[#allocation5 + $0x344] sm:$0xf]
        %v822 = vld [vmem:[#allocation5 + $0x348] sm:$0xff]
        %v823 = vld [vmem:[#allocation5 + $0x350] sm:$0xf]
        %v824 = vld [vmem:[#allocation5 + $0x354] sm:$0xff]
        %v825 = vld [vmem:[#allocation5 + $0x35c] sm:$0xf]
        %v826 = vld [vmem:[#allocation5 + $0x360] sm:$0xff]
        %v827 = vld [vmem:[#allocation5 + $0x368] sm:$0xf]
        %v828 = vld [vmem:[#allocation5 + $0x36c] sm:$0xff]
        %v829 = vld [vmem:[#allocation5 + $0x374] sm:$0xf]
        %v830 = vld [vmem:[#allocation5 + $0x378] sm:$0xff]
        %v831 = vld [vmem:[#allocation5 + $0x380] sm:$0xf]
        %v832 = vld [vmem:[#allocation5 + $0x384] sm:$0xff]
        %v833 = vld [vmem:[#allocation5 + $0x38c] sm:$0xf]
        %v834 = vld [vmem:[#allocation5 + $0x390] sm:$0xff]
        %v835 = vld [vmem:[#allocation5 + $0x398] sm:$0xf]
        %v836 = vld [vmem:[#allocation5 + $0x39c] sm:$0xff]
        %v837 = vld [vmem:[#allocation5 + $0x3a4] sm:$0xf]
        %v838 = vld [vmem:[#allocation5 + $0x3a8] sm:$0xff]
        %v839 = vld [vmem:[#allocation5 + $0x3b0] sm:$0xf]
        %v840 = vld [vmem:[#allocation5 + $0x3b4] sm:$0xff]
        %v841 = vld [vmem:[#allocation5 + $0x3bc] sm:$0xf]
        %v842 = vld [vmem:[#allocation5 + $0x3c0] sm:$0xff]
        %v843 = vld [vmem:[#allocation5 + $0x3c8] sm:$0xf]
        %v844 = vld [vmem:[#allocation5 + $0x3cc] sm:$0xff]
        %v845 = vld [vmem:[#allocation5 + $0x3d4] sm:$0xf]
        %v846 = vld [vmem:[#allocation5 + $0x3d8] sm:$0xff]
        %v847 = vld [vmem:[#allocation5 + $0x3e0] sm:$0xf]
        %v848 = vld [vmem:[#allocation5 + $0x3e4] sm:$0xff]
        %v849 = vld [vmem:[#allocation5 + $0x3ec] sm:$0xf]
        %v850 = vld [vmem:[#allocation5 + $0x3f0] sm:$0xff]
        %v851 = vld [vmem:[#allocation5 + $0x3f8] sm:$0xf]
        %v852 = vld [vmem:[#allocation5 + $0x3fc] sm:$0xff]
        %v853 = vld [vmem:[#allocation5 + $0x404] sm:$0xf]
        %v854 = vld [vmem:[#allocation5 + $0x408] sm:$0xff]
        %v855 = vld [vmem:[#allocation5 + $0x410] sm:$0xf]
        %v856 = vld [vmem:[#allocation5 + $0x414] sm:$0xff]
        %v857 = vld [vmem:[#allocation5 + $0x41c] sm:$0xf]
        %v858 = vld [vmem:[#allocation5 + $0x420] sm:$0xff]
        %v859 = vld [vmem:[#allocation5 + $0x428] sm:$0xf]
        %v860 = vld [vmem:[#allocation5 + $0x42c] sm:$0xff]
        %v861 = vld [vmem:[#allocation5 + $0x434] sm:$0xf]
        %v862 = vld [vmem:[#allocation5 + $0x438] sm:$0xff]
        %v863 = vld [vmem:[#allocation5 + $0x440] sm:$0xf]
        %v864 = vld [vmem:[#allocation5 + $0x444] sm:$0xff]
        %v865 = vld [vmem:[#allocation5 + $0x44c] sm:$0xf]
        %v866 = vld [vmem:[#allocation5 + $0x450] sm:$0xff]
        %v867 = vld [vmem:[#allocation5 + $0x458] sm:$0xf]
        %v868 = vld [vmem:[#allocation5 + $0x45c] sm:$0xff]
        %v869 = vld [vmem:[#allocation5 + $0x464] sm:$0xf]
        %v870 = vld [vmem:[#allocation5 + $0x468] sm:$0xff]
        %v871 = vld [vmem:[#allocation5 + $0x470] sm:$0xf]
        %v872 = vld [vmem:[#allocation5 + $0x474] sm:$0xff]
        %v873 = vld [vmem:[#allocation5 + $0x47c] sm:$0xf]
        %v874 = vld [vmem:[#allocation5 + $0x480] sm:$0xff]
        %v875 = vld [vmem:[#allocation5 + $0x488] sm:$0xf]
        %v876 = vld [vmem:[#allocation5 + $0x48c] sm:$0xff]
        %v877 = vld [vmem:[#allocation5 + $0x494] sm:$0xf]
        %v878 = vld [vmem:[#allocation5 + $0x498] sm:$0xff]
        %v879 = vld [vmem:[#allocation5 + $0x4a0] sm:$0xf]
        %v880 = vld [vmem:[#allocation5 + $0x4a4] sm:$0xff]
        %v881 = vld [vmem:[#allocation5 + $0x4ac] sm:$0xf]
        %v882 = vld [vmem:[#allocation5 + $0x4b0] sm:$0xff]
        %v883 = vld [vmem:[#allocation5 + $0x4b8] sm:$0xf]
        %v884 = vld [vmem:[#allocation5 + $0x4bc] sm:$0xff]
        %v885 = vld [vmem:[#allocation5 + $0x4c4] sm:$0xf]
        %v886 = vld [vmem:[#allocation5 + $0x4c8] sm:$0xff]
        %v887 = vld [vmem:[#allocation5 + $0x4d0] sm:$0xf]
        %v888 = vld [vmem:[#allocation5 + $0x4d4] sm:$0xff]
        %v889 = vld [vmem:[#allocation5 + $0x4dc] sm:$0xf]
        %v890 = vld [vmem:[#allocation5 + $0x4e0] sm:$0xff]
        %v891 = vld [vmem:[#allocation5 + $0x4e8] sm:$0xf]
        %v892 = vld [vmem:[#allocation5 + $0x4ec] sm:$0xff]
        %v893 = vld [vmem:[#allocation5 + $0x4f4] sm:$0xf]
        %v894 = vld [vmem:[#allocation5 + $0x4f8] sm:$0xff]
        %v895 = vld [vmem:[#allocation5 + $0x500] sm:$0xf]
        %v896 = vld [vmem:[#allocation5 + $0x504] sm:$0xff]
        %v897 = vld [vmem:[#allocation5 + $0x50c] sm:$0xf]
        %v898 = vld [vmem:[#allocation5 + $0x510] sm:$0xff]
        %v899 = vld [vmem:[#allocation5 + $0x518] sm:$0xf]
        %v900 = vld [vmem:[#allocation5 + $0x51c] sm:$0xff]
        %v901 = vld [vmem:[#allocation5 + $0x524] sm:$0xf]
        %v902 = vld [vmem:[#allocation5 + $0x528] sm:$0xff]
        %v903 = vld [vmem:[#allocation5 + $0x530] sm:$0xf]
        %v904 = vld [vmem:[#allocation5 + $0x534] sm:$0xff]
        %v905 = vld [vmem:[#allocation5 + $0x53c] sm:$0xf]
        %v906 = vld [vmem:[#allocation5 + $0x540] sm:$0xff]
        %v907 = vld [vmem:[#allocation5 + $0x548] sm:$0xf]
        %v908 = vld [vmem:[#allocation5 + $0x54c] sm:$0xff]
        %v909 = vld [vmem:[#allocation5 + $0x554] sm:$0xf]
        %v910 = vld [vmem:[#allocation5 + $0x558] sm:$0xff]
        %v911 = vld [vmem:[#allocation5 + $0x560] sm:$0xf]
        %v912 = vld [vmem:[#allocation5 + $0x564] sm:$0xff]
        %v913 = vld [vmem:[#allocation5 + $0x56c] sm:$0xf]
        %v914 = vld [vmem:[#allocation5 + $0x570] sm:$0xff]
        %v915 = vld [vmem:[#allocation5 + $0x578] sm:$0xf]
        %v916 = vld [vmem:[#allocation5 + $0x57c] sm:$0xff]
        %v917 = vld [vmem:[#allocation5 + $0x584] sm:$0xf]
        %v918 = vld [vmem:[#allocation5 + $0x588] sm:$0xff]
        %v919 = vld [vmem:[#allocation5 + $0x590] sm:$0xf]
        %v920 = vld [vmem:[#allocation5 + $0x594] sm:$0xff]
        %v921 = vld [vmem:[#allocation5 + $0x59c] sm:$0xf]
        %v922 = vld [vmem:[#allocation5 + $0x5a0] sm:$0xff]
        %v923 = vld [vmem:[#allocation5 + $0x5a8] sm:$0xf]
        %v924 = vld [vmem:[#allocation5 + $0x5ac] sm:$0xff]
        %v925 = vld [vmem:[#allocation5 + $0x5b4] sm:$0xf]
        %v926 = vld [vmem:[#allocation5 + $0x5b8] sm:$0xff]
        %v927 = vld [vmem:[#allocation5 + $0x5c0] sm:$0xf]
        %v928 = vld [vmem:[#allocation5 + $0x5c4] sm:$0xff]
        %v929 = vld [vmem:[#allocation5 + $0x5cc] sm:$0xf]
        %v930 = vld [vmem:[#allocation5 + $0x5d0] sm:$0xff]
        %v931 = vld [vmem:[#allocation5 + $0x5d8] sm:$0xf]
        %v932 = vld [vmem:[#allocation5 + $0x5dc] sm:$0xff]
        %v933 = vld [vmem:[#allocation5 + $0x5e4] sm:$0xf]
        %v934 = vld [vmem:[#allocation5 + $0x5e8] sm:$0xff]
        %v935 = vld [vmem:[#allocation5 + $0x5f0] sm:$0xf]
        %v936 = vld [vmem:[#allocation5 + $0x5f4] sm:$0xff]
        %v937 = vld [vmem:[#allocation5 + $0x5fc] sm:$0xf]
        %v938 = vld [vmem:[#allocation5 + $0x600] sm:$0xff]
        %v939 = vld [vmem:[#allocation5 + $0x608] sm:$0xf]
        %v940 = vld [vmem:[#allocation5 + $0x60c] sm:$0xff]
        %v941 = vld [vmem:[#allocation5 + $0x614] sm:$0xf]
        %v942 = vld [vmem:[#allocation5 + $0x618] sm:$0xff]
        %v943 = vld [vmem:[#allocation5 + $0x620] sm:$0xf]
        %v944 = vld [vmem:[#allocation5 + $0x624] sm:$0xff]
        %v945 = vld [vmem:[#allocation5 + $0x62c] sm:$0xf]
        %v946 = vld [vmem:[#allocation5 + $0x630] sm:$0xff]
        %v947 = vld [vmem:[#allocation5 + $0x638] sm:$0xf]
        %v948 = vld [vmem:[#allocation5 + $0x63c] sm:$0xff]
        %v949 = vld [vmem:[#allocation5 + $0x644] sm:$0xf]
        %v950 = vld [vmem:[#allocation5 + $0x648] sm:$0xff]
        %v951 = vld [vmem:[#allocation5 + $0x650] sm:$0xf]
        %v952 = vld [vmem:[#allocation5 + $0x654] sm:$0xff]
        %v953 = vld [vmem:[#allocation5 + $0x65c] sm:$0xf]
        %v954 = vld [vmem:[#allocation5 + $0x660] sm:$0xff]
        %v955 = vld [vmem:[#allocation5 + $0x668] sm:$0xf]
        %v956 = vld [vmem:[#allocation5 + $0x66c] sm:$0xff]
        %v957 = vld [vmem:[#allocation5 + $0x674] sm:$0xf]
        %v958 = vld [vmem:[#allocation5 + $0x678] sm:$0xff]
        %v959 = vld [vmem:[#allocation5 + $0x680] sm:$0xf]
        %v960 = vld [vmem:[#allocation5 + $0x684] sm:$0xff]
        %v961 = vld [vmem:[#allocation5 + $0x68c] sm:$0xf]
        %v962 = vld [vmem:[#allocation5 + $0x690] sm:$0xff]
        %v963 = vld [vmem:[#allocation5 + $0x698] sm:$0xf]
        %v964 = vld [vmem:[#allocation5 + $0x69c] sm:$0xff]
        %v965 = vld [vmem:[#allocation5 + $0x6a4] sm:$0xf]
        %v966 = vld [vmem:[#allocation5 + $0x6a8] sm:$0xff]
        %v967 = vld [vmem:[#allocation5 + $0x6b0] sm:$0xf]
        %v968 = vld [vmem:[#allocation5 + $0x6b4] sm:$0xff]
        %v969 = vld [vmem:[#allocation5 + $0x6bc] sm:$0xf]
        %v970 = vld [vmem:[#allocation5 + $0x6c0] sm:$0xff]
        %v971 = vld [vmem:[#allocation5 + $0x6c8] sm:$0xf]
        %v972 = vld [vmem:[#allocation5 + $0x6cc] sm:$0xff]
        %v973 = vld [vmem:[#allocation5 + $0x6d4] sm:$0xf]
        %v974 = vld [vmem:[#allocation5 + $0x6d8] sm:$0xff]
        %v975 = vld [vmem:[#allocation5 + $0x6e0] sm:$0xf]
        %v976 = vld [vmem:[#allocation5 + $0x6e4] sm:$0xff]
        %v977 = vld [vmem:[#allocation5 + $0x6ec] sm:$0xf]
        %v978 = vld [vmem:[#allocation5 + $0x6f0] sm:$0xff]
        %v979 = vld [vmem:[#allocation5 + $0x6f8] sm:$0xf]
        %v980 = vld [vmem:[#allocation5 + $0x6fc] sm:$0xff]
        %v981 = vld [vmem:[#allocation5 + $0x704] sm:$0xf]
        %v982 = vld [vmem:[#allocation5 + $0x708] sm:$0xff]
        %v983 = vld [vmem:[#allocation5 + $0x710] sm:$0xf]
        %v984 = vld [vmem:[#allocation5 + $0x714] sm:$0xff]
        %v985 = vld [vmem:[#allocation5 + $0x71c] sm:$0xf]
        %v986 = vld [vmem:[#allocation5 + $0x720] sm:$0xff]
        %v987 = vld [vmem:[#allocation5 + $0x728] sm:$0xf]
        %v988 = vld [vmem:[#allocation5 + $0x72c] sm:$0xff]
        %v989 = vld [vmem:[#allocation5 + $0x734] sm:$0xf]
        %v990 = vld [vmem:[#allocation5 + $0x738] sm:$0xff]
        %v991 = vld [vmem:[#allocation5 + $0x740] sm:$0xf]
        %v992 = vld [vmem:[#allocation5 + $0x744] sm:$0xff]
        %v993 = vld [vmem:[#allocation5 + $0x74c] sm:$0xf]
        %v994 = vld [vmem:[#allocation5 + $0x750] sm:$0xff]
        %v995 = vld [vmem:[#allocation5 + $0x758] sm:$0xf]
        %v996 = vld [vmem:[#allocation5 + $0x75c] sm:$0xff]
        %v997 = vld [vmem:[#allocation5 + $0x764] sm:$0xf]
        %v998 = vld [vmem:[#allocation5 + $0x768] sm:$0xff]
        %v999 = vld [vmem:[#allocation5 + $0x770] sm:$0xf]
        %v1000 = vld [vmem:[#allocation5 + $0x774] sm:$0xff]
        %v1001 = vld [vmem:[#allocation5 + $0x77c] sm:$0xf]
        %v1002 = vld [vmem:[#allocation5 + $0x780] sm:$0xff]
        %v1003 = vld [vmem:[#allocation5 + $0x788] sm:$0xf]
        %v1004 = vld [vmem:[#allocation5 + $0x78c] sm:$0xff]
        %v1005 = vld [vmem:[#allocation5 + $0x794] sm:$0xf]
        %v1006 = vld [vmem:[#allocation5 + $0x798] sm:$0xff]
        %v1007 = vld [vmem:[#allocation5 + $0x7a0] sm:$0xf]
        %v1008 = vld [vmem:[#allocation5 + $0x7a4] sm:$0xff]
        %v1009 = vld [vmem:[#allocation5 + $0x7ac] sm:$0xf]
        %v1010 = vld [vmem:[#allocation5 + $0x7b0] sm:$0xff]
        %v1011 = vld [vmem:[#allocation5 + $0x7b8] sm:$0xf]
        %v1012 = vld [vmem:[#allocation5 + $0x7bc] sm:$0xff]
        %v1013 = vld [vmem:[#allocation5 + $0x7c4] sm:$0xf]
        %v1014 = vld [vmem:[#allocation5 + $0x7c8] sm:$0xff]
        %v1015 = vld [vmem:[#allocation5 + $0x7d0] sm:$0xf]
        %v1016 = vld [vmem:[#allocation5 + $0x7d4] sm:$0xff]
        %v1017 = vld [vmem:[#allocation5 + $0x7dc] sm:$0xf]
        %v1018 = vld [vmem:[#allocation5 + $0x7e0] sm:$0xff]
        %v1019 = vld [vmem:[#allocation5 + $0x7e8] sm:$0xf]
        %v1020 = vld [vmem:[#allocation5 + $0x7ec] sm:$0xff]
        %v1021 = vld [vmem:[#allocation5 + $0x7f4] sm:$0xf]
        %v1022 = vld [vmem:[#allocation5 + $0x7f8] sm:$0xff]
        %v1023 = vld [vmem:[#allocation5 + $0x800] sm:$0xf]
        %v1024 = vld [vmem:[#allocation5 + $0x804] sm:$0xff]
        %v1025 = vld [vmem:[#allocation5 + $0x80c] sm:$0xf]
        %v1026 = vld [vmem:[#allocation5 + $0x810] sm:$0xff]
        %v1027 = vld [vmem:[#allocation5 + $0x818] sm:$0xf]
        %v1028 = vld [vmem:[#allocation5 + $0x81c] sm:$0xff]
        %v1029 = vld [vmem:[#allocation5 + $0x824] sm:$0xf]
        %v1030 = vld [vmem:[#allocation5 + $0x828] sm:$0xff]
        %v1031 = vld [vmem:[#allocation5 + $0x830] sm:$0xf]
        %v1032 = vld [vmem:[#allocation5 + $0x834] sm:$0xff]
        %v1033 = vld [vmem:[#allocation5 + $0x83c] sm:$0xf]
        %v1034 = vld [vmem:[#allocation5 + $0x840] sm:$0xff]
        %v1035 = vld [vmem:[#allocation5 + $0x848] sm:$0xf]
        %v1036 = vld [vmem:[#allocation5 + $0x84c] sm:$0xff]
        %v1037 = vld [vmem:[#allocation5 + $0x854] sm:$0xf]
        %v1038 = vld [vmem:[#allocation5 + $0x858] sm:$0xff]
        %v1039 = vld [vmem:[#allocation5 + $0x860] sm:$0xf]
        %v1040 = vld [vmem:[#allocation5 + $0x864] sm:$0xff]
        %v1041 = vld [vmem:[#allocation5 + $0x86c] sm:$0xf]
        %v1042 = vld [vmem:[#allocation5 + $0x870] sm:$0xff]
        %v1043 = vld [vmem:[#allocation5 + $0x878] sm:$0xf]
        %v1044 = vld [vmem:[#allocation5 + $0x87c] sm:$0xff]
        %v1045 = vld [vmem:[#allocation5 + $0x884] sm:$0xf]
        %v1046 = vld [vmem:[#allocation5 + $0x888] sm:$0xff]
        %v1047 = vld [vmem:[#allocation5 + $0x890] sm:$0xf]
        %v1048 = vld [vmem:[#allocation5 + $0x894] sm:$0xff]
        %v1049 = vld [vmem:[#allocation5 + $0x89c] sm:$0xf]
        %v1050 = vld [vmem:[#allocation5 + $0x8a0] sm:$0xff]
        %v1051 = vld [vmem:[#allocation5 + $0x8a8] sm:$0xf]
        %v1052 = vld [vmem:[#allocation5 + $0x8ac] sm:$0xff]
        %v1053 = vld [vmem:[#allocation5 + $0x8b4] sm:$0xf]
        %v1054 = vld [vmem:[#allocation5 + $0x8b8] sm:$0xff]
        %v1055 = vld [vmem:[#allocation5 + $0x8c0] sm:$0xf]
        %v1056 = vld [vmem:[#allocation5 + $0x8c4] sm:$0xff]
        %v1057 = vld [vmem:[#allocation5 + $0x8cc] sm:$0xf]
        %v1058 = vld [vmem:[#allocation5 + $0x8d0] sm:$0xff]
        %v1059 = vld [vmem:[#allocation5 + $0x8d8] sm:$0xf]
        %v1060 = vld [vmem:[#allocation5 + $0x8dc] sm:$0xff]
        %v1061 = vld [vmem:[#allocation5 + $0x8e4] sm:$0xf]
        %v1062 = vld [vmem:[#allocation5 + $0x8e8] sm:$0xff]
        %v1063 = vld [vmem:[#allocation5 + $0x8f0] sm:$0xf]
        %v1064 = vld [vmem:[#allocation5 + $0x8f4] sm:$0xff]
        %v1065 = vld [vmem:[#allocation5 + $0x8fc] sm:$0xf]
        %v1066 = vld [vmem:[#allocation5 + $0x900] sm:$0xff]
        %v1067 = vld [vmem:[#allocation5 + $0x908] sm:$0xf]
        %v1068 = vld [vmem:[#allocation5 + $0x90c] sm:$0xff]
        %v1069 = vld [vmem:[#allocation5 + $0x914] sm:$0xf]
        %v1070 = vld [vmem:[#allocation5 + $0x918] sm:$0xff]
        %v1071 = vld [vmem:[#allocation5 + $0x920] sm:$0xf]
        %v1072 = vld [vmem:[#allocation5 + $0x924] sm:$0xff]
        %v1073 = vld [vmem:[#allocation5 + $0x92c] sm:$0xf]
        %v1074 = vld [vmem:[#allocation5 + $0x930] sm:$0xff]
        %v1075 = vld [vmem:[#allocation5 + $0x938] sm:$0xf]
        %v1076 = vld [vmem:[#allocation5 + $0x93c] sm:$0xff]
        %v1077 = vld [vmem:[#allocation5 + $0x944] sm:$0xf]
        %v1078 = vld [vmem:[#allocation5 + $0x948] sm:$0xff]
        %v1079 = vld [vmem:[#allocation5 + $0x950] sm:$0xf]
        %v1080 = vld [vmem:[#allocation5 + $0x954] sm:$0xff]
        %v1081 = vld [vmem:[#allocation5 + $0x95c] sm:$0xf]
        %v1082 = vld [vmem:[#allocation5 + $0x960] sm:$0xff]
        %v1083 = vld [vmem:[#allocation5 + $0x968] sm:$0xf]
        %v1084 = vld [vmem:[#allocation5 + $0x96c] sm:$0xff]
        %v1085 = vld [vmem:[#allocation5 + $0x974] sm:$0xf]
        %v1086 = vld [vmem:[#allocation5 + $0x978] sm:$0xff]
        %v1087 = vld [vmem:[#allocation5 + $0x980] sm:$0xf]
        %v1088 = vld [vmem:[#allocation5 + $0x984] sm:$0xff]
        %v1089 = vld [vmem:[#allocation5 + $0x98c] sm:$0xf]
        %v1090 = vld [vmem:[#allocation5 + $0x990] sm:$0xff]
        %v1091 = vld [vmem:[#allocation5 + $0x998] sm:$0xf]
        %v1092 = vld [vmem:[#allocation5 + $0x99c] sm:$0xff]
        %v1093 = vld [vmem:[#allocation5 + $0x9a4] sm:$0xf]
        %v1094 = vld [vmem:[#allocation5 + $0x9a8] sm:$0xff]
        %v1095 = vld [vmem:[#allocation5 + $0x9b0] sm:$0xf]
        %v1096 = vld [vmem:[#allocation5 + $0x9b4] sm:$0xff]
        %v1097 = vld [vmem:[#allocation5 + $0x9bc] sm:$0xf]
        %v1098 = vld [vmem:[#allocation5 + $0x9c0] sm:$0xff]
        %v1099 = vld [vmem:[#allocation5 + $0x9c8] sm:$0xf]
        %v1100 = vld [vmem:[#allocation5 + $0x9cc] sm:$0xff]
        %v1101 = vld [vmem:[#allocation5 + $0x9d4] sm:$0xf]
        %v1102 = vld [vmem:[#allocation5 + $0x9d8] sm:$0xff]
        %v1103 = vld [vmem:[#allocation5 + $0x9e0] sm:$0xf]
        %v1104 = vld [vmem:[#allocation5 + $0x9e4] sm:$0xff]
        %v1105 = vld [vmem:[#allocation5 + $0x9ec] sm:$0xf]
        %v1106 = vld [vmem:[#allocation5 + $0x9f0] sm:$0xff]
        %v1107 = vld [vmem:[#allocation5 + $0x9f8] sm:$0xf]
        %v1108 = vld [vmem:[#allocation5 + $0x9fc] sm:$0xff]
        %v1109 = vld [vmem:[#allocation5 + $0xa04] sm:$0xf]
        %v1110 = vld [vmem:[#allocation5 + $0xa08] sm:$0xff]
        %v1111 = vld [vmem:[#allocation5 + $0xa10] sm:$0xf]
        %v1112 = vld [vmem:[#allocation5 + $0xa14] sm:$0xff]
        %v1113 = vld [vmem:[#allocation5 + $0xa1c] sm:$0xf]
        %v1114 = vld [vmem:[#allocation5 + $0xa20] sm:$0xff]
        %v1115 = vld [vmem:[#allocation5 + $0xa28] sm:$0xf]
        %v1116 = vld [vmem:[#allocation5 + $0xa2c] sm:$0xff]
        %v1117 = vld [vmem:[#allocation5 + $0xa34] sm:$0xf]
        %v1118 = vld [vmem:[#allocation5 + $0xa38] sm:$0xff]
        %v1119 = vld [vmem:[#allocation5 + $0xa40] sm:$0xf]
        %v1120 = vld [vmem:[#allocation5 + $0xa44] sm:$0xff]
        %v1121 = vld [vmem:[#allocation5 + $0xa4c] sm:$0xf]
        %v1122 = vld [vmem:[#allocation5 + $0xa50] sm:$0xff]
        %v1123 = vld [vmem:[#allocation5 + $0xa58] sm:$0xf]
        %v1124 = vld [vmem:[#allocation5 + $0xa5c] sm:$0xff]
        %v1125 = vld [vmem:[#allocation5 + $0xa64] sm:$0xf]
        %v1126 = vld [vmem:[#allocation5 + $0xa68] sm:$0xff]
        %v1127 = vld [vmem:[#allocation5 + $0xa70] sm:$0xf]
        %v1128 = vld [vmem:[#allocation5 + $0xa74] sm:$0xff]
        %v1129 = vld [vmem:[#allocation5 + $0xa7c] sm:$0xf]
        %v1130 = vld [vmem:[#allocation5 + $0xa80] sm:$0xff]
        %v1131 = vld [vmem:[#allocation5 + $0xa88] sm:$0xf]
        %v1132 = vld [vmem:[#allocation5 + $0xa8c] sm:$0xff]
        %v1133 = vld [vmem:[#allocation5 + $0xa94] sm:$0xf]
        %v1134 = vld [vmem:[#allocation5 + $0xa98] sm:$0xff]
        %v1135 = vld [vmem:[#allocation5 + $0xaa0] sm:$0xf]
        %v1136 = vld [vmem:[#allocation5 + $0xaa4] sm:$0xff]
        %v1137 = vld [vmem:[#allocation5 + $0xaac] sm:$0xf]
        %v1138 = vld [vmem:[#allocation5 + $0xab0] sm:$0xff]
        %v1139 = vld [vmem:[#allocation5 + $0xab8] sm:$0xf]
        %v1140 = vld [vmem:[#allocation5 + $0xabc] sm:$0xff]
        %v1141 = vld [vmem:[#allocation5 + $0xac4] sm:$0xf]
        %v1142 = vld [vmem:[#allocation5 + $0xac8] sm:$0xff]
        %v1143 = vld [vmem:[#allocation5 + $0xad0] sm:$0xf]
        %v1144 = vld [vmem:[#allocation5 + $0xad4] sm:$0xff]
        %v1145 = vld [vmem:[#allocation5 + $0xadc] sm:$0xf]
        %v1146 = vld [vmem:[#allocation5 + $0xae0] sm:$0xff]
        %v1147 = vld [vmem:[#allocation5 + $0xae8] sm:$0xf]
        %v1148 = vld [vmem:[#allocation5 + $0xaec] sm:$0xff]
        %v1149 = vld [vmem:[#allocation5 + $0xaf4] sm:$0xf]
        %v1150 = vld [vmem:[#allocation5 + $0xaf8] sm:$0xff]
        %v1151 = vld [vmem:[#allocation5 + $0xb00] sm:$0xf]
        %v1152 = vld [vmem:[#allocation5 + $0xb04] sm:$0xff]
        %v1153 = vld [vmem:[#allocation5 + $0xb0c] sm:$0xf]
        %v1154 = vld [vmem:[#allocation5 + $0xb10] sm:$0xff]
        %v1155 = vld [vmem:[#allocation5 + $0xb18] sm:$0xf]
        %v1156 = vld [vmem:[#allocation5 + $0xb1c] sm:$0xff]
        %v1157 = vld [vmem:[#allocation5 + $0xb24] sm:$0xf]
        %v1158 = vld [vmem:[#allocation5 + $0xb28] sm:$0xff]
        %v1159 = vld [vmem:[#allocation5 + $0xb30] sm:$0xf]
        %v1160 = vld [vmem:[#allocation5 + $0xb34] sm:$0xff]
        %v1161 = vld [vmem:[#allocation5 + $0xb3c] sm:$0xf]
        %v1162 = vld [vmem:[#allocation5 + $0xb40] sm:$0xff]
        %v1163 = vld [vmem:[#allocation5 + $0xb48] sm:$0xf]
        %v1164 = vld [vmem:[#allocation5 + $0xb4c] sm:$0xff]
        %v1165 = vld [vmem:[#allocation5 + $0xb54] sm:$0xf]
        %v1166 = vld [vmem:[#allocation5 + $0xb58] sm:$0xff]
        %v1167 = vld [vmem:[#allocation5 + $0xb60] sm:$0xf]
        %v1168 = vld [vmem:[#allocation5 + $0xb64] sm:$0xff]
        %v1169 = vld [vmem:[#allocation5 + $0xb6c] sm:$0xf]
        %v1170 = vld [vmem:[#allocation5 + $0xb70] sm:$0xff]
        %v1171 = vld [vmem:[#allocation5 + $0xb78] sm:$0xf]
        %v1172 = vld [vmem:[#allocation5 + $0xb7c] sm:$0xff]
        %v1173 = vld [vmem:[#allocation5 + $0xb84] sm:$0xf]
        %v1174 = vld [vmem:[#allocation5 + $0xb88] sm:$0xff]
        %v1175 = vld [vmem:[#allocation5 + $0xb90] sm:$0xf]
        %v1176 = vld [vmem:[#allocation5 + $0xb94] sm:$0xff]
        %v1177 = vld [vmem:[#allocation5 + $0xb9c] sm:$0xf]
        %v1178 = vld [vmem:[#allocation5 + $0xba0] sm:$0xff]
        %v1179 = vld [vmem:[#allocation5 + $0xba8] sm:$0xf]
        %v1180 = vld [vmem:[#allocation5 + $0xbac] sm:$0xff]
        %v1181 = vld [vmem:[#allocation5 + $0xbb4] sm:$0xf]
        %v1182 = vld [vmem:[#allocation5 + $0xbb8] sm:$0xff]
        %v1183 = vld [vmem:[#allocation5 + $0xbc0] sm:$0xf]
        %v1184 = vld [vmem:[#allocation5 + $0xbc4] sm:$0xff]
        %v1185 = vld [vmem:[#allocation5 + $0xbcc] sm:$0xf]
        %v1186 = vld [vmem:[#allocation5 + $0xbd0] sm:$0xff]
        %v1187 = vld [vmem:[#allocation5 + $0xbd8] sm:$0xf]
        %v1188 = vld [vmem:[#allocation5 + $0xbdc] sm:$0xff]
        %v1189 = vld [vmem:[#allocation5 + $0xbe4] sm:$0xf]
        %v1190 = vld [vmem:[#allocation5 + $0xbe8] sm:$0xff]
        %v1191 = vld [vmem:[#allocation5 + $0xbf0] sm:$0xf]
        %v1192 = vld [vmem:[#allocation5 + $0xbf4] sm:$0xff]
        %v1193 = vld [vmem:[#allocation5 + $0xbfc] sm:$0xf]
        %v1194 = vld [vmem:[#allocation7] sm:$0x7]
        %v1196 = vlaneseq
        %v1197 = vshrl.u32 %v1196, 7
        %v1198 = vsub.s32 0, %v1197
        %v1199 = vrot.slane %v1194, %v1198
        %v1200 = vlaneseq
        %v1201 = vshrl.u32 %v1200, 7
        %v1202 = vsub.s32 1, %v1201
        %v1203 = vrot.slane %v1194, %v1202
        %v1204 = vlaneseq
        %v1205 = vshrl.u32 %v1204, 7
        %v1206 = vsub.s32 2, %v1205
        %v1207 = vrot.slane %v1194, %v1206
        %v1723 = vunpack.c.l.b16 %v682
        %v1724 = vunpack.c.h.b16 %v682
        %v1725 = vunpack.c.l.b16 %v683
        %v1726 = vunpack.c.l.b16 %v684
        %v1727 = vunpack.c.h.b16 %v684
        %v1728 = vunpack.c.l.b16 %v685
        %v1729 = vunpack.c.l.b16 %v686
        %v1730 = vunpack.c.h.b16 %v686
        %v1731 = vunpack.c.l.b16 %v687
        %v1732 = vunpack.c.l.b16 %v688
        %v1733 = vunpack.c.h.b16 %v688
        %v1734 = vunpack.c.l.b16 %v689
        %v1735 = vunpack.c.l.b16 %v690
        %v1736 = vunpack.c.h.b16 %v690
        %v1737 = vunpack.c.l.b16 %v691
        %v1738 = vunpack.c.l.b16 %v692
        %v1739 = vunpack.c.h.b16 %v692
        %v1740 = vunpack.c.l.b16 %v693
        %v1741 = vunpack.c.l.b16 %v694
        %v1742 = vunpack.c.h.b16 %v694
        %v1743 = vunpack.c.l.b16 %v695
        %v1744 = vunpack.c.l.b16 %v696
        %v1745 = vunpack.c.h.b16 %v696
        %v1746 = vunpack.c.l.b16 %v697
        %v1747 = vunpack.c.l.b16 %v698
        %v1748 = vunpack.c.h.b16 %v698
        %v1749 = vunpack.c.l.b16 %v699
        %v1750 = vunpack.c.l.b16 %v700
        %v1751 = vunpack.c.h.b16 %v700
        %v1752 = vunpack.c.l.b16 %v701
        %v1753 = vunpack.c.l.b16 %v702
        %v1754 = vunpack.c.h.b16 %v702
        %v1755 = vunpack.c.l.b16 %v703
        %v1756 = vunpack.c.l.b16 %v704
        %v1757 = vunpack.c.h.b16 %v704
        %v1758 = vunpack.c.l.b16 %v705
        %v1759 = vunpack.c.l.b16 %v706
        %v1760 = vunpack.c.h.b16 %v706
        %v1761 = vunpack.c.l.b16 %v707
        %v1762 = vunpack.c.l.b16 %v708
        %v1763 = vunpack.c.h.b16 %v708
        %v1764 = vunpack.c.l.b16 %v709
        %v1765 = vunpack.c.l.b16 %v710
        %v1766 = vunpack.c.h.b16 %v710
        %v1767 = vunpack.c.l.b16 %v711
        %v1768 = vunpack.c.l.b16 %v712
        %v1769 = vunpack.c.h.b16 %v712
        %v1770 = vunpack.c.l.b16 %v713
        %v1771 = vunpack.c.l.b16 %v714
        %v1772 = vunpack.c.h.b16 %v714
        %v1773 = vunpack.c.l.b16 %v715
        %v1774 = vunpack.c.l.b16 %v716
        %v1775 = vunpack.c.h.b16 %v716
        %v1776 = vunpack.c.l.b16 %v717
        %v1777 = vunpack.c.l.b16 %v718
        %v1778 = vunpack.c.h.b16 %v718
        %v1779 = vunpack.c.l.b16 %v719
        %v1780 = vunpack.c.l.b16 %v720
        %v1781 = vunpack.c.h.b16 %v720
        %v1782 = vunpack.c.l.b16 %v721
        %v1783 = vunpack.c.l.b16 %v722
        %v1784 = vunpack.c.h.b16 %v722
        %v1785 = vunpack.c.l.b16 %v723
        %v1786 = vunpack.c.l.b16 %v724
        %v1787 = vunpack.c.h.b16 %v724
        %v1788 = vunpack.c.l.b16 %v725
        %v1789 = vunpack.c.l.b16 %v726
        %v1790 = vunpack.c.h.b16 %v726
        %v1791 = vunpack.c.l.b16 %v727
        %v1792 = vunpack.c.l.b16 %v728
        %v1793 = vunpack.c.h.b16 %v728
        %v1794 = vunpack.c.l.b16 %v729
        %v1795 = vunpack.c.l.b16 %v730
        %v1796 = vunpack.c.h.b16 %v730
        %v1797 = vunpack.c.l.b16 %v731
        %v1798 = vunpack.c.l.b16 %v732
        %v1799 = vunpack.c.h.b16 %v732
        %v1800 = vunpack.c.l.b16 %v733
        %v1801 = vunpack.c.l.b16 %v734
        %v1802 = vunpack.c.h.b16 %v734
        %v1803 = vunpack.c.l.b16 %v735
        %v1804 = vunpack.c.l.b16 %v736
        %v1805 = vunpack.c.h.b16 %v736
        %v1806 = vunpack.c.l.b16 %v737
        %v1807 = vunpack.c.l.b16 %v738
        %v1808 = vunpack.c.h.b16 %v738
        %v1809 = vunpack.c.l.b16 %v739
        %v1810 = vunpack.c.l.b16 %v740
        %v1811 = vunpack.c.h.b16 %v740
        %v1812 = vunpack.c.l.b16 %v741
        %v1813 = vunpack.c.l.b16 %v742
        %v1814 = vunpack.c.h.b16 %v742
        %v1815 = vunpack.c.l.b16 %v743
        %v1816 = vunpack.c.l.b16 %v744
        %v1817 = vunpack.c.h.b16 %v744
        %v1818 = vunpack.c.l.b16 %v745
        %v1819 = vunpack.c.l.b16 %v746
        %v1820 = vunpack.c.h.b16 %v746
        %v1821 = vunpack.c.l.b16 %v747
        %v1822 = vunpack.c.l.b16 %v748
        %v1823 = vunpack.c.h.b16 %v748
        %v1824 = vunpack.c.l.b16 %v749
        %v1825 = vunpack.c.l.b16 %v750
        %v1826 = vunpack.c.h.b16 %v750
        %v1827 = vunpack.c.l.b16 %v751
        %v1828 = vunpack.c.l.b16 %v752
        %v1829 = vunpack.c.h.b16 %v752
        %v1830 = vunpack.c.l.b16 %v753
        %v1831 = vunpack.c.l.b16 %v754
        %v1832 = vunpack.c.h.b16 %v754
        %v1833 = vunpack.c.l.b16 %v755
        %v1834 = vunpack.c.l.b16 %v756
        %v1835 = vunpack.c.h.b16 %v756
        %v1836 = vunpack.c.l.b16 %v757
        %v1837 = vunpack.c.l.b16 %v758
        %v1838 = vunpack.c.h.b16 %v758
        %v1839 = vunpack.c.l.b16 %v759
        %v1840 = vunpack.c.l.b16 %v760
        %v1841 = vunpack.c.h.b16 %v760
        %v1842 = vunpack.c.l.b16 %v761
        %v1843 = vunpack.c.l.b16 %v762
        %v1844 = vunpack.c.h.b16 %v762
        %v1845 = vunpack.c.l.b16 %v763
        %v1846 = vunpack.c.l.b16 %v764
        %v1847 = vunpack.c.h.b16 %v764
        %v1848 = vunpack.c.l.b16 %v765
        %v1849 = vunpack.c.l.b16 %v766
        %v1850 = vunpack.c.h.b16 %v766
        %v1851 = vunpack.c.l.b16 %v767
        %v1852 = vunpack.c.l.b16 %v768
        %v1853 = vunpack.c.h.b16 %v768
        %v1854 = vunpack.c.l.b16 %v769
        %v1855 = vunpack.c.l.b16 %v770
        %v1856 = vunpack.c.h.b16 %v770
        %v1857 = vunpack.c.l.b16 %v771
        %v1858 = vunpack.c.l.b16 %v772
        %v1859 = vunpack.c.h.b16 %v772
        %v1860 = vunpack.c.l.b16 %v773
        %v1861 = vunpack.c.l.b16 %v774
        %v1862 = vunpack.c.h.b16 %v774
        %v1863 = vunpack.c.l.b16 %v775
        %v1864 = vunpack.c.l.b16 %v776
        %v1865 = vunpack.c.h.b16 %v776
        %v1866 = vunpack.c.l.b16 %v777
        %v1867 = vunpack.c.l.b16 %v778
        %v1868 = vunpack.c.h.b16 %v778
        %v1869 = vunpack.c.l.b16 %v779
        %v1870 = vunpack.c.l.b16 %v780
        %v1871 = vunpack.c.h.b16 %v780
        %v1872 = vunpack.c.l.b16 %v781
        %v1873 = vunpack.c.l.b16 %v782
        %v1874 = vunpack.c.h.b16 %v782
        %v1875 = vunpack.c.l.b16 %v783
        %v1876 = vunpack.c.l.b16 %v784
        %v1877 = vunpack.c.h.b16 %v784
        %v1878 = vunpack.c.l.b16 %v785
        %v1879 = vunpack.c.l.b16 %v786
        %v1880 = vunpack.c.h.b16 %v786
        %v1881 = vunpack.c.l.b16 %v787
        %v1882 = vunpack.c.l.b16 %v788
        %v1883 = vunpack.c.h.b16 %v788
        %v1884 = vunpack.c.l.b16 %v789
        %v1885 = vunpack.c.l.b16 %v790
        %v1886 = vunpack.c.h.b16 %v790
        %v1887 = vunpack.c.l.b16 %v791
        %v1888 = vunpack.c.l.b16 %v792
        %v1889 = vunpack.c.h.b16 %v792
        %v1890 = vunpack.c.l.b16 %v793
        %v1891 = vunpack.c.l.b16 %v794
        %v1892 = vunpack.c.h.b16 %v794
        %v1893 = vunpack.c.l.b16 %v795
        %v1894 = vunpack.c.l.b16 %v796
        %v1895 = vunpack.c.h.b16 %v796
        %v1896 = vunpack.c.l.b16 %v797
        %v1897 = vunpack.c.l.b16 %v798
        %v1898 = vunpack.c.h.b16 %v798
        %v1899 = vunpack.c.l.b16 %v799
        %v1900 = vunpack.c.l.b16 %v800
        %v1901 = vunpack.c.h.b16 %v800
        %v1902 = vunpack.c.l.b16 %v801
        %v1903 = vunpack.c.l.b16 %v802
        %v1904 = vunpack.c.h.b16 %v802
        %v1905 = vunpack.c.l.b16 %v803
        %v1906 = vunpack.c.l.b16 %v804
        %v1907 = vunpack.c.h.b16 %v804
        %v1908 = vunpack.c.l.b16 %v805
        %v1909 = vunpack.c.l.b16 %v806
        %v1910 = vunpack.c.h.b16 %v806
        %v1911 = vunpack.c.l.b16 %v807
        %v1912 = vunpack.c.l.b16 %v808
        %v1913 = vunpack.c.h.b16 %v808
        %v1914 = vunpack.c.l.b16 %v809
        %v1915 = vunpack.c.l.b16 %v810
        %v1916 = vunpack.c.h.b16 %v810
        %v1917 = vunpack.c.l.b16 %v811
        %v1918 = vunpack.c.l.b16 %v812
        %v1919 = vunpack.c.h.b16 %v812
        %v1920 = vunpack.c.l.b16 %v813
        %v1921 = vunpack.c.l.b16 %v814
        %v1922 = vunpack.c.h.b16 %v814
        %v1923 = vunpack.c.l.b16 %v815
        %v1924 = vunpack.c.l.b16 %v816
        %v1925 = vunpack.c.h.b16 %v816
        %v1926 = vunpack.c.l.b16 %v817
        %v1927 = vunpack.c.l.b16 %v818
        %v1928 = vunpack.c.h.b16 %v818
        %v1929 = vunpack.c.l.b16 %v819
        %v1930 = vunpack.c.l.b16 %v820
        %v1931 = vunpack.c.h.b16 %v820
        %v1932 = vunpack.c.l.b16 %v821
        %v1933 = vunpack.c.l.b16 %v822
        %v1934 = vunpack.c.h.b16 %v822
        %v1935 = vunpack.c.l.b16 %v823
        %v1936 = vunpack.c.l.b16 %v824
        %v1937 = vunpack.c.h.b16 %v824
        %v1938 = vunpack.c.l.b16 %v825
        %v1939 = vunpack.c.l.b16 %v826
        %v1940 = vunpack.c.h.b16 %v826
        %v1941 = vunpack.c.l.b16 %v827
        %v1942 = vunpack.c.l.b16 %v828
        %v1943 = vunpack.c.h.b16 %v828
        %v1944 = vunpack.c.l.b16 %v829
        %v1945 = vunpack.c.l.b16 %v830
        %v1946 = vunpack.c.h.b16 %v830
        %v1947 = vunpack.c.l.b16 %v831
        %v1948 = vunpack.c.l.b16 %v832
        %v1949 = vunpack.c.h.b16 %v832
        %v1950 = vunpack.c.l.b16 %v833
        %v1951 = vunpack.c.l.b16 %v834
        %v1952 = vunpack.c.h.b16 %v834
        %v1953 = vunpack.c.l.b16 %v835
        %v1954 = vunpack.c.l.b16 %v836
        %v1955 = vunpack.c.h.b16 %v836
        %v1956 = vunpack.c.l.b16 %v837
        %v1957 = vunpack.c.l.b16 %v838
        %v1958 = vunpack.c.h.b16 %v838
        %v1959 = vunpack.c.l.b16 %v839
        %v1960 = vunpack.c.l.b16 %v840
        %v1961 = vunpack.c.h.b16 %v840
        %v1962 = vunpack.c.l.b16 %v841
        %v1963 = vunpack.c.l.b16 %v842
        %v1964 = vunpack.c.h.b16 %v842
        %v1965 = vunpack.c.l.b16 %v843
        %v1966 = vunpack.c.l.b16 %v844
        %v1967 = vunpack.c.h.b16 %v844
        %v1968 = vunpack.c.l.b16 %v845
        %v1969 = vunpack.c.l.b16 %v846
        %v1970 = vunpack.c.h.b16 %v846
        %v1971 = vunpack.c.l.b16 %v847
        %v1972 = vunpack.c.l.b16 %v848
        %v1973 = vunpack.c.h.b16 %v848
        %v1974 = vunpack.c.l.b16 %v849
        %v1975 = vunpack.c.l.b16 %v850
        %v1976 = vunpack.c.h.b16 %v850
        %v1977 = vunpack.c.l.b16 %v851
        %v1978 = vunpack.c.l.b16 %v852
        %v1979 = vunpack.c.h.b16 %v852
        %v1980 = vunpack.c.l.b16 %v853
        %v1981 = vunpack.c.l.b16 %v854
        %v1982 = vunpack.c.h.b16 %v854
        %v1983 = vunpack.c.l.b16 %v855
        %v1984 = vunpack.c.l.b16 %v856
        %v1985 = vunpack.c.h.b16 %v856
        %v1986 = vunpack.c.l.b16 %v857
        %v1987 = vunpack.c.l.b16 %v858
        %v1988 = vunpack.c.h.b16 %v858
        %v1989 = vunpack.c.l.b16 %v859
        %v1990 = vunpack.c.l.b16 %v860
        %v1991 = vunpack.c.h.b16 %v860
        %v1992 = vunpack.c.l.b16 %v861
        %v1993 = vunpack.c.l.b16 %v862
        %v1994 = vunpack.c.h.b16 %v862
        %v1995 = vunpack.c.l.b16 %v863
        %v1996 = vunpack.c.l.b16 %v864
        %v1997 = vunpack.c.h.b16 %v864
        %v1998 = vunpack.c.l.b16 %v865
        %v1999 = vunpack.c.l.b16 %v866
        %v2000 = vunpack.c.h.b16 %v866
        %v2001 = vunpack.c.l.b16 %v867
        %v2002 = vunpack.c.l.b16 %v868
        %v2003 = vunpack.c.h.b16 %v868
        %v2004 = vunpack.c.l.b16 %v869
        %v2005 = vunpack.c.l.b16 %v870
        %v2006 = vunpack.c.h.b16 %v870
        %v2007 = vunpack.c.l.b16 %v871
        %v2008 = vunpack.c.l.b16 %v872
        %v2009 = vunpack.c.h.b16 %v872
        %v2010 = vunpack.c.l.b16 %v873
        %v2011 = vunpack.c.l.b16 %v874
        %v2012 = vunpack.c.h.b16 %v874
        %v2013 = vunpack.c.l.b16 %v875
        %v2014 = vunpack.c.l.b16 %v876
        %v2015 = vunpack.c.h.b16 %v876
        %v2016 = vunpack.c.l.b16 %v877
        %v2017 = vunpack.c.l.b16 %v878
        %v2018 = vunpack.c.h.b16 %v878
        %v2019 = vunpack.c.l.b16 %v879
        %v2020 = vunpack.c.l.b16 %v880
        %v2021 = vunpack.c.h.b16 %v880
        %v2022 = vunpack.c.l.b16 %v881
        %v2023 = vunpack.c.l.b16 %v882
        %v2024 = vunpack.c.h.b16 %v882
        %v2025 = vunpack.c.l.b16 %v883
        %v2026 = vunpack.c.l.b16 %v884
        %v2027 = vunpack.c.h.b16 %v884
        %v2028 = vunpack.c.l.b16 %v885
        %v2029 = vunpack.c.l.b16 %v886
        %v2030 = vunpack.c.h.b16 %v886
        %v2031 = vunpack.c.l.b16 %v887
        %v2032 = vunpack.c.l.b16 %v888
        %v2033 = vunpack.c.h.b16 %v888
        %v2034 = vunpack.c.l.b16 %v889
        %v2035 = vunpack.c.l.b16 %v890
        %v2036 = vunpack.c.h.b16 %v890
        %v2037 = vunpack.c.l.b16 %v891
        %v2038 = vunpack.c.l.b16 %v892
        %v2039 = vunpack.c.h.b16 %v892
        %v2040 = vunpack.c.l.b16 %v893
        %v2041 = vunpack.c.l.b16 %v894
        %v2042 = vunpack.c.h.b16 %v894
        %v2043 = vunpack.c.l.b16 %v895
        %v2044 = vunpack.c.l.b16 %v896
        %v2045 = vunpack.c.h.b16 %v896
        %v2046 = vunpack.c.l.b16 %v897
        %v2047 = vunpack.c.l.b16 %v898
        %v2048 = vunpack.c.h.b16 %v898
        %v2049 = vunpack.c.l.b16 %v899
        %v2050 = vunpack.c.l.b16 %v900
        %v2051 = vunpack.c.h.b16 %v900
        %v2052 = vunpack.c.l.b16 %v901
        %v2053 = vunpack.c.l.b16 %v902
        %v2054 = vunpack.c.h.b16 %v902
        %v2055 = vunpack.c.l.b16 %v903
        %v2056 = vunpack.c.l.b16 %v904
        %v2057 = vunpack.c.h.b16 %v904
        %v2058 = vunpack.c.l.b16 %v905
        %v2059 = vunpack.c.l.b16 %v906
        %v2060 = vunpack.c.h.b16 %v906
        %v2061 = vunpack.c.l.b16 %v907
        %v2062 = vunpack.c.l.b16 %v908
        %v2063 = vunpack.c.h.b16 %v908
        %v2064 = vunpack.c.l.b16 %v909
        %v2065 = vunpack.c.l.b16 %v910
        %v2066 = vunpack.c.h.b16 %v910
        %v2067 = vunpack.c.l.b16 %v911
        %v2068 = vunpack.c.l.b16 %v912
        %v2069 = vunpack.c.h.b16 %v912
        %v2070 = vunpack.c.l.b16 %v913
        %v2071 = vunpack.c.l.b16 %v914
        %v2072 = vunpack.c.h.b16 %v914
        %v2073 = vunpack.c.l.b16 %v915
        %v2074 = vunpack.c.l.b16 %v916
        %v2075 = vunpack.c.h.b16 %v916
        %v2076 = vunpack.c.l.b16 %v917
        %v2077 = vunpack.c.l.b16 %v918
        %v2078 = vunpack.c.h.b16 %v918
        %v2079 = vunpack.c.l.b16 %v919
        %v2080 = vunpack.c.l.b16 %v920
        %v2081 = vunpack.c.h.b16 %v920
        %v2082 = vunpack.c.l.b16 %v921
        %v2083 = vunpack.c.l.b16 %v922
        %v2084 = vunpack.c.h.b16 %v922
        %v2085 = vunpack.c.l.b16 %v923
        %v2086 = vunpack.c.l.b16 %v924
        %v2087 = vunpack.c.h.b16 %v924
        %v2088 = vunpack.c.l.b16 %v925
        %v2089 = vunpack.c.l.b16 %v926
        %v2090 = vunpack.c.h.b16 %v926
        %v2091 = vunpack.c.l.b16 %v927
        %v2092 = vunpack.c.l.b16 %v928
        %v2093 = vunpack.c.h.b16 %v928
        %v2094 = vunpack.c.l.b16 %v929
        %v2095 = vunpack.c.l.b16 %v930
        %v2096 = vunpack.c.h.b16 %v930
        %v2097 = vunpack.c.l.b16 %v931
        %v2098 = vunpack.c.l.b16 %v932
        %v2099 = vunpack.c.h.b16 %v932
        %v2100 = vunpack.c.l.b16 %v933
        %v2101 = vunpack.c.l.b16 %v934
        %v2102 = vunpack.c.h.b16 %v934
        %v2103 = vunpack.c.l.b16 %v935
        %v2104 = vunpack.c.l.b16 %v936
        %v2105 = vunpack.c.h.b16 %v936
        %v2106 = vunpack.c.l.b16 %v937
        %v2107 = vunpack.c.l.b16 %v938
        %v2108 = vunpack.c.h.b16 %v938
        %v2109 = vunpack.c.l.b16 %v939
        %v2110 = vunpack.c.l.b16 %v940
        %v2111 = vunpack.c.h.b16 %v940
        %v2112 = vunpack.c.l.b16 %v941
        %v2113 = vunpack.c.l.b16 %v942
        %v2114 = vunpack.c.h.b16 %v942
        %v2115 = vunpack.c.l.b16 %v943
        %v2116 = vunpack.c.l.b16 %v944
        %v2117 = vunpack.c.h.b16 %v944
        %v2118 = vunpack.c.l.b16 %v945
        %v2119 = vunpack.c.l.b16 %v946
        %v2120 = vunpack.c.h.b16 %v946
        %v2121 = vunpack.c.l.b16 %v947
        %v2122 = vunpack.c.l.b16 %v948
        %v2123 = vunpack.c.h.b16 %v948
        %v2124 = vunpack.c.l.b16 %v949
        %v2125 = vunpack.c.l.b16 %v950
        %v2126 = vunpack.c.h.b16 %v950
        %v2127 = vunpack.c.l.b16 %v951
        %v2128 = vunpack.c.l.b16 %v952
        %v2129 = vunpack.c.h.b16 %v952
        %v2130 = vunpack.c.l.b16 %v953
        %v2131 = vunpack.c.l.b16 %v954
        %v2132 = vunpack.c.h.b16 %v954
        %v2133 = vunpack.c.l.b16 %v955
        %v2134 = vunpack.c.l.b16 %v956
        %v2135 = vunpack.c.h.b16 %v956
        %v2136 = vunpack.c.l.b16 %v957
        %v2137 = vunpack.c.l.b16 %v958
        %v2138 = vunpack.c.h.b16 %v958
        %v2139 = vunpack.c.l.b16 %v959
        %v2140 = vunpack.c.l.b16 %v960
        %v2141 = vunpack.c.h.b16 %v960
        %v2142 = vunpack.c.l.b16 %v961
        %v2143 = vunpack.c.l.b16 %v962
        %v2144 = vunpack.c.h.b16 %v962
        %v2145 = vunpack.c.l.b16 %v963
        %v2146 = vunpack.c.l.b16 %v964
        %v2147 = vunpack.c.h.b16 %v964
        %v2148 = vunpack.c.l.b16 %v965
        %v2149 = vunpack.c.l.b16 %v966
        %v2150 = vunpack.c.h.b16 %v966
        %v2151 = vunpack.c.l.b16 %v967
        %v2152 = vunpack.c.l.b16 %v968
        %v2153 = vunpack.c.h.b16 %v968
        %v2154 = vunpack.c.l.b16 %v969
        %v2155 = vunpack.c.l.b16 %v970
        %v2156 = vunpack.c.h.b16 %v970
        %v2157 = vunpack.c.l.b16 %v971
        %v2158 = vunpack.c.l.b16 %v972
        %v2159 = vunpack.c.h.b16 %v972
        %v2160 = vunpack.c.l.b16 %v973
        %v2161 = vunpack.c.l.b16 %v974
        %v2162 = vunpack.c.h.b16 %v974
        %v2163 = vunpack.c.l.b16 %v975
        %v2164 = vunpack.c.l.b16 %v976
        %v2165 = vunpack.c.h.b16 %v976
        %v2166 = vunpack.c.l.b16 %v977
        %v2167 = vunpack.c.l.b16 %v978
        %v2168 = vunpack.c.h.b16 %v978
        %v2169 = vunpack.c.l.b16 %v979
        %v2170 = vunpack.c.l.b16 %v980
        %v2171 = vunpack.c.h.b16 %v980
        %v2172 = vunpack.c.l.b16 %v981
        %v2173 = vunpack.c.l.b16 %v982
        %v2174 = vunpack.c.h.b16 %v982
        %v2175 = vunpack.c.l.b16 %v983
        %v2176 = vunpack.c.l.b16 %v984
        %v2177 = vunpack.c.h.b16 %v984
        %v2178 = vunpack.c.l.b16 %v985
        %v2179 = vunpack.c.l.b16 %v986
        %v2180 = vunpack.c.h.b16 %v986
        %v2181 = vunpack.c.l.b16 %v987
        %v2182 = vunpack.c.l.b16 %v988
        %v2183 = vunpack.c.h.b16 %v988
        %v2184 = vunpack.c.l.b16 %v989
        %v2185 = vunpack.c.l.b16 %v990
        %v2186 = vunpack.c.h.b16 %v990
        %v2187 = vunpack.c.l.b16 %v991
        %v2188 = vunpack.c.l.b16 %v992
        %v2189 = vunpack.c.h.b16 %v992
        %v2190 = vunpack.c.l.b16 %v993
        %v2191 = vunpack.c.l.b16 %v994
        %v2192 = vunpack.c.h.b16 %v994
        %v2193 = vunpack.c.l.b16 %v995
        %v2194 = vunpack.c.l.b16 %v996
        %v2195 = vunpack.c.h.b16 %v996
        %v2196 = vunpack.c.l.b16 %v997
        %v2197 = vunpack.c.l.b16 %v998
        %v2198 = vunpack.c.h.b16 %v998
        %v2199 = vunpack.c.l.b16 %v999
        %v2200 = vunpack.c.l.b16 %v1000
        %v2201 = vunpack.c.h.b16 %v1000
        %v2202 = vunpack.c.l.b16 %v1001
        %v2203 = vunpack.c.l.b16 %v1002
        %v2204 = vunpack.c.h.b16 %v1002
        %v2205 = vunpack.c.l.b16 %v1003
        %v2206 = vunpack.c.l.b16 %v1004
        %v2207 = vunpack.c.h.b16 %v1004
        %v2208 = vunpack.c.l.b16 %v1005
        %v2209 = vunpack.c.l.b16 %v1006
        %v2210 = vunpack.c.h.b16 %v1006
        %v2211 = vunpack.c.l.b16 %v1007
        %v2212 = vunpack.c.l.b16 %v1008
        %v2213 = vunpack.c.h.b16 %v1008
        %v2214 = vunpack.c.l.b16 %v1009
        %v2215 = vunpack.c.l.b16 %v1010
        %v2216 = vunpack.c.h.b16 %v1010
        %v2217 = vunpack.c.l.b16 %v1011
        %v2218 = vunpack.c.l.b16 %v1012
        %v2219 = vunpack.c.h.b16 %v1012
        %v2220 = vunpack.c.l.b16 %v1013
        %v2221 = vunpack.c.l.b16 %v1014
        %v2222 = vunpack.c.h.b16 %v1014
        %v2223 = vunpack.c.l.b16 %v1015
        %v2224 = vunpack.c.l.b16 %v1016
        %v2225 = vunpack.c.h.b16 %v1016
        %v2226 = vunpack.c.l.b16 %v1017
        %v2227 = vunpack.c.l.b16 %v1018
        %v2228 = vunpack.c.h.b16 %v1018
        %v2229 = vunpack.c.l.b16 %v1019
        %v2230 = vunpack.c.l.b16 %v1020
        %v2231 = vunpack.c.h.b16 %v1020
        %v2232 = vunpack.c.l.b16 %v1021
        %v2233 = vunpack.c.l.b16 %v1022
        %v2234 = vunpack.c.h.b16 %v1022
        %v2235 = vunpack.c.l.b16 %v1023
        %v2236 = vunpack.c.l.b16 %v1024
        %v2237 = vunpack.c.h.b16 %v1024
        %v2238 = vunpack.c.l.b16 %v1025
        %v2239 = vunpack.c.l.b16 %v1026
        %v2240 = vunpack.c.h.b16 %v1026
        %v2241 = vunpack.c.l.b16 %v1027
        %v2242 = vunpack.c.l.b16 %v1028
        %v2243 = vunpack.c.h.b16 %v1028
        %v2244 = vunpack.c.l.b16 %v1029
        %v2245 = vunpack.c.l.b16 %v1030
        %v2246 = vunpack.c.h.b16 %v1030
        %v2247 = vunpack.c.l.b16 %v1031
        %v2248 = vunpack.c.l.b16 %v1032
        %v2249 = vunpack.c.h.b16 %v1032
        %v2250 = vunpack.c.l.b16 %v1033
        %v2251 = vunpack.c.l.b16 %v1034
        %v2252 = vunpack.c.h.b16 %v1034
        %v2253 = vunpack.c.l.b16 %v1035
        %v2254 = vunpack.c.l.b16 %v1036
        %v2255 = vunpack.c.h.b16 %v1036
        %v2256 = vunpack.c.l.b16 %v1037
        %v2257 = vunpack.c.l.b16 %v1038
        %v2258 = vunpack.c.h.b16 %v1038
        %v2259 = vunpack.c.l.b16 %v1039
        %v2260 = vunpack.c.l.b16 %v1040
        %v2261 = vunpack.c.h.b16 %v1040
        %v2262 = vunpack.c.l.b16 %v1041
        %v2263 = vunpack.c.l.b16 %v1042
        %v2264 = vunpack.c.h.b16 %v1042
        %v2265 = vunpack.c.l.b16 %v1043
        %v2266 = vunpack.c.l.b16 %v1044
        %v2267 = vunpack.c.h.b16 %v1044
        %v2268 = vunpack.c.l.b16 %v1045
        %v2269 = vunpack.c.l.b16 %v1046
        %v2270 = vunpack.c.h.b16 %v1046
        %v2271 = vunpack.c.l.b16 %v1047
        %v2272 = vunpack.c.l.b16 %v1048
        %v2273 = vunpack.c.h.b16 %v1048
        %v2274 = vunpack.c.l.b16 %v1049
        %v2275 = vunpack.c.l.b16 %v1050
        %v2276 = vunpack.c.h.b16 %v1050
        %v2277 = vunpack.c.l.b16 %v1051
        %v2278 = vunpack.c.l.b16 %v1052
        %v2279 = vunpack.c.h.b16 %v1052
        %v2280 = vunpack.c.l.b16 %v1053
        %v2281 = vunpack.c.l.b16 %v1054
        %v2282 = vunpack.c.h.b16 %v1054
        %v2283 = vunpack.c.l.b16 %v1055
        %v2284 = vunpack.c.l.b16 %v1056
        %v2285 = vunpack.c.h.b16 %v1056
        %v2286 = vunpack.c.l.b16 %v1057
        %v2287 = vunpack.c.l.b16 %v1058
        %v2288 = vunpack.c.h.b16 %v1058
        %v2289 = vunpack.c.l.b16 %v1059
        %v2290 = vunpack.c.l.b16 %v1060
        %v2291 = vunpack.c.h.b16 %v1060
        %v2292 = vunpack.c.l.b16 %v1061
        %v2293 = vunpack.c.l.b16 %v1062
        %v2294 = vunpack.c.h.b16 %v1062
        %v2295 = vunpack.c.l.b16 %v1063
        %v2296 = vunpack.c.l.b16 %v1064
        %v2297 = vunpack.c.h.b16 %v1064
        %v2298 = vunpack.c.l.b16 %v1065
        %v2299 = vunpack.c.l.b16 %v1066
        %v2300 = vunpack.c.h.b16 %v1066
        %v2301 = vunpack.c.l.b16 %v1067
        %v2302 = vunpack.c.l.b16 %v1068
        %v2303 = vunpack.c.h.b16 %v1068
        %v2304 = vunpack.c.l.b16 %v1069
        %v2305 = vunpack.c.l.b16 %v1070
        %v2306 = vunpack.c.h.b16 %v1070
        %v2307 = vunpack.c.l.b16 %v1071
        %v2308 = vunpack.c.l.b16 %v1072
        %v2309 = vunpack.c.h.b16 %v1072
        %v2310 = vunpack.c.l.b16 %v1073
        %v2311 = vunpack.c.l.b16 %v1074
        %v2312 = vunpack.c.h.b16 %v1074
        %v2313 = vunpack.c.l.b16 %v1075
        %v2314 = vunpack.c.l.b16 %v1076
        %v2315 = vunpack.c.h.b16 %v1076
        %v2316 = vunpack.c.l.b16 %v1077
        %v2317 = vunpack.c.l.b16 %v1078
        %v2318 = vunpack.c.h.b16 %v1078
        %v2319 = vunpack.c.l.b16 %v1079
        %v2320 = vunpack.c.l.b16 %v1080
        %v2321 = vunpack.c.h.b16 %v1080
        %v2322 = vunpack.c.l.b16 %v1081
        %v2323 = vunpack.c.l.b16 %v1082
        %v2324 = vunpack.c.h.b16 %v1082
        %v2325 = vunpack.c.l.b16 %v1083
        %v2326 = vunpack.c.l.b16 %v1084
        %v2327 = vunpack.c.h.b16 %v1084
        %v2328 = vunpack.c.l.b16 %v1085
        %v2329 = vunpack.c.l.b16 %v1086
        %v2330 = vunpack.c.h.b16 %v1086
        %v2331 = vunpack.c.l.b16 %v1087
        %v2332 = vunpack.c.l.b16 %v1088
        %v2333 = vunpack.c.h.b16 %v1088
        %v2334 = vunpack.c.l.b16 %v1089
        %v2335 = vunpack.c.l.b16 %v1090
        %v2336 = vunpack.c.h.b16 %v1090
        %v2337 = vunpack.c.l.b16 %v1091
        %v2338 = vunpack.c.l.b16 %v1092
        %v2339 = vunpack.c.h.b16 %v1092
        %v2340 = vunpack.c.l.b16 %v1093
        %v2341 = vunpack.c.l.b16 %v1094
        %v2342 = vunpack.c.h.b16 %v1094
        %v2343 = vunpack.c.l.b16 %v1095
        %v2344 = vunpack.c.l.b16 %v1096
        %v2345 = vunpack.c.h.b16 %v1096
        %v2346 = vunpack.c.l.b16 %v1097
        %v2347 = vunpack.c.l.b16 %v1098
        %v2348 = vunpack.c.h.b16 %v1098
        %v2349 = vunpack.c.l.b16 %v1099
        %v2350 = vunpack.c.l.b16 %v1100
        %v2351 = vunpack.c.h.b16 %v1100
        %v2352 = vunpack.c.l.b16 %v1101
        %v2353 = vunpack.c.l.b16 %v1102
        %v2354 = vunpack.c.h.b16 %v1102
        %v2355 = vunpack.c.l.b16 %v1103
        %v2356 = vunpack.c.l.b16 %v1104
        %v2357 = vunpack.c.h.b16 %v1104
        %v2358 = vunpack.c.l.b16 %v1105
        %v2359 = vunpack.c.l.b16 %v1106
        %v2360 = vunpack.c.h.b16 %v1106
        %v2361 = vunpack.c.l.b16 %v1107
        %v2362 = vunpack.c.l.b16 %v1108
        %v2363 = vunpack.c.h.b16 %v1108
        %v2364 = vunpack.c.l.b16 %v1109
        %v2365 = vunpack.c.l.b16 %v1110
        %v2366 = vunpack.c.h.b16 %v1110
        %v2367 = vunpack.c.l.b16 %v1111
        %v2368 = vunpack.c.l.b16 %v1112
        %v2369 = vunpack.c.h.b16 %v1112
        %v2370 = vunpack.c.l.b16 %v1113
        %v2371 = vunpack.c.l.b16 %v1114
        %v2372 = vunpack.c.h.b16 %v1114
        %v2373 = vunpack.c.l.b16 %v1115
        %v2374 = vunpack.c.l.b16 %v1116
        %v2375 = vunpack.c.h.b16 %v1116
        %v2376 = vunpack.c.l.b16 %v1117
        %v2377 = vunpack.c.l.b16 %v1118
        %v2378 = vunpack.c.h.b16 %v1118
        %v2379 = vunpack.c.l.b16 %v1119
        %v2380 = vunpack.c.l.b16 %v1120
        %v2381 = vunpack.c.h.b16 %v1120
        %v2382 = vunpack.c.l.b16 %v1121
        %v2383 = vunpack.c.l.b16 %v1122
        %v2384 = vunpack.c.h.b16 %v1122
        %v2385 = vunpack.c.l.b16 %v1123
        %v2386 = vunpack.c.l.b16 %v1124
        %v2387 = vunpack.c.h.b16 %v1124
        %v2388 = vunpack.c.l.b16 %v1125
        %v2389 = vunpack.c.l.b16 %v1126
        %v2390 = vunpack.c.h.b16 %v1126
        %v2391 = vunpack.c.l.b16 %v1127
        %v2392 = vunpack.c.l.b16 %v1128
        %v2393 = vunpack.c.h.b16 %v1128
        %v2394 = vunpack.c.l.b16 %v1129
        %v2395 = vunpack.c.l.b16 %v1130
        %v2396 = vunpack.c.h.b16 %v1130
        %v2397 = vunpack.c.l.b16 %v1131
        %v2398 = vunpack.c.l.b16 %v1132
        %v2399 = vunpack.c.h.b16 %v1132
        %v2400 = vunpack.c.l.b16 %v1133
        %v2401 = vunpack.c.l.b16 %v1134
        %v2402 = vunpack.c.h.b16 %v1134
        %v2403 = vunpack.c.l.b16 %v1135
        %v2404 = vunpack.c.l.b16 %v1136
        %v2405 = vunpack.c.h.b16 %v1136
        %v2406 = vunpack.c.l.b16 %v1137
        %v2407 = vunpack.c.l.b16 %v1138
        %v2408 = vunpack.c.h.b16 %v1138
        %v2409 = vunpack.c.l.b16 %v1139
        %v2410 = vunpack.c.l.b16 %v1140
        %v2411 = vunpack.c.h.b16 %v1140
        %v2412 = vunpack.c.l.b16 %v1141
        %v2413 = vunpack.c.l.b16 %v1142
        %v2414 = vunpack.c.h.b16 %v1142
        %v2415 = vunpack.c.l.b16 %v1143
        %v2416 = vunpack.c.l.b16 %v1144
        %v2417 = vunpack.c.h.b16 %v1144
        %v2418 = vunpack.c.l.b16 %v1145
        %v2419 = vunpack.c.l.b16 %v1146
        %v2420 = vunpack.c.h.b16 %v1146
        %v2421 = vunpack.c.l.b16 %v1147
        %v2422 = vunpack.c.l.b16 %v1148
        %v2423 = vunpack.c.h.b16 %v1148
        %v2424 = vunpack.c.l.b16 %v1149
        %v2425 = vunpack.c.l.b16 %v1150
        %v2426 = vunpack.c.h.b16 %v1150
        %v2427 = vunpack.c.l.b16 %v1151
        %v2428 = vunpack.c.l.b16 %v1152
        %v2429 = vunpack.c.h.b16 %v1152
        %v2430 = vunpack.c.l.b16 %v1153
        %v2431 = vunpack.c.l.b16 %v1154
        %v2432 = vunpack.c.h.b16 %v1154
        %v2433 = vunpack.c.l.b16 %v1155
        %v2434 = vunpack.c.l.b16 %v1156
        %v2435 = vunpack.c.h.b16 %v1156
        %v2436 = vunpack.c.l.b16 %v1157
        %v2437 = vunpack.c.l.b16 %v1158
        %v2438 = vunpack.c.h.b16 %v1158
        %v2439 = vunpack.c.l.b16 %v1159
        %v2440 = vunpack.c.l.b16 %v1160
        %v2441 = vunpack.c.h.b16 %v1160
        %v2442 = vunpack.c.l.b16 %v1161
        %v2443 = vunpack.c.l.b16 %v1162
        %v2444 = vunpack.c.h.b16 %v1162
        %v2445 = vunpack.c.l.b16 %v1163
        %v2446 = vunpack.c.l.b16 %v1164
        %v2447 = vunpack.c.h.b16 %v1164
        %v2448 = vunpack.c.l.b16 %v1165
        %v2449 = vunpack.c.l.b16 %v1166
        %v2450 = vunpack.c.h.b16 %v1166
        %v2451 = vunpack.c.l.b16 %v1167
        %v2452 = vunpack.c.l.b16 %v1168
        %v2453 = vunpack.c.h.b16 %v1168
        %v2454 = vunpack.c.l.b16 %v1169
        %v2455 = vunpack.c.l.b16 %v1170
        %v2456 = vunpack.c.h.b16 %v1170
        %v2457 = vunpack.c.l.b16 %v1171
        %v2458 = vunpack.c.l.b16 %v1172
        %v2459 = vunpack.c.h.b16 %v1172
        %v2460 = vunpack.c.l.b16 %v1173
        %v2461 = vunpack.c.l.b16 %v1174
        %v2462 = vunpack.c.h.b16 %v1174
        %v2463 = vunpack.c.l.b16 %v1175
        %v2464 = vunpack.c.l.b16 %v1176
        %v2465 = vunpack.c.h.b16 %v1176
        %v2466 = vunpack.c.l.b16 %v1177
        %v2467 = vunpack.c.l.b16 %v1178
        %v2468 = vunpack.c.h.b16 %v1178
        %v2469 = vunpack.c.l.b16 %v1179
        %v2470 = vunpack.c.l.b16 %v1180
        %v2471 = vunpack.c.h.b16 %v1180
        %v2472 = vunpack.c.l.b16 %v1181
        %v2473 = vunpack.c.l.b16 %v1182
        %v2474 = vunpack.c.h.b16 %v1182
        %v2475 = vunpack.c.l.b16 %v1183
        %v2476 = vunpack.c.l.b16 %v1184
        %v2477 = vunpack.c.h.b16 %v1184
        %v2478 = vunpack.c.l.b16 %v1185
        %v2479 = vunpack.c.l.b16 %v1186
        %v2480 = vunpack.c.h.b16 %v1186
        %v2481 = vunpack.c.l.b16 %v1187
        %v2482 = vunpack.c.l.b16 %v1188
        %v2483 = vunpack.c.h.b16 %v1188
        %v2484 = vunpack.c.l.b16 %v1189
        %v2485 = vunpack.c.l.b16 %v1190
        %v2486 = vunpack.c.h.b16 %v1190
        %v2487 = vunpack.c.l.b16 %v1191
        %v2488 = vunpack.c.l.b16 %v1192
        %v2489 = vunpack.c.h.b16 %v1192
        %v2490 = vunpack.c.l.b16 %v1193
        %v2491 = vpack.c.b16 %v1726, %v1723
        %v2492 = vpack.c.b16 %v1727, %v1724
        %v2493 = vpack.c.b16 %v1728, %v1725
        %v2494 = vpack.c.b16 %v1732, %v1729
        %v2495 = vpack.c.b16 %v1733, %v1730
        %v2496 = vpack.c.b16 %v1734, %v1731
        %v2497 = vpack.c.b16 %v1738, %v1735
        %v2498 = vpack.c.b16 %v1739, %v1736
        %v2499 = vpack.c.b16 %v1740, %v1737
        %v2500 = vpack.c.b16 %v1744, %v1741
        %v2501 = vpack.c.b16 %v1745, %v1742
        %v2502 = vpack.c.b16 %v1746, %v1743
        %v2503 = vpack.c.b16 %v1750, %v1747
        %v2504 = vpack.c.b16 %v1751, %v1748
        %v2505 = vpack.c.b16 %v1752, %v1749
        %v2506 = vpack.c.b16 %v1756, %v1753
        %v2507 = vpack.c.b16 %v1757, %v1754
        %v2508 = vpack.c.b16 %v1758, %v1755
        %v2509 = vpack.c.b16 %v1762, %v1759
        %v2510 = vpack.c.b16 %v1763, %v1760
        %v2511 = vpack.c.b16 %v1764, %v1761
        %v2512 = vpack.c.b16 %v1768, %v1765
        %v2513 = vpack.c.b16 %v1769, %v1766
        %v2514 = vpack.c.b16 %v1770, %v1767
        %v2515 = vpack.c.b16 %v1774, %v1771
        %v2516 = vpack.c.b16 %v1775, %v1772
        %v2517 = vpack.c.b16 %v1776, %v1773
        %v2518 = vpack.c.b16 %v1780, %v1777
        %v2519 = vpack.c.b16 %v1781, %v1778
        %v2520 = vpack.c.b16 %v1782, %v1779
        %v2521 = vpack.c.b16 %v1786, %v1783
        %v2522 = vpack.c.b16 %v1787, %v1784
        %v2523 = vpack.c.b16 %v1788, %v1785
        %v2524 = vpack.c.b16 %v1792, %v1789
        %v2525 = vpack.c.b16 %v1793, %v1790
        %v2526 = vpack.c.b16 %v1794, %v1791
        %v2527 = vpack.c.b16 %v1798, %v1795
        %v2528 = vpack.c.b16 %v1799, %v1796
        %v2529 = vpack.c.b16 %v1800, %v1797
        %v2530 = vpack.c.b16 %v1804, %v1801
        %v2531 = vpack.c.b16 %v1805, %v1802
        %v2532 = vpack.c.b16 %v1806, %v1803
        %v2533 = vpack.c.b16 %v1810, %v1807
        %v2534 = vpack.c.b16 %v1811, %v1808
        %v2535 = vpack.c.b16 %v1812, %v1809
        %v2536 = vpack.c.b16 %v1816, %v1813
        %v2537 = vpack.c.b16 %v1817, %v1814
        %v2538 = vpack.c.b16 %v1818, %v1815
        %v2539 = vpack.c.b16 %v1822, %v1819
        %v2540 = vpack.c.b16 %v1823, %v1820
        %v2541 = vpack.c.b16 %v1824, %v1821
        %v2542 = vpack.c.b16 %v1828, %v1825
        %v2543 = vpack.c.b16 %v1829, %v1826
        %v2544 = vpack.c.b16 %v1830, %v1827
        %v2545 = vpack.c.b16 %v1834, %v1831
        %v2546 = vpack.c.b16 %v1835, %v1832
        %v2547 = vpack.c.b16 %v1836, %v1833
        %v2548 = vpack.c.b16 %v1840, %v1837
        %v2549 = vpack.c.b16 %v1841, %v1838
        %v2550 = vpack.c.b16 %v1842, %v1839
        %v2551 = vpack.c.b16 %v1846, %v1843
        %v2552 = vpack.c.b16 %v1847, %v1844
        %v2553 = vpack.c.b16 %v1848, %v1845
        %v2554 = vpack.c.b16 %v1852, %v1849
        %v2555 = vpack.c.b16 %v1853, %v1850
        %v2556 = vpack.c.b16 %v1854, %v1851
        %v2557 = vpack.c.b16 %v1858, %v1855
        %v2558 = vpack.c.b16 %v1859, %v1856
        %v2559 = vpack.c.b16 %v1860, %v1857
        %v2560 = vpack.c.b16 %v1864, %v1861
        %v2561 = vpack.c.b16 %v1865, %v1862
        %v2562 = vpack.c.b16 %v1866, %v1863
        %v2563 = vpack.c.b16 %v1870, %v1867
        %v2564 = vpack.c.b16 %v1871, %v1868
        %v2565 = vpack.c.b16 %v1872, %v1869
        %v2566 = vpack.c.b16 %v1876, %v1873
        %v2567 = vpack.c.b16 %v1877, %v1874
        %v2568 = vpack.c.b16 %v1878, %v1875
        %v2569 = vpack.c.b16 %v1882, %v1879
        %v2570 = vpack.c.b16 %v1883, %v1880
        %v2571 = vpack.c.b16 %v1884, %v1881
        %v2572 = vpack.c.b16 %v1888, %v1885
        %v2573 = vpack.c.b16 %v1889, %v1886
        %v2574 = vpack.c.b16 %v1890, %v1887
        %v2575 = vpack.c.b16 %v1894, %v1891
        %v2576 = vpack.c.b16 %v1895, %v1892
        %v2577 = vpack.c.b16 %v1896, %v1893
        %v2578 = vpack.c.b16 %v1900, %v1897
        %v2579 = vpack.c.b16 %v1901, %v1898
        %v2580 = vpack.c.b16 %v1902, %v1899
        %v2581 = vpack.c.b16 %v1906, %v1903
        %v2582 = vpack.c.b16 %v1907, %v1904
        %v2583 = vpack.c.b16 %v1908, %v1905
        %v2584 = vpack.c.b16 %v1912, %v1909
        %v2585 = vpack.c.b16 %v1913, %v1910
        %v2586 = vpack.c.b16 %v1914, %v1911
        %v2587 = vpack.c.b16 %v1918, %v1915
        %v2588 = vpack.c.b16 %v1919, %v1916
        %v2589 = vpack.c.b16 %v1920, %v1917
        %v2590 = vpack.c.b16 %v1924, %v1921
        %v2591 = vpack.c.b16 %v1925, %v1922
        %v2592 = vpack.c.b16 %v1926, %v1923
        %v2593 = vpack.c.b16 %v1930, %v1927
        %v2594 = vpack.c.b16 %v1931, %v1928
        %v2595 = vpack.c.b16 %v1932, %v1929
        %v2596 = vpack.c.b16 %v1936, %v1933
        %v2597 = vpack.c.b16 %v1937, %v1934
        %v2598 = vpack.c.b16 %v1938, %v1935
        %v2599 = vpack.c.b16 %v1942, %v1939
        %v2600 = vpack.c.b16 %v1943, %v1940
        %v2601 = vpack.c.b16 %v1944, %v1941
        %v2602 = vpack.c.b16 %v1948, %v1945
        %v2603 = vpack.c.b16 %v1949, %v1946
        %v2604 = vpack.c.b16 %v1950, %v1947
        %v2605 = vpack.c.b16 %v1954, %v1951
        %v2606 = vpack.c.b16 %v1955, %v1952
        %v2607 = vpack.c.b16 %v1956, %v1953
        %v2608 = vpack.c.b16 %v1960, %v1957
        %v2609 = vpack.c.b16 %v1961, %v1958
        %v2610 = vpack.c.b16 %v1962, %v1959
        %v2611 = vpack.c.b16 %v1966, %v1963
        %v2612 = vpack.c.b16 %v1967, %v1964
        %v2613 = vpack.c.b16 %v1968, %v1965
        %v2614 = vpack.c.b16 %v1972, %v1969
        %v2615 = vpack.c.b16 %v1973, %v1970
        %v2616 = vpack.c.b16 %v1974, %v1971
        %v2617 = vpack.c.b16 %v1978, %v1975
        %v2618 = vpack.c.b16 %v1979, %v1976
        %v2619 = vpack.c.b16 %v1980, %v1977
        %v2620 = vpack.c.b16 %v1984, %v1981
        %v2621 = vpack.c.b16 %v1985, %v1982
        %v2622 = vpack.c.b16 %v1986, %v1983
        %v2623 = vpack.c.b16 %v1990, %v1987
        %v2624 = vpack.c.b16 %v1991, %v1988
        %v2625 = vpack.c.b16 %v1992, %v1989
        %v2626 = vpack.c.b16 %v1996, %v1993
        %v2627 = vpack.c.b16 %v1997, %v1994
        %v2628 = vpack.c.b16 %v1998, %v1995
        %v2629 = vpack.c.b16 %v2002, %v1999
        %v2630 = vpack.c.b16 %v2003, %v2000
        %v2631 = vpack.c.b16 %v2004, %v2001
        %v2632 = vpack.c.b16 %v2008, %v2005
        %v2633 = vpack.c.b16 %v2009, %v2006
        %v2634 = vpack.c.b16 %v2010, %v2007
        %v2635 = vpack.c.b16 %v2014, %v2011
        %v2636 = vpack.c.b16 %v2015, %v2012
        %v2637 = vpack.c.b16 %v2016, %v2013
        %v2638 = vpack.c.b16 %v2020, %v2017
        %v2639 = vpack.c.b16 %v2021, %v2018
        %v2640 = vpack.c.b16 %v2022, %v2019
        %v2641 = vpack.c.b16 %v2026, %v2023
        %v2642 = vpack.c.b16 %v2027, %v2024
        %v2643 = vpack.c.b16 %v2028, %v2025
        %v2644 = vpack.c.b16 %v2032, %v2029
        %v2645 = vpack.c.b16 %v2033, %v2030
        %v2646 = vpack.c.b16 %v2034, %v2031
        %v2647 = vpack.c.b16 %v2038, %v2035
        %v2648 = vpack.c.b16 %v2039, %v2036
        %v2649 = vpack.c.b16 %v2040, %v2037
        %v2650 = vpack.c.b16 %v2044, %v2041
        %v2651 = vpack.c.b16 %v2045, %v2042
        %v2652 = vpack.c.b16 %v2046, %v2043
        %v2653 = vpack.c.b16 %v2050, %v2047
        %v2654 = vpack.c.b16 %v2051, %v2048
        %v2655 = vpack.c.b16 %v2052, %v2049
        %v2656 = vpack.c.b16 %v2056, %v2053
        %v2657 = vpack.c.b16 %v2057, %v2054
        %v2658 = vpack.c.b16 %v2058, %v2055
        %v2659 = vpack.c.b16 %v2062, %v2059
        %v2660 = vpack.c.b16 %v2063, %v2060
        %v2661 = vpack.c.b16 %v2064, %v2061
        %v2662 = vpack.c.b16 %v2068, %v2065
        %v2663 = vpack.c.b16 %v2069, %v2066
        %v2664 = vpack.c.b16 %v2070, %v2067
        %v2665 = vpack.c.b16 %v2074, %v2071
        %v2666 = vpack.c.b16 %v2075, %v2072
        %v2667 = vpack.c.b16 %v2076, %v2073
        %v2668 = vpack.c.b16 %v2080, %v2077
        %v2669 = vpack.c.b16 %v2081, %v2078
        %v2670 = vpack.c.b16 %v2082, %v2079
        %v2671 = vpack.c.b16 %v2086, %v2083
        %v2672 = vpack.c.b16 %v2087, %v2084
        %v2673 = vpack.c.b16 %v2088, %v2085
        %v2674 = vpack.c.b16 %v2092, %v2089
        %v2675 = vpack.c.b16 %v2093, %v2090
        %v2676 = vpack.c.b16 %v2094, %v2091
        %v2677 = vpack.c.b16 %v2098, %v2095
        %v2678 = vpack.c.b16 %v2099, %v2096
        %v2679 = vpack.c.b16 %v2100, %v2097
        %v2680 = vpack.c.b16 %v2104, %v2101
        %v2681 = vpack.c.b16 %v2105, %v2102
        %v2682 = vpack.c.b16 %v2106, %v2103
        %v2683 = vpack.c.b16 %v2110, %v2107
        %v2684 = vpack.c.b16 %v2111, %v2108
        %v2685 = vpack.c.b16 %v2112, %v2109
        %v2686 = vpack.c.b16 %v2116, %v2113
        %v2687 = vpack.c.b16 %v2117, %v2114
        %v2688 = vpack.c.b16 %v2118, %v2115
        %v2689 = vpack.c.b16 %v2122, %v2119
        %v2690 = vpack.c.b16 %v2123, %v2120
        %v2691 = vpack.c.b16 %v2124, %v2121
        %v2692 = vpack.c.b16 %v2128, %v2125
        %v2693 = vpack.c.b16 %v2129, %v2126
        %v2694 = vpack.c.b16 %v2130, %v2127
        %v2695 = vpack.c.b16 %v2134, %v2131
        %v2696 = vpack.c.b16 %v2135, %v2132
        %v2697 = vpack.c.b16 %v2136, %v2133
        %v2698 = vpack.c.b16 %v2140, %v2137
        %v2699 = vpack.c.b16 %v2141, %v2138
        %v2700 = vpack.c.b16 %v2142, %v2139
        %v2701 = vpack.c.b16 %v2146, %v2143
        %v2702 = vpack.c.b16 %v2147, %v2144
        %v2703 = vpack.c.b16 %v2148, %v2145
        %v2704 = vpack.c.b16 %v2152, %v2149
        %v2705 = vpack.c.b16 %v2153, %v2150
        %v2706 = vpack.c.b16 %v2154, %v2151
        %v2707 = vpack.c.b16 %v2158, %v2155
        %v2708 = vpack.c.b16 %v2159, %v2156
        %v2709 = vpack.c.b16 %v2160, %v2157
        %v2710 = vpack.c.b16 %v2164, %v2161
        %v2711 = vpack.c.b16 %v2165, %v2162
        %v2712 = vpack.c.b16 %v2166, %v2163
        %v2713 = vpack.c.b16 %v2170, %v2167
        %v2714 = vpack.c.b16 %v2171, %v2168
        %v2715 = vpack.c.b16 %v2172, %v2169
        %v2716 = vpack.c.b16 %v2176, %v2173
        %v2717 = vpack.c.b16 %v2177, %v2174
        %v2718 = vpack.c.b16 %v2178, %v2175
        %v2719 = vpack.c.b16 %v2182, %v2179
        %v2720 = vpack.c.b16 %v2183, %v2180
        %v2721 = vpack.c.b16 %v2184, %v2181
        %v2722 = vpack.c.b16 %v2188, %v2185
        %v2723 = vpack.c.b16 %v2189, %v2186
        %v2724 = vpack.c.b16 %v2190, %v2187
        %v2725 = vpack.c.b16 %v2194, %v2191
        %v2726 = vpack.c.b16 %v2195, %v2192
        %v2727 = vpack.c.b16 %v2196, %v2193
        %v2728 = vpack.c.b16 %v2200, %v2197
        %v2729 = vpack.c.b16 %v2201, %v2198
        %v2730 = vpack.c.b16 %v2202, %v2199
        %v2731 = vpack.c.b16 %v2206, %v2203
        %v2732 = vpack.c.b16 %v2207, %v2204
        %v2733 = vpack.c.b16 %v2208, %v2205
        %v2734 = vpack.c.b16 %v2212, %v2209
        %v2735 = vpack.c.b16 %v2213, %v2210
        %v2736 = vpack.c.b16 %v2214, %v2211
        %v2737 = vpack.c.b16 %v2218, %v2215
        %v2738 = vpack.c.b16 %v2219, %v2216
        %v2739 = vpack.c.b16 %v2220, %v2217
        %v2740 = vpack.c.b16 %v2224, %v2221
        %v2741 = vpack.c.b16 %v2225, %v2222
        %v2742 = vpack.c.b16 %v2226, %v2223
        %v2743 = vpack.c.b16 %v2230, %v2227
        %v2744 = vpack.c.b16 %v2231, %v2228
        %v2745 = vpack.c.b16 %v2232, %v2229
        %v2746 = vpack.c.b16 %v2236, %v2233
        %v2747 = vpack.c.b16 %v2237, %v2234
        %v2748 = vpack.c.b16 %v2238, %v2235
        %v2749 = vpack.c.b16 %v2242, %v2239
        %v2750 = vpack.c.b16 %v2243, %v2240
        %v2751 = vpack.c.b16 %v2244, %v2241
        %v2752 = vpack.c.b16 %v2248, %v2245
        %v2753 = vpack.c.b16 %v2249, %v2246
        %v2754 = vpack.c.b16 %v2250, %v2247
        %v2755 = vpack.c.b16 %v2254, %v2251
        %v2756 = vpack.c.b16 %v2255, %v2252
        %v2757 = vpack.c.b16 %v2256, %v2253
        %v2758 = vpack.c.b16 %v2260, %v2257
        %v2759 = vpack.c.b16 %v2261, %v2258
        %v2760 = vpack.c.b16 %v2262, %v2259
        %v2761 = vpack.c.b16 %v2266, %v2263
        %v2762 = vpack.c.b16 %v2267, %v2264
        %v2763 = vpack.c.b16 %v2268, %v2265
        %v2764 = vpack.c.b16 %v2272, %v2269
        %v2765 = vpack.c.b16 %v2273, %v2270
        %v2766 = vpack.c.b16 %v2274, %v2271
        %v2767 = vpack.c.b16 %v2278, %v2275
        %v2768 = vpack.c.b16 %v2279, %v2276
        %v2769 = vpack.c.b16 %v2280, %v2277
        %v2770 = vpack.c.b16 %v2284, %v2281
        %v2771 = vpack.c.b16 %v2285, %v2282
        %v2772 = vpack.c.b16 %v2286, %v2283
        %v2773 = vpack.c.b16 %v2290, %v2287
        %v2774 = vpack.c.b16 %v2291, %v2288
        %v2775 = vpack.c.b16 %v2292, %v2289
        %v2776 = vpack.c.b16 %v2296, %v2293
        %v2777 = vpack.c.b16 %v2297, %v2294
        %v2778 = vpack.c.b16 %v2298, %v2295
        %v2779 = vpack.c.b16 %v2302, %v2299
        %v2780 = vpack.c.b16 %v2303, %v2300
        %v2781 = vpack.c.b16 %v2304, %v2301
        %v2782 = vpack.c.b16 %v2308, %v2305
        %v2783 = vpack.c.b16 %v2309, %v2306
        %v2784 = vpack.c.b16 %v2310, %v2307
        %v2785 = vpack.c.b16 %v2314, %v2311
        %v2786 = vpack.c.b16 %v2315, %v2312
        %v2787 = vpack.c.b16 %v2316, %v2313
        %v2788 = vpack.c.b16 %v2320, %v2317
        %v2789 = vpack.c.b16 %v2321, %v2318
        %v2790 = vpack.c.b16 %v2322, %v2319
        %v2791 = vpack.c.b16 %v2326, %v2323
        %v2792 = vpack.c.b16 %v2327, %v2324
        %v2793 = vpack.c.b16 %v2328, %v2325
        %v2794 = vpack.c.b16 %v2332, %v2329
        %v2795 = vpack.c.b16 %v2333, %v2330
        %v2796 = vpack.c.b16 %v2334, %v2331
        %v2797 = vpack.c.b16 %v2338, %v2335
        %v2798 = vpack.c.b16 %v2339, %v2336
        %v2799 = vpack.c.b16 %v2340, %v2337
        %v2800 = vpack.c.b16 %v2344, %v2341
        %v2801 = vpack.c.b16 %v2345, %v2342
        %v2802 = vpack.c.b16 %v2346, %v2343
        %v2803 = vpack.c.b16 %v2350, %v2347
        %v2804 = vpack.c.b16 %v2351, %v2348
        %v2805 = vpack.c.b16 %v2352, %v2349
        %v2806 = vpack.c.b16 %v2356, %v2353
        %v2807 = vpack.c.b16 %v2357, %v2354
        %v2808 = vpack.c.b16 %v2358, %v2355
        %v2809 = vpack.c.b16 %v2362, %v2359
        %v2810 = vpack.c.b16 %v2363, %v2360
        %v2811 = vpack.c.b16 %v2364, %v2361
        %v2812 = vpack.c.b16 %v2368, %v2365
        %v2813 = vpack.c.b16 %v2369, %v2366
        %v2814 = vpack.c.b16 %v2370, %v2367
        %v2815 = vpack.c.b16 %v2374, %v2371
        %v2816 = vpack.c.b16 %v2375, %v2372
        %v2817 = vpack.c.b16 %v2376, %v2373
        %v2818 = vpack.c.b16 %v2380, %v2377
        %v2819 = vpack.c.b16 %v2381, %v2378
        %v2820 = vpack.c.b16 %v2382, %v2379
        %v2821 = vpack.c.b16 %v2386, %v2383
        %v2822 = vpack.c.b16 %v2387, %v2384
        %v2823 = vpack.c.b16 %v2388, %v2385
        %v2824 = vpack.c.b16 %v2392, %v2389
        %v2825 = vpack.c.b16 %v2393, %v2390
        %v2826 = vpack.c.b16 %v2394, %v2391
        %v2827 = vpack.c.b16 %v2398, %v2395
        %v2828 = vpack.c.b16 %v2399, %v2396
        %v2829 = vpack.c.b16 %v2400, %v2397
        %v2830 = vpack.c.b16 %v2404, %v2401
        %v2831 = vpack.c.b16 %v2405, %v2402
        %v2832 = vpack.c.b16 %v2406, %v2403
        %v2833 = vpack.c.b16 %v2410, %v2407
        %v2834 = vpack.c.b16 %v2411, %v2408
        %v2835 = vpack.c.b16 %v2412, %v2409
        %v2836 = vpack.c.b16 %v2416, %v2413
        %v2837 = vpack.c.b16 %v2417, %v2414
        %v2838 = vpack.c.b16 %v2418, %v2415
        %v2839 = vpack.c.b16 %v2422, %v2419
        %v2840 = vpack.c.b16 %v2423, %v2420
        %v2841 = vpack.c.b16 %v2424, %v2421
        %v2842 = vpack.c.b16 %v2428, %v2425
        %v2843 = vpack.c.b16 %v2429, %v2426
        %v2844 = vpack.c.b16 %v2430, %v2427
        %v2845 = vpack.c.b16 %v2434, %v2431
        %v2846 = vpack.c.b16 %v2435, %v2432
        %v2847 = vpack.c.b16 %v2436, %v2433
        %v2848 = vpack.c.b16 %v2440, %v2437
        %v2849 = vpack.c.b16 %v2441, %v2438
        %v2850 = vpack.c.b16 %v2442, %v2439
        %v2851 = vpack.c.b16 %v2446, %v2443
        %v2852 = vpack.c.b16 %v2447, %v2444
        %v2853 = vpack.c.b16 %v2448, %v2445
        %v2854 = vpack.c.b16 %v2452, %v2449
        %v2855 = vpack.c.b16 %v2453, %v2450
        %v2856 = vpack.c.b16 %v2454, %v2451
        %v2857 = vpack.c.b16 %v2458, %v2455
        %v2858 = vpack.c.b16 %v2459, %v2456
        %v2859 = vpack.c.b16 %v2460, %v2457
        %v2860 = vpack.c.b16 %v2464, %v2461
        %v2861 = vpack.c.b16 %v2465, %v2462
        %v2862 = vpack.c.b16 %v2466, %v2463
        %v2863 = vpack.c.b16 %v2470, %v2467
        %v2864 = vpack.c.b16 %v2471, %v2468
        %v2865 = vpack.c.b16 %v2472, %v2469
        %v2866 = vpack.c.b16 %v2476, %v2473
        %v2867 = vpack.c.b16 %v2477, %v2474
        %v2868 = vpack.c.b16 %v2478, %v2475
        %v2869 = vpack.c.b16 %v2482, %v2479
        %v2870 = vpack.c.b16 %v2483, %v2480
        %v2871 = vpack.c.b16 %v2484, %v2481
        %v2872 = vpack.c.b16 %v2488, %v2485
        %v2873 = vpack.c.b16 %v2489, %v2486
        %v2874 = vpack.c.b16 %v2490, %v2487
        %3259 = vmatprep.subr.bf16.mxu0 %v2492
        %3260 = vmatpush1.bf16.msra.mxu0 %v2491
        %3261 = vmatprep.subr.bf16.mxu0 %v2495
        %3262 = vmatpush1.bf16.msra.mxu0 %v2494
        %3263 = vmatprep.subr.bf16.mxu0 %v2498
        %3264 = vmatpush1.bf16.msra.mxu0 %v2497
        %3265 = vmatprep.subr.bf16.mxu0 %v2501
        %3266 = vmatpush1.bf16.msra.mxu0 %v2500
        %3267 = vmatprep.subr.bf16.mxu0 %v2504
        %3268 = vmatpush1.bf16.msra.mxu0 %v2503
        %3269 = vmatprep.subr.bf16.mxu0 %v2507
        %3270 = vmatpush1.bf16.msra.mxu0 %v2506
        %3271 = vmatprep.subr.bf16.mxu0 %v2510
        %3272 = vmatpush1.bf16.msra.mxu0 %v2509
        %3273 = vmatprep.subr.bf16.mxu0 %v2513
        %3274 = vmatpush1.bf16.msra.mxu0 %v2512
        %3275 = vmatprep.subr.bf16.mxu0 %v2516
        %3276 = vmatpush1.bf16.msra.mxu0 %v2515
        %3277 = vmatprep.subr.bf16.mxu0 %v2519
        %3278 = vmatpush1.bf16.msra.mxu0 %v2518
        %3279 = vmatprep.subr.bf16.mxu0 %v2522
        %3280 = vmatpush1.bf16.msra.mxu0 %v2521
        %3281 = vmatprep.subr.bf16.mxu0 %v2525
        %3282 = vmatpush1.bf16.msra.mxu0 %v2524
        %3283 = vmatprep.subr.bf16.mxu0 %v2528
        %3284 = vmatpush1.bf16.msra.mxu0 %v2527
        %3285 = vmatprep.subr.bf16.mxu0 %v2531
        %3286 = vmatpush1.bf16.msra.mxu0 %v2530
        %3287 = vmatprep.subr.bf16.mxu0 %v2534
        %3288 = vmatpush1.bf16.msra.mxu0 %v2533
        %3289 = vmatprep.subr.bf16.mxu0 %v2537
        %3290 = vmatpush1.bf16.msra.mxu0 %v2536
        %3291 = vmatprep.mubr.bf16.mxu0 %v555
        %3292 = vmatmul.mubr.bf16.gmra.mrb[0].mxu0 %v554
        %v3293 = vpop.f32.mrb[0].mxu0
        %v3294 = vadd.f32 %v1199, %v3293
        %v3295 = vpop.f32.mrb[0].mxu0
        %v3296 = vadd.f32 %v1203, %v3295
        %v3297 = vpop.f32.mrb[0].mxu0
        %v3298 = vadd.f32 %v1199, %v3297
        %v3299 = vpop.f32.mrb[0].mxu0
        %v3300 = vadd.f32 %v1203, %v3299
        %3301 = vmatprep.mubr.bf16.mxu0 %v571
        %3302 = vmatmul.mubr.bf16.gmra.mrb[0].mxu0 %v570
        %v3303 = vpop.f32.mrb[0].mxu0
        %v3304 = vadd.f32 %v1199, %v3303
        %v3305 = vpop.f32.mrb[0].mxu0
        %v3306 = vadd.f32 %v1203, %v3305
        %v3307 = vpop.f32.mrb[0].mxu0
        %v3308 = vadd.f32 %v1199, %v3307
        %v3309 = vpop.f32.mrb[0].mxu0
        %v3310 = vadd.f32 %v1203, %v3309
        %3311 = vmatprep.mubr.bf16.mxu0 %v587
        %3312 = vmatmul.mubr.bf16.gmra.mrb[0].mxu0 %v586
        %v3313 = vpop.f32.mrb[0].mxu0
        %v3314 = vadd.f32 %v1199, %v3313
        %v3315 = vpop.f32.mrb[0].mxu0
        %v3316 = vadd.f32 %v1203, %v3315
        %v3317 = vpop.f32.mrb[0].mxu0
        %v3318 = vadd.f32 %v1199, %v3317
        %v3319 = vpop.f32.mrb[0].mxu0
        %v3320 = vadd.f32 %v1203, %v3319
        %3321 = vmatprep.mubr.bf16.mxu0 %v603
        %3322 = vmatmul.mubr.bf16.gmra.mrb[0].mxu0 %v602
        %v3323 = vpop.f32.mrb[0].mxu0
        %v3324 = vadd.f32 %v1199, %v3323
        %v3325 = vpop.f32.mrb[0].mxu0
        %v3326 = vadd.f32 %v1203, %v3325
        %v3327 = vpop.f32.mrb[0].mxu0
        %v3328 = vadd.f32 %v1199, %v3327
        %v3329 = vpop.f32.mrb[0].mxu0
        %v3330 = vadd.f32 %v1203, %v3329
        %3331 = vmatprep.mubr.bf16.mxu0 %v619
        %3332 = vmatmul.mubr.bf16.gmra.mrb[0].mxu0 %v618
        %v3333 = vpop.f32.mrb[0].mxu0
        %v3334 = vadd.f32 %v1199, %v3333
        %v3335 = vpop.f32.mrb[0].mxu0
        %v3336 = vadd.f32 %v1203, %v3335
        %v3337 = vpop.f32.mrb[0].mxu0
        %v3338 = vadd.f32 %v1199, %v3337
        %v3339 = vpop.f32.mrb[0].mxu0
        %v3340 = vadd.f32 %v1203, %v3339
        %3341 = vmatprep.mubr.bf16.mxu0 %v635
        %3342 = vmatmul.mubr.bf16.gmra.mrb[0].mxu0 %v634
        %v3343 = vpop.f32.mrb[0].mxu0
        %v3344 = vadd.f32 %v1199, %v3343
        %v3345 = vpop.f32.mrb[0].mxu0
        %v3346 = vadd.f32 %v1203, %v3345
        %v3347 = vpop.f32.mrb[0].mxu0
        %v3348 = vadd.f32 %v1199, %v3347
        %v3349 = vpop.f32.mrb[0].mxu0
        %v3350 = vadd.f32 %v1203, %v3349
        %3351 = vmatprep.mubr.bf16.mxu0 %v651
        %3352 = vmatmul.mubr.bf16.gmra.mrb[0].mxu0 %v650
        %v3353 = vpop.f32.mrb[0].mxu0
        %v3354 = vadd.f32 %v1199, %v3353
        %v3355 = vpop.f32.mrb[0].mxu0
        %v3356 = vadd.f32 %v1203, %v3355
        %v3357 = vpop.f32.mrb[0].mxu0
        %v3358 = vadd.f32 %v1199, %v3357
        %v3359 = vpop.f32.mrb[0].mxu0
        %v3360 = vadd.f32 %v1203, %v3359
        %3361 = vmatprep.mubr.bf16.mxu0 %v667
        %3362 = vmatmul.mubr.bf16.gmra.mrb[0].mxu0 %v666
        %v3363 = vpop.f32.mrb[0].mxu0
        %v3364 = vadd.f32 %v1199, %v3363
        %v3365 = vpop.f32.mrb[0].mxu0
        %v3366 = vadd.f32 %v1203, %v3365
        %v3367 = vpop.f32.mrb[0].mxu0
        %v3368 = vadd.f32 %v1199, %v3367
        %v3369 = vpop.f32.mrb[0].mxu0
        %v3370 = vadd.f32 %v1203, %v3369
        %3371 = vdwg.mxu0
        %3372 = vmatprep.subr.bf16.mxu0 %v2540
        %3373 = vmatpush1.bf16.msra.mxu0 %v2539
        %3374 = vmatprep.subr.bf16.mxu0 %v2543
        %3375 = vmatpush1.bf16.msra.mxu0 %v2542
        %3376 = vmatprep.subr.bf16.mxu0 %v2546
        %3377 = vmatpush1.bf16.msra.mxu0 %v2545
        %3378 = vmatprep.subr.bf16.mxu0 %v2549
        %3379 = vmatpush1.bf16.msra.mxu0 %v2548
        %3380 = vmatprep.subr.bf16.mxu0 %v2552
        %3381 = vmatpush1.bf16.msra.mxu0 %v2551
        %3382 = vmatprep.subr.bf16.mxu0 %v2555
        %3383 = vmatpush1.bf16.msra.mxu0 %v2554
        %3384 = vmatprep.subr.bf16.mxu0 %v2558
        %3385 = vmatpush1.bf16.msra.mxu0 %v2557
        %3386 = vmatprep.subr.bf16.mxu0 %v2561
        %3387 = vmatpush1.bf16.msra.mxu0 %v2560
        %3388 = vmatprep.subr.bf16.mxu0 %v2564
        %3389 = vmatpush1.bf16.msra.mxu0 %v2563
        %3390 = vmatprep.subr.bf16.mxu0 %v2567
        %3391 = vmatpush1.bf16.msra.mxu0 %v2566
        %3392 = vmatprep.subr.bf16.mxu0 %v2570
        %3393 = vmatpush1.bf16.msra.mxu0 %v2569
        %3394 = vmatprep.subr.bf16.mxu0 %v2573
        %3395 = vmatpush1.bf16.msra.mxu0 %v2572
        %3396 = vmatprep.subr.bf16.mxu0 %v2576
        %3397 = vmatpush1.bf16.msra.mxu0 %v2575
        %3398 = vmatprep.subr.bf16.mxu0 %v2579
        %3399 = vmatpush1.bf16.msra.mxu0 %v2578
        %3400 = vmatprep.subr.bf16.mxu0 %v2582
        %3401 = vmatpush1.bf16.msra.mxu0 %v2581
        %3402 = vmatprep.subr.bf16.mxu0 %v2585
        %3403 = vmatpush1.bf16.msra.mxu0 %v2584
        %3404 = vmatprep.mubr.bf16.mxu0 %v557
        %3405 = vmatmul.mubr.bf16.gmra.mrb[0].mxu0 %v556
        %v3406 = vpop.f32.mrb[0].mxu0
        %v3407 = vadd.f32 %v3294, %v3406
        %v3408 = vpop.f32.mrb[0].mxu0
        %v3409 = vadd.f32 %v3296, %v3408
        %v3410 = vpop.f32.mrb[0].mxu0
        %v3411 = vadd.f32 %v3298, %v3410
        %v3412 = vpop.f32.mrb[0].mxu0
        %v3413 = vadd.f32 %v3300, %v3412
        %3414 = vmatprep.mubr.bf16.mxu0 %v573
        %3415 = vmatmul.mubr.bf16.gmra.mrb[0].mxu0 %v572
        %v3416 = vpop.f32.mrb[0].mxu0
        %v3417 = vadd.f32 %v3304, %v3416
        %v3418 = vpop.f32.mrb[0].mxu0
        %v3419 = vadd.f32 %v3306, %v3418
        %v3420 = vpop.f32.mrb[0].mxu0
        %v3421 = vadd.f32 %v3308, %v3420
        %v3422 = vpop.f32.mrb[0].mxu0
        %v3423 = vadd.f32 %v3310, %v3422
        %3424 = vmatprep.mubr.bf16.mxu0 %v589
        %3425 = vmatmul.mubr.bf16.gmra.mrb[0].mxu0 %v588
        %v3426 = vpop.f32.mrb[0].mxu0
        %v3427 = vadd.f32 %v3314, %v3426
        %v3428 = vpop.f32.mrb[0].mxu0
        %v3429 = vadd.f32 %v3316, %v3428
        %v3430 = vpop.f32.mrb[0].mxu0
        %v3431 = vadd.f32 %v3318, %v3430
        %v3432 = vpop.f32.mrb[0].mxu0
        %v3433 = vadd.f32 %v3320, %v3432
        %3434 = vmatprep.mubr.bf16.mxu0 %v605
        %3435 = vmatmul.mubr.bf16.gmra.mrb[0].mxu0 %v604
        %v3436 = vpop.f32.mrb[0].mxu0
        %v3437 = vadd.f32 %v3324, %v3436
        %v3438 = vpop.f32.mrb[0].mxu0
        %v3439 = vadd.f32 %v3326, %v3438
        %v3440 = vpop.f32.mrb[0].mxu0
        %v3441 = vadd.f32 %v3328, %v3440
        %v3442 = vpop.f32.mrb[0].mxu0
        %v3443 = vadd.f32 %v3330, %v3442
        %3444 = vmatprep.mubr.bf16.mxu0 %v621
        %3445 = vmatmul.mubr.bf16.gmra.mrb[0].mxu0 %v620
        %v3446 = vpop.f32.mrb[0].mxu0
        %v3447 = vadd.f32 %v3334, %v3446
        %v3448 = vpop.f32.mrb[0].mxu0
        %v3449 = vadd.f32 %v3336, %v3448
        %v3450 = vpop.f32.mrb[0].mxu0
        %v3451 = vadd.f32 %v3338, %v3450
        %v3452 = vpop.f32.mrb[0].mxu0
        %v3453 = vadd.f32 %v3340, %v3452
        %3454 = vmatprep.mubr.bf16.mxu0 %v637
        %3455 = vmatmul.mubr.bf16.gmra.mrb[0].mxu0 %v636
        %v3456 = vpop.f32.mrb[0].mxu0
        %v3457 = vadd.f32 %v3344, %v3456
        %v3458 = vpop.f32.mrb[0].mxu0
        %v3459 = vadd.f32 %v3346, %v3458
        %v3460 = vpop.f32.mrb[0].mxu0
        %v3461 = vadd.f32 %v3348, %v3460
        %v3462 = vpop.f32.mrb[0].mxu0
        %v3463 = vadd.f32 %v3350, %v3462
        %3464 = vmatprep.mubr.bf16.mxu0 %v653
        %3465 = vmatmul.mubr.bf16.gmra.mrb[0].mxu0 %v652
        %v3466 = vpop.f32.mrb[0].mxu0
        %v3467 = vadd.f32 %v3354, %v3466
        %v3468 = vpop.f32.mrb[0].mxu0
        %v3469 = vadd.f32 %v3356, %v3468
        %v3470 = vpop.f32.mrb[0].mxu0
        %v3471 = vadd.f32 %v3358, %v3470
        %v3472 = vpop.f32.mrb[0].mxu0
        %v3473 = vadd.f32 %v3360, %v3472
        %3474 = vmatprep.mubr.bf16.mxu0 %v669
        %3475 = vmatmul.mubr.bf16.gmra.mrb[0].mxu0 %v668
        %v3476 = vpop.f32.mrb[0].mxu0
        %v3477 = vadd.f32 %v3364, %v3476
        %v3478 = vpop.f32.mrb[0].mxu0
        %v3479 = vadd.f32 %v3366, %v3478
        %v3480 = vpop.f32.mrb[0].mxu0
        %v3481 = vadd.f32 %v3368, %v3480
        %v3482 = vpop.f32.mrb[0].mxu0
        %v3483 = vadd.f32 %v3370, %v3482
        %3484 = vdwg.mxu0
        %3485 = vmatprep.subr.bf16.mxu0 %v2588
        %3486 = vmatpush1.bf16.msra.mxu0 %v2587
        %3487 = vmatprep.subr.bf16.mxu0 %v2591
        %3488 = vmatpush1.bf16.msra.mxu0 %v2590
        %3489 = vmatprep.subr.bf16.mxu0 %v2594
        %3490 = vmatpush1.bf16.msra.mxu0 %v2593
        %3491 = vmatprep.subr.bf16.mxu0 %v2597
        %3492 = vmatpush1.bf16.msra.mxu0 %v2596
        %3493 = vmatprep.subr.bf16.mxu0 %v2600
        %3494 = vmatpush1.bf16.msra.mxu0 %v2599
        %3495 = vmatprep.subr.bf16.mxu0 %v2603
        %3496 = vmatpush1.bf16.msra.mxu0 %v2602
        %3497 = vmatprep.subr.bf16.mxu0 %v2606
        %3498 = vmatpush1.bf16.msra.mxu0 %v2605
        %3499 = vmatprep.subr.bf16.mxu0 %v2609
        %3500 = vmatpush1.bf16.msra.mxu0 %v2608
        %3501 = vmatprep.subr.bf16.mxu0 %v2612
        %3502 = vmatpush1.bf16.msra.mxu0 %v2611
        %3503 = vmatprep.subr.bf16.mxu0 %v2615
        %3504 = vmatpush1.bf16.msra.mxu0 %v2614
        %3505 = vmatprep.subr.bf16.mxu0 %v2618
        %3506 = vmatpush1.bf16.msra.mxu0 %v2617
        %3507 = vmatprep.subr.bf16.mxu0 %v2621
        %3508 = vmatpush1.bf16.msra.mxu0 %v2620
        %3509 = vmatprep.subr.bf16.mxu0 %v2624
        %3510 = vmatpush1.bf16.msra.mxu0 %v2623
        %3511 = vmatprep.subr.bf16.mxu0 %v2627
        %3512 = vmatpush1.bf16.msra.mxu0 %v2626
        %3513 = vmatprep.subr.bf16.mxu0 %v2630
        %3514 = vmatpush1.bf16.msra.mxu0 %v2629
        %3515 = vmatprep.subr.bf16.mxu0 %v2633
        %3516 = vmatpush1.bf16.msra.mxu0 %v2632
        %3517 = vmatprep.mubr.bf16.mxu0 %v559
        %3518 = vmatmul.mubr.bf16.gmra.mrb[0].mxu0 %v558
        %v3519 = vpop.f32.mrb[0].mxu0
        %v3520 = vadd.f32 %v3407, %v3519
        %v3521 = vpop.f32.mrb[0].mxu0
        %v3522 = vadd.f32 %v3409, %v3521
        %v3523 = vpop.f32.mrb[0].mxu0
        %v3524 = vadd.f32 %v3411, %v3523
        %v3525 = vpop.f32.mrb[0].mxu0
        %v3526 = vadd.f32 %v3413, %v3525
        %3527 = vmatprep.mubr.bf16.mxu0 %v575
        %3528 = vmatmul.mubr.bf16.gmra.mrb[0].mxu0 %v574
        %v3529 = vpop.f32.mrb[0].mxu0
        %v3530 = vadd.f32 %v3417, %v3529
        %v3531 = vpop.f32.mrb[0].mxu0
        %v3532 = vadd.f32 %v3419, %v3531
        %v3533 = vpop.f32.mrb[0].mxu0
        %v3534 = vadd.f32 %v3421, %v3533
        %v3535 = vpop.f32.mrb[0].mxu0
        %v3536 = vadd.f32 %v3423, %v3535
        %3537 = vmatprep.mubr.bf16.mxu0 %v591
        %3538 = vmatmul.mubr.bf16.gmra.mrb[0].mxu0 %v590
        %v3539 = vpop.f32.mrb[0].mxu0
        %v3540 = vadd.f32 %v3427, %v3539
        %v3541 = vpop.f32.mrb[0].mxu0
        %v3542 = vadd.f32 %v3429, %v3541
        %v3543 = vpop.f32.mrb[0].mxu0
        %v3544 = vadd.f32 %v3431, %v3543
        %v3545 = vpop.f32.mrb[0].mxu0
        %v3546 = vadd.f32 %v3433, %v3545
        %3547 = vmatprep.mubr.bf16.mxu0 %v607
        %3548 = vmatmul.mubr.bf16.gmra.mrb[0].mxu0 %v606
        %v3549 = vpop.f32.mrb[0].mxu0
        %v3550 = vadd.f32 %v3437, %v3549
        %v3551 = vpop.f32.mrb[0].mxu0
        %v3552 = vadd.f32 %v3439, %v3551
        %v3553 = vpop.f32.mrb[0].mxu0
        %v3554 = vadd.f32 %v3441, %v3553
        %v3555 = vpop.f32.mrb[0].mxu0
        %v3556 = vadd.f32 %v3443, %v3555
        %3557 = vmatprep.mubr.bf16.mxu0 %v623
        %3558 = vmatmul.mubr.bf16.gmra.mrb[0].mxu0 %v622
        %v3559 = vpop.f32.mrb[0].mxu0
        %v3560 = vadd.f32 %v3447, %v3559
        %v3561 = vpop.f32.mrb[0].mxu0
        %v3562 = vadd.f32 %v3449, %v3561
        %v3563 = vpop.f32.mrb[0].mxu0
        %v3564 = vadd.f32 %v3451, %v3563
        %v3565 = vpop.f32.mrb[0].mxu0
        %v3566 = vadd.f32 %v3453, %v3565
        %3567 = vmatprep.mubr.bf16.mxu0 %v639
        %3568 = vmatmul.mubr.bf16.gmra.mrb[0].mxu0 %v638
        %v3569 = vpop.f32.mrb[0].mxu0
        %v3570 = vadd.f32 %v3457, %v3569
        %v3571 = vpop.f32.mrb[0].mxu0
        %v3572 = vadd.f32 %v3459, %v3571
        %v3573 = vpop.f32.mrb[0].mxu0
        %v3574 = vadd.f32 %v3461, %v3573
        %v3575 = vpop.f32.mrb[0].mxu0
        %v3576 = vadd.f32 %v3463, %v3575
        %3577 = vmatprep.mubr.bf16.mxu0 %v655
        %3578 = vmatmul.mubr.bf16.gmra.mrb[0].mxu0 %v654
        %v3579 = vpop.f32.mrb[0].mxu0
        %v3580 = vadd.f32 %v3467, %v3579
        %v3581 = vpop.f32.mrb[0].mxu0
        %v3582 = vadd.f32 %v3469, %v3581
        %v3583 = vpop.f32.mrb[0].mxu0
        %v3584 = vadd.f32 %v3471, %v3583
        %v3585 = vpop.f32.mrb[0].mxu0
        %v3586 = vadd.f32 %v3473, %v3585
        %3587 = vmatprep.mubr.bf16.mxu0 %v671
        %3588 = vmatmul.mubr.bf16.gmra.mrb[0].mxu0 %v670
        %v3589 = vpop.f32.mrb[0].mxu0
        %v3590 = vadd.f32 %v3477, %v3589
        %v3591 = vpop.f32.mrb[0].mxu0
        %v3592 = vadd.f32 %v3479, %v3591
        %v3593 = vpop.f32.mrb[0].mxu0
        %v3594 = vadd.f32 %v3481, %v3593
        %v3595 = vpop.f32.mrb[0].mxu0
        %v3596 = vadd.f32 %v3483, %v3595
        %3597 = vdwg.mxu0
        %3598 = vmatprep.subr.bf16.mxu0 %v2636
        %3599 = vmatpush1.bf16.msra.mxu0 %v2635
        %3600 = vmatprep.subr.bf16.mxu0 %v2639
        %3601 = vmatpush1.bf16.msra.mxu0 %v2638
        %3602 = vmatprep.subr.bf16.mxu0 %v2642
        %3603 = vmatpush1.bf16.msra.mxu0 %v2641
        %3604 = vmatprep.subr.bf16.mxu0 %v2645
        %3605 = vmatpush1.bf16.msra.mxu0 %v2644
        %3606 = vmatprep.subr.bf16.mxu0 %v2648
        %3607 = vmatpush1.bf16.msra.mxu0 %v2647
        %3608 = vmatprep.subr.bf16.mxu0 %v2651
        %3609 = vmatpush1.bf16.msra.mxu0 %v2650
        %3610 = vmatprep.subr.bf16.mxu0 %v2654
        %3611 = vmatpush1.bf16.msra.mxu0 %v2653
        %3612 = vmatprep.subr.bf16.mxu0 %v2657
        %3613 = vmatpush1.bf16.msra.mxu0 %v2656
        %3614 = vmatprep.subr.bf16.mxu0 %v2660
        %3615 = vmatpush1.bf16.msra.mxu0 %v2659
        %3616 = vmatprep.subr.bf16.mxu0 %v2663
        %3617 = vmatpush1.bf16.msra.mxu0 %v2662
        %3618 = vmatprep.subr.bf16.mxu0 %v2666
        %3619 = vmatpush1.bf16.msra.mxu0 %v2665
        %3620 = vmatprep.subr.bf16.mxu0 %v2669
        %3621 = vmatpush1.bf16.msra.mxu0 %v2668
        %3622 = vmatprep.subr.bf16.mxu0 %v2672
        %3623 = vmatpush1.bf16.msra.mxu0 %v2671
        %3624 = vmatprep.subr.bf16.mxu0 %v2675
        %3625 = vmatpush1.bf16.msra.mxu0 %v2674
        %3626 = vmatprep.subr.bf16.mxu0 %v2678
        %3627 = vmatpush1.bf16.msra.mxu0 %v2677
        %3628 = vmatprep.subr.bf16.mxu0 %v2681
        %3629 = vmatpush1.bf16.msra.mxu0 %v2680
        %3630 = vmatprep.mubr.bf16.mxu0 %v561
        %3631 = vmatmul.mubr.bf16.gmra.mrb[0].mxu0 %v560
        %v3632 = vpop.f32.mrb[0].mxu0
        %v3633 = vadd.f32 %v3520, %v3632
        %v3634 = vpop.f32.mrb[0].mxu0
        %v3635 = vadd.f32 %v3522, %v3634
        %v3636 = vpop.f32.mrb[0].mxu0
        %v3637 = vadd.f32 %v3524, %v3636
        %v3638 = vpop.f32.mrb[0].mxu0
        %v3639 = vadd.f32 %v3526, %v3638
        %3640 = vmatprep.mubr.bf16.mxu0 %v577
        %3641 = vmatmul.mubr.bf16.gmra.mrb[0].mxu0 %v576
        %v3642 = vpop.f32.mrb[0].mxu0
        %v3643 = vadd.f32 %v3530, %v3642
        %v3644 = vpop.f32.mrb[0].mxu0
        %v3645 = vadd.f32 %v3532, %v3644
        %v3646 = vpop.f32.mrb[0].mxu0
        %v3647 = vadd.f32 %v3534, %v3646
        %v3648 = vpop.f32.mrb[0].mxu0
        %v3649 = vadd.f32 %v3536, %v3648
        %3650 = vmatprep.mubr.bf16.mxu0 %v593
        %3651 = vmatmul.mubr.bf16.gmra.mrb[0].mxu0 %v592
        %v3652 = vpop.f32.mrb[0].mxu0
        %v3653 = vadd.f32 %v3540, %v3652
        %v3654 = vpop.f32.mrb[0].mxu0
        %v3655 = vadd.f32 %v3542, %v3654
        %v3656 = vpop.f32.mrb[0].mxu0
        %v3657 = vadd.f32 %v3544, %v3656
        %v3658 = vpop.f32.mrb[0].mxu0
        %v3659 = vadd.f32 %v3546, %v3658
        %3660 = vmatprep.mubr.bf16.mxu0 %v609
        %3661 = vmatmul.mubr.bf16.gmra.mrb[0].mxu0 %v608
        %v3662 = vpop.f32.mrb[0].mxu0
        %v3663 = vadd.f32 %v3550, %v3662
        %v3664 = vpop.f32.mrb[0].mxu0
        %v3665 = vadd.f32 %v3552, %v3664
        %v3666 = vpop.f32.mrb[0].mxu0
        %v3667 = vadd.f32 %v3554, %v3666
        %v3668 = vpop.f32.mrb[0].mxu0
        %v3669 = vadd.f32 %v3556, %v3668
        %3670 = vmatprep.mubr.bf16.mxu0 %v625
        %3671 = vmatmul.mubr.bf16.gmra.mrb[0].mxu0 %v624
        %v3672 = vpop.f32.mrb[0].mxu0
        %v3673 = vadd.f32 %v3560, %v3672
        %v3674 = vpop.f32.mrb[0].mxu0
        %v3675 = vadd.f32 %v3562, %v3674
        %v3676 = vpop.f32.mrb[0].mxu0
        %v3677 = vadd.f32 %v3564, %v3676
        %v3678 = vpop.f32.mrb[0].mxu0
        %v3679 = vadd.f32 %v3566, %v3678
        %3680 = vmatprep.mubr.bf16.mxu0 %v641
        %3681 = vmatmul.mubr.bf16.gmra.mrb[0].mxu0 %v640
        %v3682 = vpop.f32.mrb[0].mxu0
        %v3683 = vadd.f32 %v3570, %v3682
        %v3684 = vpop.f32.mrb[0].mxu0
        %v3685 = vadd.f32 %v3572, %v3684
        %v3686 = vpop.f32.mrb[0].mxu0
        %v3687 = vadd.f32 %v3574, %v3686
        %v3688 = vpop.f32.mrb[0].mxu0
        %v3689 = vadd.f32 %v3576, %v3688
        %3690 = vmatprep.mubr.bf16.mxu0 %v657
        %3691 = vmatmul.mubr.bf16.gmra.mrb[0].mxu0 %v656
        %v3692 = vpop.f32.mrb[0].mxu0
        %v3693 = vadd.f32 %v3580, %v3692
        %v3694 = vpop.f32.mrb[0].mxu0
        %v3695 = vadd.f32 %v3582, %v3694
        %v3696 = vpop.f32.mrb[0].mxu0
        %v3697 = vadd.f32 %v3584, %v3696
        %v3698 = vpop.f32.mrb[0].mxu0
        %v3699 = vadd.f32 %v3586, %v3698
        %3700 = vmatprep.mubr.bf16.mxu0 %v673
        %3701 = vmatmul.mubr.bf16.gmra.mrb[0].mxu0 %v672
        %v3702 = vpop.f32.mrb[0].mxu0
        %v3703 = vadd.f32 %v3590, %v3702
        %v3704 = vpop.f32.mrb[0].mxu0
        %v3705 = vadd.f32 %v3592, %v3704
        %v3706 = vpop.f32.mrb[0].mxu0
        %v3707 = vadd.f32 %v3594, %v3706
        %v3708 = vpop.f32.mrb[0].mxu0
        %v3709 = vadd.f32 %v3596, %v3708
        %3710 = vdwg.mxu0
        %3711 = vmatprep.subr.bf16.mxu0 %v2684
        %3712 = vmatpush1.bf16.msra.mxu0 %v2683
        %3713 = vmatprep.subr.bf16.mxu0 %v2687
        %3714 = vmatpush1.bf16.msra.mxu0 %v2686
        %3715 = vmatprep.subr.bf16.mxu0 %v2690
        %3716 = vmatpush1.bf16.msra.mxu0 %v2689
        %3717 = vmatprep.subr.bf16.mxu0 %v2693
        %3718 = vmatpush1.bf16.msra.mxu0 %v2692
        %3719 = vmatprep.subr.bf16.mxu0 %v2696
        %3720 = vmatpush1.bf16.msra.mxu0 %v2695
        %3721 = vmatprep.subr.bf16.mxu0 %v2699
        %3722 = vmatpush1.bf16.msra.mxu0 %v2698
        %3723 = vmatprep.subr.bf16.mxu0 %v2702
        %3724 = vmatpush1.bf16.msra.mxu0 %v2701
        %3725 = vmatprep.subr.bf16.mxu0 %v2705
        %3726 = vmatpush1.bf16.msra.mxu0 %v2704
        %3727 = vmatprep.subr.bf16.mxu0 %v2708
        %3728 = vmatpush1.bf16.msra.mxu0 %v2707
        %3729 = vmatprep.subr.bf16.mxu0 %v2711
        %3730 = vmatpush1.bf16.msra.mxu0 %v2710
        %3731 = vmatprep.subr.bf16.mxu0 %v2714
        %3732 = vmatpush1.bf16.msra.mxu0 %v2713
        %3733 = vmatprep.subr.bf16.mxu0 %v2717
        %3734 = vmatpush1.bf16.msra.mxu0 %v2716
        %3735 = vmatprep.subr.bf16.mxu0 %v2720
        %3736 = vmatpush1.bf16.msra.mxu0 %v2719
        %3737 = vmatprep.subr.bf16.mxu0 %v2723
        %3738 = vmatpush1.bf16.msra.mxu0 %v2722
        %3739 = vmatprep.subr.bf16.mxu0 %v2726
        %3740 = vmatpush1.bf16.msra.mxu0 %v2725
        %3741 = vmatprep.subr.bf16.mxu0 %v2729
        %3742 = vmatpush1.bf16.msra.mxu0 %v2728
        %3743 = vmatprep.mubr.bf16.mxu0 %v563
        %3744 = vmatmul.mubr.bf16.gmra.mrb[0].mxu0 %v562
        %v3745 = vpop.f32.mrb[0].mxu0
        %v3746 = vadd.f32 %v3633, %v3745
        %v3747 = vpop.f32.mrb[0].mxu0
        %v3748 = vadd.f32 %v3635, %v3747
        %v3749 = vpop.f32.mrb[0].mxu0
        %v3750 = vadd.f32 %v3637, %v3749
        %v3751 = vpop.f32.mrb[0].mxu0
        %v3752 = vadd.f32 %v3639, %v3751
        %3753 = vmatprep.mubr.bf16.mxu0 %v579
        %3754 = vmatmul.mubr.bf16.gmra.mrb[0].mxu0 %v578
        %v3755 = vpop.f32.mrb[0].mxu0
        %v3756 = vadd.f32 %v3643, %v3755
        %v3757 = vpop.f32.mrb[0].mxu0
        %v3758 = vadd.f32 %v3645, %v3757
        %v3759 = vpop.f32.mrb[0].mxu0
        %v3760 = vadd.f32 %v3647, %v3759
        %v3761 = vpop.f32.mrb[0].mxu0
        %v3762 = vadd.f32 %v3649, %v3761
        %3763 = vmatprep.mubr.bf16.mxu0 %v595
        %3764 = vmatmul.mubr.bf16.gmra.mrb[0].mxu0 %v594
        %v3765 = vpop.f32.mrb[0].mxu0
        %v3766 = vadd.f32 %v3653, %v3765
        %v3767 = vpop.f32.mrb[0].mxu0
        %v3768 = vadd.f32 %v3655, %v3767
        %v3769 = vpop.f32.mrb[0].mxu0
        %v3770 = vadd.f32 %v3657, %v3769
        %v3771 = vpop.f32.mrb[0].mxu0
        %v3772 = vadd.f32 %v3659, %v3771
        %3773 = vmatprep.mubr.bf16.mxu0 %v611
        %3774 = vmatmul.mubr.bf16.gmra.mrb[0].mxu0 %v610
        %v3775 = vpop.f32.mrb[0].mxu0
        %v3776 = vadd.f32 %v3663, %v3775
        %v3777 = vpop.f32.mrb[0].mxu0
        %v3778 = vadd.f32 %v3665, %v3777
        %v3779 = vpop.f32.mrb[0].mxu0
        %v3780 = vadd.f32 %v3667, %v3779
        %v3781 = vpop.f32.mrb[0].mxu0
        %v3782 = vadd.f32 %v3669, %v3781
        %3783 = vmatprep.mubr.bf16.mxu0 %v627
        %3784 = vmatmul.mubr.bf16.gmra.mrb[0].mxu0 %v626
        %v3785 = vpop.f32.mrb[0].mxu0
        %v3786 = vadd.f32 %v3673, %v3785
        %v3787 = vpop.f32.mrb[0].mxu0
        %v3788 = vadd.f32 %v3675, %v3787
        %v3789 = vpop.f32.mrb[0].mxu0
        %v3790 = vadd.f32 %v3677, %v3789
        %v3791 = vpop.f32.mrb[0].mxu0
        %v3792 = vadd.f32 %v3679, %v3791
        %3793 = vmatprep.mubr.bf16.mxu0 %v643
        %3794 = vmatmul.mubr.bf16.gmra.mrb[0].mxu0 %v642
        %v3795 = vpop.f32.mrb[0].mxu0
        %v3796 = vadd.f32 %v3683, %v3795
        %v3797 = vpop.f32.mrb[0].mxu0
        %v3798 = vadd.f32 %v3685, %v3797
        %v3799 = vpop.f32.mrb[0].mxu0
        %v3800 = vadd.f32 %v3687, %v3799
        %v3801 = vpop.f32.mrb[0].mxu0
        %v3802 = vadd.f32 %v3689, %v3801
        %3803 = vmatprep.mubr.bf16.mxu0 %v659
        %3804 = vmatmul.mubr.bf16.gmra.mrb[0].mxu0 %v658
        %v3805 = vpop.f32.mrb[0].mxu0
        %v3806 = vadd.f32 %v3693, %v3805
        %v3807 = vpop.f32.mrb[0].mxu0
        %v3808 = vadd.f32 %v3695, %v3807
        %v3809 = vpop.f32.mrb[0].mxu0
        %v3810 = vadd.f32 %v3697, %v3809
        %v3811 = vpop.f32.mrb[0].mxu0
        %v3812 = vadd.f32 %v3699, %v3811
        %3813 = vmatprep.mubr.bf16.mxu0 %v675
        %3814 = vmatmul.mubr.bf16.gmra.mrb[0].mxu0 %v674
        %v3815 = vpop.f32.mrb[0].mxu0
        %v3816 = vadd.f32 %v3703, %v3815
        %v3817 = vpop.f32.mrb[0].mxu0
        %v3818 = vadd.f32 %v3705, %v3817
        %v3819 = vpop.f32.mrb[0].mxu0
        %v3820 = vadd.f32 %v3707, %v3819
        %v3821 = vpop.f32.mrb[0].mxu0
        %v3822 = vadd.f32 %v3709, %v3821
        %3823 = vdwg.mxu0
        %3824 = vmatprep.subr.bf16.mxu0 %v2732
        %3825 = vmatpush1.bf16.msra.mxu0 %v2731
        %3826 = vmatprep.subr.bf16.mxu0 %v2735
        %3827 = vmatpush1.bf16.msra.mxu0 %v2734
        %3828 = vmatprep.subr.bf16.mxu0 %v2738
        %3829 = vmatpush1.bf16.msra.mxu0 %v2737
        %3830 = vmatprep.subr.bf16.mxu0 %v2741
        %3831 = vmatpush1.bf16.msra.mxu0 %v2740
        %3832 = vmatprep.subr.bf16.mxu0 %v2744
        %3833 = vmatpush1.bf16.msra.mxu0 %v2743
        %3834 = vmatprep.subr.bf16.mxu0 %v2747
        %3835 = vmatpush1.bf16.msra.mxu0 %v2746
        %3836 = vmatprep.subr.bf16.mxu0 %v2750
        %3837 = vmatpush1.bf16.msra.mxu0 %v2749
        %3838 = vmatprep.subr.bf16.mxu0 %v2753
        %3839 = vmatpush1.bf16.msra.mxu0 %v2752
        %3840 = vmatprep.subr.bf16.mxu0 %v2756
        %3841 = vmatpush1.bf16.msra.mxu0 %v2755
        %3842 = vmatprep.subr.bf16.mxu0 %v2759
        %3843 = vmatpush1.bf16.msra.mxu0 %v2758
        %3844 = vmatprep.subr.bf16.mxu0 %v2762
        %3845 = vmatpush1.bf16.msra.mxu0 %v2761
        %3846 = vmatprep.subr.bf16.mxu0 %v2765
        %3847 = vmatpush1.bf16.msra.mxu0 %v2764
        %3848 = vmatprep.subr.bf16.mxu0 %v2768
        %3849 = vmatpush1.bf16.msra.mxu0 %v2767
        %3850 = vmatprep.subr.bf16.mxu0 %v2771
        %3851 = vmatpush1.bf16.msra.mxu0 %v2770
        %3852 = vmatprep.subr.bf16.mxu0 %v2774
        %3853 = vmatpush1.bf16.msra.mxu0 %v2773
        %3854 = vmatprep.subr.bf16.mxu0 %v2777
        %3855 = vmatpush1.bf16.msra.mxu0 %v2776
        %3856 = vmatprep.mubr.bf16.mxu0 %v565
        %3857 = vmatmul.mubr.bf16.gmra.mrb[0].mxu0 %v564
        %v3858 = vpop.f32.mrb[0].mxu0
        %v3859 = vadd.f32 %v3746, %v3858
        %v3860 = vpop.f32.mrb[0].mxu0
        %v3861 = vadd.f32 %v3748, %v3860
        %v3862 = vpop.f32.mrb[0].mxu0
        %v3863 = vadd.f32 %v3750, %v3862
        %v3864 = vpop.f32.mrb[0].mxu0
        %v3865 = vadd.f32 %v3752, %v3864
        %3866 = vmatprep.mubr.bf16.mxu0 %v581
        %3867 = vmatmul.mubr.bf16.gmra.mrb[0].mxu0 %v580
        %v3868 = vpop.f32.mrb[0].mxu0
        %v3869 = vadd.f32 %v3756, %v3868
        %v3870 = vpop.f32.mrb[0].mxu0
        %v3871 = vadd.f32 %v3758, %v3870
        %v3872 = vpop.f32.mrb[0].mxu0
        %v3873 = vadd.f32 %v3760, %v3872
        %v3874 = vpop.f32.mrb[0].mxu0
        %v3875 = vadd.f32 %v3762, %v3874
        %3876 = vmatprep.mubr.bf16.mxu0 %v597
        %3877 = vmatmul.mubr.bf16.gmra.mrb[0].mxu0 %v596
        %v3878 = vpop.f32.mrb[0].mxu0
        %v3879 = vadd.f32 %v3766, %v3878
        %v3880 = vpop.f32.mrb[0].mxu0
        %v3881 = vadd.f32 %v3768, %v3880
        %v3882 = vpop.f32.mrb[0].mxu0
        %v3883 = vadd.f32 %v3770, %v3882
        %v3884 = vpop.f32.mrb[0].mxu0
        %v3885 = vadd.f32 %v3772, %v3884
        %3886 = vmatprep.mubr.bf16.mxu0 %v613
        %3887 = vmatmul.mubr.bf16.gmra.mrb[0].mxu0 %v612
        %v3888 = vpop.f32.mrb[0].mxu0
        %v3889 = vadd.f32 %v3776, %v3888
        %v3890 = vpop.f32.mrb[0].mxu0
        %v3891 = vadd.f32 %v3778, %v3890
        %v3892 = vpop.f32.mrb[0].mxu0
        %v3893 = vadd.f32 %v3780, %v3892
        %v3894 = vpop.f32.mrb[0].mxu0
        %v3895 = vadd.f32 %v3782, %v3894
        %3896 = vmatprep.mubr.bf16.mxu0 %v629
        %3897 = vmatmul.mubr.bf16.gmra.mrb[0].mxu0 %v628
        %v3898 = vpop.f32.mrb[0].mxu0
        %v3899 = vadd.f32 %v3786, %v3898
        %v3900 = vpop.f32.mrb[0].mxu0
        %v3901 = vadd.f32 %v3788, %v3900
        %v3902 = vpop.f32.mrb[0].mxu0
        %v3903 = vadd.f32 %v3790, %v3902
        %v3904 = vpop.f32.mrb[0].mxu0
        %v3905 = vadd.f32 %v3792, %v3904
        %3906 = vmatprep.mubr.bf16.mxu0 %v645
        %3907 = vmatmul.mubr.bf16.gmra.mrb[0].mxu0 %v644
        %v3908 = vpop.f32.mrb[0].mxu0
        %v3909 = vadd.f32 %v3796, %v3908
        %v3910 = vpop.f32.mrb[0].mxu0
        %v3911 = vadd.f32 %v3798, %v3910
        %v3912 = vpop.f32.mrb[0].mxu0
        %v3913 = vadd.f32 %v3800, %v3912
        %v3914 = vpop.f32.mrb[0].mxu0
        %v3915 = vadd.f32 %v3802, %v3914
        %3916 = vmatprep.mubr.bf16.mxu0 %v661
        %3917 = vmatmul.mubr.bf16.gmra.mrb[0].mxu0 %v660
        %v3918 = vpop.f32.mrb[0].mxu0
        %v3919 = vadd.f32 %v3806, %v3918
        %v3920 = vpop.f32.mrb[0].mxu0
        %v3921 = vadd.f32 %v3808, %v3920
        %v3922 = vpop.f32.mrb[0].mxu0
        %v3923 = vadd.f32 %v3810, %v3922
        %v3924 = vpop.f32.mrb[0].mxu0
        %v3925 = vadd.f32 %v3812, %v3924
        %3926 = vmatprep.mubr.bf16.mxu0 %v677
        %3927 = vmatmul.mubr.bf16.gmra.mrb[0].mxu0 %v676
        %v3928 = vpop.f32.mrb[0].mxu0
        %v3929 = vadd.f32 %v3816, %v3928
        %v3930 = vpop.f32.mrb[0].mxu0
        %v3931 = vadd.f32 %v3818, %v3930
        %v3932 = vpop.f32.mrb[0].mxu0
        %v3933 = vadd.f32 %v3820, %v3932
        %v3934 = vpop.f32.mrb[0].mxu0
        %v3935 = vadd.f32 %v3822, %v3934
        %3936 = vdwg.mxu0
        %3937 = vmatprep.subr.bf16.mxu0 %v2780
        %3938 = vmatpush1.bf16.msra.mxu0 %v2779
        %3939 = vmatprep.subr.bf16.mxu0 %v2783
        %3940 = vmatpush1.bf16.msra.mxu0 %v2782
        %3941 = vmatprep.subr.bf16.mxu0 %v2786
        %3942 = vmatpush1.bf16.msra.mxu0 %v2785
        %3943 = vmatprep.subr.bf16.mxu0 %v2789
        %3944 = vmatpush1.bf16.msra.mxu0 %v2788
        %3945 = vmatprep.subr.bf16.mxu0 %v2792
        %3946 = vmatpush1.bf16.msra.mxu0 %v2791
        %3947 = vmatprep.subr.bf16.mxu0 %v2795
        %3948 = vmatpush1.bf16.msra.mxu0 %v2794
        %3949 = vmatprep.subr.bf16.mxu0 %v2798
        %3950 = vmatpush1.bf16.msra.mxu0 %v2797
        %3951 = vmatprep.subr.bf16.mxu0 %v2801
        %3952 = vmatpush1.bf16.msra.mxu0 %v2800
        %3953 = vmatprep.subr.bf16.mxu0 %v2804
        %3954 = vmatpush1.bf16.msra.mxu0 %v2803
        %3955 = vmatprep.subr.bf16.mxu0 %v2807
        %3956 = vmatpush1.bf16.msra.mxu0 %v2806
        %3957 = vmatprep.subr.bf16.mxu0 %v2810
        %3958 = vmatpush1.bf16.msra.mxu0 %v2809
        %3959 = vmatprep.subr.bf16.mxu0 %v2813
        %3960 = vmatpush1.bf16.msra.mxu0 %v2812
        %3961 = vmatprep.subr.bf16.mxu0 %v2816
        %3962 = vmatpush1.bf16.msra.mxu0 %v2815
        %3963 = vmatprep.subr.bf16.mxu0 %v2819
        %3964 = vmatpush1.bf16.msra.mxu0 %v2818
        %3965 = vmatprep.subr.bf16.mxu0 %v2822
        %3966 = vmatpush1.bf16.msra.mxu0 %v2821
        %3967 = vmatprep.subr.bf16.mxu0 %v2825
        %3968 = vmatpush1.bf16.msra.mxu0 %v2824
        %3969 = vmatprep.mubr.bf16.mxu0 %v567
        %3970 = vmatmul.mubr.bf16.gmra.mrb[0].mxu0 %v566
        %v3971 = vpop.f32.mrb[0].mxu0
        %v3972 = vadd.f32 %v3859, %v3971
        %v3973 = vpop.f32.mrb[0].mxu0
        %v3974 = vadd.f32 %v3861, %v3973
        %v3975 = vpop.f32.mrb[0].mxu0
        %v3976 = vadd.f32 %v3863, %v3975
        %v3977 = vpop.f32.mrb[0].mxu0
        %v3978 = vadd.f32 %v3865, %v3977
        %3979 = vmatprep.mubr.bf16.mxu0 %v583
        %3980 = vmatmul.mubr.bf16.gmra.mrb[0].mxu0 %v582
        %v3981 = vpop.f32.mrb[0].mxu0
        %v3982 = vadd.f32 %v3869, %v3981
        %v3983 = vpop.f32.mrb[0].mxu0
        %v3984 = vadd.f32 %v3871, %v3983
        %v3985 = vpop.f32.mrb[0].mxu0
        %v3986 = vadd.f32 %v3873, %v3985
        %v3987 = vpop.f32.mrb[0].mxu0
        %v3988 = vadd.f32 %v3875, %v3987
        %3989 = vmatprep.mubr.bf16.mxu0 %v599
        %3990 = vmatmul.mubr.bf16.gmra.mrb[0].mxu0 %v598
        %v3991 = vpop.f32.mrb[0].mxu0
        %v3992 = vadd.f32 %v3879, %v3991
        %v3993 = vpop.f32.mrb[0].mxu0
        %v3994 = vadd.f32 %v3881, %v3993
        %v3995 = vpop.f32.mrb[0].mxu0
        %v3996 = vadd.f32 %v3883, %v3995
        %v3997 = vpop.f32.mrb[0].mxu0
        %v3998 = vadd.f32 %v3885, %v3997
        %3999 = vmatprep.mubr.bf16.mxu0 %v615
        %4000 = vmatmul.mubr.bf16.gmra.mrb[0].mxu0 %v614
        %v4001 = vpop.f32.mrb[0].mxu0
        %v4002 = vadd.f32 %v3889, %v4001
        %v4003 = vpop.f32.mrb[0].mxu0
        %v4004 = vadd.f32 %v3891, %v4003
        %v4005 = vpop.f32.mrb[0].mxu0
        %v4006 = vadd.f32 %v3893, %v4005
        %v4007 = vpop.f32.mrb[0].mxu0
        %v4008 = vadd.f32 %v3895, %v4007
        %4009 = vmatprep.mubr.bf16.mxu0 %v631
        %4010 = vmatmul.mubr.bf16.gmra.mrb[0].mxu0 %v630
        %v4011 = vpop.f32.mrb[0].mxu0
        %v4012 = vadd.f32 %v3899, %v4011
        %v4013 = vpop.f32.mrb[0].mxu0
        %v4014 = vadd.f32 %v3901, %v4013
        %v4015 = vpop.f32.mrb[0].mxu0
        %v4016 = vadd.f32 %v3903, %v4015
        %v4017 = vpop.f32.mrb[0].mxu0
        %v4018 = vadd.f32 %v3905, %v4017
        %4019 = vmatprep.mubr.bf16.mxu0 %v647
        %4020 = vmatmul.mubr.bf16.gmra.mrb[0].mxu0 %v646
        %v4021 = vpop.f32.mrb[0].mxu0
        %v4022 = vadd.f32 %v3909, %v4021
        %v4023 = vpop.f32.mrb[0].mxu0
        %v4024 = vadd.f32 %v3911, %v4023
        %v4025 = vpop.f32.mrb[0].mxu0
        %v4026 = vadd.f32 %v3913, %v4025
        %v4027 = vpop.f32.mrb[0].mxu0
        %v4028 = vadd.f32 %v3915, %v4027
        %4029 = vmatprep.mubr.bf16.mxu0 %v663
        %4030 = vmatmul.mubr.bf16.gmra.mrb[0].mxu0 %v662
        %v4031 = vpop.f32.mrb[0].mxu0
        %v4032 = vadd.f32 %v3919, %v4031
        %v4033 = vpop.f32.mrb[0].mxu0
        %v4034 = vadd.f32 %v3921, %v4033
        %v4035 = vpop.f32.mrb[0].mxu0
        %v4036 = vadd.f32 %v3923, %v4035
        %v4037 = vpop.f32.mrb[0].mxu0
        %v4038 = vadd.f32 %v3925, %v4037
        %4039 = vmatprep.mubr.bf16.mxu0 %v679
        %4040 = vmatmul.mubr.bf16.gmra.mrb[0].mxu0 %v678
        %v4041 = vpop.f32.mrb[0].mxu0
        %v4042 = vadd.f32 %v3929, %v4041
        %v4043 = vpop.f32.mrb[0].mxu0
        %v4044 = vadd.f32 %v3931, %v4043
        %v4045 = vpop.f32.mrb[0].mxu0
        %v4046 = vadd.f32 %v3933, %v4045
        %v4047 = vpop.f32.mrb[0].mxu0
        %v4048 = vadd.f32 %v3935, %v4047
        %4049 = vdwg.mxu0
        %4050 = vmatprep.subr.bf16.mxu0 %v2828
        %4051 = vmatpush1.bf16.msra.mxu0 %v2827
        %4052 = vmatprep.subr.bf16.mxu0 %v2831
        %4053 = vmatpush1.bf16.msra.mxu0 %v2830
        %4054 = vmatprep.subr.bf16.mxu0 %v2834
        %4055 = vmatpush1.bf16.msra.mxu0 %v2833
        %4056 = vmatprep.subr.bf16.mxu0 %v2837
        %4057 = vmatpush1.bf16.msra.mxu0 %v2836
        %4058 = vmatprep.subr.bf16.mxu0 %v2840
        %4059 = vmatpush1.bf16.msra.mxu0 %v2839
        %4060 = vmatprep.subr.bf16.mxu0 %v2843
        %4061 = vmatpush1.bf16.msra.mxu0 %v2842
        %4062 = vmatprep.subr.bf16.mxu0 %v2846
        %4063 = vmatpush1.bf16.msra.mxu0 %v2845
        %4064 = vmatprep.subr.bf16.mxu0 %v2849
        %4065 = vmatpush1.bf16.msra.mxu0 %v2848
        %4066 = vmatprep.subr.bf16.mxu0 %v2852
        %4067 = vmatpush1.bf16.msra.mxu0 %v2851
        %4068 = vmatprep.subr.bf16.mxu0 %v2855
        %4069 = vmatpush1.bf16.msra.mxu0 %v2854
        %4070 = vmatprep.subr.bf16.mxu0 %v2858
        %4071 = vmatpush1.bf16.msra.mxu0 %v2857
        %4072 = vmatprep.subr.bf16.mxu0 %v2861
        %4073 = vmatpush1.bf16.msra.mxu0 %v2860
        %4074 = vmatprep.subr.bf16.mxu0 %v2864
        %4075 = vmatpush1.bf16.msra.mxu0 %v2863
        %4076 = vmatprep.subr.bf16.mxu0 %v2867
        %4077 = vmatpush1.bf16.msra.mxu0 %v2866
        %4078 = vmatprep.subr.bf16.mxu0 %v2870
        %4079 = vmatpush1.bf16.msra.mxu0 %v2869
        %4080 = vmatprep.subr.bf16.mxu0 %v2873
        %4081 = vmatpush1.bf16.msra.mxu0 %v2872
        %4082 = vmatprep.mubr.bf16.mxu0 %v569
        %4083 = vmatmul.mubr.bf16.gmra.mrb[0].mxu0 %v568
        %v4084 = vpop.f32.mrb[0].mxu0
        %v4085 = vadd.f32 %v3972, %v4084
        %v4086 = vpop.f32.mrb[0].mxu0
        %v4087 = vadd.f32 %v3974, %v4086
        %v4088 = vpop.f32.mrb[0].mxu0
        %v4089 = vadd.f32 %v3976, %v4088
        %v4090 = vpop.f32.mrb[0].mxu0
        %v4091 = vadd.f32 %v3978, %v4090
        %4092 = vmatprep.mubr.bf16.mxu0 %v585
        %4093 = vmatmul.mubr.bf16.gmra.mrb[0].mxu0 %v584
        %v4094 = vpop.f32.mrb[0].mxu0
        %v4095 = vadd.f32 %v3982, %v4094
        %v4096 = vpop.f32.mrb[0].mxu0
        %v4097 = vadd.f32 %v3984, %v4096
        %v4098 = vpop.f32.mrb[0].mxu0
        %v4099 = vadd.f32 %v3986, %v4098
        %v4100 = vpop.f32.mrb[0].mxu0
        %v4101 = vadd.f32 %v3988, %v4100
        %4102 = vmatprep.mubr.bf16.mxu0 %v601
        %4103 = vmatmul.mubr.bf16.gmra.mrb[0].mxu0 %v600
        %v4104 = vpop.f32.mrb[0].mxu0
        %v4105 = vadd.f32 %v3992, %v4104
        %v4106 = vpop.f32.mrb[0].mxu0
        %v4107 = vadd.f32 %v3994, %v4106
        %v4108 = vpop.f32.mrb[0].mxu0
        %v4109 = vadd.f32 %v3996, %v4108
        %v4110 = vpop.f32.mrb[0].mxu0
        %v4111 = vadd.f32 %v3998, %v4110
        %4112 = vmatprep.mubr.bf16.mxu0 %v617
        %4113 = vmatmul.mubr.bf16.gmra.mrb[0].mxu0 %v616
        %v4114 = vpop.f32.mrb[0].mxu0
        %v4115 = vadd.f32 %v4002, %v4114
        %v4116 = vpop.f32.mrb[0].mxu0
        %v4117 = vadd.f32 %v4004, %v4116
        %v4118 = vpop.f32.mrb[0].mxu0
        %v4119 = vadd.f32 %v4006, %v4118
        %v4120 = vpop.f32.mrb[0].mxu0
        %v4121 = vadd.f32 %v4008, %v4120
        %4122 = vmatprep.mubr.bf16.mxu0 %v633
        %4123 = vmatmul.mubr.bf16.gmra.mrb[0].mxu0 %v632
        %v4124 = vpop.f32.mrb[0].mxu0
        %v4125 = vadd.f32 %v4012, %v4124
        %v4126 = vpop.f32.mrb[0].mxu0
        %v4127 = vadd.f32 %v4014, %v4126
        %v4128 = vpop.f32.mrb[0].mxu0
        %v4129 = vadd.f32 %v4016, %v4128
        %v4130 = vpop.f32.mrb[0].mxu0
        %v4131 = vadd.f32 %v4018, %v4130
        %4132 = vmatprep.mubr.bf16.mxu0 %v649
        %4133 = vmatmul.mubr.bf16.gmra.mrb[0].mxu0 %v648
        %v4134 = vpop.f32.mrb[0].mxu0
        %v4135 = vadd.f32 %v4022, %v4134
        %v4136 = vpop.f32.mrb[0].mxu0
        %v4137 = vadd.f32 %v4024, %v4136
        %v4138 = vpop.f32.mrb[0].mxu0
        %v4139 = vadd.f32 %v4026, %v4138
        %v4140 = vpop.f32.mrb[0].mxu0
        %v4141 = vadd.f32 %v4028, %v4140
        %4142 = vmatprep.mubr.bf16.mxu0 %v665
        %4143 = vmatmul.mubr.bf16.gmra.mrb[0].mxu0 %v664
        %v4144 = vpop.f32.mrb[0].mxu0
        %v4145 = vadd.f32 %v4032, %v4144
        %v4146 = vpop.f32.mrb[0].mxu0
        %v4147 = vadd.f32 %v4034, %v4146
        %v4148 = vpop.f32.mrb[0].mxu0
        %v4149 = vadd.f32 %v4036, %v4148
        %v4150 = vpop.f32.mrb[0].mxu0
        %v4151 = vadd.f32 %v4038, %v4150
        %4152 = vmatprep.mubr.bf16.mxu0 %v681
        %4153 = vmatmul.mubr.bf16.gmra.mrb[0].mxu0 %v680
        %v4154 = vpop.f32.mrb[0].mxu0
        %v4155 = vadd.f32 %v4042, %v4154
        %v4156 = vpop.f32.mrb[0].mxu0
        %v4157 = vadd.f32 %v4044, %v4156
        %v4158 = vpop.f32.mrb[0].mxu0
        %v4159 = vadd.f32 %v4046, %v4158
        %v4160 = vpop.f32.mrb[0].mxu0
        %v4161 = vadd.f32 %v4048, %v4160
        %4162 = vdwg.mxu0
        %4163 = vmatprep.subr.bf16.mxu0 0
        %4164 = vmatpush1.bf16.msra.mxu0 %v2493
        %4165 = vmatprep.subr.bf16.mxu0 0
        %4166 = vmatpush1.bf16.msra.mxu0 %v2496
        %4167 = vmatprep.subr.bf16.mxu0 0
        %4168 = vmatpush1.bf16.msra.mxu0 %v2499
        %4169 = vmatprep.subr.bf16.mxu0 0
        %4170 = vmatpush1.bf16.msra.mxu0 %v2502
        %4171 = vmatprep.subr.bf16.mxu0 0
        %4172 = vmatpush1.bf16.msra.mxu0 %v2505
        %4173 = vmatprep.subr.bf16.mxu0 0
        %4174 = vmatpush1.bf16.msra.mxu0 %v2508
        %4175 = vmatprep.subr.bf16.mxu0 0
        %4176 = vmatpush1.bf16.msra.mxu0 %v2511
        %4177 = vmatprep.subr.bf16.mxu0 0
        %4178 = vmatpush1.bf16.msra.mxu0 %v2514
        %4179 = vmatprep.subr.bf16.mxu0 0
        %4180 = vmatpush1.bf16.msra.mxu0 %v2517
        %4181 = vmatprep.subr.bf16.mxu0 0
        %4182 = vmatpush1.bf16.msra.mxu0 %v2520
        %4183 = vmatprep.subr.bf16.mxu0 0
        %4184 = vmatpush1.bf16.msra.mxu0 %v2523
        %4185 = vmatprep.subr.bf16.mxu0 0
        %4186 = vmatpush1.bf16.msra.mxu0 %v2526
        %4187 = vmatprep.subr.bf16.mxu0 0
        %4188 = vmatpush1.bf16.msra.mxu0 %v2529
        %4189 = vmatprep.subr.bf16.mxu0 0
        %4190 = vmatpush1.bf16.msra.mxu0 %v2532
        %4191 = vmatprep.subr.bf16.mxu0 0
        %4192 = vmatpush1.bf16.msra.mxu0 %v2535
        %4193 = vmatprep.subr.bf16.mxu0 0
        %4194 = vmatpush1.bf16.msra.mxu0 %v2538
        %4195 = vmatprep.mubr.bf16.mxu0 %v555
        %4196 = vmatmul.mubr.bf16.gmra.mrb[0].mxu0 %v554
        %v4197 = vpop.f32.mrb[0].mxu0
        %v4198 = vadd.f32 %v1207, %v4197
        %v4199 = vpop.f32.mrb[0].mxu0
        %v4200 = vpop.f32.mrb[0].mxu0
        %v4201 = vadd.f32 %v1207, %v4200
        %v4202 = vpop.f32.mrb[0].mxu0
        %4203 = vmatprep.mubr.bf16.mxu0 %v571
        %4204 = vmatmul.mubr.bf16.gmra.mrb[0].mxu0 %v570
        %v4205 = vpop.f32.mrb[0].mxu0
        %v4206 = vadd.f32 %v1207, %v4205
        %v4207 = vpop.f32.mrb[0].mxu0
        %v4208 = vpop.f32.mrb[0].mxu0
        %v4209 = vadd.f32 %v1207, %v4208
        %v4210 = vpop.f32.mrb[0].mxu0
        %4211 = vmatprep.mubr.bf16.mxu0 %v587
        %4212 = vmatmul.mubr.bf16.gmra.mrb[0].mxu0 %v586
        %v4213 = vpop.f32.mrb[0].mxu0
        %v4214 = vadd.f32 %v1207, %v4213
        %v4215 = vpop.f32.mrb[0].mxu0
        %v4216 = vpop.f32.mrb[0].mxu0
        %v4217 = vadd.f32 %v1207, %v4216
        %v4218 = vpop.f32.mrb[0].mxu0
        %4219 = vmatprep.mubr.bf16.mxu0 %v603
        %4220 = vmatmul.mubr.bf16.gmra.mrb[0].mxu0 %v602
        %v4221 = vpop.f32.mrb[0].mxu0
        %v4222 = vadd.f32 %v1207, %v4221
        %v4223 = vpop.f32.mrb[0].mxu0
        %v4224 = vpop.f32.mrb[0].mxu0
        %v4225 = vadd.f32 %v1207, %v4224
        %v4226 = vpop.f32.mrb[0].mxu0
        %4227 = vmatprep.mubr.bf16.mxu0 %v619
        %4228 = vmatmul.mubr.bf16.gmra.mrb[0].mxu0 %v618
        %v4229 = vpop.f32.mrb[0].mxu0
        %v4230 = vadd.f32 %v1207, %v4229
        %v4231 = vpop.f32.mrb[0].mxu0
        %v4232 = vpop.f32.mrb[0].mxu0
        %v4233 = vadd.f32 %v1207, %v4232
        %v4234 = vpop.f32.mrb[0].mxu0
        %4235 = vmatprep.mubr.bf16.mxu0 %v635
        %4236 = vmatmul.mubr.bf16.gmra.mrb[0].mxu0 %v634
        %v4237 = vpop.f32.mrb[0].mxu0
        %v4238 = vadd.f32 %v1207, %v4237
        %v4239 = vpop.f32.mrb[0].mxu0
        %v4240 = vpop.f32.mrb[0].mxu0
        %v4241 = vadd.f32 %v1207, %v4240
        %v4242 = vpop.f32.mrb[0].mxu0
        %4243 = vmatprep.mubr.bf16.mxu0 %v651
        %4244 = vmatmul.mubr.bf16.gmra.mrb[0].mxu0 %v650
        %v4245 = vpop.f32.mrb[0].mxu0
        %v4246 = vadd.f32 %v1207, %v4245
        %v4247 = vpop.f32.mrb[0].mxu0
        %v4248 = vpop.f32.mrb[0].mxu0
        %v4249 = vadd.f32 %v1207, %v4248
        %v4250 = vpop.f32.mrb[0].mxu0
        %4251 = vmatprep.mubr.bf16.mxu0 %v667
        %4252 = vmatmul.mubr.bf16.gmra.mrb[0].mxu0 %v666
        %v4253 = vpop.f32.mrb[0].mxu0
        %v4254 = vadd.f32 %v1207, %v4253
        %v4255 = vpop.f32.mrb[0].mxu0
        %v4256 = vpop.f32.mrb[0].mxu0
        %v4257 = vadd.f32 %v1207, %v4256
        %v4258 = vpop.f32.mrb[0].mxu0
        %4259 = vdwg.mxu0
        %4260 = vmatprep.subr.bf16.mxu0 0
        %4261 = vmatpush1.bf16.msra.mxu0 %v2541
        %4262 = vmatprep.subr.bf16.mxu0 0
        %4263 = vmatpush1.bf16.msra.mxu0 %v2544
        %4264 = vmatprep.subr.bf16.mxu0 0
        %4265 = vmatpush1.bf16.msra.mxu0 %v2547
        %4266 = vmatprep.subr.bf16.mxu0 0
        %4267 = vmatpush1.bf16.msra.mxu0 %v2550
        %4268 = vmatprep.subr.bf16.mxu0 0
        %4269 = vmatpush1.bf16.msra.mxu0 %v2553
        %4270 = vmatprep.subr.bf16.mxu0 0
        %4271 = vmatpush1.bf16.msra.mxu0 %v2556
        %4272 = vmatprep.subr.bf16.mxu0 0
        %4273 = vmatpush1.bf16.msra.mxu0 %v2559
        %4274 = vmatprep.subr.bf16.mxu0 0
        %4275 = vmatpush1.bf16.msra.mxu0 %v2562
        %4276 = vmatprep.subr.bf16.mxu0 0
        %4277 = vmatpush1.bf16.msra.mxu0 %v2565
        %4278 = vmatprep.subr.bf16.mxu0 0
        %4279 = vmatpush1.bf16.msra.mxu0 %v2568
        %4280 = vmatprep.subr.bf16.mxu0 0
        %4281 = vmatpush1.bf16.msra.mxu0 %v2571
        %4282 = vmatprep.subr.bf16.mxu0 0
        %4283 = vmatpush1.bf16.msra.mxu0 %v2574
        %4284 = vmatprep.subr.bf16.mxu0 0
        %4285 = vmatpush1.bf16.msra.mxu0 %v2577
        %4286 = vmatprep.subr.bf16.mxu0 0
        %4287 = vmatpush1.bf16.msra.mxu0 %v2580
        %4288 = vmatprep.subr.bf16.mxu0 0
        %4289 = vmatpush1.bf16.msra.mxu0 %v2583
        %4290 = vmatprep.subr.bf16.mxu0 0
        %4291 = vmatpush1.bf16.msra.mxu0 %v2586
        %4292 = vmatprep.mubr.bf16.mxu0 %v557
        %4293 = vmatmul.mubr.bf16.gmra.mrb[0].mxu0 %v556
        %v4294 = vpop.f32.mrb[0].mxu0
        %v4295 = vadd.f32 %v4198, %v4294
        %v4296 = vpop.f32.mrb[0].mxu0
        %v4297 = vpop.f32.mrb[0].mxu0
        %v4298 = vadd.f32 %v4201, %v4297
        %v4299 = vpop.f32.mrb[0].mxu0
        %4300 = vmatprep.mubr.bf16.mxu0 %v573
        %4301 = vmatmul.mubr.bf16.gmra.mrb[0].mxu0 %v572
        %v4302 = vpop.f32.mrb[0].mxu0
        %v4303 = vadd.f32 %v4206, %v4302
        %v4304 = vpop.f32.mrb[0].mxu0
        %v4305 = vpop.f32.mrb[0].mxu0
        %v4306 = vadd.f32 %v4209, %v4305
        %v4307 = vpop.f32.mrb[0].mxu0
        %4308 = vmatprep.mubr.bf16.mxu0 %v589
        %4309 = vmatmul.mubr.bf16.gmra.mrb[0].mxu0 %v588
        %v4310 = vpop.f32.mrb[0].mxu0
        %v4311 = vadd.f32 %v4214, %v4310
        %v4312 = vpop.f32.mrb[0].mxu0
        %v4313 = vpop.f32.mrb[0].mxu0
        %v4314 = vadd.f32 %v4217, %v4313
        %v4315 = vpop.f32.mrb[0].mxu0
        %4316 = vmatprep.mubr.bf16.mxu0 %v605
        %4317 = vmatmul.mubr.bf16.gmra.mrb[0].mxu0 %v604
        %v4318 = vpop.f32.mrb[0].mxu0
        %v4319 = vadd.f32 %v4222, %v4318
        %v4320 = vpop.f32.mrb[0].mxu0
        %v4321 = vpop.f32.mrb[0].mxu0
        %v4322 = vadd.f32 %v4225, %v4321
        %v4323 = vpop.f32.mrb[0].mxu0
        %4324 = vmatprep.mubr.bf16.mxu0 %v621
        %4325 = vmatmul.mubr.bf16.gmra.mrb[0].mxu0 %v620
        %v4326 = vpop.f32.mrb[0].mxu0
        %v4327 = vadd.f32 %v4230, %v4326
        %v4328 = vpop.f32.mrb[0].mxu0
        %v4329 = vpop.f32.mrb[0].mxu0
        %v4330 = vadd.f32 %v4233, %v4329
        %v4331 = vpop.f32.mrb[0].mxu0
        %4332 = vmatprep.mubr.bf16.mxu0 %v637
        %4333 = vmatmul.mubr.bf16.gmra.mrb[0].mxu0 %v636
        %v4334 = vpop.f32.mrb[0].mxu0
        %v4335 = vadd.f32 %v4238, %v4334
        %v4336 = vpop.f32.mrb[0].mxu0
        %v4337 = vpop.f32.mrb[0].mxu0
        %v4338 = vadd.f32 %v4241, %v4337
        %v4339 = vpop.f32.mrb[0].mxu0
        %4340 = vmatprep.mubr.bf16.mxu0 %v653
        %4341 = vmatmul.mubr.bf16.gmra.mrb[0].mxu0 %v652
        %v4342 = vpop.f32.mrb[0].mxu0
        %v4343 = vadd.f32 %v4246, %v4342
        %v4344 = vpop.f32.mrb[0].mxu0
        %v4345 = vpop.f32.mrb[0].mxu0
        %v4346 = vadd.f32 %v4249, %v4345
        %v4347 = vpop.f32.mrb[0].mxu0
        %4348 = vmatprep.mubr.bf16.mxu0 %v669
        %4349 = vmatmul.mubr.bf16.gmra.mrb[0].mxu0 %v668
        %v4350 = vpop.f32.mrb[0].mxu0
        %v4351 = vadd.f32 %v4254, %v4350
        %v4352 = vpop.f32.mrb[0].mxu0
        %v4353 = vpop.f32.mrb[0].mxu0
        %v4354 = vadd.f32 %v4257, %v4353
        %v4355 = vpop.f32.mrb[0].mxu0
        %4356 = vdwg.mxu0
        %4357 = vmatprep.subr.bf16.mxu0 0
        %4358 = vmatpush1.bf16.msra.mxu0 %v2589
        %4359 = vmatprep.subr.bf16.mxu0 0
        %4360 = vmatpush1.bf16.msra.mxu0 %v2592
        %4361 = vmatprep.subr.bf16.mxu0 0
        %4362 = vmatpush1.bf16.msra.mxu0 %v2595
        %4363 = vmatprep.subr.bf16.mxu0 0
        %4364 = vmatpush1.bf16.msra.mxu0 %v2598
        %4365 = vmatprep.subr.bf16.mxu0 0
        %4366 = vmatpush1.bf16.msra.mxu0 %v2601
        %4367 = vmatprep.subr.bf16.mxu0 0
        %4368 = vmatpush1.bf16.msra.mxu0 %v2604
        %4369 = vmatprep.subr.bf16.mxu0 0
        %4370 = vmatpush1.bf16.msra.mxu0 %v2607
        %4371 = vmatprep.subr.bf16.mxu0 0
        %4372 = vmatpush1.bf16.msra.mxu0 %v2610
        %4373 = vmatprep.subr.bf16.mxu0 0
        %4374 = vmatpush1.bf16.msra.mxu0 %v2613
        %4375 = vmatprep.subr.bf16.mxu0 0
        %4376 = vmatpush1.bf16.msra.mxu0 %v2616
        %4377 = vmatprep.subr.bf16.mxu0 0
        %4378 = vmatpush1.bf16.msra.mxu0 %v2619
        %4379 = vmatprep.subr.bf16.mxu0 0
        %4380 = vmatpush1.bf16.msra.mxu0 %v2622
        %4381 = vmatprep.subr.bf16.mxu0 0
        %4382 = vmatpush1.bf16.msra.mxu0 %v2625
        %4383 = vmatprep.subr.bf16.mxu0 0
        %4384 = vmatpush1.bf16.msra.mxu0 %v2628
        %4385 = vmatprep.subr.bf16.mxu0 0
        %4386 = vmatpush1.bf16.msra.mxu0 %v2631
        %4387 = vmatprep.subr.bf16.mxu0 0
        %4388 = vmatpush1.bf16.msra.mxu0 %v2634
        %4389 = vmatprep.mubr.bf16.mxu0 %v559
        %4390 = vmatmul.mubr.bf16.gmra.mrb[0].mxu0 %v558
        %v4391 = vpop.f32.mrb[0].mxu0
        %v4392 = vadd.f32 %v4295, %v4391
        %v4393 = vpop.f32.mrb[0].mxu0
        %v4394 = vpop.f32.mrb[0].mxu0
        %v4395 = vadd.f32 %v4298, %v4394
        %v4396 = vpop.f32.mrb[0].mxu0
        %4397 = vmatprep.mubr.bf16.mxu0 %v575
        %4398 = vmatmul.mubr.bf16.gmra.mrb[0].mxu0 %v574
        %v4399 = vpop.f32.mrb[0].mxu0
        %v4400 = vadd.f32 %v4303, %v4399
        %v4401 = vpop.f32.mrb[0].mxu0
        %v4402 = vpop.f32.mrb[0].mxu0
        %v4403 = vadd.f32 %v4306, %v4402
        %v4404 = vpop.f32.mrb[0].mxu0
        %4405 = vmatprep.mubr.bf16.mxu0 %v591
        %4406 = vmatmul.mubr.bf16.gmra.mrb[0].mxu0 %v590
        %v4407 = vpop.f32.mrb[0].mxu0
        %v4408 = vadd.f32 %v4311, %v4407
        %v4409 = vpop.f32.mrb[0].mxu0
        %v4410 = vpop.f32.mrb[0].mxu0
        %v4411 = vadd.f32 %v4314, %v4410
        %v4412 = vpop.f32.mrb[0].mxu0
        %4413 = vmatprep.mubr.bf16.mxu0 %v607
        %4414 = vmatmul.mubr.bf16.gmra.mrb[0].mxu0 %v606
        %v4415 = vpop.f32.mrb[0].mxu0
        %v4416 = vadd.f32 %v4319, %v4415
        %v4417 = vpop.f32.mrb[0].mxu0
        %v4418 = vpop.f32.mrb[0].mxu0
        %v4419 = vadd.f32 %v4322, %v4418
        %v4420 = vpop.f32.mrb[0].mxu0
        %4421 = vmatprep.mubr.bf16.mxu0 %v623
        %4422 = vmatmul.mubr.bf16.gmra.mrb[0].mxu0 %v622
        %v4423 = vpop.f32.mrb[0].mxu0
        %v4424 = vadd.f32 %v4327, %v4423
        %v4425 = vpop.f32.mrb[0].mxu0
        %v4426 = vpop.f32.mrb[0].mxu0
        %v4427 = vadd.f32 %v4330, %v4426
        %v4428 = vpop.f32.mrb[0].mxu0
        %4429 = vmatprep.mubr.bf16.mxu0 %v639
        %4430 = vmatmul.mubr.bf16.gmra.mrb[0].mxu0 %v638
        %v4431 = vpop.f32.mrb[0].mxu0
        %v4432 = vadd.f32 %v4335, %v4431
        %v4433 = vpop.f32.mrb[0].mxu0
        %v4434 = vpop.f32.mrb[0].mxu0
        %v4435 = vadd.f32 %v4338, %v4434
        %v4436 = vpop.f32.mrb[0].mxu0
        %4437 = vmatprep.mubr.bf16.mxu0 %v655
        %4438 = vmatmul.mubr.bf16.gmra.mrb[0].mxu0 %v654
        %v4439 = vpop.f32.mrb[0].mxu0
        %v4440 = vadd.f32 %v4343, %v4439
        %v4441 = vpop.f32.mrb[0].mxu0
        %v4442 = vpop.f32.mrb[0].mxu0
        %v4443 = vadd.f32 %v4346, %v4442
        %v4444 = vpop.f32.mrb[0].mxu0
        %4445 = vmatprep.mubr.bf16.mxu0 %v671
        %4446 = vmatmul.mubr.bf16.gmra.mrb[0].mxu0 %v670
        %v4447 = vpop.f32.mrb[0].mxu0
        %v4448 = vadd.f32 %v4351, %v4447
        %v4449 = vpop.f32.mrb[0].mxu0
        %v4450 = vpop.f32.mrb[0].mxu0
        %v4451 = vadd.f32 %v4354, %v4450
        %v4452 = vpop.f32.mrb[0].mxu0
        %4453 = vdwg.mxu0
        %4454 = vmatprep.subr.bf16.mxu0 0
        %4455 = vmatpush1.bf16.msra.mxu0 %v2637
        %4456 = vmatprep.subr.bf16.mxu0 0
        %4457 = vmatpush1.bf16.msra.mxu0 %v2640
        %4458 = vmatprep.subr.bf16.mxu0 0
        %4459 = vmatpush1.bf16.msra.mxu0 %v2643
        %4460 = vmatprep.subr.bf16.mxu0 0
        %4461 = vmatpush1.bf16.msra.mxu0 %v2646
        %4462 = vmatprep.subr.bf16.mxu0 0
        %4463 = vmatpush1.bf16.msra.mxu0 %v2649
        %4464 = vmatprep.subr.bf16.mxu0 0
        %4465 = vmatpush1.bf16.msra.mxu0 %v2652
        %4466 = vmatprep.subr.bf16.mxu0 0
        %4467 = vmatpush1.bf16.msra.mxu0 %v2655
        %4468 = vmatprep.subr.bf16.mxu0 0
        %4469 = vmatpush1.bf16.msra.mxu0 %v2658
        %4470 = vmatprep.subr.bf16.mxu0 0
        %4471 = vmatpush1.bf16.msra.mxu0 %v2661
        %4472 = vmatprep.subr.bf16.mxu0 0
        %4473 = vmatpush1.bf16.msra.mxu0 %v2664
        %4474 = vmatprep.subr.bf16.mxu0 0
        %4475 = vmatpush1.bf16.msra.mxu0 %v2667
        %4476 = vmatprep.subr.bf16.mxu0 0
        %4477 = vmatpush1.bf16.msra.mxu0 %v2670
        %4478 = vmatprep.subr.bf16.mxu0 0
        %4479 = vmatpush1.bf16.msra.mxu0 %v2673
        %4480 = vmatprep.subr.bf16.mxu0 0
        %4481 = vmatpush1.bf16.msra.mxu0 %v2676
        %4482 = vmatprep.subr.bf16.mxu0 0
        %4483 = vmatpush1.bf16.msra.mxu0 %v2679
        %4484 = vmatprep.subr.bf16.mxu0 0
        %4485 = vmatpush1.bf16.msra.mxu0 %v2682
        %4486 = vmatprep.mubr.bf16.mxu0 %v561
        %4487 = vmatmul.mubr.bf16.gmra.mrb[0].mxu0 %v560
        %v4488 = vpop.f32.mrb[0].mxu0
        %v4489 = vadd.f32 %v4392, %v4488
        %v4490 = vpop.f32.mrb[0].mxu0
        %v4491 = vpop.f32.mrb[0].mxu0
        %v4492 = vadd.f32 %v4395, %v4491
        %v4493 = vpop.f32.mrb[0].mxu0
        %4494 = vmatprep.mubr.bf16.mxu0 %v577
        %4495 = vmatmul.mubr.bf16.gmra.mrb[0].mxu0 %v576
        %v4496 = vpop.f32.mrb[0].mxu0
        %v4497 = vadd.f32 %v4400, %v4496
        %v4498 = vpop.f32.mrb[0].mxu0
        %v4499 = vpop.f32.mrb[0].mxu0
        %v4500 = vadd.f32 %v4403, %v4499
        %v4501 = vpop.f32.mrb[0].mxu0
        %4502 = vmatprep.mubr.bf16.mxu0 %v593
        %4503 = vmatmul.mubr.bf16.gmra.mrb[0].mxu0 %v592
        %v4504 = vpop.f32.mrb[0].mxu0
        %v4505 = vadd.f32 %v4408, %v4504
        %v4506 = vpop.f32.mrb[0].mxu0
        %v4507 = vpop.f32.mrb[0].mxu0
        %v4508 = vadd.f32 %v4411, %v4507
        %v4509 = vpop.f32.mrb[0].mxu0
        %4510 = vmatprep.mubr.bf16.mxu0 %v609
        %4511 = vmatmul.mubr.bf16.gmra.mrb[0].mxu0 %v608
        %v4512 = vpop.f32.mrb[0].mxu0
        %v4513 = vadd.f32 %v4416, %v4512
        %v4514 = vpop.f32.mrb[0].mxu0
        %v4515 = vpop.f32.mrb[0].mxu0
        %v4516 = vadd.f32 %v4419, %v4515
        %v4517 = vpop.f32.mrb[0].mxu0
        %4518 = vmatprep.mubr.bf16.mxu0 %v625
        %4519 = vmatmul.mubr.bf16.gmra.mrb[0].mxu0 %v624
        %v4520 = vpop.f32.mrb[0].mxu0
        %v4521 = vadd.f32 %v4424, %v4520
        %v4522 = vpop.f32.mrb[0].mxu0
        %v4523 = vpop.f32.mrb[0].mxu0
        %v4524 = vadd.f32 %v4427, %v4523
        %v4525 = vpop.f32.mrb[0].mxu0
        %4526 = vmatprep.mubr.bf16.mxu0 %v641
        %4527 = vmatmul.mubr.bf16.gmra.mrb[0].mxu0 %v640
        %v4528 = vpop.f32.mrb[0].mxu0
        %v4529 = vadd.f32 %v4432, %v4528
        %v4530 = vpop.f32.mrb[0].mxu0
        %v4531 = vpop.f32.mrb[0].mxu0
        %v4532 = vadd.f32 %v4435, %v4531
        %v4533 = vpop.f32.mrb[0].mxu0
        %4534 = vmatprep.mubr.bf16.mxu0 %v657
        %4535 = vmatmul.mubr.bf16.gmra.mrb[0].mxu0 %v656
        %v4536 = vpop.f32.mrb[0].mxu0
        %v4537 = vadd.f32 %v4440, %v4536
        %v4538 = vpop.f32.mrb[0].mxu0
        %v4539 = vpop.f32.mrb[0].mxu0
        %v4540 = vadd.f32 %v4443, %v4539
        %v4541 = vpop.f32.mrb[0].mxu0
        %4542 = vmatprep.mubr.bf16.mxu0 %v673
        %4543 = vmatmul.mubr.bf16.gmra.mrb[0].mxu0 %v672
        %v4544 = vpop.f32.mrb[0].mxu0
        %v4545 = vadd.f32 %v4448, %v4544
        %v4546 = vpop.f32.mrb[0].mxu0
        %v4547 = vpop.f32.mrb[0].mxu0
        %v4548 = vadd.f32 %v4451, %v4547
        %v4549 = vpop.f32.mrb[0].mxu0
        %4550 = vdwg.mxu0
        %4551 = vmatprep.subr.bf16.mxu0 0
        %4552 = vmatpush1.bf16.msra.mxu0 %v2685
        %4553 = vmatprep.subr.bf16.mxu0 0
        %4554 = vmatpush1.bf16.msra.mxu0 %v2688
        %4555 = vmatprep.subr.bf16.mxu0 0
        %4556 = vmatpush1.bf16.msra.mxu0 %v2691
        %4557 = vmatprep.subr.bf16.mxu0 0
        %4558 = vmatpush1.bf16.msra.mxu0 %v2694
        %4559 = vmatprep.subr.bf16.mxu0 0
        %4560 = vmatpush1.bf16.msra.mxu0 %v2697
        %4561 = vmatprep.subr.bf16.mxu0 0
        %4562 = vmatpush1.bf16.msra.mxu0 %v2700
        %4563 = vmatprep.subr.bf16.mxu0 0
        %4564 = vmatpush1.bf16.msra.mxu0 %v2703
        %4565 = vmatprep.subr.bf16.mxu0 0
        %4566 = vmatpush1.bf16.msra.mxu0 %v2706
        %4567 = vmatprep.subr.bf16.mxu0 0
        %4568 = vmatpush1.bf16.msra.mxu0 %v2709
        %4569 = vmatprep.subr.bf16.mxu0 0
        %4570 = vmatpush1.bf16.msra.mxu0 %v2712
        %4571 = vmatprep.subr.bf16.mxu0 0
        %4572 = vmatpush1.bf16.msra.mxu0 %v2715
        %4573 = vmatprep.subr.bf16.mxu0 0
        %4574 = vmatpush1.bf16.msra.mxu0 %v2718
        %4575 = vmatprep.subr.bf16.mxu0 0
        %4576 = vmatpush1.bf16.msra.mxu0 %v2721
        %4577 = vmatprep.subr.bf16.mxu0 0
        %4578 = vmatpush1.bf16.msra.mxu0 %v2724
        %4579 = vmatprep.subr.bf16.mxu0 0
        %4580 = vmatpush1.bf16.msra.mxu0 %v2727
        %4581 = vmatprep.subr.bf16.mxu0 0
        %4582 = vmatpush1.bf16.msra.mxu0 %v2730
        %4583 = vmatprep.mubr.bf16.mxu0 %v563
        %4584 = vmatmul.mubr.bf16.gmra.mrb[0].mxu0 %v562
        %v4585 = vpop.f32.mrb[0].mxu0
        %v4586 = vadd.f32 %v4489, %v4585
        %v4587 = vpop.f32.mrb[0].mxu0
        %v4588 = vpop.f32.mrb[0].mxu0
        %v4589 = vadd.f32 %v4492, %v4588
        %v4590 = vpop.f32.mrb[0].mxu0
        %4591 = vmatprep.mubr.bf16.mxu0 %v579
        %4592 = vmatmul.mubr.bf16.gmra.mrb[0].mxu0 %v578
        %v4593 = vpop.f32.mrb[0].mxu0
        %v4594 = vadd.f32 %v4497, %v4593
        %v4595 = vpop.f32.mrb[0].mxu0
        %v4596 = vpop.f32.mrb[0].mxu0
        %v4597 = vadd.f32 %v4500, %v4596
        %v4598 = vpop.f32.mrb[0].mxu0
        %4599 = vmatprep.mubr.bf16.mxu0 %v595
        %4600 = vmatmul.mubr.bf16.gmra.mrb[0].mxu0 %v594
        %v4601 = vpop.f32.mrb[0].mxu0
        %v4602 = vadd.f32 %v4505, %v4601
        %v4603 = vpop.f32.mrb[0].mxu0
        %v4604 = vpop.f32.mrb[0].mxu0
        %v4605 = vadd.f32 %v4508, %v4604
        %v4606 = vpop.f32.mrb[0].mxu0
        %4607 = vmatprep.mubr.bf16.mxu0 %v611
        %4608 = vmatmul.mubr.bf16.gmra.mrb[0].mxu0 %v610
        %v4609 = vpop.f32.mrb[0].mxu0
        %v4610 = vadd.f32 %v4513, %v4609
        %v4611 = vpop.f32.mrb[0].mxu0
        %v4612 = vpop.f32.mrb[0].mxu0
        %v4613 = vadd.f32 %v4516, %v4612
        %v4614 = vpop.f32.mrb[0].mxu0
        %4615 = vmatprep.mubr.bf16.mxu0 %v627
        %4616 = vmatmul.mubr.bf16.gmra.mrb[0].mxu0 %v626
        %v4617 = vpop.f32.mrb[0].mxu0
        %v4618 = vadd.f32 %v4521, %v4617
        %v4619 = vpop.f32.mrb[0].mxu0
        %v4620 = vpop.f32.mrb[0].mxu0
        %v4621 = vadd.f32 %v4524, %v4620
        %v4622 = vpop.f32.mrb[0].mxu0
        %4623 = vmatprep.mubr.bf16.mxu0 %v643
        %4624 = vmatmul.mubr.bf16.gmra.mrb[0].mxu0 %v642
        %v4625 = vpop.f32.mrb[0].mxu0
        %v4626 = vadd.f32 %v4529, %v4625
        %v4627 = vpop.f32.mrb[0].mxu0
        %v4628 = vpop.f32.mrb[0].mxu0
        %v4629 = vadd.f32 %v4532, %v4628
        %v4630 = vpop.f32.mrb[0].mxu0
        %4631 = vmatprep.mubr.bf16.mxu0 %v659
        %4632 = vmatmul.mubr.bf16.gmra.mrb[0].mxu0 %v658
        %v4633 = vpop.f32.mrb[0].mxu0
        %v4634 = vadd.f32 %v4537, %v4633
        %v4635 = vpop.f32.mrb[0].mxu0
        %v4636 = vpop.f32.mrb[0].mxu0
        %v4637 = vadd.f32 %v4540, %v4636
        %v4638 = vpop.f32.mrb[0].mxu0
        %4639 = vmatprep.mubr.bf16.mxu0 %v675
        %4640 = vmatmul.mubr.bf16.gmra.mrb[0].mxu0 %v674
        %v4641 = vpop.f32.mrb[0].mxu0
        %v4642 = vadd.f32 %v4545, %v4641
        %v4643 = vpop.f32.mrb[0].mxu0
        %v4644 = vpop.f32.mrb[0].mxu0
        %v4645 = vadd.f32 %v4548, %v4644
        %v4646 = vpop.f32.mrb[0].mxu0
        %4647 = vdwg.mxu0
        %4648 = vmatprep.subr.bf16.mxu0 0
        %4649 = vmatpush1.bf16.msra.mxu0 %v2733
        %4650 = vmatprep.subr.bf16.mxu0 0
        %4651 = vmatpush1.bf16.msra.mxu0 %v2736
        %4652 = vmatprep.subr.bf16.mxu0 0
        %4653 = vmatpush1.bf16.msra.mxu0 %v2739
        %4654 = vmatprep.subr.bf16.mxu0 0
        %4655 = vmatpush1.bf16.msra.mxu0 %v2742
        %4656 = vmatprep.subr.bf16.mxu0 0
        %4657 = vmatpush1.bf16.msra.mxu0 %v2745
        %4658 = vmatprep.subr.bf16.mxu0 0
        %4659 = vmatpush1.bf16.msra.mxu0 %v2748
        %4660 = vmatprep.subr.bf16.mxu0 0
        %4661 = vmatpush1.bf16.msra.mxu0 %v2751
        %4662 = vmatprep.subr.bf16.mxu0 0
        %4663 = vmatpush1.bf16.msra.mxu0 %v2754
        %4664 = vmatprep.subr.bf16.mxu0 0
        %4665 = vmatpush1.bf16.msra.mxu0 %v2757
        %4666 = vmatprep.subr.bf16.mxu0 0
        %4667 = vmatpush1.bf16.msra.mxu0 %v2760
        %4668 = vmatprep.subr.bf16.mxu0 0
        %4669 = vmatpush1.bf16.msra.mxu0 %v2763
        %4670 = vmatprep.subr.bf16.mxu0 0
        %4671 = vmatpush1.bf16.msra.mxu0 %v2766
        %4672 = vmatprep.subr.bf16.mxu0 0
        %4673 = vmatpush1.bf16.msra.mxu0 %v2769
        %4674 = vmatprep.subr.bf16.mxu0 0
        %4675 = vmatpush1.bf16.msra.mxu0 %v2772
        %4676 = vmatprep.subr.bf16.mxu0 0
        %4677 = vmatpush1.bf16.msra.mxu0 %v2775
        %4678 = vmatprep.subr.bf16.mxu0 0
        %4679 = vmatpush1.bf16.msra.mxu0 %v2778
        %4680 = vmatprep.mubr.bf16.mxu0 %v565
        %4681 = vmatmul.mubr.bf16.gmra.mrb[0].mxu0 %v564
        %v4682 = vpop.f32.mrb[0].mxu0
        %v4683 = vadd.f32 %v4586, %v4682
        %v4684 = vpop.f32.mrb[0].mxu0
        %v4685 = vpop.f32.mrb[0].mxu0
        %v4686 = vadd.f32 %v4589, %v4685
        %v4687 = vpop.f32.mrb[0].mxu0
        %4688 = vmatprep.mubr.bf16.mxu0 %v581
        %4689 = vmatmul.mubr.bf16.gmra.mrb[0].mxu0 %v580
        %v4690 = vpop.f32.mrb[0].mxu0
        %v4691 = vadd.f32 %v4594, %v4690
        %v4692 = vpop.f32.mrb[0].mxu0
        %v4693 = vpop.f32.mrb[0].mxu0
        %v4694 = vadd.f32 %v4597, %v4693
        %v4695 = vpop.f32.mrb[0].mxu0
        %4696 = vmatprep.mubr.bf16.mxu0 %v597
        %4697 = vmatmul.mubr.bf16.gmra.mrb[0].mxu0 %v596
        %v4698 = vpop.f32.mrb[0].mxu0
        %v4699 = vadd.f32 %v4602, %v4698
        %v4700 = vpop.f32.mrb[0].mxu0
        %v4701 = vpop.f32.mrb[0].mxu0
        %v4702 = vadd.f32 %v4605, %v4701
        %v4703 = vpop.f32.mrb[0].mxu0
        %4704 = vmatprep.mubr.bf16.mxu0 %v613
        %4705 = vmatmul.mubr.bf16.gmra.mrb[0].mxu0 %v612
        %v4706 = vpop.f32.mrb[0].mxu0
        %v4707 = vadd.f32 %v4610, %v4706
        %v4708 = vpop.f32.mrb[0].mxu0
        %v4709 = vpop.f32.mrb[0].mxu0
        %v4710 = vadd.f32 %v4613, %v4709
        %v4711 = vpop.f32.mrb[0].mxu0
        %4712 = vmatprep.mubr.bf16.mxu0 %v629
        %4713 = vmatmul.mubr.bf16.gmra.mrb[0].mxu0 %v628
        %v4714 = vpop.f32.mrb[0].mxu0
        %v4715 = vadd.f32 %v4618, %v4714
        %v4716 = vpop.f32.mrb[0].mxu0
        %v4717 = vpop.f32.mrb[0].mxu0
        %v4718 = vadd.f32 %v4621, %v4717
        %v4719 = vpop.f32.mrb[0].mxu0
        %4720 = vmatprep.mubr.bf16.mxu0 %v645
        %4721 = vmatmul.mubr.bf16.gmra.mrb[0].mxu0 %v644
        %v4722 = vpop.f32.mrb[0].mxu0
        %v4723 = vadd.f32 %v4626, %v4722
        %v4724 = vpop.f32.mrb[0].mxu0
        %v4725 = vpop.f32.mrb[0].mxu0
        %v4726 = vadd.f32 %v4629, %v4725
        %v4727 = vpop.f32.mrb[0].mxu0
        %4728 = vmatprep.mubr.bf16.mxu0 %v661
        %4729 = vmatmul.mubr.bf16.gmra.mrb[0].mxu0 %v660
        %v4730 = vpop.f32.mrb[0].mxu0
        %v4731 = vadd.f32 %v4634, %v4730
        %v4732 = vpop.f32.mrb[0].mxu0
        %v4733 = vpop.f32.mrb[0].mxu0
        %v4734 = vadd.f32 %v4637, %v4733
        %v4735 = vpop.f32.mrb[0].mxu0
        %4736 = vmatprep.mubr.bf16.mxu0 %v677
        %4737 = vmatmul.mubr.bf16.gmra.mrb[0].mxu0 %v676
        %v4738 = vpop.f32.mrb[0].mxu0
        %v4739 = vadd.f32 %v4642, %v4738
        %v4740 = vpop.f32.mrb[0].mxu0
        %v4741 = vpop.f32.mrb[0].mxu0
        %v4742 = vadd.f32 %v4645, %v4741
        %v4743 = vpop.f32.mrb[0].mxu0
        %4744 = vdwg.mxu0
        %4745 = vmatprep.subr.bf16.mxu0 0
        %4746 = vmatpush1.bf16.msra.mxu0 %v2781
        %4747 = vmatprep.subr.bf16.mxu0 0
        %4748 = vmatpush1.bf16.msra.mxu0 %v2784
        %4749 = vmatprep.subr.bf16.mxu0 0
        %4750 = vmatpush1.bf16.msra.mxu0 %v2787
        %4751 = vmatprep.subr.bf16.mxu0 0
        %4752 = vmatpush1.bf16.msra.mxu0 %v2790
        %4753 = vmatprep.subr.bf16.mxu0 0
        %4754 = vmatpush1.bf16.msra.mxu0 %v2793
        %4755 = vmatprep.subr.bf16.mxu0 0
        %4756 = vmatpush1.bf16.msra.mxu0 %v2796
        %4757 = vmatprep.subr.bf16.mxu0 0
        %4758 = vmatpush1.bf16.msra.mxu0 %v2799
        %4759 = vmatprep.subr.bf16.mxu0 0
        %4760 = vmatpush1.bf16.msra.mxu0 %v2802
        %4761 = vmatprep.subr.bf16.mxu0 0
        %4762 = vmatpush1.bf16.msra.mxu0 %v2805
        %4763 = vmatprep.subr.bf16.mxu0 0
        %4764 = vmatpush1.bf16.msra.mxu0 %v2808
        %4765 = vmatprep.subr.bf16.mxu0 0
        %4766 = vmatpush1.bf16.msra.mxu0 %v2811
        %4767 = vmatprep.subr.bf16.mxu0 0
        %4768 = vmatpush1.bf16.msra.mxu0 %v2814
        %4769 = vmatprep.subr.bf16.mxu0 0
        %4770 = vmatpush1.bf16.msra.mxu0 %v2817
        %4771 = vmatprep.subr.bf16.mxu0 0
        %4772 = vmatpush1.bf16.msra.mxu0 %v2820
        %4773 = vmatprep.subr.bf16.mxu0 0
        %4774 = vmatpush1.bf16.msra.mxu0 %v2823
        %4775 = vmatprep.subr.bf16.mxu0 0
        %4776 = vmatpush1.bf16.msra.mxu0 %v2826
        %4777 = vmatprep.mubr.bf16.mxu0 %v567
        %4778 = vmatmul.mubr.bf16.gmra.mrb[0].mxu0 %v566
        %v4779 = vpop.f32.mrb[0].mxu0
        %v4780 = vadd.f32 %v4683, %v4779
        %v4781 = vpop.f32.mrb[0].mxu0
        %v4782 = vpop.f32.mrb[0].mxu0
        %v4783 = vadd.f32 %v4686, %v4782
        %v4784 = vpop.f32.mrb[0].mxu0
        %4785 = vmatprep.mubr.bf16.mxu0 %v583
        %4786 = vmatmul.mubr.bf16.gmra.mrb[0].mxu0 %v582
        %v4787 = vpop.f32.mrb[0].mxu0
        %v4788 = vadd.f32 %v4691, %v4787
        %v4789 = vpop.f32.mrb[0].mxu0
        %v4790 = vpop.f32.mrb[0].mxu0
        %v4791 = vadd.f32 %v4694, %v4790
        %v4792 = vpop.f32.mrb[0].mxu0
        %4793 = vmatprep.mubr.bf16.mxu0 %v599
        %4794 = vmatmul.mubr.bf16.gmra.mrb[0].mxu0 %v598
        %v4795 = vpop.f32.mrb[0].mxu0
        %v4796 = vadd.f32 %v4699, %v4795
        %v4797 = vpop.f32.mrb[0].mxu0
        %v4798 = vpop.f32.mrb[0].mxu0
        %v4799 = vadd.f32 %v4702, %v4798
        %v4800 = vpop.f32.mrb[0].mxu0
        %4801 = vmatprep.mubr.bf16.mxu0 %v615
        %4802 = vmatmul.mubr.bf16.gmra.mrb[0].mxu0 %v614
        %v4803 = vpop.f32.mrb[0].mxu0
        %v4804 = vadd.f32 %v4707, %v4803
        %v4805 = vpop.f32.mrb[0].mxu0
        %v4806 = vpop.f32.mrb[0].mxu0
        %v4807 = vadd.f32 %v4710, %v4806
        %v4808 = vpop.f32.mrb[0].mxu0
        %4809 = vmatprep.mubr.bf16.mxu0 %v631
        %4810 = vmatmul.mubr.bf16.gmra.mrb[0].mxu0 %v630
        %v4811 = vpop.f32.mrb[0].mxu0
        %v4812 = vadd.f32 %v4715, %v4811
        %v4813 = vpop.f32.mrb[0].mxu0
        %v4814 = vpop.f32.mrb[0].mxu0
        %v4815 = vadd.f32 %v4718, %v4814
        %v4816 = vpop.f32.mrb[0].mxu0
        %4817 = vmatprep.mubr.bf16.mxu0 %v647
        %4818 = vmatmul.mubr.bf16.gmra.mrb[0].mxu0 %v646
        %v4819 = vpop.f32.mrb[0].mxu0
        %v4820 = vadd.f32 %v4723, %v4819
        %v4821 = vpop.f32.mrb[0].mxu0
        %v4822 = vpop.f32.mrb[0].mxu0
        %v4823 = vadd.f32 %v4726, %v4822
        %v4824 = vpop.f32.mrb[0].mxu0
        %4825 = vmatprep.mubr.bf16.mxu0 %v663
        %4826 = vmatmul.mubr.bf16.gmra.mrb[0].mxu0 %v662
        %v4827 = vpop.f32.mrb[0].mxu0
        %v4828 = vadd.f32 %v4731, %v4827
        %v4829 = vpop.f32.mrb[0].mxu0
        %v4830 = vpop.f32.mrb[0].mxu0
        %v4831 = vadd.f32 %v4734, %v4830
        %v4832 = vpop.f32.mrb[0].mxu0
        %4833 = vmatprep.mubr.bf16.mxu0 %v679
        %4834 = vmatmul.mubr.bf16.gmra.mrb[0].mxu0 %v678
        %v4835 = vpop.f32.mrb[0].mxu0
        %v4836 = vadd.f32 %v4739, %v4835
        %v4837 = vpop.f32.mrb[0].mxu0
        %v4838 = vpop.f32.mrb[0].mxu0
        %v4839 = vadd.f32 %v4742, %v4838
        %v4840 = vpop.f32.mrb[0].mxu0
        %4841 = vdwg.mxu0
        %4842 = vmatprep.subr.bf16.mxu0 0
        %4843 = vmatpush1.bf16.msra.mxu0 %v2829
        %4844 = vmatprep.subr.bf16.mxu0 0
        %4845 = vmatpush1.bf16.msra.mxu0 %v2832
        %4846 = vmatprep.subr.bf16.mxu0 0
        %4847 = vmatpush1.bf16.msra.mxu0 %v2835
        %4848 = vmatprep.subr.bf16.mxu0 0
        %4849 = vmatpush1.bf16.msra.mxu0 %v2838
        %4850 = vmatprep.subr.bf16.mxu0 0
        %4851 = vmatpush1.bf16.msra.mxu0 %v2841
        %4852 = vmatprep.subr.bf16.mxu0 0
        %4853 = vmatpush1.bf16.msra.mxu0 %v2844
        %4854 = vmatprep.subr.bf16.mxu0 0
        %4855 = vmatpush1.bf16.msra.mxu0 %v2847
        %4856 = vmatprep.subr.bf16.mxu0 0
        %4857 = vmatpush1.bf16.msra.mxu0 %v2850
        %4858 = vmatprep.subr.bf16.mxu0 0
        %4859 = vmatpush1.bf16.msra.mxu0 %v2853
        %4860 = vmatprep.subr.bf16.mxu0 0
        %4861 = vmatpush1.bf16.msra.mxu0 %v2856
        %4862 = vmatprep.subr.bf16.mxu0 0
        %4863 = vmatpush1.bf16.msra.mxu0 %v2859
        %4864 = vmatprep.subr.bf16.mxu0 0
        %4865 = vmatpush1.bf16.msra.mxu0 %v2862
        %4866 = vmatprep.subr.bf16.mxu0 0
        %4867 = vmatpush1.bf16.msra.mxu0 %v2865
        %4868 = vmatprep.subr.bf16.mxu0 0
        %4869 = vmatpush1.bf16.msra.mxu0 %v2868
        %4870 = vmatprep.subr.bf16.mxu0 0
        %4871 = vmatpush1.bf16.msra.mxu0 %v2871
        %4872 = vmatprep.subr.bf16.mxu0 0
        %4873 = vmatpush1.bf16.msra.mxu0 %v2874
        %4874 = vmatprep.mubr.bf16.mxu0 %v569
        %4875 = vmatmul.mubr.bf16.gmra.mrb[0].mxu0 %v568
        %v4876 = vpop.f32.mrb[0].mxu0
        %v4877 = vadd.f32 %v4780, %v4876
        %v4878 = vpop.f32.mrb[0].mxu0
        %v4879 = vpop.f32.mrb[0].mxu0
        %v4880 = vadd.f32 %v4783, %v4879
        %v4881 = vpop.f32.mrb[0].mxu0
        %4882 = vmatprep.mubr.bf16.mxu0 %v585
        %4883 = vmatmul.mubr.bf16.gmra.mrb[0].mxu0 %v584
        %v4884 = vpop.f32.mrb[0].mxu0
        %v4885 = vadd.f32 %v4788, %v4884
        %v4886 = vpop.f32.mrb[0].mxu0
        %v4887 = vpop.f32.mrb[0].mxu0
        %v4888 = vadd.f32 %v4791, %v4887
        %v4889 = vpop.f32.mrb[0].mxu0
        %4890 = vmatprep.mubr.bf16.mxu0 %v601
        %4891 = vmatmul.mubr.bf16.gmra.mrb[0].mxu0 %v600
        %v4892 = vpop.f32.mrb[0].mxu0
        %v4893 = vadd.f32 %v4796, %v4892
        %v4894 = vpop.f32.mrb[0].mxu0
        %v4895 = vpop.f32.mrb[0].mxu0
        %v4896 = vadd.f32 %v4799, %v4895
        %v4897 = vpop.f32.mrb[0].mxu0
        %4898 = vmatprep.mubr.bf16.mxu0 %v617
        %4899 = vmatmul.mubr.bf16.gmra.mrb[0].mxu0 %v616
        %v4900 = vpop.f32.mrb[0].mxu0
        %v4901 = vadd.f32 %v4804, %v4900
        %v4902 = vpop.f32.mrb[0].mxu0
        %v4903 = vpop.f32.mrb[0].mxu0
        %v4904 = vadd.f32 %v4807, %v4903
        %v4905 = vpop.f32.mrb[0].mxu0
        %4906 = vmatprep.mubr.bf16.mxu0 %v633
        %4907 = vmatmul.mubr.bf16.gmra.mrb[0].mxu0 %v632
        %v4908 = vpop.f32.mrb[0].mxu0
        %v4909 = vadd.f32 %v4812, %v4908
        %v4910 = vpop.f32.mrb[0].mxu0
        %v4911 = vpop.f32.mrb[0].mxu0
        %v4912 = vadd.f32 %v4815, %v4911
        %v4913 = vpop.f32.mrb[0].mxu0
        %4914 = vmatprep.mubr.bf16.mxu0 %v649
        %4915 = vmatmul.mubr.bf16.gmra.mrb[0].mxu0 %v648
        %v4916 = vpop.f32.mrb[0].mxu0
        %v4917 = vadd.f32 %v4820, %v4916
        %v4918 = vpop.f32.mrb[0].mxu0
        %v4919 = vpop.f32.mrb[0].mxu0
        %v4920 = vadd.f32 %v4823, %v4919
        %v4921 = vpop.f32.mrb[0].mxu0
        %4922 = vmatprep.mubr.bf16.mxu0 %v665
        %4923 = vmatmul.mubr.bf16.gmra.mrb[0].mxu0 %v664
        %v4924 = vpop.f32.mrb[0].mxu0
        %v4925 = vadd.f32 %v4828, %v4924
        %v4926 = vpop.f32.mrb[0].mxu0
        %v4927 = vpop.f32.mrb[0].mxu0
        %v4928 = vadd.f32 %v4831, %v4927
        %v4929 = vpop.f32.mrb[0].mxu0
        %4930 = vmatprep.mubr.bf16.mxu0 %v681
        %4931 = vmatmul.mubr.bf16.gmra.mrb[0].mxu0 %v680
        %v4932 = vpop.f32.mrb[0].mxu0
        %v4933 = vadd.f32 %v4836, %v4932
        %v4934 = vpop.f32.mrb[0].mxu0
        %v4935 = vpop.f32.mrb[0].mxu0
        %v4936 = vadd.f32 %v4839, %v4935
        %v4937 = vpop.f32.mrb[0].mxu0
        %4938 = vdwg.mxu0
        %v4939 = vpack.c.bf16 %v4089, %v4085
        %v4940 = vpack.c.bf16 %v4091, %v4087
        %v4941 = vpack.c.bf16 %v4880, %v4877
        %v4942 = vpack.c.bf16 %v4099, %v4095
        %v4943 = vpack.c.bf16 %v4101, %v4097
        %v4944 = vpack.c.bf16 %v4888, %v4885
        %v4945 = vpack.c.bf16 %v4109, %v4105
        %v4946 = vpack.c.bf16 %v4111, %v4107
        %v4947 = vpack.c.bf16 %v4896, %v4893
        %v4948 = vpack.c.bf16 %v4119, %v4115
        %v4949 = vpack.c.bf16 %v4121, %v4117
        %v4950 = vpack.c.bf16 %v4904, %v4901
        %v4951 = vpack.c.bf16 %v4129, %v4125
        %v4952 = vpack.c.bf16 %v4131, %v4127
        %v4953 = vpack.c.bf16 %v4912, %v4909
        %v4954 = vpack.c.bf16 %v4139, %v4135
        %v4955 = vpack.c.bf16 %v4141, %v4137
        %v4956 = vpack.c.bf16 %v4920, %v4917
        %v4957 = vpack.c.bf16 %v4149, %v4145
        %v4958 = vpack.c.bf16 %v4151, %v4147
        %v4959 = vpack.c.bf16 %v4928, %v4925
        %v4960 = vpack.c.bf16 %v4159, %v4155
        %v4961 = vpack.c.bf16 %v4161, %v4157
        %v4962 = vpack.c.bf16 %v4936, %v4933
        %v4963 = vlaneseq
        %v4964 = vshrl.u32 %v4963, 7
        %v4965 = vadd.s32 %v4964, 8
        %v4966 = vadd.s32 %v4964, 16
        %v4967 = vadd.s32 %v4964, 24
        %v4968 = vadd.s32 %v4964, 32
        %v4969 = vadd.s32 %v4964, 40
        %v4970 = vadd.s32 %v4964, 48
        %v4971 = vadd.s32 %v4964, 56
        %v4972 = vadd.s32 %v4964, 64
        %v4973 = vadd.s32 %v4964, 72
        %v4974 = vadd.s32 %v4964, 80
        %v4975 = vadd.s32 %v4964, 88
        %v4976 = vadd.s32 %v4964, 96
        %v4977 = vadd.s32 %v4964, 104
        %v4978 = vadd.s32 %v4964, 112
        %v4979 = vadd.s32 %v4964, 120
        %v4980 = vlaneseq
        %v4981 = vand.u32 %v4980, 127
        %vm4982 = vcmp.le.s32.totalorder %v4981, %v4964
        %vm4983 = vcmp.le.s32.totalorder %v4981, %v4965
        %vm4984 = vcmp.le.s32.totalorder %v4981, %v4966
        %vm4985 = vcmp.le.s32.totalorder %v4981, %v4967
        %vm4986 = vcmp.le.s32.totalorder %v4981, %v4968
        %vm4987 = vcmp.le.s32.totalorder %v4981, %v4969
        %vm4988 = vcmp.le.s32.totalorder %v4981, %v4970
        %vm4989 = vcmp.le.s32.totalorder %v4981, %v4971
        %vm4990 = vcmp.le.s32.totalorder %v4981, %v4972
        %vm4991 = vcmp.le.s32.totalorder %v4981, %v4973
        %vm4992 = vcmp.le.s32.totalorder %v4981, %v4974
        %vm4993 = vcmp.le.s32.totalorder %v4981, %v4975
        %vm4994 = vcmp.le.s32.totalorder %v4981, %v4976
        %vm4995 = vcmp.le.s32.totalorder %v4981, %v4977
        %vm4996 = vcmp.le.s32.totalorder %v4981, %v4978
        %vm4997 = vcmp.le.s32.totalorder %v4981, %v4979
        %vm4998 = vcmask 523264
        %v5000 = vsel %vm4998, %v4939, 0
        %v5003 = vsel %vm4998, %v4942, 0
        %v5006 = vsel %vm4998, %v4945, 0
        %v5009 = vsel %vm4998, %v4948, 0
        %v5012 = vsel %vm4998, %v4951, 0
        %v5015 = vsel %vm4998, %v4954, 0
        %v5018 = vsel %vm4998, %v4957, 0
        %v5021 = vsel %vm4998, %v4960, 0
        %v5024 = vsel %vm4998, %v4940, 0
        %v5027 = vsel %vm4998, %v4943, 0
        %v5030 = vsel %vm4998, %v4946, 0
        %v5033 = vsel %vm4998, %v4949, 0
        %v5036 = vsel %vm4998, %v4952, 0
        %v5039 = vsel %vm4998, %v4955, 0
        %v5042 = vsel %vm4998, %v4958, 0
        %v5045 = vsel %vm4998, %v4961, 0
        %5047 = vmatprep.subr.bf16.mxu0 0
        %5048 = vmatpush1.bf16.xpose.msra.mxu0 %v5024
        %5049 = vmatprep.subr.bf16.mxu0 0
        %5050 = vmatpush1.bf16.xpose.msra.mxu0 %v5027
        %5051 = vmatprep.subr.bf16.mxu0 0
        %5052 = vmatpush1.bf16.xpose.msra.mxu0 %v5030
        %5053 = vmatprep.subr.bf16.mxu0 0
        %5054 = vmatpush1.bf16.xpose.msra.mxu0 %v5033
        %5055 = vmatprep.subr.bf16.mxu0 0
        %5056 = vmatpush1.bf16.xpose.msra.mxu0 %v5036
        %5057 = vmatprep.subr.bf16.mxu0 0
        %5058 = vmatpush1.bf16.xpose.msra.mxu0 %v5039
        %5059 = vmatprep.subr.bf16.mxu0 0
        %5060 = vmatpush1.bf16.xpose.msra.mxu0 %v5042
        %5061 = vmatprep.subr.bf16.mxu0 0
        %5062 = vmatpush1.bf16.xpose.msra.mxu0 %v5045
        %5063 = vmatprep.subr.bf16.mxu0 0
        %5064 = vmatpush1.bf16.xpose.msra.mxu0 0
        %5065 = vmatprep.subr.bf16.mxu0 0
        %5066 = vmatpush1.bf16.xpose.msra.mxu0 0
        %5067 = vmatprep.subr.bf16.mxu0 0
        %5068 = vmatpush1.bf16.xpose.msra.mxu0 0
        %5069 = vmatprep.subr.bf16.mxu0 0
        %5070 = vmatpush1.bf16.xpose.msra.mxu0 0
        %5071 = vmatprep.subr.bf16.mxu0 0
        %5072 = vmatpush1.bf16.xpose.msra.mxu0 0
        %5073 = vmatprep.subr.bf16.mxu0 0
        %5074 = vmatpush1.bf16.xpose.msra.mxu0 0
        %5075 = vmatprep.subr.bf16.mxu0 0
        %5076 = vmatpush1.bf16.xpose.msra.mxu0 0
        %5077 = vmatprep.subr.bf16.mxu0 0
        %5078 = vmatpush1.bf16.xpose.msra.mxu0 0
        %5079 = vmatprep.mubr.bf16.mxu0 0
        %5080 = vmatmul.mubr.bf16.gmra.mrb[0].mxu0 %v5000
        %v5081 = vpop.f32.mrb[0].mxu0
        %v5082 = vadd.f32 0.0, %v5081
        %v5083 = vpop.f32.mrb[0].mxu0
        %v5084 = vpop.f32.mrb[0].mxu0
        %v5085 = vadd.f32 0.0, %v5084
        %v5086 = vpop.f32.mrb[0].mxu0
        %5087 = vmatprep.mubr.bf16.mxu0 0
        %5088 = vmatmul.mubr.bf16.gmra.mrb[0].mxu0 %v5003
        %v5089 = vpop.f32.mrb[0].mxu0
        %v5090 = vadd.f32 0.0, %v5089
        %v5091 = vpop.f32.mrb[0].mxu0
        %v5092 = vpop.f32.mrb[0].mxu0
        %v5093 = vadd.f32 0.0, %v5092
        %v5094 = vpop.f32.mrb[0].mxu0
        %5095 = vmatprep.mubr.bf16.mxu0 0
        %5096 = vmatmul.mubr.bf16.gmra.mrb[0].mxu0 %v5006
        %v5097 = vpop.f32.mrb[0].mxu0
        %v5098 = vadd.f32 0.0, %v5097
        %v5099 = vpop.f32.mrb[0].mxu0
        %v5100 = vpop.f32.mrb[0].mxu0
        %v5101 = vadd.f32 0.0, %v5100
        %v5102 = vpop.f32.mrb[0].mxu0
        %5103 = vmatprep.mubr.bf16.mxu0 0
        %5104 = vmatmul.mubr.bf16.gmra.mrb[0].mxu0 %v5009
        %v5105 = vpop.f32.mrb[0].mxu0
        %v5106 = vadd.f32 0.0, %v5105
        %v5107 = vpop.f32.mrb[0].mxu0
        %v5108 = vpop.f32.mrb[0].mxu0
        %v5109 = vadd.f32 0.0, %v5108
        %v5110 = vpop.f32.mrb[0].mxu0
        %5111 = vmatprep.mubr.bf16.mxu0 0
        %5112 = vmatmul.mubr.bf16.gmra.mrb[0].mxu0 %v5012
        %v5113 = vpop.f32.mrb[0].mxu0
        %v5114 = vadd.f32 0.0, %v5113
        %v5115 = vpop.f32.mrb[0].mxu0
        %v5116 = vpop.f32.mrb[0].mxu0
        %v5117 = vadd.f32 0.0, %v5116
        %v5118 = vpop.f32.mrb[0].mxu0
        %5119 = vmatprep.mubr.bf16.mxu0 0
        %5120 = vmatmul.mubr.bf16.gmra.mrb[0].mxu0 %v5015
        %v5121 = vpop.f32.mrb[0].mxu0
        %v5122 = vadd.f32 0.0, %v5121
        %v5123 = vpop.f32.mrb[0].mxu0
        %v5124 = vpop.f32.mrb[0].mxu0
        %v5125 = vadd.f32 0.0, %v5124
        %v5126 = vpop.f32.mrb[0].mxu0
        %5127 = vmatprep.mubr.bf16.mxu0 0
        %5128 = vmatmul.mubr.bf16.gmra.mrb[0].mxu0 %v5018
        %v5129 = vpop.f32.mrb[0].mxu0
        %v5130 = vadd.f32 0.0, %v5129
        %v5131 = vpop.f32.mrb[0].mxu0
        %v5132 = vpop.f32.mrb[0].mxu0
        %v5133 = vadd.f32 0.0, %v5132
        %v5134 = vpop.f32.mrb[0].mxu0
        %5135 = vmatprep.mubr.bf16.mxu0 0
        %5136 = vmatmul.mubr.bf16.gmra.mrb[0].mxu0 %v5021
        %v5137 = vpop.f32.mrb[0].mxu0
        %v5138 = vadd.f32 0.0, %v5137
        %v5139 = vpop.f32.mrb[0].mxu0
        %v5140 = vpop.f32.mrb[0].mxu0
        %v5141 = vadd.f32 0.0, %v5140
        %v5142 = vpop.f32.mrb[0].mxu0
        %5143 = vdwg.mxu0
        %v5144 = vsel %vm4982, %v5082, -10000.0
        %v5145 = vsel %vm4983, %v5085, -10000.0
        %v5146 = vsel %vm4984, %v5090, -10000.0
        %v5147 = vsel %vm4985, %v5093, -10000.0
        %v5148 = vsel %vm4986, %v5098, -10000.0
        %v5149 = vsel %vm4987, %v5101, -10000.0
        %v5150 = vsel %vm4988, %v5106, -10000.0
        %v5151 = vsel %vm4989, %v5109, -10000.0
        %v5152 = vsel %vm4990, %v5114, -10000.0
        %v5153 = vsel %vm4991, %v5117, -10000.0
        %v5154 = vsel %vm4992, %v5122, -10000.0
        %v5155 = vsel %vm4993, %v5125, -10000.0
        %v5156 = vsel %vm4994, %v5130, -10000.0
        %v5157 = vsel %vm4995, %v5133, -10000.0
        %v5158 = vsel %vm4996, %v5138, -10000.0
        %v5159 = vsel %vm4997, %v5141, -10000.0
        %5160 = vmax.xlane.f32.xlu0 %v5144
        %v5161 = vpop.xlane.xlu0 %5160
        %5162 = vmax.xlane.f32.xlu0 %v5145
        %v5163 = vpop.xlane.xlu0 %5162
        %5164 = vmax.xlane.f32.xlu0 %v5146
        %v5165 = vpop.xlane.xlu0 %5164
        %5166 = vmax.xlane.f32.xlu0 %v5147
        %v5167 = vpop.xlane.xlu0 %5166
        %5168 = vmax.xlane.f32.xlu0 %v5148
        %v5169 = vpop.xlane.xlu0 %5168
        %5170 = vmax.xlane.f32.xlu0 %v5149
        %v5171 = vpop.xlane.xlu0 %5170
        %5172 = vmax.xlane.f32.xlu0 %v5150
        %v5173 = vpop.xlane.xlu0 %5172
        %5174 = vmax.xlane.f32.xlu0 %v5151
        %v5175 = vpop.xlane.xlu0 %5174
        %5176 = vmax.xlane.f32.xlu0 %v5152
        %v5177 = vpop.xlane.xlu0 %5176
        %5178 = vmax.xlane.f32.xlu0 %v5153
        %v5179 = vpop.xlane.xlu0 %5178
        %5180 = vmax.xlane.f32.xlu0 %v5154
        %v5181 = vpop.xlane.xlu0 %5180
        %5182 = vmax.xlane.f32.xlu0 %v5155
        %v5183 = vpop.xlane.xlu0 %5182
        %5184 = vmax.xlane.f32.xlu0 %v5156
        %v5185 = vpop.xlane.xlu0 %5184
        %5186 = vmax.xlane.f32.xlu0 %v5157
        %v5187 = vpop.xlane.xlu0 %5186
        %5188 = vmax.xlane.f32.xlu0 %v5158
        %v5189 = vpop.xlane.xlu0 %5188
        %5190 = vmax.xlane.f32.xlu0 %v5159
        %v5191 = vpop.xlane.xlu0 %5190
        %v5192 = vsub.f32 %v5144, %v5161
        %v5193 = vsub.f32 %v5145, %v5163
        %v5194 = vsub.f32 %v5146, %v5165
        %v5195 = vsub.f32 %v5147, %v5167
        %v5196 = vsub.f32 %v5148, %v5169
        %v5197 = vsub.f32 %v5149, %v5171
        %v5198 = vsub.f32 %v5150, %v5173
        %v5199 = vsub.f32 %v5151, %v5175
        %v5200 = vsub.f32 %v5152, %v5177
        %v5201 = vsub.f32 %v5153, %v5179
        %v5202 = vsub.f32 %v5154, %v5181
        %v5203 = vsub.f32 %v5155, %v5183
        %v5204 = vsub.f32 %v5156, %v5185
        %v5205 = vsub.f32 %v5157, %v5187
        %v5206 = vsub.f32 %v5158, %v5189
        %v5207 = vsub.f32 %v5159, %v5191
        %v5208 = vmul.f32 %v5192, 1.442695
        %v5209 = vpow.pop %v5208
        %v5210 = vmul.f32 %v5193, 1.442695
        %v5211 = vpow.pop %v5210
        %v5212 = vmul.f32 %v5194, 1.442695
        %v5213 = vpow.pop %v5212
        %v5214 = vmul.f32 %v5195, 1.442695
        %v5215 = vpow.pop %v5214
        %v5216 = vmul.f32 %v5196, 1.442695
        %v5217 = vpow.pop %v5216
        %v5218 = vmul.f32 %v5197, 1.442695
        %v5219 = vpow.pop %v5218
        %v5220 = vmul.f32 %v5198, 1.442695
        %v5221 = vpow.pop %v5220
        %v5222 = vmul.f32 %v5199, 1.442695
        %v5223 = vpow.pop %v5222
        %v5224 = vmul.f32 %v5200, 1.442695
        %v5225 = vpow.pop %v5224
        %v5226 = vmul.f32 %v5201, 1.442695
        %v5227 = vpow.pop %v5226
        %v5228 = vmul.f32 %v5202, 1.442695
        %v5229 = vpow.pop %v5228
        %v5230 = vmul.f32 %v5203, 1.442695
        %v5231 = vpow.pop %v5230
        %v5232 = vmul.f32 %v5204, 1.442695
        %v5233 = vpow.pop %v5232
        %v5234 = vmul.f32 %v5205, 1.442695
        %v5235 = vpow.pop %v5234
        %v5236 = vmul.f32 %v5206, 1.442695
        %v5237 = vpow.pop %v5236
        %v5238 = vmul.f32 %v5207, 1.442695
        %v5239 = vpow.pop %v5238
        %5240 = vadd.xlane.f32.xlu0 %v5209
        %v5241 = vpop.xlane.xlu0 %5240
        %5242 = vadd.xlane.f32.xlu0 %v5211
        %v5243 = vpop.xlane.xlu0 %5242
        %5244 = vadd.xlane.f32.xlu0 %v5213
        %v5245 = vpop.xlane.xlu0 %5244
        %5246 = vadd.xlane.f32.xlu0 %v5215
        %v5247 = vpop.xlane.xlu0 %5246
        %5248 = vadd.xlane.f32.xlu0 %v5217
        %v5249 = vpop.xlane.xlu0 %5248
        %5250 = vadd.xlane.f32.xlu0 %v5219
        %v5251 = vpop.xlane.xlu0 %5250
        %5252 = vadd.xlane.f32.xlu0 %v5221
        %v5253 = vpop.xlane.xlu0 %5252
        %5254 = vadd.xlane.f32.xlu0 %v5223
        %v5255 = vpop.xlane.xlu0 %5254
        %5256 = vadd.xlane.f32.xlu0 %v5225
        %v5257 = vpop.xlane.xlu0 %5256
        %5258 = vadd.xlane.f32.xlu0 %v5227
        %v5259 = vpop.xlane.xlu0 %5258
        %5260 = vadd.xlane.f32.xlu0 %v5229
        %v5261 = vpop.xlane.xlu0 %5260
        %5262 = vadd.xlane.f32.xlu0 %v5231
        %v5263 = vpop.xlane.xlu0 %5262
        %5264 = vadd.xlane.f32.xlu0 %v5233
        %v5265 = vpop.xlane.xlu0 %5264
        %5266 = vadd.xlane.f32.xlu0 %v5235
        %v5267 = vpop.xlane.xlu0 %5266
        %5268 = vadd.xlane.f32.xlu0 %v5237
        %v5269 = vpop.xlane.xlu0 %5268
        %5270 = vadd.xlane.f32.xlu0 %v5239
        %v5271 = vpop.xlane.xlu0 %5270
        %v5272 = vpack.c.bf16 %v5211, %v5209
        %v5273 = vpack.c.bf16 %v5215, %v5213
        %v5274 = vpack.c.bf16 %v5219, %v5217
        %v5275 = vpack.c.bf16 %v5223, %v5221
        %v5276 = vpack.c.bf16 %v5227, %v5225
        %v5277 = vpack.c.bf16 %v5231, %v5229
        %v5278 = vpack.c.bf16 %v5235, %v5233
        %v5279 = vpack.c.bf16 %v5239, %v5237
        %5280 = vmatprep.subr.bf16.mxu0 0
        %5281 = vmatpush1.bf16.msra.mxu0 %v4941
        %5282 = vmatprep.subr.bf16.mxu0 0
        %5283 = vmatpush1.bf16.msra.mxu0 %v4944
        %5284 = vmatprep.subr.bf16.mxu0 0
        %5285 = vmatpush1.bf16.msra.mxu0 %v4947
        %5286 = vmatprep.subr.bf16.mxu0 0
        %5287 = vmatpush1.bf16.msra.mxu0 %v4950
        %5288 = vmatprep.subr.bf16.mxu0 0
        %5289 = vmatpush1.bf16.msra.mxu0 %v4953
        %5290 = vmatprep.subr.bf16.mxu0 0
        %5291 = vmatpush1.bf16.msra.mxu0 %v4956
        %5292 = vmatprep.subr.bf16.mxu0 0
        %5293 = vmatpush1.bf16.msra.mxu0 %v4959
        %5294 = vmatprep.subr.bf16.mxu0 0
        %5295 = vmatpush1.bf16.msra.mxu0 %v4962
        %5296 = vmatprep.subr.bf16.mxu0 0
        %5297 = vmatpush1.bf16.msra.mxu0 0
        %5298 = vmatprep.subr.bf16.mxu0 0
        %5299 = vmatpush1.bf16.msra.mxu0 0
        %5300 = vmatprep.subr.bf16.mxu0 0
        %5301 = vmatpush1.bf16.msra.mxu0 0
        %5302 = vmatprep.subr.bf16.mxu0 0
        %5303 = vmatpush1.bf16.msra.mxu0 0
        %5304 = vmatprep.subr.bf16.mxu0 0
        %5305 = vmatpush1.bf16.msra.mxu0 0
        %5306 = vmatprep.subr.bf16.mxu0 0
        %5307 = vmatpush1.bf16.msra.mxu0 0
        %5308 = vmatprep.subr.bf16.mxu0 0
        %5309 = vmatpush1.bf16.msra.mxu0 0
        %5310 = vmatprep.subr.bf16.mxu0 0
        %5311 = vmatpush1.bf16.msra.mxu0 0
        %5312 = vmatprep.mubr.bf16.mxu0 0
        %5313 = vmatmul.mubr.bf16.gmra.mrb[0].mxu0 %v5272
        %v5314 = vpop.f32.mrb[0].mxu0
        %v5315 = vadd.f32 0.0, %v5314
        %v5316 = vpop.f32.mrb[0].mxu0
        %v5317 = vpop.f32.mrb[0].mxu0
        %v5318 = vadd.f32 0.0, %v5317
        %v5319 = vpop.f32.mrb[0].mxu0
        %5320 = vmatprep.mubr.bf16.mxu0 0
        %5321 = vmatmul.mubr.bf16.gmra.mrb[0].mxu0 %v5273
        %v5322 = vpop.f32.mrb[0].mxu0
        %v5323 = vadd.f32 0.0, %v5322
        %v5324 = vpop.f32.mrb[0].mxu0
        %v5325 = vpop.f32.mrb[0].mxu0
        %v5326 = vadd.f32 0.0, %v5325
        %v5327 = vpop.f32.mrb[0].mxu0
        %5328 = vmatprep.mubr.bf16.mxu0 0
        %5329 = vmatmul.mubr.bf16.gmra.mrb[0].mxu0 %v5274
        %v5330 = vpop.f32.mrb[0].mxu0
        %v5331 = vadd.f32 0.0, %v5330
        %v5332 = vpop.f32.mrb[0].mxu0
        %v5333 = vpop.f32.mrb[0].mxu0
        %v5334 = vadd.f32 0.0, %v5333
        %v5335 = vpop.f32.mrb[0].mxu0
        %5336 = vmatprep.mubr.bf16.mxu0 0
        %5337 = vmatmul.mubr.bf16.gmra.mrb[0].mxu0 %v5275
        %v5338 = vpop.f32.mrb[0].mxu0
        %v5339 = vadd.f32 0.0, %v5338
        %v5340 = vpop.f32.mrb[0].mxu0
        %v5341 = vpop.f32.mrb[0].mxu0
        %v5342 = vadd.f32 0.0, %v5341
        %v5343 = vpop.f32.mrb[0].mxu0
        %5344 = vmatprep.mubr.bf16.mxu0 0
        %5345 = vmatmul.mubr.bf16.gmra.mrb[0].mxu0 %v5276
        %v5346 = vpop.f32.mrb[0].mxu0
        %v5347 = vadd.f32 0.0, %v5346
        %v5348 = vpop.f32.mrb[0].mxu0
        %v5349 = vpop.f32.mrb[0].mxu0
        %v5350 = vadd.f32 0.0, %v5349
        %v5351 = vpop.f32.mrb[0].mxu0
        %5352 = vmatprep.mubr.bf16.mxu0 0
        %5353 = vmatmul.mubr.bf16.gmra.mrb[0].mxu0 %v5277
        %v5354 = vpop.f32.mrb[0].mxu0
        %v5355 = vadd.f32 0.0, %v5354
        %v5356 = vpop.f32.mrb[0].mxu0
        %v5357 = vpop.f32.mrb[0].mxu0
        %v5358 = vadd.f32 0.0, %v5357
        %v5359 = vpop.f32.mrb[0].mxu0
        %5360 = vmatprep.mubr.bf16.mxu0 0
        %5361 = vmatmul.mubr.bf16.gmra.mrb[0].mxu0 %v5278
        %v5362 = vpop.f32.mrb[0].mxu0
        %v5363 = vadd.f32 0.0, %v5362
        %v5364 = vpop.f32.mrb[0].mxu0
        %v5365 = vpop.f32.mrb[0].mxu0
        %v5366 = vadd.f32 0.0, %v5365
        %v5367 = vpop.f32.mrb[0].mxu0
        %5368 = vmatprep.mubr.bf16.mxu0 0
        %5369 = vmatmul.mubr.bf16.gmra.mrb[0].mxu0 %v5279
        %v5370 = vpop.f32.mrb[0].mxu0
        %v5371 = vadd.f32 0.0, %v5370
        %v5372 = vpop.f32.mrb[0].mxu0
        %v5373 = vpop.f32.mrb[0].mxu0
        %v5374 = vadd.f32 0.0, %v5373
        %v5375 = vpop.f32.mrb[0].mxu0
        %5376 = vdwg.mxu0
        %v5377 = vrcp.pop %v5241
        %v5378 = vrcp.pop %v5243
        %v5379 = vrcp.pop %v5245
        %v5380 = vrcp.pop %v5247
        %v5381 = vrcp.pop %v5249
        %v5382 = vrcp.pop %v5251
        %v5383 = vrcp.pop %v5253
        %v5384 = vrcp.pop %v5255
        %v5385 = vrcp.pop %v5257
        %v5386 = vrcp.pop %v5259
        %v5387 = vrcp.pop %v5261
        %v5388 = vrcp.pop %v5263
        %v5389 = vrcp.pop %v5265
        %v5390 = vrcp.pop %v5267
        %v5391 = vrcp.pop %v5269
        %v5392 = vrcp.pop %v5271
        %v5393 = vmul.f32 %v5315, %v5377
        %v5394 = vmul.f32 %v5318, %v5378
        %v5395 = vmul.f32 %v5323, %v5379
        %v5396 = vmul.f32 %v5326, %v5380
        %v5397 = vmul.f32 %v5331, %v5381
        %v5398 = vmul.f32 %v5334, %v5382
        %v5399 = vmul.f32 %v5339, %v5383
        %v5400 = vmul.f32 %v5342, %v5384
        %v5401 = vmul.f32 %v5347, %v5385
        %v5402 = vmul.f32 %v5350, %v5386
        %v5403 = vmul.f32 %v5355, %v5387
        %v5404 = vmul.f32 %v5358, %v5388
        %v5405 = vmul.f32 %v5363, %v5389
        %v5406 = vmul.f32 %v5366, %v5390
        %v5407 = vmul.f32 %v5371, %v5391
        %v5408 = vmul.f32 %v5374, %v5392
        %5417 = vrot.lane.b32.xlu0 %v4939, 64
        %v5418 = vpop.permute.xlu0 %5417
        %5419 = vrot.lane.b32.xlu0 %v4942, 64
        %v5420 = vpop.permute.xlu0 %5419
        %5421 = vrot.lane.b32.xlu0 %v4945, 64
        %v5422 = vpop.permute.xlu0 %5421
        %5423 = vrot.lane.b32.xlu0 %v4948, 64
        %v5424 = vpop.permute.xlu0 %5423
        %5425 = vrot.lane.b32.xlu0 %v4951, 64
        %v5426 = vpop.permute.xlu0 %5425
        %5427 = vrot.lane.b32.xlu0 %v4954, 64
        %v5428 = vpop.permute.xlu0 %5427
        %5429 = vrot.lane.b32.xlu0 %v4957, 64
        %v5430 = vpop.permute.xlu0 %5429
        %5431 = vrot.lane.b32.xlu0 %v4960, 64
        %v5432 = vpop.permute.xlu0 %5431
        %5441 = vrot.lane.b32.xlu0 %v4940, 64
        %v5442 = vpop.permute.xlu0 %5441
        %5443 = vrot.lane.b32.xlu0 %v4943, 64
        %v5444 = vpop.permute.xlu0 %5443
        %5445 = vrot.lane.b32.xlu0 %v4946, 64
        %v5446 = vpop.permute.xlu0 %5445
        %5447 = vrot.lane.b32.xlu0 %v4949, 64
        %v5448 = vpop.permute.xlu0 %5447
        %5449 = vrot.lane.b32.xlu0 %v4952, 64
        %v5450 = vpop.permute.xlu0 %5449
        %5451 = vrot.lane.b32.xlu0 %v4955, 64
        %v5452 = vpop.permute.xlu0 %5451
        %5453 = vrot.lane.b32.xlu0 %v4958, 64
        %v5454 = vpop.permute.xlu0 %5453
        %5455 = vrot.lane.b32.xlu0 %v4961, 64
        %v5456 = vpop.permute.xlu0 %5455
        %v5458 = vsel %vm4998, %v5418, 0
        %v5461 = vsel %vm4998, %v5420, 0
        %v5464 = vsel %vm4998, %v5422, 0
        %v5467 = vsel %vm4998, %v5424, 0
        %v5470 = vsel %vm4998, %v5426, 0
        %v5473 = vsel %vm4998, %v5428, 0
        %v5476 = vsel %vm4998, %v5430, 0
        %v5479 = vsel %vm4998, %v5432, 0
        %v5482 = vsel %vm4998, %v5442, 0
        %v5485 = vsel %vm4998, %v5444, 0
        %v5488 = vsel %vm4998, %v5446, 0
        %v5491 = vsel %vm4998, %v5448, 0
        %v5494 = vsel %vm4998, %v5450, 0
        %v5497 = vsel %vm4998, %v5452, 0
        %v5500 = vsel %vm4998, %v5454, 0
        %v5503 = vsel %vm4998, %v5456, 0
        %5505 = vmatprep.subr.bf16.mxu0 0
        %5506 = vmatpush1.bf16.xpose.msra.mxu0 %v5482
        %5507 = vmatprep.subr.bf16.mxu0 0
        %5508 = vmatpush1.bf16.xpose.msra.mxu0 %v5485
        %5509 = vmatprep.subr.bf16.mxu0 0
        %5510 = vmatpush1.bf16.xpose.msra.mxu0 %v5488
        %5511 = vmatprep.subr.bf16.mxu0 0
        %5512 = vmatpush1.bf16.xpose.msra.mxu0 %v5491
        %5513 = vmatprep.subr.bf16.mxu0 0
        %5514 = vmatpush1.bf16.xpose.msra.mxu0 %v5494
        %5515 = vmatprep.subr.bf16.mxu0 0
        %5516 = vmatpush1.bf16.xpose.msra.mxu0 %v5497
        %5517 = vmatprep.subr.bf16.mxu0 0
        %5518 = vmatpush1.bf16.xpose.msra.mxu0 %v5500
        %5519 = vmatprep.subr.bf16.mxu0 0
        %5520 = vmatpush1.bf16.xpose.msra.mxu0 %v5503
        %5521 = vmatprep.subr.bf16.mxu0 0
        %5522 = vmatpush1.bf16.xpose.msra.mxu0 0
        %5523 = vmatprep.subr.bf16.mxu0 0
        %5524 = vmatpush1.bf16.xpose.msra.mxu0 0
        %5525 = vmatprep.subr.bf16.mxu0 0
        %5526 = vmatpush1.bf16.xpose.msra.mxu0 0
        %5527 = vmatprep.subr.bf16.mxu0 0
        %5528 = vmatpush1.bf16.xpose.msra.mxu0 0
        %5529 = vmatprep.subr.bf16.mxu0 0
        %5530 = vmatpush1.bf16.xpose.msra.mxu0 0
        %5531 = vmatprep.subr.bf16.mxu0 0
        %5532 = vmatpush1.bf16.xpose.msra.mxu0 0
        %5533 = vmatprep.subr.bf16.mxu0 0
        %5534 = vmatpush1.bf16.xpose.msra.mxu0 0
        %5535 = vmatprep.subr.bf16.mxu0 0
        %5536 = vmatpush1.bf16.xpose.msra.mxu0 0
        %5537 = vmatprep.mubr.bf16.mxu0 0
        %5538 = vmatmul.mubr.bf16.gmra.mrb[0].mxu0 %v5458
        %v5539 = vpop.f32.mrb[0].mxu0
        %v5540 = vadd.f32 0.0, %v5539
        %v5541 = vpop.f32.mrb[0].mxu0
        %v5542 = vpop.f32.mrb[0].mxu0
        %v5543 = vadd.f32 0.0, %v5542
        %v5544 = vpop.f32.mrb[0].mxu0
        %5545 = vmatprep.mubr.bf16.mxu0 0
        %5546 = vmatmul.mubr.bf16.gmra.mrb[0].mxu0 %v5461
        %v5547 = vpop.f32.mrb[0].mxu0
        %v5548 = vadd.f32 0.0, %v5547
        %v5549 = vpop.f32.mrb[0].mxu0
        %v5550 = vpop.f32.mrb[0].mxu0
        %v5551 = vadd.f32 0.0, %v5550
        %v5552 = vpop.f32.mrb[0].mxu0
        %5553 = vmatprep.mubr.bf16.mxu0 0
        %5554 = vmatmul.mubr.bf16.gmra.mrb[0].mxu0 %v5464
        %v5555 = vpop.f32.mrb[0].mxu0
        %v5556 = vadd.f32 0.0, %v5555
        %v5557 = vpop.f32.mrb[0].mxu0
        %v5558 = vpop.f32.mrb[0].mxu0
        %v5559 = vadd.f32 0.0, %v5558
        %v5560 = vpop.f32.mrb[0].mxu0
        %5561 = vmatprep.mubr.bf16.mxu0 0
        %5562 = vmatmul.mubr.bf16.gmra.mrb[0].mxu0 %v5467
        %v5563 = vpop.f32.mrb[0].mxu0
        %v5564 = vadd.f32 0.0, %v5563
        %v5565 = vpop.f32.mrb[0].mxu0
        %v5566 = vpop.f32.mrb[0].mxu0
        %v5567 = vadd.f32 0.0, %v5566
        %v5568 = vpop.f32.mrb[0].mxu0
        %5569 = vmatprep.mubr.bf16.mxu0 0
        %5570 = vmatmul.mubr.bf16.gmra.mrb[0].mxu0 %v5470
        %v5571 = vpop.f32.mrb[0].mxu0
        %v5572 = vadd.f32 0.0, %v5571
        %v5573 = vpop.f32.mrb[0].mxu0
        %v5574 = vpop.f32.mrb[0].mxu0
        %v5575 = vadd.f32 0.0, %v5574
        %v5576 = vpop.f32.mrb[0].mxu0
        %5577 = vmatprep.mubr.bf16.mxu0 0
        %5578 = vmatmul.mubr.bf16.gmra.mrb[0].mxu0 %v5473
        %v5579 = vpop.f32.mrb[0].mxu0
        %v5580 = vadd.f32 0.0, %v5579
        %v5581 = vpop.f32.mrb[0].mxu0
        %v5582 = vpop.f32.mrb[0].mxu0
        %v5583 = vadd.f32 0.0, %v5582
        %v5584 = vpop.f32.mrb[0].mxu0
        %5585 = vmatprep.mubr.bf16.mxu0 0
        %5586 = vmatmul.mubr.bf16.gmra.mrb[0].mxu0 %v5476
        %v5587 = vpop.f32.mrb[0].mxu0
        %v5588 = vadd.f32 0.0, %v5587
        %v5589 = vpop.f32.mrb[0].mxu0
        %v5590 = vpop.f32.mrb[0].mxu0
        %v5591 = vadd.f32 0.0, %v5590
        %v5592 = vpop.f32.mrb[0].mxu0
        %5593 = vmatprep.mubr.bf16.mxu0 0
        %5594 = vmatmul.mubr.bf16.gmra.mrb[0].mxu0 %v5479
        %v5595 = vpop.f32.mrb[0].mxu0
        %v5596 = vadd.f32 0.0, %v5595
        %v5597 = vpop.f32.mrb[0].mxu0
        %v5598 = vpop.f32.mrb[0].mxu0
        %v5599 = vadd.f32 0.0, %v5598
        %v5600 = vpop.f32.mrb[0].mxu0
        %5601 = vdwg.mxu0
        %v5602 = vsel %vm4982, %v5540, -10000.0
        %v5603 = vsel %vm4983, %v5543, -10000.0
        %v5604 = vsel %vm4984, %v5548, -10000.0
        %v5605 = vsel %vm4985, %v5551, -10000.0
        %v5606 = vsel %vm4986, %v5556, -10000.0
        %v5607 = vsel %vm4987, %v5559, -10000.0
        %v5608 = vsel %vm4988, %v5564, -10000.0
        %v5609 = vsel %vm4989, %v5567, -10000.0
        %v5610 = vsel %vm4990, %v5572, -10000.0
        %v5611 = vsel %vm4991, %v5575, -10000.0
        %v5612 = vsel %vm4992, %v5580, -10000.0
        %v5613 = vsel %vm4993, %v5583, -10000.0
        %v5614 = vsel %vm4994, %v5588, -10000.0
        %v5615 = vsel %vm4995, %v5591, -10000.0
        %v5616 = vsel %vm4996, %v5596, -10000.0
        %v5617 = vsel %vm4997, %v5599, -10000.0
        %5618 = vmax.xlane.f32.xlu0 %v5602
        %v5619 = vpop.xlane.xlu0 %5618
        %5620 = vmax.xlane.f32.xlu0 %v5603
        %v5621 = vpop.xlane.xlu0 %5620
        %5622 = vmax.xlane.f32.xlu0 %v5604
        %v5623 = vpop.xlane.xlu0 %5622
        %5624 = vmax.xlane.f32.xlu0 %v5605
        %v5625 = vpop.xlane.xlu0 %5624
        %5626 = vmax.xlane.f32.xlu0 %v5606
        %v5627 = vpop.xlane.xlu0 %5626
        %5628 = vmax.xlane.f32.xlu0 %v5607
        %v5629 = vpop.xlane.xlu0 %5628
        %5630 = vmax.xlane.f32.xlu0 %v5608
        %v5631 = vpop.xlane.xlu0 %5630
        %5632 = vmax.xlane.f32.xlu0 %v5609
        %v5633 = vpop.xlane.xlu0 %5632
        %5634 = vmax.xlane.f32.xlu0 %v5610
        %v5635 = vpop.xlane.xlu0 %5634
        %5636 = vmax.xlane.f32.xlu0 %v5611
        %v5637 = vpop.xlane.xlu0 %5636
        %5638 = vmax.xlane.f32.xlu0 %v5612
        %v5639 = vpop.xlane.xlu0 %5638
        %5640 = vmax.xlane.f32.xlu0 %v5613
        %v5641 = vpop.xlane.xlu0 %5640
        %5642 = vmax.xlane.f32.xlu0 %v5614
        %v5643 = vpop.xlane.xlu0 %5642
        %5644 = vmax.xlane.f32.xlu0 %v5615
        %v5645 = vpop.xlane.xlu0 %5644
        %5646 = vmax.xlane.f32.xlu0 %v5616
        %v5647 = vpop.xlane.xlu0 %5646
        %5648 = vmax.xlane.f32.xlu0 %v5617
        %v5649 = vpop.xlane.xlu0 %5648
        %v5650 = vsub.f32 %v5602, %v5619
        %v5651 = vsub.f32 %v5603, %v5621
        %v5652 = vsub.f32 %v5604, %v5623
        %v5653 = vsub.f32 %v5605, %v5625
        %v5654 = vsub.f32 %v5606, %v5627
        %v5655 = vsub.f32 %v5607, %v5629
        %v5656 = vsub.f32 %v5608, %v5631
        %v5657 = vsub.f32 %v5609, %v5633
        %v5658 = vsub.f32 %v5610, %v5635
        %v5659 = vsub.f32 %v5611, %v5637
        %v5660 = vsub.f32 %v5612, %v5639
        %v5661 = vsub.f32 %v5613, %v5641
        %v5662 = vsub.f32 %v5614, %v5643
        %v5663 = vsub.f32 %v5615, %v5645
        %v5664 = vsub.f32 %v5616, %v5647
        %v5665 = vsub.f32 %v5617, %v5649
        %v5666 = vmul.f32 %v5650, 1.442695
        %v5667 = vpow.pop %v5666
        %v5668 = vmul.f32 %v5651, 1.442695
        %v5669 = vpow.pop %v5668
        %v5670 = vmul.f32 %v5652, 1.442695
        %v5671 = vpow.pop %v5670
        %v5672 = vmul.f32 %v5653, 1.442695
        %v5673 = vpow.pop %v5672
        %v5674 = vmul.f32 %v5654, 1.442695
        %v5675 = vpow.pop %v5674
        %v5676 = vmul.f32 %v5655, 1.442695
        %v5677 = vpow.pop %v5676
        %v5678 = vmul.f32 %v5656, 1.442695
        %v5679 = vpow.pop %v5678
        %v5680 = vmul.f32 %v5657, 1.442695
        %v5681 = vpow.pop %v5680
        %v5682 = vmul.f32 %v5658, 1.442695
        %v5683 = vpow.pop %v5682
        %v5684 = vmul.f32 %v5659, 1.442695
        %v5685 = vpow.pop %v5684
        %v5686 = vmul.f32 %v5660, 1.442695
        %v5687 = vpow.pop %v5686
        %v5688 = vmul.f32 %v5661, 1.442695
        %v5689 = vpow.pop %v5688
        %v5690 = vmul.f32 %v5662, 1.442695
        %v5691 = vpow.pop %v5690
        %v5692 = vmul.f32 %v5663, 1.442695
        %v5693 = vpow.pop %v5692
        %v5694 = vmul.f32 %v5664, 1.442695
        %v5695 = vpow.pop %v5694
        %v5696 = vmul.f32 %v5665, 1.442695
        %v5697 = vpow.pop %v5696
        %5698 = vadd.xlane.f32.xlu0 %v5667
        %v5699 = vpop.xlane.xlu0 %5698
        %5700 = vadd.xlane.f32.xlu0 %v5669
        %v5701 = vpop.xlane.xlu0 %5700
        %5702 = vadd.xlane.f32.xlu0 %v5671
        %v5703 = vpop.xlane.xlu0 %5702
        %5704 = vadd.xlane.f32.xlu0 %v5673
        %v5705 = vpop.xlane.xlu0 %5704
        %5706 = vadd.xlane.f32.xlu0 %v5675
        %v5707 = vpop.xlane.xlu0 %5706
        %5708 = vadd.xlane.f32.xlu0 %v5677
        %v5709 = vpop.xlane.xlu0 %5708
        %5710 = vadd.xlane.f32.xlu0 %v5679
        %v5711 = vpop.xlane.xlu0 %5710
        %5712 = vadd.xlane.f32.xlu0 %v5681
        %v5713 = vpop.xlane.xlu0 %5712
        %5714 = vadd.xlane.f32.xlu0 %v5683
        %v5715 = vpop.xlane.xlu0 %5714
        %5716 = vadd.xlane.f32.xlu0 %v5685
        %v5717 = vpop.xlane.xlu0 %5716
        %5718 = vadd.xlane.f32.xlu0 %v5687
        %v5719 = vpop.xlane.xlu0 %5718
        %5720 = vadd.xlane.f32.xlu0 %v5689
        %v5721 = vpop.xlane.xlu0 %5720
        %5722 = vadd.xlane.f32.xlu0 %v5691
        %v5723 = vpop.xlane.xlu0 %5722
        %5724 = vadd.xlane.f32.xlu0 %v5693
        %v5725 = vpop.xlane.xlu0 %5724
        %5726 = vadd.xlane.f32.xlu0 %v5695
        %v5727 = vpop.xlane.xlu0 %5726
        %5728 = vadd.xlane.f32.xlu0 %v5697
        %v5729 = vpop.xlane.xlu0 %5728
        %v5730 = vpack.c.bf16 %v5669, %v5667
        %v5731 = vpack.c.bf16 %v5673, %v5671
        %v5732 = vpack.c.bf16 %v5677, %v5675
        %v5733 = vpack.c.bf16 %v5681, %v5679
        %v5734 = vpack.c.bf16 %v5685, %v5683
        %v5735 = vpack.c.bf16 %v5689, %v5687
        %v5736 = vpack.c.bf16 %v5693, %v5691
        %v5737 = vpack.c.bf16 %v5697, %v5695
        %5746 = vrot.lane.b32.xlu0 %v4941, 64
        %v5747 = vpop.permute.xlu0 %5746
        %5748 = vrot.lane.b32.xlu0 %v4944, 64
        %v5749 = vpop.permute.xlu0 %5748
        %5750 = vrot.lane.b32.xlu0 %v4947, 64
        %v5751 = vpop.permute.xlu0 %5750
        %5752 = vrot.lane.b32.xlu0 %v4950, 64
        %v5753 = vpop.permute.xlu0 %5752
        %5754 = vrot.lane.b32.xlu0 %v4953, 64
        %v5755 = vpop.permute.xlu0 %5754
        %5756 = vrot.lane.b32.xlu0 %v4956, 64
        %v5757 = vpop.permute.xlu0 %5756
        %5758 = vrot.lane.b32.xlu0 %v4959, 64
        %v5759 = vpop.permute.xlu0 %5758
        %5760 = vrot.lane.b32.xlu0 %v4962, 64
        %v5761 = vpop.permute.xlu0 %5760
        %5770 = vmatprep.subr.bf16.mxu0 0
        %5771 = vmatpush1.bf16.msra.mxu0 %v5747
        %5772 = vmatprep.subr.bf16.mxu0 0
        %5773 = vmatpush1.bf16.msra.mxu0 %v5749
        %5774 = vmatprep.subr.bf16.mxu0 0
        %5775 = vmatpush1.bf16.msra.mxu0 %v5751
        %5776 = vmatprep.subr.bf16.mxu0 0
        %5777 = vmatpush1.bf16.msra.mxu0 %v5753
        %5778 = vmatprep.subr.bf16.mxu0 0
        %5779 = vmatpush1.bf16.msra.mxu0 %v5755
        %5780 = vmatprep.subr.bf16.mxu0 0
        %5781 = vmatpush1.bf16.msra.mxu0 %v5757
        %5782 = vmatprep.subr.bf16.mxu0 0
        %5783 = vmatpush1.bf16.msra.mxu0 %v5759
        %5784 = vmatprep.subr.bf16.mxu0 0
        %5785 = vmatpush1.bf16.msra.mxu0 %v5761
        %5786 = vmatprep.subr.bf16.mxu0 0
        %5787 = vmatpush1.bf16.msra.mxu0 0
        %5788 = vmatprep.subr.bf16.mxu0 0
        %5789 = vmatpush1.bf16.msra.mxu0 0
        %5790 = vmatprep.subr.bf16.mxu0 0
        %5791 = vmatpush1.bf16.msra.mxu0 0
        %5792 = vmatprep.subr.bf16.mxu0 0
        %5793 = vmatpush1.bf16.msra.mxu0 0
        %5794 = vmatprep.subr.bf16.mxu0 0
        %5795 = vmatpush1.bf16.msra.mxu0 0
        %5796 = vmatprep.subr.bf16.mxu0 0
        %5797 = vmatpush1.bf16.msra.mxu0 0
        %5798 = vmatprep.subr.bf16.mxu0 0
        %5799 = vmatpush1.bf16.msra.mxu0 0
        %5800 = vmatprep.subr.bf16.mxu0 0
        %5801 = vmatpush1.bf16.msra.mxu0 0
        %5802 = vmatprep.mubr.bf16.mxu0 0
        %5803 = vmatmul.mubr.bf16.gmra.mrb[0].mxu0 %v5730
        %v5804 = vpop.f32.mrb[0].mxu0
        %v5805 = vadd.f32 0.0, %v5804
        %v5806 = vpop.f32.mrb[0].mxu0
        %v5807 = vpop.f32.mrb[0].mxu0
        %v5808 = vadd.f32 0.0, %v5807
        %v5809 = vpop.f32.mrb[0].mxu0
        %5810 = vmatprep.mubr.bf16.mxu0 0
        %5811 = vmatmul.mubr.bf16.gmra.mrb[0].mxu0 %v5731
        %v5812 = vpop.f32.mrb[0].mxu0
        %v5813 = vadd.f32 0.0, %v5812
        %v5814 = vpop.f32.mrb[0].mxu0
        %v5815 = vpop.f32.mrb[0].mxu0
        %v5816 = vadd.f32 0.0, %v5815
        %v5817 = vpop.f32.mrb[0].mxu0
        %5818 = vmatprep.mubr.bf16.mxu0 0
        %5819 = vmatmul.mubr.bf16.gmra.mrb[0].mxu0 %v5732
        %v5820 = vpop.f32.mrb[0].mxu0
        %v5821 = vadd.f32 0.0, %v5820
        %v5822 = vpop.f32.mrb[0].mxu0
        %v5823 = vpop.f32.mrb[0].mxu0
        %v5824 = vadd.f32 0.0, %v5823
        %v5825 = vpop.f32.mrb[0].mxu0
        %5826 = vmatprep.mubr.bf16.mxu0 0
        %5827 = vmatmul.mubr.bf16.gmra.mrb[0].mxu0 %v5733
        %v5828 = vpop.f32.mrb[0].mxu0
        %v5829 = vadd.f32 0.0, %v5828
        %v5830 = vpop.f32.mrb[0].mxu0
        %v5831 = vpop.f32.mrb[0].mxu0
        %v5832 = vadd.f32 0.0, %v5831
        %v5833 = vpop.f32.mrb[0].mxu0
        %5834 = vmatprep.mubr.bf16.mxu0 0
        %5835 = vmatmul.mubr.bf16.gmra.mrb[0].mxu0 %v5734
        %v5836 = vpop.f32.mrb[0].mxu0
        %v5837 = vadd.f32 0.0, %v5836
        %v5838 = vpop.f32.mrb[0].mxu0
        %v5839 = vpop.f32.mrb[0].mxu0
        %v5840 = vadd.f32 0.0, %v5839
        %v5841 = vpop.f32.mrb[0].mxu0
        %5842 = vmatprep.mubr.bf16.mxu0 0
        %5843 = vmatmul.mubr.bf16.gmra.mrb[0].mxu0 %v5735
        %v5844 = vpop.f32.mrb[0].mxu0
        %v5845 = vadd.f32 0.0, %v5844
        %v5846 = vpop.f32.mrb[0].mxu0
        %v5847 = vpop.f32.mrb[0].mxu0
        %v5848 = vadd.f32 0.0, %v5847
        %v5849 = vpop.f32.mrb[0].mxu0
        %5850 = vmatprep.mubr.bf16.mxu0 0
        %5851 = vmatmul.mubr.bf16.gmra.mrb[0].mxu0 %v5736
        %v5852 = vpop.f32.mrb[0].mxu0
        %v5853 = vadd.f32 0.0, %v5852
        %v5854 = vpop.f32.mrb[0].mxu0
        %v5855 = vpop.f32.mrb[0].mxu0
        %v5856 = vadd.f32 0.0, %v5855
        %v5857 = vpop.f32.mrb[0].mxu0
        %5858 = vmatprep.mubr.bf16.mxu0 0
        %5859 = vmatmul.mubr.bf16.gmra.mrb[0].mxu0 %v5737
        %v5860 = vpop.f32.mrb[0].mxu0
        %v5861 = vadd.f32 0.0, %v5860
        %v5862 = vpop.f32.mrb[0].mxu0
        %v5863 = vpop.f32.mrb[0].mxu0
        %v5864 = vadd.f32 0.0, %v5863
        %v5865 = vpop.f32.mrb[0].mxu0
        %5866 = vdwg.mxu0
        %v5867 = vrcp.pop %v5699
        %v5868 = vrcp.pop %v5701
        %v5869 = vrcp.pop %v5703
        %v5870 = vrcp.pop %v5705
        %v5871 = vrcp.pop %v5707
        %v5872 = vrcp.pop %v5709
        %v5873 = vrcp.pop %v5711
        %v5874 = vrcp.pop %v5713
        %v5875 = vrcp.pop %v5715
        %v5876 = vrcp.pop %v5717
        %v5877 = vrcp.pop %v5719
        %v5878 = vrcp.pop %v5721
        %v5879 = vrcp.pop %v5723
        %v5880 = vrcp.pop %v5725
        %v5881 = vrcp.pop %v5727
        %v5882 = vrcp.pop %v5729
        %v5883 = vmul.f32 %v5805, %v5867
        %v5884 = vmul.f32 %v5808, %v5868
        %v5885 = vmul.f32 %v5813, %v5869
        %v5886 = vmul.f32 %v5816, %v5870
        %v5887 = vmul.f32 %v5821, %v5871
        %v5888 = vmul.f32 %v5824, %v5872
        %v5889 = vmul.f32 %v5829, %v5873
        %v5890 = vmul.f32 %v5832, %v5874
        %v5891 = vmul.f32 %v5837, %v5875
        %v5892 = vmul.f32 %v5840, %v5876
        %v5893 = vmul.f32 %v5845, %v5877
        %v5894 = vmul.f32 %v5848, %v5878
        %v5895 = vmul.f32 %v5853, %v5879
        %v5896 = vmul.f32 %v5856, %v5880
        %v5897 = vmul.f32 %v5861, %v5881
        %v5898 = vmul.f32 %v5864, %v5882
        %5915 = vrot.lane.b32.xlu0 %v5883, 64
        %v5916 = vpop.permute.xlu0 %5915
        %5917 = vrot.lane.b32.xlu0 %v5884, 64
        %v5918 = vpop.permute.xlu0 %5917
        %5919 = vrot.lane.b32.xlu0 %v5885, 64
        %v5920 = vpop.permute.xlu0 %5919
        %5921 = vrot.lane.b32.xlu0 %v5886, 64
        %v5922 = vpop.permute.xlu0 %5921
        %5923 = vrot.lane.b32.xlu0 %v5887, 64
        %v5924 = vpop.permute.xlu0 %5923
        %5925 = vrot.lane.b32.xlu0 %v5888, 64
        %v5926 = vpop.permute.xlu0 %5925
        %5927 = vrot.lane.b32.xlu0 %v5889, 64
        %v5928 = vpop.permute.xlu0 %5927
        %5929 = vrot.lane.b32.xlu0 %v5890, 64
        %v5930 = vpop.permute.xlu0 %5929
        %5931 = vrot.lane.b32.xlu0 %v5891, 64
        %v5932 = vpop.permute.xlu0 %5931
        %5933 = vrot.lane.b32.xlu0 %v5892, 64
        %v5934 = vpop.permute.xlu0 %5933
        %5935 = vrot.lane.b32.xlu0 %v5893, 64
        %v5936 = vpop.permute.xlu0 %5935
        %5937 = vrot.lane.b32.xlu0 %v5894, 64
        %v5938 = vpop.permute.xlu0 %5937
        %5939 = vrot.lane.b32.xlu0 %v5895, 64
        %v5940 = vpop.permute.xlu0 %5939
        %5941 = vrot.lane.b32.xlu0 %v5896, 64
        %v5942 = vpop.permute.xlu0 %5941
        %5943 = vrot.lane.b32.xlu0 %v5897, 64
        %v5944 = vpop.permute.xlu0 %5943
        %5945 = vrot.lane.b32.xlu0 %v5898, 64
        %v5946 = vpop.permute.xlu0 %5945
        %v5963 = vsel %vm4998, %v5393, %v5916
        %v5964 = vsel %vm4998, %v5394, %v5918
        %v5965 = vsel %vm4998, %v5395, %v5920
        %v5966 = vsel %vm4998, %v5396, %v5922
        %v5967 = vsel %vm4998, %v5397, %v5924
        %v5968 = vsel %vm4998, %v5398, %v5926
        %v5969 = vsel %vm4998, %v5399, %v5928
        %v5970 = vsel %vm4998, %v5400, %v5930
        %v5971 = vsel %vm4998, %v5401, %v5932
        %v5972 = vsel %vm4998, %v5402, %v5934
        %v5973 = vsel %vm4998, %v5403, %v5936
        %v5974 = vsel %vm4998, %v5404, %v5938
        %v5975 = vsel %vm4998, %v5405, %v5940
        %v5976 = vsel %vm4998, %v5406, %v5942
        %v5977 = vsel %vm4998, %v5407, %v5944
        %v5978 = vsel %vm4998, %v5408, %v5946
        %v5979 = vpack.c.bf16 %v5964, %v5963
        %v5980 = vpack.c.bf16 %v5966, %v5965
        %v5981 = vpack.c.bf16 %v5968, %v5967
        %v5982 = vpack.c.bf16 %v5970, %v5969
        %v5983 = vpack.c.bf16 %v5972, %v5971
        %v5984 = vpack.c.bf16 %v5974, %v5973
        %v5985 = vpack.c.bf16 %v5976, %v5975
        %v5986 = vpack.c.bf16 %v5978, %v5977
        %v5987 = vld [vmem:[#allocation8] sm:$0xff]
        %v5988 = vld [vmem:[#allocation8 + $0x8] sm:$0xff]
        %v5989 = vld [vmem:[#allocation8 + $0x10] sm:$0xff]
        %v5990 = vld [vmem:[#allocation8 + $0x18] sm:$0xff]
        %v5991 = vld [vmem:[#allocation8 + $0x20] sm:$0xff]
        %v5992 = vld [vmem:[#allocation8 + $0x28] sm:$0xff]
        %v5993 = vld [vmem:[#allocation8 + $0x30] sm:$0xff]
        %v5994 = vld [vmem:[#allocation8 + $0x38] sm:$0xff]
        %v5995 = vld [vmem:[#allocation8 + $0x40] sm:$0xff]
        %v5996 = vld [vmem:[#allocation8 + $0x48] sm:$0xff]
        %v5997 = vld [vmem:[#allocation8 + $0x50] sm:$0xff]
        %v5998 = vld [vmem:[#allocation8 + $0x58] sm:$0xff]
        %v5999 = vld [vmem:[#allocation8 + $0x60] sm:$0xff]
        %v6000 = vld [vmem:[#allocation8 + $0x68] sm:$0xff]
        %v6001 = vld [vmem:[#allocation8 + $0x70] sm:$0xff]
        %v6002 = vld [vmem:[#allocation8 + $0x78] sm:$0xff]
        %v6003 = vld [vmem:[#allocation8 + $0x80] sm:$0xff]
        %v6004 = vld [vmem:[#allocation8 + $0x88] sm:$0xff]
        %v6005 = vld [vmem:[#allocation8 + $0x90] sm:$0xff]
        %v6006 = vld [vmem:[#allocation8 + $0x98] sm:$0xff]
        %v6007 = vld [vmem:[#allocation8 + $0xa0] sm:$0xff]
        %v6008 = vld [vmem:[#allocation8 + $0xa8] sm:$0xff]
        %v6009 = vld [vmem:[#allocation8 + $0xb0] sm:$0xff]
        %v6010 = vld [vmem:[#allocation8 + $0xb8] sm:$0xff]
        %v6011 = vld [vmem:[#allocation8 + $0xc0] sm:$0xff]
        %v6012 = vld [vmem:[#allocation8 + $0xc8] sm:$0xff]
        %v6013 = vld [vmem:[#allocation8 + $0xd0] sm:$0xff]
        %v6014 = vld [vmem:[#allocation8 + $0xd8] sm:$0xff]
        %v6015 = vld [vmem:[#allocation8 + $0xe0] sm:$0xff]
        %v6016 = vld [vmem:[#allocation8 + $0xe8] sm:$0xff]
        %v6017 = vld [vmem:[#allocation8 + $0xf0] sm:$0xff]
        %v6018 = vld [vmem:[#allocation8 + $0xf8] sm:$0xff]
        %v6019 = vld [vmem:[#allocation8 + $0x100] sm:$0xff]
        %v6020 = vld [vmem:[#allocation8 + $0x108] sm:$0xff]
        %v6021 = vld [vmem:[#allocation8 + $0x110] sm:$0xff]
        %v6022 = vld [vmem:[#allocation8 + $0x118] sm:$0xff]
        %v6023 = vld [vmem:[#allocation8 + $0x120] sm:$0xff]
        %v6024 = vld [vmem:[#allocation8 + $0x128] sm:$0xff]
        %v6025 = vld [vmem:[#allocation8 + $0x130] sm:$0xff]
        %v6026 = vld [vmem:[#allocation8 + $0x138] sm:$0xff]
        %v6027 = vld [vmem:[#allocation8 + $0x140] sm:$0xff]
        %v6028 = vld [vmem:[#allocation8 + $0x148] sm:$0xff]
        %v6029 = vld [vmem:[#allocation8 + $0x150] sm:$0xff]
        %v6030 = vld [vmem:[#allocation8 + $0x158] sm:$0xff]
        %v6031 = vld [vmem:[#allocation8 + $0x160] sm:$0xff]
        %v6032 = vld [vmem:[#allocation8 + $0x168] sm:$0xff]
        %v6033 = vld [vmem:[#allocation8 + $0x170] sm:$0xff]
        %v6034 = vld [vmem:[#allocation8 + $0x178] sm:$0xff]
        %v6035 = vld [vmem:[#allocation8 + $0x180] sm:$0xff]
        %v6036 = vld [vmem:[#allocation8 + $0x188] sm:$0xff]
        %v6037 = vld [vmem:[#allocation8 + $0x190] sm:$0xff]
        %v6038 = vld [vmem:[#allocation8 + $0x198] sm:$0xff]
        %v6039 = vld [vmem:[#allocation8 + $0x1a0] sm:$0xff]
        %v6040 = vld [vmem:[#allocation8 + $0x1a8] sm:$0xff]
        %v6041 = vld [vmem:[#allocation8 + $0x1b0] sm:$0xff]
        %v6042 = vld [vmem:[#allocation8 + $0x1b8] sm:$0xff]
        %v6043 = vld [vmem:[#allocation8 + $0x1c0] sm:$0xff]
        %v6044 = vld [vmem:[#allocation8 + $0x1c8] sm:$0xff]
        %v6045 = vld [vmem:[#allocation8 + $0x1d0] sm:$0xff]
        %v6046 = vld [vmem:[#allocation8 + $0x1d8] sm:$0xff]
        %v6047 = vld [vmem:[#allocation8 + $0x1e0] sm:$0xff]
        %v6048 = vld [vmem:[#allocation8 + $0x1e8] sm:$0xff]
        %v6049 = vld [vmem:[#allocation8 + $0x1f0] sm:$0xff]
        %v6050 = vld [vmem:[#allocation8 + $0x1f8] sm:$0xff]
        %v6051 = vld [vmem:[#allocation8 + $0x200] sm:$0xff]
        %v6052 = vld [vmem:[#allocation8 + $0x208] sm:$0xff]
        %v6053 = vld [vmem:[#allocation8 + $0x210] sm:$0xff]
        %v6054 = vld [vmem:[#allocation8 + $0x218] sm:$0xff]
        %v6055 = vld [vmem:[#allocation8 + $0x220] sm:$0xff]
        %v6056 = vld [vmem:[#allocation8 + $0x228] sm:$0xff]
        %v6057 = vld [vmem:[#allocation8 + $0x230] sm:$0xff]
        %v6058 = vld [vmem:[#allocation8 + $0x238] sm:$0xff]
        %v6059 = vld [vmem:[#allocation8 + $0x240] sm:$0xff]
        %v6060 = vld [vmem:[#allocation8 + $0x248] sm:$0xff]
        %v6061 = vld [vmem:[#allocation8 + $0x250] sm:$0xff]
        %v6062 = vld [vmem:[#allocation8 + $0x258] sm:$0xff]
        %v6063 = vld [vmem:[#allocation8 + $0x260] sm:$0xff]
        %v6064 = vld [vmem:[#allocation8 + $0x268] sm:$0xff]
        %v6065 = vld [vmem:[#allocation8 + $0x270] sm:$0xff]
        %v6066 = vld [vmem:[#allocation8 + $0x278] sm:$0xff]
        %v6067 = vld [vmem:[#allocation8 + $0x280] sm:$0xff]
        %v6068 = vld [vmem:[#allocation8 + $0x288] sm:$0xff]
        %v6069 = vld [vmem:[#allocation8 + $0x290] sm:$0xff]
        %v6070 = vld [vmem:[#allocation8 + $0x298] sm:$0xff]
        %v6071 = vld [vmem:[#allocation8 + $0x2a0] sm:$0xff]
        %v6072 = vld [vmem:[#allocation8 + $0x2a8] sm:$0xff]
        %v6073 = vld [vmem:[#allocation8 + $0x2b0] sm:$0xff]
        %v6074 = vld [vmem:[#allocation8 + $0x2b8] sm:$0xff]
        %v6075 = vld [vmem:[#allocation8 + $0x2c0] sm:$0xff]
        %v6076 = vld [vmem:[#allocation8 + $0x2c8] sm:$0xff]
        %v6077 = vld [vmem:[#allocation8 + $0x2d0] sm:$0xff]
        %v6078 = vld [vmem:[#allocation8 + $0x2d8] sm:$0xff]
        %v6079 = vld [vmem:[#allocation8 + $0x2e0] sm:$0xff]
        %v6080 = vld [vmem:[#allocation8 + $0x2e8] sm:$0xff]
        %v6081 = vld [vmem:[#allocation8 + $0x2f0] sm:$0xff]
        %v6082 = vld [vmem:[#allocation8 + $0x2f8] sm:$0xff]
        %v6083 = vld [vmem:[#allocation8 + $0x300] sm:$0xff]
        %v6084 = vld [vmem:[#allocation8 + $0x308] sm:$0xff]
        %v6085 = vld [vmem:[#allocation8 + $0x310] sm:$0xff]
        %v6086 = vld [vmem:[#allocation8 + $0x318] sm:$0xff]
        %v6087 = vld [vmem:[#allocation8 + $0x320] sm:$0xff]
        %v6088 = vld [vmem:[#allocation8 + $0x328] sm:$0xff]
        %v6089 = vld [vmem:[#allocation8 + $0x330] sm:$0xff]
        %v6090 = vld [vmem:[#allocation8 + $0x338] sm:$0xff]
        %v6091 = vld [vmem:[#allocation8 + $0x340] sm:$0xff]
        %v6092 = vld [vmem:[#allocation8 + $0x348] sm:$0xff]
        %v6093 = vld [vmem:[#allocation8 + $0x350] sm:$0xff]
        %v6094 = vld [vmem:[#allocation8 + $0x358] sm:$0xff]
        %v6095 = vld [vmem:[#allocation8 + $0x360] sm:$0xff]
        %v6096 = vld [vmem:[#allocation8 + $0x368] sm:$0xff]
        %v6097 = vld [vmem:[#allocation8 + $0x370] sm:$0xff]
        %v6098 = vld [vmem:[#allocation8 + $0x378] sm:$0xff]
        %v6099 = vld [vmem:[#allocation8 + $0x380] sm:$0xff]
        %v6100 = vld [vmem:[#allocation8 + $0x388] sm:$0xff]
        %v6101 = vld [vmem:[#allocation8 + $0x390] sm:$0xff]
        %v6102 = vld [vmem:[#allocation8 + $0x398] sm:$0xff]
        %v6103 = vld [vmem:[#allocation8 + $0x3a0] sm:$0xff]
        %v6104 = vld [vmem:[#allocation8 + $0x3a8] sm:$0xff]
        %v6105 = vld [vmem:[#allocation8 + $0x3b0] sm:$0xff]
        %v6106 = vld [vmem:[#allocation8 + $0x3b8] sm:$0xff]
        %v6107 = vld [vmem:[#allocation8 + $0x3c0] sm:$0xff]
        %v6108 = vld [vmem:[#allocation8 + $0x3c8] sm:$0xff]
        %v6109 = vld [vmem:[#allocation8 + $0x3d0] sm:$0xff]
        %v6110 = vld [vmem:[#allocation8 + $0x3d8] sm:$0xff]
        %v6111 = vld [vmem:[#allocation8 + $0x3e0] sm:$0xff]
        %v6112 = vld [vmem:[#allocation8 + $0x3e8] sm:$0xff]
        %v6113 = vld [vmem:[#allocation8 + $0x3f0] sm:$0xff]
        %v6114 = vld [vmem:[#allocation8 + $0x3f8] sm:$0xff]
        %v6115 = vld [vmem:[#allocation10] sm:$0xff]
        %v6116 = vld [vmem:[#allocation10 + $0x8] sm:$0xff]
        %v6119 = vlaneseq
        %v6120 = vshrl.u32 %v6119, 7
        %v6121 = vsub.s32 0, %v6120
        %v6122 = vrot.slane %v6115, %v6121
        %v6123 = vlaneseq
        %v6124 = vshrl.u32 %v6123, 7
        %v6125 = vsub.s32 1, %v6124
        %v6126 = vrot.slane %v6115, %v6125
        %v6127 = vlaneseq
        %v6128 = vshrl.u32 %v6127, 7
        %v6129 = vsub.s32 2, %v6128
        %v6130 = vrot.slane %v6115, %v6129
        %v6131 = vlaneseq
        %v6132 = vshrl.u32 %v6131, 7
        %v6133 = vsub.s32 3, %v6132
        %v6134 = vrot.slane %v6115, %v6133
        %v6135 = vlaneseq
        %v6136 = vshrl.u32 %v6135, 7
        %v6137 = vsub.s32 4, %v6136
        %v6138 = vrot.slane %v6115, %v6137
        %v6139 = vlaneseq
        %v6140 = vshrl.u32 %v6139, 7
        %v6141 = vsub.s32 5, %v6140
        %v6142 = vrot.slane %v6115, %v6141
        %v6143 = vlaneseq
        %v6144 = vshrl.u32 %v6143, 7
        %v6145 = vsub.s32 6, %v6144
        %v6146 = vrot.slane %v6115, %v6145
        %v6147 = vlaneseq
        %v6148 = vshrl.u32 %v6147, 7
        %v6149 = vsub.s32 7, %v6148
        %v6150 = vrot.slane %v6115, %v6149
        %v6151 = vlaneseq
        %v6152 = vshrl.u32 %v6151, 7
        %v6153 = vsub.s32 0, %v6152
        %v6154 = vrot.slane %v6116, %v6153
        %v6155 = vlaneseq
        %v6156 = vshrl.u32 %v6155, 7
        %v6157 = vsub.s32 1, %v6156
        %v6158 = vrot.slane %v6116, %v6157
        %v6159 = vlaneseq
        %v6160 = vshrl.u32 %v6159, 7
        %v6161 = vsub.s32 2, %v6160
        %v6162 = vrot.slane %v6116, %v6161
        %v6163 = vlaneseq
        %v6164 = vshrl.u32 %v6163, 7
        %v6165 = vsub.s32 3, %v6164
        %v6166 = vrot.slane %v6116, %v6165
        %v6167 = vlaneseq
        %v6168 = vshrl.u32 %v6167, 7
        %v6169 = vsub.s32 4, %v6168
        %v6170 = vrot.slane %v6116, %v6169
        %v6171 = vlaneseq
        %v6172 = vshrl.u32 %v6171, 7
        %v6173 = vsub.s32 5, %v6172
        %v6174 = vrot.slane %v6116, %v6173
        %v6175 = vlaneseq
        %v6176 = vshrl.u32 %v6175, 7
        %v6177 = vsub.s32 6, %v6176
        %v6178 = vrot.slane %v6116, %v6177
        %v6179 = vlaneseq
        %v6180 = vshrl.u32 %v6179, 7
        %v6181 = vsub.s32 7, %v6180
        %v6182 = vrot.slane %v6116, %v6181
        %v6327 = vunpack.c.l.b16 %v5987
        %v6328 = vunpack.c.h.b16 %v5987
        %v6329 = vunpack.c.l.b16 %v5988
        %v6330 = vunpack.c.h.b16 %v5988
        %v6331 = vunpack.c.l.b16 %v5989
        %v6332 = vunpack.c.h.b16 %v5989
        %v6333 = vunpack.c.l.b16 %v5990
        %v6334 = vunpack.c.h.b16 %v5990
        %v6335 = vunpack.c.l.b16 %v5991
        %v6336 = vunpack.c.h.b16 %v5991
        %v6337 = vunpack.c.l.b16 %v5992
        %v6338 = vunpack.c.h.b16 %v5992
        %v6339 = vunpack.c.l.b16 %v5993
        %v6340 = vunpack.c.h.b16 %v5993
        %v6341 = vunpack.c.l.b16 %v5994
        %v6342 = vunpack.c.h.b16 %v5994
        %v6343 = vunpack.c.l.b16 %v5995
        %v6344 = vunpack.c.h.b16 %v5995
        %v6345 = vunpack.c.l.b16 %v5996
        %v6346 = vunpack.c.h.b16 %v5996
        %v6347 = vunpack.c.l.b16 %v5997
        %v6348 = vunpack.c.h.b16 %v5997
        %v6349 = vunpack.c.l.b16 %v5998
        %v6350 = vunpack.c.h.b16 %v5998
        %v6351 = vunpack.c.l.b16 %v5999
        %v6352 = vunpack.c.h.b16 %v5999
        %v6353 = vunpack.c.l.b16 %v6000
        %v6354 = vunpack.c.h.b16 %v6000
        %v6355 = vunpack.c.l.b16 %v6001
        %v6356 = vunpack.c.h.b16 %v6001
        %v6357 = vunpack.c.l.b16 %v6002
        %v6358 = vunpack.c.h.b16 %v6002
        %v6359 = vunpack.c.l.b16 %v6003
        %v6360 = vunpack.c.h.b16 %v6003
        %v6361 = vunpack.c.l.b16 %v6004
        %v6362 = vunpack.c.h.b16 %v6004
        %v6363 = vunpack.c.l.b16 %v6005
        %v6364 = vunpack.c.h.b16 %v6005
        %v6365 = vunpack.c.l.b16 %v6006
        %v6366 = vunpack.c.h.b16 %v6006
        %v6367 = vunpack.c.l.b16 %v6007
        %v6368 = vunpack.c.h.b16 %v6007
        %v6369 = vunpack.c.l.b16 %v6008
        %v6370 = vunpack.c.h.b16 %v6008
        %v6371 = vunpack.c.l.b16 %v6009
        %v6372 = vunpack.c.h.b16 %v6009
        %v6373 = vunpack.c.l.b16 %v6010
        %v6374 = vunpack.c.h.b16 %v6010
        %v6375 = vunpack.c.l.b16 %v6011
        %v6376 = vunpack.c.h.b16 %v6011
        %v6377 = vunpack.c.l.b16 %v6012
        %v6378 = vunpack.c.h.b16 %v6012
        %v6379 = vunpack.c.l.b16 %v6013
        %v6380 = vunpack.c.h.b16 %v6013
        %v6381 = vunpack.c.l.b16 %v6014
        %v6382 = vunpack.c.h.b16 %v6014
        %v6383 = vunpack.c.l.b16 %v6015
        %v6384 = vunpack.c.h.b16 %v6015
        %v6385 = vunpack.c.l.b16 %v6016
        %v6386 = vunpack.c.h.b16 %v6016
        %v6387 = vunpack.c.l.b16 %v6017
        %v6388 = vunpack.c.h.b16 %v6017
        %v6389 = vunpack.c.l.b16 %v6018
        %v6390 = vunpack.c.h.b16 %v6018
        %v6391 = vunpack.c.l.b16 %v6019
        %v6392 = vunpack.c.h.b16 %v6019
        %v6393 = vunpack.c.l.b16 %v6020
        %v6394 = vunpack.c.h.b16 %v6020
        %v6395 = vunpack.c.l.b16 %v6021
        %v6396 = vunpack.c.h.b16 %v6021
        %v6397 = vunpack.c.l.b16 %v6022
        %v6398 = vunpack.c.h.b16 %v6022
        %v6399 = vunpack.c.l.b16 %v6023
        %v6400 = vunpack.c.h.b16 %v6023
        %v6401 = vunpack.c.l.b16 %v6024
        %v6402 = vunpack.c.h.b16 %v6024
        %v6403 = vunpack.c.l.b16 %v6025
        %v6404 = vunpack.c.h.b16 %v6025
        %v6405 = vunpack.c.l.b16 %v6026
        %v6406 = vunpack.c.h.b16 %v6026
        %v6407 = vunpack.c.l.b16 %v6027
        %v6408 = vunpack.c.h.b16 %v6027
        %v6409 = vunpack.c.l.b16 %v6028
        %v6410 = vunpack.c.h.b16 %v6028
        %v6411 = vunpack.c.l.b16 %v6029
        %v6412 = vunpack.c.h.b16 %v6029
        %v6413 = vunpack.c.l.b16 %v6030
        %v6414 = vunpack.c.h.b16 %v6030
        %v6415 = vunpack.c.l.b16 %v6031
        %v6416 = vunpack.c.h.b16 %v6031
        %v6417 = vunpack.c.l.b16 %v6032
        %v6418 = vunpack.c.h.b16 %v6032
        %v6419 = vunpack.c.l.b16 %v6033
        %v6420 = vunpack.c.h.b16 %v6033
        %v6421 = vunpack.c.l.b16 %v6034
        %v6422 = vunpack.c.h.b16 %v6034
        %v6423 = vunpack.c.l.b16 %v6035
        %v6424 = vunpack.c.h.b16 %v6035
        %v6425 = vunpack.c.l.b16 %v6036
        %v6426 = vunpack.c.h.b16 %v6036
        %v6427 = vunpack.c.l.b16 %v6037
        %v6428 = vunpack.c.h.b16 %v6037
        %v6429 = vunpack.c.l.b16 %v6038
        %v6430 = vunpack.c.h.b16 %v6038
        %v6431 = vunpack.c.l.b16 %v6039
        %v6432 = vunpack.c.h.b16 %v6039
        %v6433 = vunpack.c.l.b16 %v6040
        %v6434 = vunpack.c.h.b16 %v6040
        %v6435 = vunpack.c.l.b16 %v6041
        %v6436 = vunpack.c.h.b16 %v6041
        %v6437 = vunpack.c.l.b16 %v6042
        %v6438 = vunpack.c.h.b16 %v6042
        %v6439 = vunpack.c.l.b16 %v6043
        %v6440 = vunpack.c.h.b16 %v6043
        %v6441 = vunpack.c.l.b16 %v6044
        %v6442 = vunpack.c.h.b16 %v6044
        %v6443 = vunpack.c.l.b16 %v6045
        %v6444 = vunpack.c.h.b16 %v6045
        %v6445 = vunpack.c.l.b16 %v6046
        %v6446 = vunpack.c.h.b16 %v6046
        %v6447 = vunpack.c.l.b16 %v6047
        %v6448 = vunpack.c.h.b16 %v6047
        %v6449 = vunpack.c.l.b16 %v6048
        %v6450 = vunpack.c.h.b16 %v6048
        %v6451 = vunpack.c.l.b16 %v6049
        %v6452 = vunpack.c.h.b16 %v6049
        %v6453 = vunpack.c.l.b16 %v6050
        %v6454 = vunpack.c.h.b16 %v6050
        %v6455 = vunpack.c.l.b16 %v6051
        %v6456 = vunpack.c.h.b16 %v6051
        %v6457 = vunpack.c.l.b16 %v6052
        %v6458 = vunpack.c.h.b16 %v6052
        %v6459 = vunpack.c.l.b16 %v6053
        %v6460 = vunpack.c.h.b16 %v6053
        %v6461 = vunpack.c.l.b16 %v6054
        %v6462 = vunpack.c.h.b16 %v6054
        %v6463 = vunpack.c.l.b16 %v6055
        %v6464 = vunpack.c.h.b16 %v6055
        %v6465 = vunpack.c.l.b16 %v6056
        %v6466 = vunpack.c.h.b16 %v6056
        %v6467 = vunpack.c.l.b16 %v6057
        %v6468 = vunpack.c.h.b16 %v6057
        %v6469 = vunpack.c.l.b16 %v6058
        %v6470 = vunpack.c.h.b16 %v6058
        %v6471 = vunpack.c.l.b16 %v6059
        %v6472 = vunpack.c.h.b16 %v6059
        %v6473 = vunpack.c.l.b16 %v6060
        %v6474 = vunpack.c.h.b16 %v6060
        %v6475 = vunpack.c.l.b16 %v6061
        %v6476 = vunpack.c.h.b16 %v6061
        %v6477 = vunpack.c.l.b16 %v6062
        %v6478 = vunpack.c.h.b16 %v6062
        %v6479 = vunpack.c.l.b16 %v6063
        %v6480 = vunpack.c.h.b16 %v6063
        %v6481 = vunpack.c.l.b16 %v6064
        %v6482 = vunpack.c.h.b16 %v6064
        %v6483 = vunpack.c.l.b16 %v6065
        %v6484 = vunpack.c.h.b16 %v6065
        %v6485 = vunpack.c.l.b16 %v6066
        %v6486 = vunpack.c.h.b16 %v6066
        %v6487 = vunpack.c.l.b16 %v6067
        %v6488 = vunpack.c.h.b16 %v6067
        %v6489 = vunpack.c.l.b16 %v6068
        %v6490 = vunpack.c.h.b16 %v6068
        %v6491 = vunpack.c.l.b16 %v6069
        %v6492 = vunpack.c.h.b16 %v6069
        %v6493 = vunpack.c.l.b16 %v6070
        %v6494 = vunpack.c.h.b16 %v6070
        %v6495 = vunpack.c.l.b16 %v6071
        %v6496 = vunpack.c.h.b16 %v6071
        %v6497 = vunpack.c.l.b16 %v6072
        %v6498 = vunpack.c.h.b16 %v6072
        %v6499 = vunpack.c.l.b16 %v6073
        %v6500 = vunpack.c.h.b16 %v6073
        %v6501 = vunpack.c.l.b16 %v6074
        %v6502 = vunpack.c.h.b16 %v6074
        %v6503 = vunpack.c.l.b16 %v6075
        %v6504 = vunpack.c.h.b16 %v6075
        %v6505 = vunpack.c.l.b16 %v6076
        %v6506 = vunpack.c.h.b16 %v6076
        %v6507 = vunpack.c.l.b16 %v6077
        %v6508 = vunpack.c.h.b16 %v6077
        %v6509 = vunpack.c.l.b16 %v6078
        %v6510 = vunpack.c.h.b16 %v6078
        %v6511 = vunpack.c.l.b16 %v6079
        %v6512 = vunpack.c.h.b16 %v6079
        %v6513 = vunpack.c.l.b16 %v6080
        %v6514 = vunpack.c.h.b16 %v6080
        %v6515 = vunpack.c.l.b16 %v6081
        %v6516 = vunpack.c.h.b16 %v6081
        %v6517 = vunpack.c.l.b16 %v6082
        %v6518 = vunpack.c.h.b16 %v6082
        %v6519 = vunpack.c.l.b16 %v6083
        %v6520 = vunpack.c.h.b16 %v6083
        %v6521 = vunpack.c.l.b16 %v6084
        %v6522 = vunpack.c.h.b16 %v6084
        %v6523 = vunpack.c.l.b16 %v6085
        %v6524 = vunpack.c.h.b16 %v6085
        %v6525 = vunpack.c.l.b16 %v6086
        %v6526 = vunpack.c.h.b16 %v6086
        %v6527 = vunpack.c.l.b16 %v6087
        %v6528 = vunpack.c.h.b16 %v6087
        %v6529 = vunpack.c.l.b16 %v6088
        %v6530 = vunpack.c.h.b16 %v6088
        %v6531 = vunpack.c.l.b16 %v6089
        %v6532 = vunpack.c.h.b16 %v6089
        %v6533 = vunpack.c.l.b16 %v6090
        %v6534 = vunpack.c.h.b16 %v6090
        %v6535 = vunpack.c.l.b16 %v6091
        %v6536 = vunpack.c.h.b16 %v6091
        %v6537 = vunpack.c.l.b16 %v6092
        %v6538 = vunpack.c.h.b16 %v6092
        %v6539 = vunpack.c.l.b16 %v6093
        %v6540 = vunpack.c.h.b16 %v6093
        %v6541 = vunpack.c.l.b16 %v6094
        %v6542 = vunpack.c.h.b16 %v6094
        %v6543 = vunpack.c.l.b16 %v6095
        %v6544 = vunpack.c.h.b16 %v6095
        %v6545 = vunpack.c.l.b16 %v6096
        %v6546 = vunpack.c.h.b16 %v6096
        %v6547 = vunpack.c.l.b16 %v6097
        %v6548 = vunpack.c.h.b16 %v6097
        %v6549 = vunpack.c.l.b16 %v6098
        %v6550 = vunpack.c.h.b16 %v6098
        %v6551 = vunpack.c.l.b16 %v6099
        %v6552 = vunpack.c.h.b16 %v6099
        %v6553 = vunpack.c.l.b16 %v6100
        %v6554 = vunpack.c.h.b16 %v6100
        %v6555 = vunpack.c.l.b16 %v6101
        %v6556 = vunpack.c.h.b16 %v6101
        %v6557 = vunpack.c.l.b16 %v6102
        %v6558 = vunpack.c.h.b16 %v6102
        %v6559 = vunpack.c.l.b16 %v6103
        %v6560 = vunpack.c.h.b16 %v6103
        %v6561 = vunpack.c.l.b16 %v6104
        %v6562 = vunpack.c.h.b16 %v6104
        %v6563 = vunpack.c.l.b16 %v6105
        %v6564 = vunpack.c.h.b16 %v6105
        %v6565 = vunpack.c.l.b16 %v6106
        %v6566 = vunpack.c.h.b16 %v6106
        %v6567 = vunpack.c.l.b16 %v6107
        %v6568 = vunpack.c.h.b16 %v6107
        %v6569 = vunpack.c.l.b16 %v6108
        %v6570 = vunpack.c.h.b16 %v6108
        %v6571 = vunpack.c.l.b16 %v6109
        %v6572 = vunpack.c.h.b16 %v6109
        %v6573 = vunpack.c.l.b16 %v6110
        %v6574 = vunpack.c.h.b16 %v6110
        %v6575 = vunpack.c.l.b16 %v6111
        %v6576 = vunpack.c.h.b16 %v6111
        %v6577 = vunpack.c.l.b16 %v6112
        %v6578 = vunpack.c.h.b16 %v6112
        %v6579 = vunpack.c.l.b16 %v6113
        %v6580 = vunpack.c.h.b16 %v6113
        %v6581 = vunpack.c.l.b16 %v6114
        %v6582 = vunpack.c.h.b16 %v6114
        %v6583 = vpack.c.b16 %v6343, %v6327
        %v6584 = vpack.c.b16 %v6344, %v6328
        %v6585 = vpack.c.b16 %v6345, %v6329
        %v6586 = vpack.c.b16 %v6346, %v6330
        %v6587 = vpack.c.b16 %v6347, %v6331
        %v6588 = vpack.c.b16 %v6348, %v6332
        %v6589 = vpack.c.b16 %v6349, %v6333
        %v6590 = vpack.c.b16 %v6350, %v6334
        %v6591 = vpack.c.b16 %v6351, %v6335
        %v6592 = vpack.c.b16 %v6352, %v6336
        %v6593 = vpack.c.b16 %v6353, %v6337
        %v6594 = vpack.c.b16 %v6354, %v6338
        %v6595 = vpack.c.b16 %v6355, %v6339
        %v6596 = vpack.c.b16 %v6356, %v6340
        %v6597 = vpack.c.b16 %v6357, %v6341
        %v6598 = vpack.c.b16 %v6358, %v6342
        %v6599 = vpack.c.b16 %v6375, %v6359
        %v6600 = vpack.c.b16 %v6376, %v6360
        %v6601 = vpack.c.b16 %v6377, %v6361
        %v6602 = vpack.c.b16 %v6378, %v6362
        %v6603 = vpack.c.b16 %v6379, %v6363
        %v6604 = vpack.c.b16 %v6380, %v6364
        %v6605 = vpack.c.b16 %v6381, %v6365
        %v6606 = vpack.c.b16 %v6382, %v6366
        %v6607 = vpack.c.b16 %v6383, %v6367
        %v6608 = vpack.c.b16 %v6384, %v6368
        %v6609 = vpack.c.b16 %v6385, %v6369
        %v6610 = vpack.c.b16 %v6386, %v6370
        %v6611 = vpack.c.b16 %v6387, %v6371
        %v6612 = vpack.c.b16 %v6388, %v6372
        %v6613 = vpack.c.b16 %v6389, %v6373
        %v6614 = vpack.c.b16 %v6390, %v6374
        %v6615 = vpack.c.b16 %v6407, %v6391
        %v6616 = vpack.c.b16 %v6408, %v6392
        %v6617 = vpack.c.b16 %v6409, %v6393
        %v6618 = vpack.c.b16 %v6410, %v6394
        %v6619 = vpack.c.b16 %v6411, %v6395
        %v6620 = vpack.c.b16 %v6412, %v6396
        %v6621 = vpack.c.b16 %v6413, %v6397
        %v6622 = vpack.c.b16 %v6414, %v6398
        %v6623 = vpack.c.b16 %v6415, %v6399
        %v6624 = vpack.c.b16 %v6416, %v6400
        %v6625 = vpack.c.b16 %v6417, %v6401
        %v6626 = vpack.c.b16 %v6418, %v6402
        %v6627 = vpack.c.b16 %v6419, %v6403
        %v6628 = vpack.c.b16 %v6420, %v6404
        %v6629 = vpack.c.b16 %v6421, %v6405
        %v6630 = vpack.c.b16 %v6422, %v6406
        %v6631 = vpack.c.b16 %v6439, %v6423
        %v6632 = vpack.c.b16 %v6440, %v6424
        %v6633 = vpack.c.b16 %v6441, %v6425
        %v6634 = vpack.c.b16 %v6442, %v6426
        %v6635 = vpack.c.b16 %v6443, %v6427
        %v6636 = vpack.c.b16 %v6444, %v6428
        %v6637 = vpack.c.b16 %v6445, %v6429
        %v6638 = vpack.c.b16 %v6446, %v6430
        %v6639 = vpack.c.b16 %v6447, %v6431
        %v6640 = vpack.c.b16 %v6448, %v6432
        %v6641 = vpack.c.b16 %v6449, %v6433
        %v6642 = vpack.c.b16 %v6450, %v6434
        %v6643 = vpack.c.b16 %v6451, %v6435
        %v6644 = vpack.c.b16 %v6452, %v6436
        %v6645 = vpack.c.b16 %v6453, %v6437
        %v6646 = vpack.c.b16 %v6454, %v6438
        %v6647 = vpack.c.b16 %v6471, %v6455
        %v6648 = vpack.c.b16 %v6472, %v6456
        %v6649 = vpack.c.b16 %v6473, %v6457
        %v6650 = vpack.c.b16 %v6474, %v6458
        %v6651 = vpack.c.b16 %v6475, %v6459
        %v6652 = vpack.c.b16 %v6476, %v6460
        %v6653 = vpack.c.b16 %v6477, %v6461
        %v6654 = vpack.c.b16 %v6478, %v6462
        %v6655 = vpack.c.b16 %v6479, %v6463
        %v6656 = vpack.c.b16 %v6480, %v6464
        %v6657 = vpack.c.b16 %v6481, %v6465
        %v6658 = vpack.c.b16 %v6482, %v6466
        %v6659 = vpack.c.b16 %v6483, %v6467
        %v6660 = vpack.c.b16 %v6484, %v6468
        %v6661 = vpack.c.b16 %v6485, %v6469
        %v6662 = vpack.c.b16 %v6486, %v6470
        %v6663 = vpack.c.b16 %v6503, %v6487
        %v6664 = vpack.c.b16 %v6504, %v6488
        %v6665 = vpack.c.b16 %v6505, %v6489
        %v6666 = vpack.c.b16 %v6506, %v6490
        %v6667 = vpack.c.b16 %v6507, %v6491
        %v6668 = vpack.c.b16 %v6508, %v6492
        %v6669 = vpack.c.b16 %v6509, %v6493
        %v6670 = vpack.c.b16 %v6510, %v6494
        %v6671 = vpack.c.b16 %v6511, %v6495
        %v6672 = vpack.c.b16 %v6512, %v6496
        %v6673 = vpack.c.b16 %v6513, %v6497
        %v6674 = vpack.c.b16 %v6514, %v6498
        %v6675 = vpack.c.b16 %v6515, %v6499
        %v6676 = vpack.c.b16 %v6516, %v6500
        %v6677 = vpack.c.b16 %v6517, %v6501
        %v6678 = vpack.c.b16 %v6518, %v6502
        %v6679 = vpack.c.b16 %v6535, %v6519
        %v6680 = vpack.c.b16 %v6536, %v6520
        %v6681 = vpack.c.b16 %v6537, %v6521
        %v6682 = vpack.c.b16 %v6538, %v6522
        %v6683 = vpack.c.b16 %v6539, %v6523
        %v6684 = vpack.c.b16 %v6540, %v6524
        %v6685 = vpack.c.b16 %v6541, %v6525
        %v6686 = vpack.c.b16 %v6542, %v6526
        %v6687 = vpack.c.b16 %v6543, %v6527
        %v6688 = vpack.c.b16 %v6544, %v6528
        %v6689 = vpack.c.b16 %v6545, %v6529
        %v6690 = vpack.c.b16 %v6546, %v6530
        %v6691 = vpack.c.b16 %v6547, %v6531
        %v6692 = vpack.c.b16 %v6548, %v6532
        %v6693 = vpack.c.b16 %v6549, %v6533
        %v6694 = vpack.c.b16 %v6550, %v6534
        %v6695 = vpack.c.b16 %v6567, %v6551
        %v6696 = vpack.c.b16 %v6568, %v6552
        %v6697 = vpack.c.b16 %v6569, %v6553
        %v6698 = vpack.c.b16 %v6570, %v6554
        %v6699 = vpack.c.b16 %v6571, %v6555
        %v6700 = vpack.c.b16 %v6572, %v6556
        %v6701 = vpack.c.b16 %v6573, %v6557
        %v6702 = vpack.c.b16 %v6574, %v6558
        %v6703 = vpack.c.b16 %v6575, %v6559
        %v6704 = vpack.c.b16 %v6576, %v6560
        %v6705 = vpack.c.b16 %v6577, %v6561
        %v6706 = vpack.c.b16 %v6578, %v6562
        %v6707 = vpack.c.b16 %v6579, %v6563
        %v6708 = vpack.c.b16 %v6580, %v6564
        %v6709 = vpack.c.b16 %v6581, %v6565
        %v6710 = vpack.c.b16 %v6582, %v6566
        %6839 = vmatprep.subr.bf16.mxu0 %v6584
        %6840 = vmatpush1.bf16.msra.mxu0 %v6583
        %6841 = vmatprep.subr.bf16.mxu0 %v6600
        %6842 = vmatpush1.bf16.msra.mxu0 %v6599
        %6843 = vmatprep.subr.bf16.mxu0 %v6616
        %6844 = vmatpush1.bf16.msra.mxu0 %v6615
        %6845 = vmatprep.subr.bf16.mxu0 %v6632
        %6846 = vmatpush1.bf16.msra.mxu0 %v6631
        %6847 = vmatprep.subr.bf16.mxu0 %v6648
        %6848 = vmatpush1.bf16.msra.mxu0 %v6647
        %6849 = vmatprep.subr.bf16.mxu0 %v6664
        %6850 = vmatpush1.bf16.msra.mxu0 %v6663
        %6851 = vmatprep.subr.bf16.mxu0 %v6680
        %6852 = vmatpush1.bf16.msra.mxu0 %v6679
        %6853 = vmatprep.subr.bf16.mxu0 %v6696
        %6854 = vmatpush1.bf16.msra.mxu0 %v6695
        %6855 = vmatprep.subr.bf16.mxu0 0
        %6856 = vmatpush1.bf16.msra.mxu0 0
        %6857 = vmatprep.subr.bf16.mxu0 0
        %6858 = vmatpush1.bf16.msra.mxu0 0
        %6859 = vmatprep.subr.bf16.mxu0 0
        %6860 = vmatpush1.bf16.msra.mxu0 0
        %6861 = vmatprep.subr.bf16.mxu0 0
        %6862 = vmatpush1.bf16.msra.mxu0 0
        %6863 = vmatprep.subr.bf16.mxu0 0
        %6864 = vmatpush1.bf16.msra.mxu0 0
        %6865 = vmatprep.subr.bf16.mxu0 0
        %6866 = vmatpush1.bf16.msra.mxu0 0
        %6867 = vmatprep.subr.bf16.mxu0 0
        %6868 = vmatpush1.bf16.msra.mxu0 0
        %6869 = vmatprep.subr.bf16.mxu0 0
        %6870 = vmatpush1.bf16.msra.mxu0 0
        %6871 = vmatprep.mubr.bf16.mxu0 0
        %6872 = vmatmul.mubr.bf16.gmra.mrb[0].mxu0 %v5979
        %v6873 = vpop.f32.mrb[0].mxu0
        %v6874 = vadd.f32 %v6122, %v6873
        %v6875 = vpop.f32.mrb[0].mxu0
        %v6876 = vadd.f32 %v6126, %v6875
        %v6877 = vpop.f32.mrb[0].mxu0
        %v6878 = vadd.f32 %v6122, %v6877
        %v6879 = vpop.f32.mrb[0].mxu0
        %v6880 = vadd.f32 %v6126, %v6879
        %6881 = vmatprep.mubr.bf16.mxu0 0
        %6882 = vmatmul.mubr.bf16.gmra.mrb[0].mxu0 %v5980
        %v6883 = vpop.f32.mrb[0].mxu0
        %v6884 = vadd.f32 %v6122, %v6883
        %v6885 = vpop.f32.mrb[0].mxu0
        %v6886 = vadd.f32 %v6126, %v6885
        %v6887 = vpop.f32.mrb[0].mxu0
        %v6888 = vadd.f32 %v6122, %v6887
        %v6889 = vpop.f32.mrb[0].mxu0
        %v6890 = vadd.f32 %v6126, %v6889
        %6891 = vmatprep.mubr.bf16.mxu0 0
        %6892 = vmatmul.mubr.bf16.gmra.mrb[0].mxu0 %v5981
        %v6893 = vpop.f32.mrb[0].mxu0
        %v6894 = vadd.f32 %v6122, %v6893
        %v6895 = vpop.f32.mrb[0].mxu0
        %v6896 = vadd.f32 %v6126, %v6895
        %v6897 = vpop.f32.mrb[0].mxu0
        %v6898 = vadd.f32 %v6122, %v6897
        %v6899 = vpop.f32.mrb[0].mxu0
        %v6900 = vadd.f32 %v6126, %v6899
        %6901 = vmatprep.mubr.bf16.mxu0 0
        %6902 = vmatmul.mubr.bf16.gmra.mrb[0].mxu0 %v5982
        %v6903 = vpop.f32.mrb[0].mxu0
        %v6904 = vadd.f32 %v6122, %v6903
        %v6905 = vpop.f32.mrb[0].mxu0
        %v6906 = vadd.f32 %v6126, %v6905
        %v6907 = vpop.f32.mrb[0].mxu0
        %v6908 = vadd.f32 %v6122, %v6907
        %v6909 = vpop.f32.mrb[0].mxu0
        %v6910 = vadd.f32 %v6126, %v6909
        %6911 = vmatprep.mubr.bf16.mxu0 0
        %6912 = vmatmul.mubr.bf16.gmra.mrb[0].mxu0 %v5983
        %v6913 = vpop.f32.mrb[0].mxu0
        %v6914 = vadd.f32 %v6122, %v6913
        %v6915 = vpop.f32.mrb[0].mxu0
        %v6916 = vadd.f32 %v6126, %v6915
        %v6917 = vpop.f32.mrb[0].mxu0
        %v6918 = vadd.f32 %v6122, %v6917
        %v6919 = vpop.f32.mrb[0].mxu0
        %v6920 = vadd.f32 %v6126, %v6919
        %6921 = vmatprep.mubr.bf16.mxu0 0
        %6922 = vmatmul.mubr.bf16.gmra.mrb[0].mxu0 %v5984
        %v6923 = vpop.f32.mrb[0].mxu0
        %v6924 = vadd.f32 %v6122, %v6923
        %v6925 = vpop.f32.mrb[0].mxu0
        %v6926 = vadd.f32 %v6126, %v6925
        %v6927 = vpop.f32.mrb[0].mxu0
        %v6928 = vadd.f32 %v6122, %v6927
        %v6929 = vpop.f32.mrb[0].mxu0
        %v6930 = vadd.f32 %v6126, %v6929
        %6931 = vmatprep.mubr.bf16.mxu0 0
        %6932 = vmatmul.mubr.bf16.gmra.mrb[0].mxu0 %v5985
        %v6933 = vpop.f32.mrb[0].mxu0
        %v6934 = vadd.f32 %v6122, %v6933
        %v6935 = vpop.f32.mrb[0].mxu0
        %v6936 = vadd.f32 %v6126, %v6935
        %v6937 = vpop.f32.mrb[0].mxu0
        %v6938 = vadd.f32 %v6122, %v6937
        %v6939 = vpop.f32.mrb[0].mxu0
        %v6940 = vadd.f32 %v6126, %v6939
        %6941 = vmatprep.mubr.bf16.mxu0 0
        %6942 = vmatmul.mubr.bf16.gmra.mrb[0].mxu0 %v5986
        %v6943 = vpop.f32.mrb[0].mxu0
        %v6944 = vadd.f32 %v6122, %v6943
        %v6945 = vpop.f32.mrb[0].mxu0
        %v6946 = vadd.f32 %v6126, %v6945
        %v6947 = vpop.f32.mrb[0].mxu0
        %v6948 = vadd.f32 %v6122, %v6947
        %v6949 = vpop.f32.mrb[0].mxu0
        %v6950 = vadd.f32 %v6126, %v6949
        %6951 = vdwg.mxu0
        %6952 = vmatprep.subr.bf16.mxu0 %v6586
        %6953 = vmatpush1.bf16.msra.mxu0 %v6585
        %6954 = vmatprep.subr.bf16.mxu0 %v6602
        %6955 = vmatpush1.bf16.msra.mxu0 %v6601
        %6956 = vmatprep.subr.bf16.mxu0 %v6618
        %6957 = vmatpush1.bf16.msra.mxu0 %v6617
        %6958 = vmatprep.subr.bf16.mxu0 %v6634
        %6959 = vmatpush1.bf16.msra.mxu0 %v6633
        %6960 = vmatprep.subr.bf16.mxu0 %v6650
        %6961 = vmatpush1.bf16.msra.mxu0 %v6649
        %6962 = vmatprep.subr.bf16.mxu0 %v6666
        %6963 = vmatpush1.bf16.msra.mxu0 %v6665
        %6964 = vmatprep.subr.bf16.mxu0 %v6682
        %6965 = vmatpush1.bf16.msra.mxu0 %v6681
        %6966 = vmatprep.subr.bf16.mxu0 %v6698
        %6967 = vmatpush1.bf16.msra.mxu0 %v6697
        %6968 = vmatprep.subr.bf16.mxu0 0
        %6969 = vmatpush1.bf16.msra.mxu0 0
        %6970 = vmatprep.subr.bf16.mxu0 0
        %6971 = vmatpush1.bf16.msra.mxu0 0
        %6972 = vmatprep.subr.bf16.mxu0 0
        %6973 = vmatpush1.bf16.msra.mxu0 0
        %6974 = vmatprep.subr.bf16.mxu0 0
        %6975 = vmatpush1.bf16.msra.mxu0 0
        %6976 = vmatprep.subr.bf16.mxu0 0
        %6977 = vmatpush1.bf16.msra.mxu0 0
        %6978 = vmatprep.subr.bf16.mxu0 0
        %6979 = vmatpush1.bf16.msra.mxu0 0
        %6980 = vmatprep.subr.bf16.mxu0 0
        %6981 = vmatpush1.bf16.msra.mxu0 0
        %6982 = vmatprep.subr.bf16.mxu0 0
        %6983 = vmatpush1.bf16.msra.mxu0 0
        %6984 = vmatprep.mubr.bf16.mxu0 0
        %6985 = vmatmul.mubr.bf16.gmra.mrb[0].mxu0 %v5979
        %v6986 = vpop.f32.mrb[0].mxu0
        %v6987 = vadd.f32 %v6130, %v6986
        %v6988 = vpop.f32.mrb[0].mxu0
        %v6989 = vadd.f32 %v6134, %v6988
        %v6990 = vpop.f32.mrb[0].mxu0
        %v6991 = vadd.f32 %v6130, %v6990
        %v6992 = vpop.f32.mrb[0].mxu0
        %v6993 = vadd.f32 %v6134, %v6992
        %6994 = vmatprep.mubr.bf16.mxu0 0
        %6995 = vmatmul.mubr.bf16.gmra.mrb[0].mxu0 %v5980
        %v6996 = vpop.f32.mrb[0].mxu0
        %v6997 = vadd.f32 %v6130, %v6996
        %v6998 = vpop.f32.mrb[0].mxu0
        %v6999 = vadd.f32 %v6134, %v6998
        %v7000 = vpop.f32.mrb[0].mxu0
        %v7001 = vadd.f32 %v6130, %v7000
        %v7002 = vpop.f32.mrb[0].mxu0
        %v7003 = vadd.f32 %v6134, %v7002
        %7004 = vmatprep.mubr.bf16.mxu0 0
        %7005 = vmatmul.mubr.bf16.gmra.mrb[0].mxu0 %v5981
        %v7006 = vpop.f32.mrb[0].mxu0
        %v7007 = vadd.f32 %v6130, %v7006
        %v7008 = vpop.f32.mrb[0].mxu0
        %v7009 = vadd.f32 %v6134, %v7008
        %v7010 = vpop.f32.mrb[0].mxu0
        %v7011 = vadd.f32 %v6130, %v7010
        %v7012 = vpop.f32.mrb[0].mxu0
        %v7013 = vadd.f32 %v6134, %v7012
        %7014 = vmatprep.mubr.bf16.mxu0 0
        %7015 = vmatmul.mubr.bf16.gmra.mrb[0].mxu0 %v5982
        %v7016 = vpop.f32.mrb[0].mxu0
        %v7017 = vadd.f32 %v6130, %v7016
        %v7018 = vpop.f32.mrb[0].mxu0
        %v7019 = vadd.f32 %v6134, %v7018
        %v7020 = vpop.f32.mrb[0].mxu0
        %v7021 = vadd.f32 %v6130, %v7020
        %v7022 = vpop.f32.mrb[0].mxu0
        %v7023 = vadd.f32 %v6134, %v7022
        %7024 = vmatprep.mubr.bf16.mxu0 0
        %7025 = vmatmul.mubr.bf16.gmra.mrb[0].mxu0 %v5983
        %v7026 = vpop.f32.mrb[0].mxu0
        %v7027 = vadd.f32 %v6130, %v7026
        %v7028 = vpop.f32.mrb[0].mxu0
        %v7029 = vadd.f32 %v6134, %v7028
        %v7030 = vpop.f32.mrb[0].mxu0
        %v7031 = vadd.f32 %v6130, %v7030
        %v7032 = vpop.f32.mrb[0].mxu0
        %v7033 = vadd.f32 %v6134, %v7032
        %7034 = vmatprep.mubr.bf16.mxu0 0
        %7035 = vmatmul.mubr.bf16.gmra.mrb[0].mxu0 %v5984
        %v7036 = vpop.f32.mrb[0].mxu0
        %v7037 = vadd.f32 %v6130, %v7036
        %v7038 = vpop.f32.mrb[0].mxu0
        %v7039 = vadd.f32 %v6134, %v7038
        %v7040 = vpop.f32.mrb[0].mxu0
        %v7041 = vadd.f32 %v6130, %v7040
        %v7042 = vpop.f32.mrb[0].mxu0
        %v7043 = vadd.f32 %v6134, %v7042
        %7044 = vmatprep.mubr.bf16.mxu0 0
        %7045 = vmatmul.mubr.bf16.gmra.mrb[0].mxu0 %v5985
        %v7046 = vpop.f32.mrb[0].mxu0
        %v7047 = vadd.f32 %v6130, %v7046
        %v7048 = vpop.f32.mrb[0].mxu0
        %v7049 = vadd.f32 %v6134, %v7048
        %v7050 = vpop.f32.mrb[0].mxu0
        %v7051 = vadd.f32 %v6130, %v7050
        %v7052 = vpop.f32.mrb[0].mxu0
        %v7053 = vadd.f32 %v6134, %v7052
        %7054 = vmatprep.mubr.bf16.mxu0 0
        %7055 = vmatmul.mubr.bf16.gmra.mrb[0].mxu0 %v5986
        %v7056 = vpop.f32.mrb[0].mxu0
        %v7057 = vadd.f32 %v6130, %v7056
        %v7058 = vpop.f32.mrb[0].mxu0
        %v7059 = vadd.f32 %v6134, %v7058
        %v7060 = vpop.f32.mrb[0].mxu0
        %v7061 = vadd.f32 %v6130, %v7060
        %v7062 = vpop.f32.mrb[0].mxu0
        %v7063 = vadd.f32 %v6134, %v7062
        %7064 = vdwg.mxu0
        %7065 = vmatprep.subr.bf16.mxu0 %v6588
        %7066 = vmatpush1.bf16.msra.mxu0 %v6587
        %7067 = vmatprep.subr.bf16.mxu0 %v6604
        %7068 = vmatpush1.bf16.msra.mxu0 %v6603
        %7069 = vmatprep.subr.bf16.mxu0 %v6620
        %7070 = vmatpush1.bf16.msra.mxu0 %v6619
        %7071 = vmatprep.subr.bf16.mxu0 %v6636
        %7072 = vmatpush1.bf16.msra.mxu0 %v6635
        %7073 = vmatprep.subr.bf16.mxu0 %v6652
        %7074 = vmatpush1.bf16.msra.mxu0 %v6651
        %7075 = vmatprep.subr.bf16.mxu0 %v6668
        %7076 = vmatpush1.bf16.msra.mxu0 %v6667
        %7077 = vmatprep.subr.bf16.mxu0 %v6684
        %7078 = vmatpush1.bf16.msra.mxu0 %v6683
        %7079 = vmatprep.subr.bf16.mxu0 %v6700
        %7080 = vmatpush1.bf16.msra.mxu0 %v6699
        %7081 = vmatprep.subr.bf16.mxu0 0
        %7082 = vmatpush1.bf16.msra.mxu0 0
        %7083 = vmatprep.subr.bf16.mxu0 0
        %7084 = vmatpush1.bf16.msra.mxu0 0
        %7085 = vmatprep.subr.bf16.mxu0 0
        %7086 = vmatpush1.bf16.msra.mxu0 0
        %7087 = vmatprep.subr.bf16.mxu0 0
        %7088 = vmatpush1.bf16.msra.mxu0 0
        %7089 = vmatprep.subr.bf16.mxu0 0
        %7090 = vmatpush1.bf16.msra.mxu0 0
        %7091 = vmatprep.subr.bf16.mxu0 0
        %7092 = vmatpush1.bf16.msra.mxu0 0
        %7093 = vmatprep.subr.bf16.mxu0 0
        %7094 = vmatpush1.bf16.msra.mxu0 0
        %7095 = vmatprep.subr.bf16.mxu0 0
        %7096 = vmatpush1.bf16.msra.mxu0 0
        %7097 = vmatprep.mubr.bf16.mxu0 0
        %7098 = vmatmul.mubr.bf16.gmra.mrb[0].mxu0 %v5979
        %v7099 = vpop.f32.mrb[0].mxu0
        %v7100 = vadd.f32 %v6138, %v7099
        %v7101 = vpop.f32.mrb[0].mxu0
        %v7102 = vadd.f32 %v6142, %v7101
        %v7103 = vpop.f32.mrb[0].mxu0
        %v7104 = vadd.f32 %v6138, %v7103
        %v7105 = vpop.f32.mrb[0].mxu0
        %v7106 = vadd.f32 %v6142, %v7105
        %7107 = vmatprep.mubr.bf16.mxu0 0
        %7108 = vmatmul.mubr.bf16.gmra.mrb[0].mxu0 %v5980
        %v7109 = vpop.f32.mrb[0].mxu0
        %v7110 = vadd.f32 %v6138, %v7109
        %v7111 = vpop.f32.mrb[0].mxu0
        %v7112 = vadd.f32 %v6142, %v7111
        %v7113 = vpop.f32.mrb[0].mxu0
        %v7114 = vadd.f32 %v6138, %v7113
        %v7115 = vpop.f32.mrb[0].mxu0
        %v7116 = vadd.f32 %v6142, %v7115
        %7117 = vmatprep.mubr.bf16.mxu0 0
        %7118 = vmatmul.mubr.bf16.gmra.mrb[0].mxu0 %v5981
        %v7119 = vpop.f32.mrb[0].mxu0
        %v7120 = vadd.f32 %v6138, %v7119
        %v7121 = vpop.f32.mrb[0].mxu0
        %v7122 = vadd.f32 %v6142, %v7121
        %v7123 = vpop.f32.mrb[0].mxu0
        %v7124 = vadd.f32 %v6138, %v7123
        %v7125 = vpop.f32.mrb[0].mxu0
        %v7126 = vadd.f32 %v6142, %v7125
        %7127 = vmatprep.mubr.bf16.mxu0 0
        %7128 = vmatmul.mubr.bf16.gmra.mrb[0].mxu0 %v5982
        %v7129 = vpop.f32.mrb[0].mxu0
        %v7130 = vadd.f32 %v6138, %v7129
        %v7131 = vpop.f32.mrb[0].mxu0
        %v7132 = vadd.f32 %v6142, %v7131
        %v7133 = vpop.f32.mrb[0].mxu0
        %v7134 = vadd.f32 %v6138, %v7133
        %v7135 = vpop.f32.mrb[0].mxu0
        %v7136 = vadd.f32 %v6142, %v7135
        %7137 = vmatprep.mubr.bf16.mxu0 0
        %7138 = vmatmul.mubr.bf16.gmra.mrb[0].mxu0 %v5983
        %v7139 = vpop.f32.mrb[0].mxu0
        %v7140 = vadd.f32 %v6138, %v7139
        %v7141 = vpop.f32.mrb[0].mxu0
        %v7142 = vadd.f32 %v6142, %v7141
        %v7143 = vpop.f32.mrb[0].mxu0
        %v7144 = vadd.f32 %v6138, %v7143
        %v7145 = vpop.f32.mrb[0].mxu0
        %v7146 = vadd.f32 %v6142, %v7145
        %7147 = vmatprep.mubr.bf16.mxu0 0
        %7148 = vmatmul.mubr.bf16.gmra.mrb[0].mxu0 %v5984
        %v7149 = vpop.f32.mrb[0].mxu0
        %v7150 = vadd.f32 %v6138, %v7149
        %v7151 = vpop.f32.mrb[0].mxu0
        %v7152 = vadd.f32 %v6142, %v7151
        %v7153 = vpop.f32.mrb[0].mxu0
        %v7154 = vadd.f32 %v6138, %v7153
        %v7155 = vpop.f32.mrb[0].mxu0
        %v7156 = vadd.f32 %v6142, %v7155
        %7157 = vmatprep.mubr.bf16.mxu0 0
        %7158 = vmatmul.mubr.bf16.gmra.mrb[0].mxu0 %v5985
        %v7159 = vpop.f32.mrb[0].mxu0
        %v7160 = vadd.f32 %v6138, %v7159
        %v7161 = vpop.f32.mrb[0].mxu0
        %v7162 = vadd.f32 %v6142, %v7161
        %v7163 = vpop.f32.mrb[0].mxu0
        %v7164 = vadd.f32 %v6138, %v7163
        %v7165 = vpop.f32.mrb[0].mxu0
        %v7166 = vadd.f32 %v6142, %v7165
        %7167 = vmatprep.mubr.bf16.mxu0 0
        %7168 = vmatmul.mubr.bf16.gmra.mrb[0].mxu0 %v5986
        %v7169 = vpop.f32.mrb[0].mxu0
        %v7170 = vadd.f32 %v6138, %v7169
        %v7171 = vpop.f32.mrb[0].mxu0
        %v7172 = vadd.f32 %v6142, %v7171
        %v7173 = vpop.f32.mrb[0].mxu0
        %v7174 = vadd.f32 %v6138, %v7173
        %v7175 = vpop.f32.mrb[0].mxu0
        %v7176 = vadd.f32 %v6142, %v7175
        %7177 = vdwg.mxu0
        %7178 = vmatprep.subr.bf16.mxu0 %v6590
        %7179 = vmatpush1.bf16.msra.mxu0 %v6589
        %7180 = vmatprep.subr.bf16.mxu0 %v6606
        %7181 = vmatpush1.bf16.msra.mxu0 %v6605
        %7182 = vmatprep.subr.bf16.mxu0 %v6622
        %7183 = vmatpush1.bf16.msra.mxu0 %v6621
        %7184 = vmatprep.subr.bf16.mxu0 %v6638
        %7185 = vmatpush1.bf16.msra.mxu0 %v6637
        %7186 = vmatprep.subr.bf16.mxu0 %v6654
        %7187 = vmatpush1.bf16.msra.mxu0 %v6653
        %7188 = vmatprep.subr.bf16.mxu0 %v6670
        %7189 = vmatpush1.bf16.msra.mxu0 %v6669
        %7190 = vmatprep.subr.bf16.mxu0 %v6686
        %7191 = vmatpush1.bf16.msra.mxu0 %v6685
        %7192 = vmatprep.subr.bf16.mxu0 %v6702
        %7193 = vmatpush1.bf16.msra.mxu0 %v6701
        %7194 = vmatprep.subr.bf16.mxu0 0
        %7195 = vmatpush1.bf16.msra.mxu0 0
        %7196 = vmatprep.subr.bf16.mxu0 0
        %7197 = vmatpush1.bf16.msra.mxu0 0
        %7198 = vmatprep.subr.bf16.mxu0 0
        %7199 = vmatpush1.bf16.msra.mxu0 0
        %7200 = vmatprep.subr.bf16.mxu0 0
        %7201 = vmatpush1.bf16.msra.mxu0 0
        %7202 = vmatprep.subr.bf16.mxu0 0
        %7203 = vmatpush1.bf16.msra.mxu0 0
        %7204 = vmatprep.subr.bf16.mxu0 0
        %7205 = vmatpush1.bf16.msra.mxu0 0
        %7206 = vmatprep.subr.bf16.mxu0 0
        %7207 = vmatpush1.bf16.msra.mxu0 0
        %7208 = vmatprep.subr.bf16.mxu0 0
        %7209 = vmatpush1.bf16.msra.mxu0 0
        %7210 = vmatprep.mubr.bf16.mxu0 0
        %7211 = vmatmul.mubr.bf16.gmra.mrb[0].mxu0 %v5979
        %v7212 = vpop.f32.mrb[0].mxu0
        %v7213 = vadd.f32 %v6146, %v7212
        %v7214 = vpop.f32.mrb[0].mxu0
        %v7215 = vadd.f32 %v6150, %v7214
        %v7216 = vpop.f32.mrb[0].mxu0
        %v7217 = vadd.f32 %v6146, %v7216
        %v7218 = vpop.f32.mrb[0].mxu0
        %v7219 = vadd.f32 %v6150, %v7218
        %7220 = vmatprep.mubr.bf16.mxu0 0
        %7221 = vmatmul.mubr.bf16.gmra.mrb[0].mxu0 %v5980
        %v7222 = vpop.f32.mrb[0].mxu0
        %v7223 = vadd.f32 %v6146, %v7222
        %v7224 = vpop.f32.mrb[0].mxu0
        %v7225 = vadd.f32 %v6150, %v7224
        %v7226 = vpop.f32.mrb[0].mxu0
        %v7227 = vadd.f32 %v6146, %v7226
        %v7228 = vpop.f32.mrb[0].mxu0
        %v7229 = vadd.f32 %v6150, %v7228
        %7230 = vmatprep.mubr.bf16.mxu0 0
        %7231 = vmatmul.mubr.bf16.gmra.mrb[0].mxu0 %v5981
        %v7232 = vpop.f32.mrb[0].mxu0
        %v7233 = vadd.f32 %v6146, %v7232
        %v7234 = vpop.f32.mrb[0].mxu0
        %v7235 = vadd.f32 %v6150, %v7234
        %v7236 = vpop.f32.mrb[0].mxu0
        %v7237 = vadd.f32 %v6146, %v7236
        %v7238 = vpop.f32.mrb[0].mxu0
        %v7239 = vadd.f32 %v6150, %v7238
        %7240 = vmatprep.mubr.bf16.mxu0 0
        %7241 = vmatmul.mubr.bf16.gmra.mrb[0].mxu0 %v5982
        %v7242 = vpop.f32.mrb[0].mxu0
        %v7243 = vadd.f32 %v6146, %v7242
        %v7244 = vpop.f32.mrb[0].mxu0
        %v7245 = vadd.f32 %v6150, %v7244
        %v7246 = vpop.f32.mrb[0].mxu0
        %v7247 = vadd.f32 %v6146, %v7246
        %v7248 = vpop.f32.mrb[0].mxu0
        %v7249 = vadd.f32 %v6150, %v7248
        %7250 = vmatprep.mubr.bf16.mxu0 0
        %7251 = vmatmul.mubr.bf16.gmra.mrb[0].mxu0 %v5983
        %v7252 = vpop.f32.mrb[0].mxu0
        %v7253 = vadd.f32 %v6146, %v7252
        %v7254 = vpop.f32.mrb[0].mxu0
        %v7255 = vadd.f32 %v6150, %v7254
        %v7256 = vpop.f32.mrb[0].mxu0
        %v7257 = vadd.f32 %v6146, %v7256
        %v7258 = vpop.f32.mrb[0].mxu0
        %v7259 = vadd.f32 %v6150, %v7258
        %7260 = vmatprep.mubr.bf16.mxu0 0
        %7261 = vmatmul.mubr.bf16.gmra.mrb[0].mxu0 %v5984
        %v7262 = vpop.f32.mrb[0].mxu0
        %v7263 = vadd.f32 %v6146, %v7262
        %v7264 = vpop.f32.mrb[0].mxu0
        %v7265 = vadd.f32 %v6150, %v7264
        %v7266 = vpop.f32.mrb[0].mxu0
        %v7267 = vadd.f32 %v6146, %v7266
        %v7268 = vpop.f32.mrb[0].mxu0
        %v7269 = vadd.f32 %v6150, %v7268
        %7270 = vmatprep.mubr.bf16.mxu0 0
        %7271 = vmatmul.mubr.bf16.gmra.mrb[0].mxu0 %v5985
        %v7272 = vpop.f32.mrb[0].mxu0
        %v7273 = vadd.f32 %v6146, %v7272
        %v7274 = vpop.f32.mrb[0].mxu0
        %v7275 = vadd.f32 %v6150, %v7274
        %v7276 = vpop.f32.mrb[0].mxu0
        %v7277 = vadd.f32 %v6146, %v7276
        %v7278 = vpop.f32.mrb[0].mxu0
        %v7279 = vadd.f32 %v6150, %v7278
        %7280 = vmatprep.mubr.bf16.mxu0 0
        %7281 = vmatmul.mubr.bf16.gmra.mrb[0].mxu0 %v5986
        %v7282 = vpop.f32.mrb[0].mxu0
        %v7283 = vadd.f32 %v6146, %v7282
        %v7284 = vpop.f32.mrb[0].mxu0
        %v7285 = vadd.f32 %v6150, %v7284
        %v7286 = vpop.f32.mrb[0].mxu0
        %v7287 = vadd.f32 %v6146, %v7286
        %v7288 = vpop.f32.mrb[0].mxu0
        %v7289 = vadd.f32 %v6150, %v7288
        %7290 = vdwg.mxu0
        %7291 = vmatprep.subr.bf16.mxu0 %v6592
        %7292 = vmatpush1.bf16.msra.mxu0 %v6591
        %7293 = vmatprep.subr.bf16.mxu0 %v6608
        %7294 = vmatpush1.bf16.msra.mxu0 %v6607
        %7295 = vmatprep.subr.bf16.mxu0 %v6624
        %7296 = vmatpush1.bf16.msra.mxu0 %v6623
        %7297 = vmatprep.subr.bf16.mxu0 %v6640
        %7298 = vmatpush1.bf16.msra.mxu0 %v6639
        %7299 = vmatprep.subr.bf16.mxu0 %v6656
        %7300 = vmatpush1.bf16.msra.mxu0 %v6655
        %7301 = vmatprep.subr.bf16.mxu0 %v6672
        %7302 = vmatpush1.bf16.msra.mxu0 %v6671
        %7303 = vmatprep.subr.bf16.mxu0 %v6688
        %7304 = vmatpush1.bf16.msra.mxu0 %v6687
        %7305 = vmatprep.subr.bf16.mxu0 %v6704
        %7306 = vmatpush1.bf16.msra.mxu0 %v6703
        %7307 = vmatprep.subr.bf16.mxu0 0
        %7308 = vmatpush1.bf16.msra.mxu0 0
        %7309 = vmatprep.subr.bf16.mxu0 0
        %7310 = vmatpush1.bf16.msra.mxu0 0
        %7311 = vmatprep.subr.bf16.mxu0 0
        %7312 = vmatpush1.bf16.msra.mxu0 0
        %7313 = vmatprep.subr.bf16.mxu0 0
        %7314 = vmatpush1.bf16.msra.mxu0 0
        %7315 = vmatprep.subr.bf16.mxu0 0
        %7316 = vmatpush1.bf16.msra.mxu0 0
        %7317 = vmatprep.subr.bf16.mxu0 0
        %7318 = vmatpush1.bf16.msra.mxu0 0
        %7319 = vmatprep.subr.bf16.mxu0 0
        %7320 = vmatpush1.bf16.msra.mxu0 0
        %7321 = vmatprep.subr.bf16.mxu0 0
        %7322 = vmatpush1.bf16.msra.mxu0 0
        %7323 = vmatprep.mubr.bf16.mxu0 0
        %7324 = vmatmul.mubr.bf16.gmra.mrb[0].mxu0 %v5979
        %v7325 = vpop.f32.mrb[0].mxu0
        %v7326 = vadd.f32 %v6154, %v7325
        %v7327 = vpop.f32.mrb[0].mxu0
        %v7328 = vadd.f32 %v6158, %v7327
        %v7329 = vpop.f32.mrb[0].mxu0
        %v7330 = vadd.f32 %v6154, %v7329
        %v7331 = vpop.f32.mrb[0].mxu0
        %v7332 = vadd.f32 %v6158, %v7331
        %7333 = vmatprep.mubr.bf16.mxu0 0
        %7334 = vmatmul.mubr.bf16.gmra.mrb[0].mxu0 %v5980
        %v7335 = vpop.f32.mrb[0].mxu0
        %v7336 = vadd.f32 %v6154, %v7335
        %v7337 = vpop.f32.mrb[0].mxu0
        %v7338 = vadd.f32 %v6158, %v7337
        %v7339 = vpop.f32.mrb[0].mxu0
        %v7340 = vadd.f32 %v6154, %v7339
        %v7341 = vpop.f32.mrb[0].mxu0
        %v7342 = vadd.f32 %v6158, %v7341
        %7343 = vmatprep.mubr.bf16.mxu0 0
        %7344 = vmatmul.mubr.bf16.gmra.mrb[0].mxu0 %v5981
        %v7345 = vpop.f32.mrb[0].mxu0
        %v7346 = vadd.f32 %v6154, %v7345
        %v7347 = vpop.f32.mrb[0].mxu0
        %v7348 = vadd.f32 %v6158, %v7347
        %v7349 = vpop.f32.mrb[0].mxu0
        %v7350 = vadd.f32 %v6154, %v7349
        %v7351 = vpop.f32.mrb[0].mxu0
        %v7352 = vadd.f32 %v6158, %v7351
        %7353 = vmatprep.mubr.bf16.mxu0 0
        %7354 = vmatmul.mubr.bf16.gmra.mrb[0].mxu0 %v5982
        %v7355 = vpop.f32.mrb[0].mxu0
        %v7356 = vadd.f32 %v6154, %v7355
        %v7357 = vpop.f32.mrb[0].mxu0
        %v7358 = vadd.f32 %v6158, %v7357
        %v7359 = vpop.f32.mrb[0].mxu0
        %v7360 = vadd.f32 %v6154, %v7359
        %v7361 = vpop.f32.mrb[0].mxu0
        %v7362 = vadd.f32 %v6158, %v7361
        %7363 = vmatprep.mubr.bf16.mxu0 0
        %7364 = vmatmul.mubr.bf16.gmra.mrb[0].mxu0 %v5983
        %v7365 = vpop.f32.mrb[0].mxu0
        %v7366 = vadd.f32 %v6154, %v7365
        %v7367 = vpop.f32.mrb[0].mxu0
        %v7368 = vadd.f32 %v6158, %v7367
        %v7369 = vpop.f32.mrb[0].mxu0
        %v7370 = vadd.f32 %v6154, %v7369
        %v7371 = vpop.f32.mrb[0].mxu0
        %v7372 = vadd.f32 %v6158, %v7371
        %7373 = vmatprep.mubr.bf16.mxu0 0
        %7374 = vmatmul.mubr.bf16.gmra.mrb[0].mxu0 %v5984
        %v7375 = vpop.f32.mrb[0].mxu0
        %v7376 = vadd.f32 %v6154, %v7375
        %v7377 = vpop.f32.mrb[0].mxu0
        %v7378 = vadd.f32 %v6158, %v7377
        %v7379 = vpop.f32.mrb[0].mxu0
        %v7380 = vadd.f32 %v6154, %v7379
        %v7381 = vpop.f32.mrb[0].mxu0
        %v7382 = vadd.f32 %v6158, %v7381
        %7383 = vmatprep.mubr.bf16.mxu0 0
        %7384 = vmatmul.mubr.bf16.gmra.mrb[0].mxu0 %v5985
        %v7385 = vpop.f32.mrb[0].mxu0
        %v7386 = vadd.f32 %v6154, %v7385
        %v7387 = vpop.f32.mrb[0].mxu0
        %v7388 = vadd.f32 %v6158, %v7387
        %v7389 = vpop.f32.mrb[0].mxu0
        %v7390 = vadd.f32 %v6154, %v7389
        %v7391 = vpop.f32.mrb[0].mxu0
        %v7392 = vadd.f32 %v6158, %v7391
        %7393 = vmatprep.mubr.bf16.mxu0 0
        %7394 = vmatmul.mubr.bf16.gmra.mrb[0].mxu0 %v5986
        %v7395 = vpop.f32.mrb[0].mxu0
        %v7396 = vadd.f32 %v6154, %v7395
        %v7397 = vpop.f32.mrb[0].mxu0
        %v7398 = vadd.f32 %v6158, %v7397
        %v7399 = vpop.f32.mrb[0].mxu0
        %v7400 = vadd.f32 %v6154, %v7399
        %v7401 = vpop.f32.mrb[0].mxu0
        %v7402 = vadd.f32 %v6158, %v7401
        %7403 = vdwg.mxu0
        %7404 = vmatprep.subr.bf16.mxu0 %v6594
        %7405 = vmatpush1.bf16.msra.mxu0 %v6593
        %7406 = vmatprep.subr.bf16.mxu0 %v6610
        %7407 = vmatpush1.bf16.msra.mxu0 %v6609
        %7408 = vmatprep.subr.bf16.mxu0 %v6626
        %7409 = vmatpush1.bf16.msra.mxu0 %v6625
        %7410 = vmatprep.subr.bf16.mxu0 %v6642
        %7411 = vmatpush1.bf16.msra.mxu0 %v6641
        %7412 = vmatprep.subr.bf16.mxu0 %v6658
        %7413 = vmatpush1.bf16.msra.mxu0 %v6657
        %7414 = vmatprep.subr.bf16.mxu0 %v6674
        %7415 = vmatpush1.bf16.msra.mxu0 %v6673
        %7416 = vmatprep.subr.bf16.mxu0 %v6690
        %7417 = vmatpush1.bf16.msra.mxu0 %v6689
        %7418 = vmatprep.subr.bf16.mxu0 %v6706
        %7419 = vmatpush1.bf16.msra.mxu0 %v6705
        %7420 = vmatprep.subr.bf16.mxu0 0
        %7421 = vmatpush1.bf16.msra.mxu0 0
        %7422 = vmatprep.subr.bf16.mxu0 0
        %7423 = vmatpush1.bf16.msra.mxu0 0
        %7424 = vmatprep.subr.bf16.mxu0 0
        %7425 = vmatpush1.bf16.msra.mxu0 0
        %7426 = vmatprep.subr.bf16.mxu0 0
        %7427 = vmatpush1.bf16.msra.mxu0 0
        %7428 = vmatprep.subr.bf16.mxu0 0
        %7429 = vmatpush1.bf16.msra.mxu0 0
        %7430 = vmatprep.subr.bf16.mxu0 0
        %7431 = vmatpush1.bf16.msra.mxu0 0
        %7432 = vmatprep.subr.bf16.mxu0 0
        %7433 = vmatpush1.bf16.msra.mxu0 0
        %7434 = vmatprep.subr.bf16.mxu0 0
        %7435 = vmatpush1.bf16.msra.mxu0 0
        %7436 = vmatprep.mubr.bf16.mxu0 0
        %7437 = vmatmul.mubr.bf16.gmra.mrb[0].mxu0 %v5979
        %v7438 = vpop.f32.mrb[0].mxu0
        %v7439 = vadd.f32 %v6162, %v7438
        %v7440 = vpop.f32.mrb[0].mxu0
        %v7441 = vadd.f32 %v6166, %v7440
        %v7442 = vpop.f32.mrb[0].mxu0
        %v7443 = vadd.f32 %v6162, %v7442
        %v7444 = vpop.f32.mrb[0].mxu0
        %v7445 = vadd.f32 %v6166, %v7444
        %7446 = vmatprep.mubr.bf16.mxu0 0
        %7447 = vmatmul.mubr.bf16.gmra.mrb[0].mxu0 %v5980
        %v7448 = vpop.f32.mrb[0].mxu0
        %v7449 = vadd.f32 %v6162, %v7448
        %v7450 = vpop.f32.mrb[0].mxu0
        %v7451 = vadd.f32 %v6166, %v7450
        %v7452 = vpop.f32.mrb[0].mxu0
        %v7453 = vadd.f32 %v6162, %v7452
        %v7454 = vpop.f32.mrb[0].mxu0
        %v7455 = vadd.f32 %v6166, %v7454
        %7456 = vmatprep.mubr.bf16.mxu0 0
        %7457 = vmatmul.mubr.bf16.gmra.mrb[0].mxu0 %v5981
        %v7458 = vpop.f32.mrb[0].mxu0
        %v7459 = vadd.f32 %v6162, %v7458
        %v7460 = vpop.f32.mrb[0].mxu0
        %v7461 = vadd.f32 %v6166, %v7460
        %v7462 = vpop.f32.mrb[0].mxu0
        %v7463 = vadd.f32 %v6162, %v7462
        %v7464 = vpop.f32.mrb[0].mxu0
        %v7465 = vadd.f32 %v6166, %v7464
        %7466 = vmatprep.mubr.bf16.mxu0 0
        %7467 = vmatmul.mubr.bf16.gmra.mrb[0].mxu0 %v5982
        %v7468 = vpop.f32.mrb[0].mxu0
        %v7469 = vadd.f32 %v6162, %v7468
        %v7470 = vpop.f32.mrb[0].mxu0
        %v7471 = vadd.f32 %v6166, %v7470
        %v7472 = vpop.f32.mrb[0].mxu0
        %v7473 = vadd.f32 %v6162, %v7472
        %v7474 = vpop.f32.mrb[0].mxu0
        %v7475 = vadd.f32 %v6166, %v7474
        %7476 = vmatprep.mubr.bf16.mxu0 0
        %7477 = vmatmul.mubr.bf16.gmra.mrb[0].mxu0 %v5983
        %v7478 = vpop.f32.mrb[0].mxu0
        %v7479 = vadd.f32 %v6162, %v7478
        %v7480 = vpop.f32.mrb[0].mxu0
        %v7481 = vadd.f32 %v6166, %v7480
        %v7482 = vpop.f32.mrb[0].mxu0
        %v7483 = vadd.f32 %v6162, %v7482
        %v7484 = vpop.f32.mrb[0].mxu0
        %v7485 = vadd.f32 %v6166, %v7484
        %7486 = vmatprep.mubr.bf16.mxu0 0
        %7487 = vmatmul.mubr.bf16.gmra.mrb[0].mxu0 %v5984
        %v7488 = vpop.f32.mrb[0].mxu0
        %v7489 = vadd.f32 %v6162, %v7488
        %v7490 = vpop.f32.mrb[0].mxu0
        %v7491 = vadd.f32 %v6166, %v7490
        %v7492 = vpop.f32.mrb[0].mxu0
        %v7493 = vadd.f32 %v6162, %v7492
        %v7494 = vpop.f32.mrb[0].mxu0
        %v7495 = vadd.f32 %v6166, %v7494
        %7496 = vmatprep.mubr.bf16.mxu0 0
        %7497 = vmatmul.mubr.bf16.gmra.mrb[0].mxu0 %v5985
        %v7498 = vpop.f32.mrb[0].mxu0
        %v7499 = vadd.f32 %v6162, %v7498
        %v7500 = vpop.f32.mrb[0].mxu0
        %v7501 = vadd.f32 %v6166, %v7500
        %v7502 = vpop.f32.mrb[0].mxu0
        %v7503 = vadd.f32 %v6162, %v7502
        %v7504 = vpop.f32.mrb[0].mxu0
        %v7505 = vadd.f32 %v6166, %v7504
        %7506 = vmatprep.mubr.bf16.mxu0 0
        %7507 = vmatmul.mubr.bf16.gmra.mrb[0].mxu0 %v5986
        %v7508 = vpop.f32.mrb[0].mxu0
        %v7509 = vadd.f32 %v6162, %v7508
        %v7510 = vpop.f32.mrb[0].mxu0
        %v7511 = vadd.f32 %v6166, %v7510
        %v7512 = vpop.f32.mrb[0].mxu0
        %v7513 = vadd.f32 %v6162, %v7512
        %v7514 = vpop.f32.mrb[0].mxu0
        %v7515 = vadd.f32 %v6166, %v7514
        %7516 = vdwg.mxu0
        %7517 = vmatprep.subr.bf16.mxu0 %v6596
        %7518 = vmatpush1.bf16.msra.mxu0 %v6595
        %7519 = vmatprep.subr.bf16.mxu0 %v6612
        %7520 = vmatpush1.bf16.msra.mxu0 %v6611
        %7521 = vmatprep.subr.bf16.mxu0 %v6628
        %7522 = vmatpush1.bf16.msra.mxu0 %v6627
        %7523 = vmatprep.subr.bf16.mxu0 %v6644
        %7524 = vmatpush1.bf16.msra.mxu0 %v6643
        %7525 = vmatprep.subr.bf16.mxu0 %v6660
        %7526 = vmatpush1.bf16.msra.mxu0 %v6659
        %7527 = vmatprep.subr.bf16.mxu0 %v6676
        %7528 = vmatpush1.bf16.msra.mxu0 %v6675
        %7529 = vmatprep.subr.bf16.mxu0 %v6692
        %7530 = vmatpush1.bf16.msra.mxu0 %v6691
        %7531 = vmatprep.subr.bf16.mxu0 %v6708
        %7532 = vmatpush1.bf16.msra.mxu0 %v6707
        %7533 = vmatprep.subr.bf16.mxu0 0
        %7534 = vmatpush1.bf16.msra.mxu0 0
        %7535 = vmatprep.subr.bf16.mxu0 0
        %7536 = vmatpush1.bf16.msra.mxu0 0
        %7537 = vmatprep.subr.bf16.mxu0 0
        %7538 = vmatpush1.bf16.msra.mxu0 0
        %7539 = vmatprep.subr.bf16.mxu0 0
        %7540 = vmatpush1.bf16.msra.mxu0 0
        %7541 = vmatprep.subr.bf16.mxu0 0
        %7542 = vmatpush1.bf16.msra.mxu0 0
        %7543 = vmatprep.subr.bf16.mxu0 0
        %7544 = vmatpush1.bf16.msra.mxu0 0
        %7545 = vmatprep.subr.bf16.mxu0 0
        %7546 = vmatpush1.bf16.msra.mxu0 0
        %7547 = vmatprep.subr.bf16.mxu0 0
        %7548 = vmatpush1.bf16.msra.mxu0 0
        %7549 = vmatprep.mubr.bf16.mxu0 0
        %7550 = vmatmul.mubr.bf16.gmra.mrb[0].mxu0 %v5979
        %v7551 = vpop.f32.mrb[0].mxu0
        %v7552 = vadd.f32 %v6170, %v7551
        %v7553 = vpop.f32.mrb[0].mxu0
        %v7554 = vadd.f32 %v6174, %v7553
        %v7555 = vpop.f32.mrb[0].mxu0
        %v7556 = vadd.f32 %v6170, %v7555
        %v7557 = vpop.f32.mrb[0].mxu0
        %v7558 = vadd.f32 %v6174, %v7557
        %7559 = vmatprep.mubr.bf16.mxu0 0
        %7560 = vmatmul.mubr.bf16.gmra.mrb[0].mxu0 %v5980
        %v7561 = vpop.f32.mrb[0].mxu0
        %v7562 = vadd.f32 %v6170, %v7561
        %v7563 = vpop.f32.mrb[0].mxu0
        %v7564 = vadd.f32 %v6174, %v7563
        %v7565 = vpop.f32.mrb[0].mxu0
        %v7566 = vadd.f32 %v6170, %v7565
        %v7567 = vpop.f32.mrb[0].mxu0
        %v7568 = vadd.f32 %v6174, %v7567
        %7569 = vmatprep.mubr.bf16.mxu0 0
        %7570 = vmatmul.mubr.bf16.gmra.mrb[0].mxu0 %v5981
        %v7571 = vpop.f32.mrb[0].mxu0
        %v7572 = vadd.f32 %v6170, %v7571
        %v7573 = vpop.f32.mrb[0].mxu0
        %v7574 = vadd.f32 %v6174, %v7573
        %v7575 = vpop.f32.mrb[0].mxu0
        %v7576 = vadd.f32 %v6170, %v7575
        %v7577 = vpop.f32.mrb[0].mxu0
        %v7578 = vadd.f32 %v6174, %v7577
        %7579 = vmatprep.mubr.bf16.mxu0 0
        %7580 = vmatmul.mubr.bf16.gmra.mrb[0].mxu0 %v5982
        %v7581 = vpop.f32.mrb[0].mxu0
        %v7582 = vadd.f32 %v6170, %v7581
        %v7583 = vpop.f32.mrb[0].mxu0
        %v7584 = vadd.f32 %v6174, %v7583
        %v7585 = vpop.f32.mrb[0].mxu0
        %v7586 = vadd.f32 %v6170, %v7585
        %v7587 = vpop.f32.mrb[0].mxu0
        %v7588 = vadd.f32 %v6174, %v7587
        %7589 = vmatprep.mubr.bf16.mxu0 0
        %7590 = vmatmul.mubr.bf16.gmra.mrb[0].mxu0 %v5983
        %v7591 = vpop.f32.mrb[0].mxu0
        %v7592 = vadd.f32 %v6170, %v7591
        %v7593 = vpop.f32.mrb[0].mxu0
        %v7594 = vadd.f32 %v6174, %v7593
        %v7595 = vpop.f32.mrb[0].mxu0
        %v7596 = vadd.f32 %v6170, %v7595
        %v7597 = vpop.f32.mrb[0].mxu0
        %v7598 = vadd.f32 %v6174, %v7597
        %7599 = vmatprep.mubr.bf16.mxu0 0
        %7600 = vmatmul.mubr.bf16.gmra.mrb[0].mxu0 %v5984
        %v7601 = vpop.f32.mrb[0].mxu0
        %v7602 = vadd.f32 %v6170, %v7601
        %v7603 = vpop.f32.mrb[0].mxu0
        %v7604 = vadd.f32 %v6174, %v7603
        %v7605 = vpop.f32.mrb[0].mxu0
        %v7606 = vadd.f32 %v6170, %v7605
        %v7607 = vpop.f32.mrb[0].mxu0
        %v7608 = vadd.f32 %v6174, %v7607
        %7609 = vmatprep.mubr.bf16.mxu0 0
        %7610 = vmatmul.mubr.bf16.gmra.mrb[0].mxu0 %v5985
        %v7611 = vpop.f32.mrb[0].mxu0
        %v7612 = vadd.f32 %v6170, %v7611
        %v7613 = vpop.f32.mrb[0].mxu0
        %v7614 = vadd.f32 %v6174, %v7613
        %v7615 = vpop.f32.mrb[0].mxu0
        %v7616 = vadd.f32 %v6170, %v7615
        %v7617 = vpop.f32.mrb[0].mxu0
        %v7618 = vadd.f32 %v6174, %v7617
        %7619 = vmatprep.mubr.bf16.mxu0 0
        %7620 = vmatmul.mubr.bf16.gmra.mrb[0].mxu0 %v5986
        %v7621 = vpop.f32.mrb[0].mxu0
        %v7622 = vadd.f32 %v6170, %v7621
        %v7623 = vpop.f32.mrb[0].mxu0
        %v7624 = vadd.f32 %v6174, %v7623
        %v7625 = vpop.f32.mrb[0].mxu0
        %v7626 = vadd.f32 %v6170, %v7625
        %v7627 = vpop.f32.mrb[0].mxu0
        %v7628 = vadd.f32 %v6174, %v7627
        %7629 = vdwg.mxu0
        %7630 = vmatprep.subr.bf16.mxu0 %v6598
        %7631 = vmatpush1.bf16.msra.mxu0 %v6597
        %7632 = vmatprep.subr.bf16.mxu0 %v6614
        %7633 = vmatpush1.bf16.msra.mxu0 %v6613
        %7634 = vmatprep.subr.bf16.mxu0 %v6630
        %7635 = vmatpush1.bf16.msra.mxu0 %v6629
        %7636 = vmatprep.subr.bf16.mxu0 %v6646
        %7637 = vmatpush1.bf16.msra.mxu0 %v6645
        %7638 = vmatprep.subr.bf16.mxu0 %v6662
        %7639 = vmatpush1.bf16.msra.mxu0 %v6661
        %7640 = vmatprep.subr.bf16.mxu0 %v6678
        %7641 = vmatpush1.bf16.msra.mxu0 %v6677
        %7642 = vmatprep.subr.bf16.mxu0 %v6694
        %7643 = vmatpush1.bf16.msra.mxu0 %v6693
        %7644 = vmatprep.subr.bf16.mxu0 %v6710
        %7645 = vmatpush1.bf16.msra.mxu0 %v6709
        %7646 = vmatprep.subr.bf16.mxu0 0
        %7647 = vmatpush1.bf16.msra.mxu0 0
        %7648 = vmatprep.subr.bf16.mxu0 0
        %7649 = vmatpush1.bf16.msra.mxu0 0
        %7650 = vmatprep.subr.bf16.mxu0 0
        %7651 = vmatpush1.bf16.msra.mxu0 0
        %7652 = vmatprep.subr.bf16.mxu0 0
        %7653 = vmatpush1.bf16.msra.mxu0 0
        %7654 = vmatprep.subr.bf16.mxu0 0
        %7655 = vmatpush1.bf16.msra.mxu0 0
        %7656 = vmatprep.subr.bf16.mxu0 0
        %7657 = vmatpush1.bf16.msra.mxu0 0
        %7658 = vmatprep.subr.bf16.mxu0 0
        %7659 = vmatpush1.bf16.msra.mxu0 0
        %7660 = vmatprep.subr.bf16.mxu0 0
        %7661 = vmatpush1.bf16.msra.mxu0 0
        %7662 = vmatprep.mubr.bf16.mxu0 0
        %7663 = vmatmul.mubr.bf16.gmra.mrb[0].mxu0 %v5979
        %v7664 = vpop.f32.mrb[0].mxu0
        %v7665 = vadd.f32 %v6178, %v7664
        %v7666 = vpop.f32.mrb[0].mxu0
        %v7667 = vadd.f32 %v6182, %v7666
        %v7668 = vpop.f32.mrb[0].mxu0
        %v7669 = vadd.f32 %v6178, %v7668
        %v7670 = vpop.f32.mrb[0].mxu0
        %v7671 = vadd.f32 %v6182, %v7670
        %7672 = vmatprep.mubr.bf16.mxu0 0
        %7673 = vmatmul.mubr.bf16.gmra.mrb[0].mxu0 %v5980
        %v7674 = vpop.f32.mrb[0].mxu0
        %v7675 = vadd.f32 %v6178, %v7674
        %v7676 = vpop.f32.mrb[0].mxu0
        %v7677 = vadd.f32 %v6182, %v7676
        %v7678 = vpop.f32.mrb[0].mxu0
        %v7679 = vadd.f32 %v6178, %v7678
        %v7680 = vpop.f32.mrb[0].mxu0
        %v7681 = vadd.f32 %v6182, %v7680
        %7682 = vmatprep.mubr.bf16.mxu0 0
        %7683 = vmatmul.mubr.bf16.gmra.mrb[0].mxu0 %v5981
        %v7684 = vpop.f32.mrb[0].mxu0
        %v7685 = vadd.f32 %v6178, %v7684
        %v7686 = vpop.f32.mrb[0].mxu0
        %v7687 = vadd.f32 %v6182, %v7686
        %v7688 = vpop.f32.mrb[0].mxu0
        %v7689 = vadd.f32 %v6178, %v7688
        %v7690 = vpop.f32.mrb[0].mxu0
        %v7691 = vadd.f32 %v6182, %v7690
        %7692 = vmatprep.mubr.bf16.mxu0 0
        %7693 = vmatmul.mubr.bf16.gmra.mrb[0].mxu0 %v5982
        %v7694 = vpop.f32.mrb[0].mxu0
        %v7695 = vadd.f32 %v6178, %v7694
        %v7696 = vpop.f32.mrb[0].mxu0
        %v7697 = vadd.f32 %v6182, %v7696
        %v7698 = vpop.f32.mrb[0].mxu0
        %v7699 = vadd.f32 %v6178, %v7698
        %v7700 = vpop.f32.mrb[0].mxu0
        %v7701 = vadd.f32 %v6182, %v7700
        %7702 = vmatprep.mubr.bf16.mxu0 0
        %7703 = vmatmul.mubr.bf16.gmra.mrb[0].mxu0 %v5983
        %v7704 = vpop.f32.mrb[0].mxu0
        %v7705 = vadd.f32 %v6178, %v7704
        %v7706 = vpop.f32.mrb[0].mxu0
        %v7707 = vadd.f32 %v6182, %v7706
        %v7708 = vpop.f32.mrb[0].mxu0
        %v7709 = vadd.f32 %v6178, %v7708
        %v7710 = vpop.f32.mrb[0].mxu0
        %v7711 = vadd.f32 %v6182, %v7710
        %7712 = vmatprep.mubr.bf16.mxu0 0
        %7713 = vmatmul.mubr.bf16.gmra.mrb[0].mxu0 %v5984
        %v7714 = vpop.f32.mrb[0].mxu0
        %v7715 = vadd.f32 %v6178, %v7714
        %v7716 = vpop.f32.mrb[0].mxu0
        %v7717 = vadd.f32 %v6182, %v7716
        %v7718 = vpop.f32.mrb[0].mxu0
        %v7719 = vadd.f32 %v6178, %v7718
        %v7720 = vpop.f32.mrb[0].mxu0
        %v7721 = vadd.f32 %v6182, %v7720
        %7722 = vmatprep.mubr.bf16.mxu0 0
        %7723 = vmatmul.mubr.bf16.gmra.mrb[0].mxu0 %v5985
        %v7724 = vpop.f32.mrb[0].mxu0
        %v7725 = vadd.f32 %v6178, %v7724
        %v7726 = vpop.f32.mrb[0].mxu0
        %v7727 = vadd.f32 %v6182, %v7726
        %v7728 = vpop.f32.mrb[0].mxu0
        %v7729 = vadd.f32 %v6178, %v7728
        %v7730 = vpop.f32.mrb[0].mxu0
        %v7731 = vadd.f32 %v6182, %v7730
        %7732 = vmatprep.mubr.bf16.mxu0 0
        %7733 = vmatmul.mubr.bf16.gmra.mrb[0].mxu0 %v5986
        %v7734 = vpop.f32.mrb[0].mxu0
        %v7735 = vadd.f32 %v6178, %v7734
        %v7736 = vpop.f32.mrb[0].mxu0
        %v7737 = vadd.f32 %v6182, %v7736
        %v7738 = vpop.f32.mrb[0].mxu0
        %v7739 = vadd.f32 %v6178, %v7738
        %v7740 = vpop.f32.mrb[0].mxu0
        %v7741 = vadd.f32 %v6182, %v7740
        %7742 = vdwg.mxu0
        %7743 = vst [vmem:[%s296] sm:$0xff] %v6874
        %7744 = vst [vmem:[%s296 + $0x8] sm:$0xff] %v6876
        %7745 = vst [vmem:[%s296 + $0x10] sm:$0xff] %v6987
        %7746 = vst [vmem:[%s296 + $0x18] sm:$0xff] %v6989
        %7747 = vst [vmem:[%s296 + $0x20] sm:$0xff] %v7100
        %7748 = vst [vmem:[%s296 + $0x28] sm:$0xff] %v7102
        %7749 = vst [vmem:[%s296 + $0x30] sm:$0xff] %v7213
        %7750 = vst [vmem:[%s296 + $0x38] sm:$0xff] %v7215
        %7751 = vst [vmem:[%s296 + $0x40] sm:$0xff] %v7326
        %7752 = vst [vmem:[%s296 + $0x48] sm:$0xff] %v7328
        %7753 = vst [vmem:[%s296 + $0x50] sm:$0xff] %v7439
        %7754 = vst [vmem:[%s296 + $0x58] sm:$0xff] %v7441
        %7755 = vst [vmem:[%s296 + $0x60] sm:$0xff] %v7552
        %7756 = vst [vmem:[%s296 + $0x68] sm:$0xff] %v7554
        %7757 = vst [vmem:[%s296 + $0x70] sm:$0xff] %v7665
        %7758 = vst [vmem:[%s296 + $0x78] sm:$0xff] %v7667
        %7759 = vst [vmem:[%s296 + $0x80] sm:$0xff] %v6878
        %7760 = vst [vmem:[%s296 + $0x88] sm:$0xff] %v6880
        %7761 = vst [vmem:[%s296 + $0x90] sm:$0xff] %v6991
        %7762 = vst [vmem:[%s296 + $0x98] sm:$0xff] %v6993
        %7763 = vst [vmem:[%s296 + $0xa0] sm:$0xff] %v7104
        %7764 = vst [vmem:[%s296 + $0xa8] sm:$0xff] %v7106
        %7765 = vst [vmem:[%s296 + $0xb0] sm:$0xff] %v7217
        %7766 = vst [vmem:[%s296 + $0xb8] sm:$0xff] %v7219
        %7767 = vst [vmem:[%s296 + $0xc0] sm:$0xff] %v7330
        %7768 = vst [vmem:[%s296 + $0xc8] sm:$0xff] %v7332
        %7769 = vst [vmem:[%s296 + $0xd0] sm:$0xff] %v7443
        %7770 = vst [vmem:[%s296 + $0xd8] sm:$0xff] %v7445
        %7771 = vst [vmem:[%s296 + $0xe0] sm:$0xff] %v7556
        %7772 = vst [vmem:[%s296 + $0xe8] sm:$0xff] %v7558
        %7773 = vst [vmem:[%s296 + $0xf0] sm:$0xff] %v7669
        %7774 = vst [vmem:[%s296 + $0xf8] sm:$0xff] %v7671
        %7775 = vst [vmem:[%s296 + $0x100] sm:$0xff] %v6884
        %7776 = vst [vmem:[%s296 + $0x108] sm:$0xff] %v6886
        %7777 = vst [vmem:[%s296 + $0x110] sm:$0xff] %v6997
        %7778 = vst [vmem:[%s296 + $0x118] sm:$0xff] %v6999
        %7779 = vst [vmem:[%s296 + $0x120] sm:$0xff] %v7110
        %7780 = vst [vmem:[%s296 + $0x128] sm:$0xff] %v7112
        %7781 = vst [vmem:[%s296 + $0x130] sm:$0xff] %v7223
        %7782 = vst [vmem:[%s296 + $0x138] sm:$0xff] %v7225
        %7783 = vst [vmem:[%s296 + $0x140] sm:$0xff] %v7336
        %7784 = vst [vmem:[%s296 + $0x148] sm:$0xff] %v7338
        %7785 = vst [vmem:[%s296 + $0x150] sm:$0xff] %v7449
        %7786 = vst [vmem:[%s296 + $0x158] sm:$0xff] %v7451
        %7787 = vst [vmem:[%s296 + $0x160] sm:$0xff] %v7562
        %7788 = vst [vmem:[%s296 + $0x168] sm:$0xff] %v7564
        %7789 = vst [vmem:[%s296 + $0x170] sm:$0xff] %v7675
        %7790 = vst [vmem:[%s296 + $0x178] sm:$0xff] %v7677
        %7791 = vst [vmem:[%s296 + $0x180] sm:$0xff] %v6888
        %7792 = vst [vmem:[%s296 + $0x188] sm:$0xff] %v6890
        %7793 = vst [vmem:[%s296 + $0x190] sm:$0xff] %v7001
        %7794 = vst [vmem:[%s296 + $0x198] sm:$0xff] %v7003
        %7795 = vst [vmem:[%s296 + $0x1a0] sm:$0xff] %v7114
        %7796 = vst [vmem:[%s296 + $0x1a8] sm:$0xff] %v7116
        %7797 = vst [vmem:[%s296 + $0x1b0] sm:$0xff] %v7227
        %7798 = vst [vmem:[%s296 + $0x1b8] sm:$0xff] %v7229
        %7799 = vst [vmem:[%s296 + $0x1c0] sm:$0xff] %v7340
        %7800 = vst [vmem:[%s296 + $0x1c8] sm:$0xff] %v7342
        %7801 = vst [vmem:[%s296 + $0x1d0] sm:$0xff] %v7453
        %7802 = vst [vmem:[%s296 + $0x1d8] sm:$0xff] %v7455
        %7803 = vst [vmem:[%s296 + $0x1e0] sm:$0xff] %v7566
        %7804 = vst [vmem:[%s296 + $0x1e8] sm:$0xff] %v7568
        %7805 = vst [vmem:[%s296 + $0x1f0] sm:$0xff] %v7679
        %7806 = vst [vmem:[%s296 + $0x1f8] sm:$0xff] %v7681
        %7807 = vst [vmem:[%s296 + $0x200] sm:$0xff] %v6894
        %7808 = vst [vmem:[%s296 + $0x208] sm:$0xff] %v6896
        %7809 = vst [vmem:[%s296 + $0x210] sm:$0xff] %v7007
        %7810 = vst [vmem:[%s296 + $0x218] sm:$0xff] %v7009
        %7811 = vst [vmem:[%s296 + $0x220] sm:$0xff] %v7120
        %7812 = vst [vmem:[%s296 + $0x228] sm:$0xff] %v7122
        %7813 = vst [vmem:[%s296 + $0x230] sm:$0xff] %v7233
        %7814 = vst [vmem:[%s296 + $0x238] sm:$0xff] %v7235
        %7815 = vst [vmem:[%s296 + $0x240] sm:$0xff] %v7346
        %7816 = vst [vmem:[%s296 + $0x248] sm:$0xff] %v7348
        %7817 = vst [vmem:[%s296 + $0x250] sm:$0xff] %v7459
        %7818 = vst [vmem:[%s296 + $0x258] sm:$0xff] %v7461
        %7819 = vst [vmem:[%s296 + $0x260] sm:$0xff] %v7572
        %7820 = vst [vmem:[%s296 + $0x268] sm:$0xff] %v7574
        %7821 = vst [vmem:[%s296 + $0x270] sm:$0xff] %v7685
        %7822 = vst [vmem:[%s296 + $0x278] sm:$0xff] %v7687
        %7823 = vst [vmem:[%s296 + $0x280] sm:$0xff] %v6898
        %7824 = vst [vmem:[%s296 + $0x288] sm:$0xff] %v6900
        %7825 = vst [vmem:[%s296 + $0x290] sm:$0xff] %v7011
        %7826 = vst [vmem:[%s296 + $0x298] sm:$0xff] %v7013
        %7827 = vst [vmem:[%s296 + $0x2a0] sm:$0xff] %v7124
        %7828 = vst [vmem:[%s296 + $0x2a8] sm:$0xff] %v7126
        %7829 = vst [vmem:[%s296 + $0x2b0] sm:$0xff] %v7237
        %7830 = vst [vmem:[%s296 + $0x2b8] sm:$0xff] %v7239
        %7831 = vst [vmem:[%s296 + $0x2c0] sm:$0xff] %v7350
        %7832 = vst [vmem:[%s296 + $0x2c8] sm:$0xff] %v7352
        %7833 = vst [vmem:[%s296 + $0x2d0] sm:$0xff] %v7463
        %7834 = vst [vmem:[%s296 + $0x2d8] sm:$0xff] %v7465
        %7835 = vst [vmem:[%s296 + $0x2e0] sm:$0xff] %v7576
        %7836 = vst [vmem:[%s296 + $0x2e8] sm:$0xff] %v7578
        %7837 = vst [vmem:[%s296 + $0x2f0] sm:$0xff] %v7689
        %7838 = vst [vmem:[%s296 + $0x2f8] sm:$0xff] %v7691
        %7839 = vst [vmem:[%s296 + $0x300] sm:$0xff] %v6904
        %7840 = vst [vmem:[%s296 + $0x308] sm:$0xff] %v6906
        %7841 = vst [vmem:[%s296 + $0x310] sm:$0xff] %v7017
        %7842 = vst [vmem:[%s296 + $0x318] sm:$0xff] %v7019
        %7843 = vst [vmem:[%s296 + $0x320] sm:$0xff] %v7130
        %7844 = vst [vmem:[%s296 + $0x328] sm:$0xff] %v7132
        %7845 = vst [vmem:[%s296 + $0x330] sm:$0xff] %v7243
        %7846 = vst [vmem:[%s296 + $0x338] sm:$0xff] %v7245
        %7847 = vst [vmem:[%s296 + $0x340] sm:$0xff] %v7356
        %7848 = vst [vmem:[%s296 + $0x348] sm:$0xff] %v7358
        %7849 = vst [vmem:[%s296 + $0x350] sm:$0xff] %v7469
        %7850 = vst [vmem:[%s296 + $0x358] sm:$0xff] %v7471
        %7851 = vst [vmem:[%s296 + $0x360] sm:$0xff] %v7582
        %7852 = vst [vmem:[%s296 + $0x368] sm:$0xff] %v7584
        %7853 = vst [vmem:[%s296 + $0x370] sm:$0xff] %v7695
        %7854 = vst [vmem:[%s296 + $0x378] sm:$0xff] %v7697
        %7855 = vst [vmem:[%s296 + $0x380] sm:$0xff] %v6908
        %7856 = vst [vmem:[%s296 + $0x388] sm:$0xff] %v6910
        %7857 = vst [vmem:[%s296 + $0x390] sm:$0xff] %v7021
        %7858 = vst [vmem:[%s296 + $0x398] sm:$0xff] %v7023
        %7859 = vst [vmem:[%s296 + $0x3a0] sm:$0xff] %v7134
        %7860 = vst [vmem:[%s296 + $0x3a8] sm:$0xff] %v7136
        %7861 = vst [vmem:[%s296 + $0x3b0] sm:$0xff] %v7247
        %7862 = vst [vmem:[%s296 + $0x3b8] sm:$0xff] %v7249
        %7863 = vst [vmem:[%s296 + $0x3c0] sm:$0xff] %v7360
        %7864 = vst [vmem:[%s296 + $0x3c8] sm:$0xff] %v7362
        %7865 = vst [vmem:[%s296 + $0x3d0] sm:$0xff] %v7473
        %7866 = vst [vmem:[%s296 + $0x3d8] sm:$0xff] %v7475
        %7867 = vst [vmem:[%s296 + $0x3e0] sm:$0xff] %v7586
        %7868 = vst [vmem:[%s296 + $0x3e8] sm:$0xff] %v7588
        %7869 = vst [vmem:[%s296 + $0x3f0] sm:$0xff] %v7699
        %7870 = vst [vmem:[%s296 + $0x3f8] sm:$0xff] %v7701
        %7871 = vst [vmem:[%s296 + $0x400] sm:$0xff] %v6914
        %7872 = vst [vmem:[%s296 + $0x408] sm:$0xff] %v6916
        %7873 = vst [vmem:[%s296 + $0x410] sm:$0xff] %v7027
        %7874 = vst [vmem:[%s296 + $0x418] sm:$0xff] %v7029
        %7875 = vst [vmem:[%s296 + $0x420] sm:$0xff] %v7140
        %7876 = vst [vmem:[%s296 + $0x428] sm:$0xff] %v7142
        %7877 = vst [vmem:[%s296 + $0x430] sm:$0xff] %v7253
        %7878 = vst [vmem:[%s296 + $0x438] sm:$0xff] %v7255
        %7879 = vst [vmem:[%s296 + $0x440] sm:$0xff] %v7366
        %7880 = vst [vmem:[%s296 + $0x448] sm:$0xff] %v7368
        %7881 = vst [vmem:[%s296 + $0x450] sm:$0xff] %v7479
        %7882 = vst [vmem:[%s296 + $0x458] sm:$0xff] %v7481
        %7883 = vst [vmem:[%s296 + $0x460] sm:$0xff] %v7592
        %7884 = vst [vmem:[%s296 + $0x468] sm:$0xff] %v7594
        %7885 = vst [vmem:[%s296 + $0x470] sm:$0xff] %v7705
        %7886 = vst [vmem:[%s296 + $0x478] sm:$0xff] %v7707
        %7887 = vst [vmem:[%s296 + $0x480] sm:$0xff] %v6918
        %7888 = vst [vmem:[%s296 + $0x488] sm:$0xff] %v6920
        %7889 = vst [vmem:[%s296 + $0x490] sm:$0xff] %v7031
        %7890 = vst [vmem:[%s296 + $0x498] sm:$0xff] %v7033
        %7891 = vst [vmem:[%s296 + $0x4a0] sm:$0xff] %v7144
        %7892 = vst [vmem:[%s296 + $0x4a8] sm:$0xff] %v7146
        %7893 = vst [vmem:[%s296 + $0x4b0] sm:$0xff] %v7257
        %7894 = vst [vmem:[%s296 + $0x4b8] sm:$0xff] %v7259
        %7895 = vst [vmem:[%s296 + $0x4c0] sm:$0xff] %v7370
        %7896 = vst [vmem:[%s296 + $0x4c8] sm:$0xff] %v7372
        %7897 = vst [vmem:[%s296 + $0x4d0] sm:$0xff] %v7483
        %7898 = vst [vmem:[%s296 + $0x4d8] sm:$0xff] %v7485
        %7899 = vst [vmem:[%s296 + $0x4e0] sm:$0xff] %v7596
        %7900 = vst [vmem:[%s296 + $0x4e8] sm:$0xff] %v7598
        %7901 = vst [vmem:[%s296 + $0x4f0] sm:$0xff] %v7709
        %7902 = vst [vmem:[%s296 + $0x4f8] sm:$0xff] %v7711
        %7903 = vst [vmem:[%s296 + $0x500] sm:$0xff] %v6924
        %7904 = vst [vmem:[%s296 + $0x508] sm:$0xff] %v6926
        %7905 = vst [vmem:[%s296 + $0x510] sm:$0xff] %v7037
        %7906 = vst [vmem:[%s296 + $0x518] sm:$0xff] %v7039
        %7907 = vst [vmem:[%s296 + $0x520] sm:$0xff] %v7150
        %7908 = vst [vmem:[%s296 + $0x528] sm:$0xff] %v7152
        %7909 = vst [vmem:[%s296 + $0x530] sm:$0xff] %v7263
        %7910 = vst [vmem:[%s296 + $0x538] sm:$0xff] %v7265
        %7911 = vst [vmem:[%s296 + $0x540] sm:$0xff] %v7376
        %7912 = vst [vmem:[%s296 + $0x548] sm:$0xff] %v7378
        %7913 = vst [vmem:[%s296 + $0x550] sm:$0xff] %v7489
        %7914 = vst [vmem:[%s296 + $0x558] sm:$0xff] %v7491
        %7915 = vst [vmem:[%s296 + $0x560] sm:$0xff] %v7602
        %7916 = vst [vmem:[%s296 + $0x568] sm:$0xff] %v7604
        %7917 = vst [vmem:[%s296 + $0x570] sm:$0xff] %v7715
        %7918 = vst [vmem:[%s296 + $0x578] sm:$0xff] %v7717
        %7919 = vst [vmem:[%s296 + $0x580] sm:$0xff] %v6928
        %7920 = vst [vmem:[%s296 + $0x588] sm:$0xff] %v6930
        %7921 = vst [vmem:[%s296 + $0x590] sm:$0xff] %v7041
        %7922 = vst [vmem:[%s296 + $0x598] sm:$0xff] %v7043
        %7923 = vst [vmem:[%s296 + $0x5a0] sm:$0xff] %v7154
        %7924 = vst [vmem:[%s296 + $0x5a8] sm:$0xff] %v7156
        %7925 = vst [vmem:[%s296 + $0x5b0] sm:$0xff] %v7267
        %7926 = vst [vmem:[%s296 + $0x5b8] sm:$0xff] %v7269
        %7927 = vst [vmem:[%s296 + $0x5c0] sm:$0xff] %v7380
        %7928 = vst [vmem:[%s296 + $0x5c8] sm:$0xff] %v7382
        %7929 = vst [vmem:[%s296 + $0x5d0] sm:$0xff] %v7493
        %7930 = vst [vmem:[%s296 + $0x5d8] sm:$0xff] %v7495
        %7931 = vst [vmem:[%s296 + $0x5e0] sm:$0xff] %v7606
        %7932 = vst [vmem:[%s296 + $0x5e8] sm:$0xff] %v7608
        %7933 = vst [vmem:[%s296 + $0x5f0] sm:$0xff] %v7719
        %7934 = vst [vmem:[%s296 + $0x5f8] sm:$0xff] %v7721
        %7935 = vst [vmem:[%s296 + $0x600] sm:$0xff] %v6934
        %7936 = vst [vmem:[%s296 + $0x608] sm:$0xff] %v6936
        %7937 = vst [vmem:[%s296 + $0x610] sm:$0xff] %v7047
        %7938 = vst [vmem:[%s296 + $0x618] sm:$0xff] %v7049
        %7939 = vst [vmem:[%s296 + $0x620] sm:$0xff] %v7160
        %7940 = vst [vmem:[%s296 + $0x628] sm:$0xff] %v7162
        %7941 = vst [vmem:[%s296 + $0x630] sm:$0xff] %v7273
        %7942 = vst [vmem:[%s296 + $0x638] sm:$0xff] %v7275
        %7943 = vst [vmem:[%s296 + $0x640] sm:$0xff] %v7386
        %7944 = vst [vmem:[%s296 + $0x648] sm:$0xff] %v7388
        %7945 = vst [vmem:[%s296 + $0x650] sm:$0xff] %v7499
        %7946 = vst [vmem:[%s296 + $0x658] sm:$0xff] %v7501
        %7947 = vst [vmem:[%s296 + $0x660] sm:$0xff] %v7612
        %7948 = vst [vmem:[%s296 + $0x668] sm:$0xff] %v7614
        %7949 = vst [vmem:[%s296 + $0x670] sm:$0xff] %v7725
        %7950 = vst [vmem:[%s296 + $0x678] sm:$0xff] %v7727
        %7951 = vst [vmem:[%s296 + $0x680] sm:$0xff] %v6938
        %7952 = vst [vmem:[%s296 + $0x688] sm:$0xff] %v6940
        %7953 = vst [vmem:[%s296 + $0x690] sm:$0xff] %v7051
        %7954 = vst [vmem:[%s296 + $0x698] sm:$0xff] %v7053
        %7955 = vst [vmem:[%s296 + $0x6a0] sm:$0xff] %v7164
        %7956 = vst [vmem:[%s296 + $0x6a8] sm:$0xff] %v7166
        %7957 = vst [vmem:[%s296 + $0x6b0] sm:$0xff] %v7277
        %7958 = vst [vmem:[%s296 + $0x6b8] sm:$0xff] %v7279
        %7959 = vst [vmem:[%s296 + $0x6c0] sm:$0xff] %v7390
        %7960 = vst [vmem:[%s296 + $0x6c8] sm:$0xff] %v7392
        %7961 = vst [vmem:[%s296 + $0x6d0] sm:$0xff] %v7503
        %7962 = vst [vmem:[%s296 + $0x6d8] sm:$0xff] %v7505
        %7963 = vst [vmem:[%s296 + $0x6e0] sm:$0xff] %v7616
        %7964 = vst [vmem:[%s296 + $0x6e8] sm:$0xff] %v7618
        %7965 = vst [vmem:[%s296 + $0x6f0] sm:$0xff] %v7729
        %7966 = vst [vmem:[%s296 + $0x6f8] sm:$0xff] %v7731
        %7967 = vst [vmem:[%s296 + $0x700] sm:$0xff] %v6944
        %7968 = vst [vmem:[%s296 + $0x708] sm:$0xff] %v6946
        %7969 = vst [vmem:[%s296 + $0x710] sm:$0xff] %v7057
        %7970 = vst [vmem:[%s296 + $0x718] sm:$0xff] %v7059
        %7971 = vst [vmem:[%s296 + $0x720] sm:$0xff] %v7170
        %7972 = vst [vmem:[%s296 + $0x728] sm:$0xff] %v7172
        %7973 = vst [vmem:[%s296 + $0x730] sm:$0xff] %v7283
        %7974 = vst [vmem:[%s296 + $0x738] sm:$0xff] %v7285
        %7975 = vst [vmem:[%s296 + $0x740] sm:$0xff] %v7396
        %7976 = vst [vmem:[%s296 + $0x748] sm:$0xff] %v7398
        %7977 = vst [vmem:[%s296 + $0x750] sm:$0xff] %v7509
        %7978 = vst [vmem:[%s296 + $0x758] sm:$0xff] %v7511
        %7979 = vst [vmem:[%s296 + $0x760] sm:$0xff] %v7622
        %7980 = vst [vmem:[%s296 + $0x768] sm:$0xff] %v7624
        %7981 = vst [vmem:[%s296 + $0x770] sm:$0xff] %v7735
        %7982 = vst [vmem:[%s296 + $0x778] sm:$0xff] %v7737
        %7983 = vst [vmem:[%s296 + $0x780] sm:$0xff] %v6948
        %7984 = vst [vmem:[%s296 + $0x788] sm:$0xff] %v6950
        %7985 = vst [vmem:[%s296 + $0x790] sm:$0xff] %v7061
        %7986 = vst [vmem:[%s296 + $0x798] sm:$0xff] %v7063
        %7987 = vst [vmem:[%s296 + $0x7a0] sm:$0xff] %v7174
        %7988 = vst [vmem:[%s296 + $0x7a8] sm:$0xff] %v7176
        %7989 = vst [vmem:[%s296 + $0x7b0] sm:$0xff] %v7287
        %7990 = vst [vmem:[%s296 + $0x7b8] sm:$0xff] %v7289
        %7991 = vst [vmem:[%s296 + $0x7c0] sm:$0xff] %v7400
        %7992 = vst [vmem:[%s296 + $0x7c8] sm:$0xff] %v7402
        %7993 = vst [vmem:[%s296 + $0x7d0] sm:$0xff] %v7513
        %7994 = vst [vmem:[%s296 + $0x7d8] sm:$0xff] %v7515
        %7995 = vst [vmem:[%s296 + $0x7e0] sm:$0xff] %v7626
        %7996 = vst [vmem:[%s296 + $0x7e8] sm:$0xff] %v7628
        %7997 = vst [vmem:[%s296 + $0x7f0] sm:$0xff] %v7739
        %7998 = vst [vmem:[%s296 + $0x7f8] sm:$0xff] %v7741
        %s7999 = sand.u32 %s142, 1
        %s8000 = scalar_lea.sflag [#allocation4], %s7999
        %s8001 = sand.u32 %s142, 1
        %s8002 = smul.addr %s8001, 2048
        %s8003 = scalar_lea.vmem [#allocation11], %s8002
        // Predicated region
        $region61: #{tpu_custom_call.1} parent=39 // pred_check
          %p8004 = pneg %p152
        $region62: #{tpu_custom_call.1} parent=39 // pred_check_branch
          %8006 = sbr.rel (%p8004) target = $region64
        $region63: #{tpu_custom_call.1} parent=39 // pred_region
          %s8008 = ssub.s32 32768, 32768
          %8009 = vsyncadd %s8000, %s8008
          %s8010 = smul.addr %s24, 256
          %s8011 = smul.addr %s8010, 128
          %s8012 = scalar_lea.hbm %s5, %s8011
          %s8013 = sshll.u32 %s8003, 4
          %s8014 = int_to_ptr.vmem [resolvable:$true] %s8013
          %8019 = dma.vmem_to_hbm [thread:$0]  %s8014, 32768, %s8012, %s8000, 2048, 2048, 128
        $region64: #{tpu_custom_call.1} parent=39 // pred_fallthru
          _
      $region40: #{tpu_custom_call.1} parent=5 // pred_fallthru
        _
      %p8020 = scmp.le.s32.totalorder 2, %s19
      // Predicated region
      $region65: #{tpu_custom_call.1} parent=5 // pred_check
        %p8021 = pneg %p8020
      $region66: #{tpu_custom_call.1} parent=5 // pred_check_branch
        %8023 = sbr.rel (%p8021) target = $region68
      $region67: #{tpu_custom_call.1} parent=5 // pred_region
        %s8024 = ssub.s32 %s19, 2
        // Predicated region
        $region69: #{tpu_custom_call.1} parent=67 // pred_check
          %p8025 = pneg %p158
        $region70: #{tpu_custom_call.1} parent=67 // pred_check_branch
          %8027 = sbr.rel (%p8025) target = $region72
        $region71: #{tpu_custom_call.1} parent=67 // pred_region
          %s8028 = sand.u32 %s143, 1
          %s8029 = scalar_lea.sflag [#allocation4], %s8028
          %s8030 = sand.u32 %s143, 1
          %s8031 = smul.addr %s8030, 2048
          %s8032 = scalar_lea.vmem [#allocation11], %s8031
          %8033 = dma.done %s8029, 32768
        $region72: #{tpu_custom_call.1} parent=67 // pred_fallthru
          _
      $region68: #{tpu_custom_call.1} parent=5 // pred_fallthru
        _
    $region6: #{tpu_custom_call.1} parent=1 // loop_footer
      %s23 = sadd.s32 1, %s19
    $region7: #{tpu_custom_call.1} parent=1 // loop_footer_branch
      %18 = sbr.rel target = $region3
    $region8: #{tpu_custom_call.1} parent=1 // loop_exit
      _
    %8034 = vsyncpa [#allocation3], 1
    %s8035 = scalar_lea.sflag [#allocation3], 1
    %8036 = vsyncpa %s8035, 1
    %8037 = vsyncpa [#allocation6], 1
    %8038 = vsyncpa [#allocation9], 1
    %8039 = vsyncpa [#allocation4], 1
    %s8040 = scalar_lea.sflag [#allocation4], 1
    %8041 = vsyncpa %s8040, 1

</llo_original>
